<compile_context>
chip_gen: v5e
topology: v5e:2x2
jax: 0.10.0
libtpu: 0.0.40
codegen_flags: <defaults>
</compile_context>

<pallas_src>
import functools

import jax
import jax.numpy as jnp
from jax.experimental import pallas as pl
from jax.experimental.pallas import tpu as pltpu


def _round_up(n, m):
    return ((n + m - 1) // m) * m


def _row_tile(n, max_tile=256):
    # MXU-friendly row tile: 256 for large N, otherwise one 8-aligned block.
    return max_tile if n >= max_tile else _round_up(n, 8)


def _pad_rows(x2d, tm):
    n = x2d.shape[0]
    pad = _round_up(n, tm) - n
    if pad:
        x2d = jnp.pad(x2d, ((0, pad), (0, 0)))
    return x2d


# ---------------------------------------------------------------------------
# Kernels
# ---------------------------------------------------------------------------

def _linear_kernel(x_ref, w_ref, b_ref, o_ref):
    # x:(tm,Din)  w:(Din,Dout)  b:(1,Dout)  o:(tm,Dout)
    y = jnp.dot(x_ref[...], w_ref[...], preferred_element_type=jnp.float32)
    y = y + b_ref[...].astype(jnp.float32)
    o_ref[...] = y.astype(o_ref.dtype)


def _linear_residual_kernel(x_ref, w_ref, b_ref, r_ref, o_ref):
    # o = res + x @ W + b
    y = jnp.dot(x_ref[...], w_ref[...], preferred_element_type=jnp.float32)
    y = y + b_ref[...].astype(jnp.float32) + r_ref[...].astype(jnp.float32)
    o_ref[...] = y.astype(o_ref.dtype)


def _layernorm_rows(x_f32, g_ref, b_ref, eps):
    mean = jnp.mean(x_f32, axis=-1, keepdims=True)
    xc = x_f32 - mean
    var = jnp.mean(xc * xc, axis=-1, keepdims=True)
    y = xc * jax.lax.rsqrt(var + eps)
    return y * g_ref[...].astype(jnp.float32) + b_ref[...].astype(jnp.float32)


def _layernorm_kernel(x_ref, g_ref, b_ref, o_ref, *, eps):
    y = _layernorm_rows(x_ref[...].astype(jnp.float32), g_ref, b_ref, eps)
    o_ref[...] = y.astype(o_ref.dtype)


def _ln_linear_kernel(x_ref, g_ref, bln_ref, w_ref, b_ref, o_ref, *, eps):
    # o = LN(x) @ W + b   (fused ln_1 + QKV projection)
    xn = _layernorm_rows(x_ref[...].astype(jnp.float32), g_ref, bln_ref, eps)
    y = jnp.dot(xn.astype(w_ref.dtype), w_ref[...],
                preferred_element_type=jnp.float32)
    o_ref[...] = (y + b_ref[...].astype(jnp.float32)).astype(o_ref.dtype)


def _erf(x):
    # Abramowitz & Stegun 7.1.26 polynomial erf (|err| <= 1.5e-7): exact-GELU
    # semantics to f32 accuracy using only EUP/VPU-supported primitives.
    p = 0.3275911
    a1, a2, a3, a4, a5 = (0.254829592, -0.284496736, 1.421413741,
                          -1.453152027, 1.061405429)
    sgn = jnp.where(x >= 0.0, 1.0, -1.0)
    ax = jnp.abs(x)
    t = 1.0 / (1.0 + p * ax)
    poly = ((((a5 * t + a4) * t + a3) * t + a2) * t + a1) * t
    return sgn * (1.0 - poly * jnp.exp(-ax * ax))


def _gelu_exact(x):
    return 0.5 * x * (1.0 + _erf(x * 0.7071067811865476))


def _ln_mlp_residual_kernel(x_ref, g_ref, bln_ref, w1_ref, b1_ref, w2_ref,
                            b2_ref, o_ref, *, eps):
    # o = x + GELU(LN(x) @ W1 + b1) @ W2 + b2   (fused ln_2 + MLP + residual)
    xf = x_ref[...].astype(jnp.float32)
    xn = _layernorm_rows(xf, g_ref, bln_ref, eps)
    h = jnp.dot(xn.astype(w1_ref.dtype), w1_ref[...],
                preferred_element_type=jnp.float32)
    h = _gelu_exact(h + b1_ref[...].astype(jnp.float32))
    y = jnp.dot(h.astype(w2_ref.dtype), w2_ref[...],
                preferred_element_type=jnp.float32)
    o_ref[...] = (xf + y + b2_ref[...].astype(jnp.float32)).astype(o_ref.dtype)


def _mha_fused_kernel(qkv_ref, m_ref, o_ref, *, num_heads, width, scale):
    # One batch element per grid step.  qkv:(1,S,3W) packed [Q|K|V], mask:(S,S),
    # output:(1,S,W) with all heads merged in-kernel -> lane-dense store.
    qkv = qkv_ref[0]                                            # (S, 3W)
    mask = m_ref[...]                                           # (S, S) f32
    dh = width // num_heads
    head_outs = []
    for h in range(num_heads):
        q = qkv[:, h * dh:(h + 1) * dh].astype(jnp.float32) * scale
        k = qkv[:, width + h * dh: width + (h + 1) * dh].astype(jnp.float32)
        v = qkv[:, 2 * width + h * dh: 2 * width + (h + 1) * dh]
        s = jnp.dot(q, k.T, preferred_element_type=jnp.float32) + mask
        s = s - jnp.max(s, axis=-1, keepdims=True)
        p = jnp.exp(s)
        p = p / jnp.sum(p, axis=-1, keepdims=True)
        head_outs.append(
            jnp.dot(p.astype(v.dtype), v, preferred_element_type=jnp.float32))
    o_ref[0] = jnp.concatenate(head_outs, axis=-1).astype(o_ref.dtype)


# ---------------------------------------------------------------------------
# pallas_call wrappers
# ---------------------------------------------------------------------------

def linear_pallas(x2d, w_t, b):
    """y = x2d @ w_t + b.   x2d:(N,Din)  w_t:(Din,Dout)  b:(Dout,)."""
    n, din = x2d.shape
    dout = w_t.shape[1]
    tm = _row_tile(n)
    xp = _pad_rows(x2d, tm)
    rows = xp.shape[0]
    itm = x2d.dtype.itemsize
    cost = pl.CostEstimate(
        flops=2 * rows * din * dout,
        transcendentals=0,
        bytes_accessed=itm * (rows * din + din * dout + rows * dout + dout))
    out = pl.pallas_call(
        _linear_kernel,
        out_shape=jax.ShapeDtypeStruct((rows, dout), x2d.dtype),
        grid_spec=pltpu.PrefetchScalarGridSpec(
            num_scalar_prefetch=0,
            grid=(rows // tm,),
            in_specs=[
                pl.BlockSpec((tm, din), lambda i: (i, 0)),
                pl.BlockSpec((din, dout), lambda i: (0, 0)),   # resident weight
                pl.BlockSpec((1, dout), lambda i: (0, 0)),
            ],
            out_specs=pl.BlockSpec((tm, dout), lambda i: (i, 0)),
        ),
        compiler_params=pltpu.CompilerParams(dimension_semantics=("parallel",)),
        cost_estimate=cost,
    )(xp, w_t, b.reshape(1, dout))
    return out[:n]


def linear_residual_pallas(x2d, w_t, b, res2d):
    """y = res2d + x2d @ w_t + b."""
    n, din = x2d.shape
    dout = w_t.shape[1]
    tm = _row_tile(n)
    xp = _pad_rows(x2d, tm)
    rp = _pad_rows(res2d, tm)
    rows = xp.shape[0]
    itm = x2d.dtype.itemsize
    cost = pl.CostEstimate(
        flops=2 * rows * din * dout + rows * dout,
        transcendentals=0,
        bytes_accessed=itm * (rows * din + din * dout + 2 * rows * dout + dout))
    out = pl.pallas_call(
        _linear_residual_kernel,
        out_shape=jax.ShapeDtypeStruct((rows, dout), x2d.dtype),
        grid_spec=pltpu.PrefetchScalarGridSpec(
            num_scalar_prefetch=0,
            grid=(rows // tm,),
            in_specs=[
                pl.BlockSpec((tm, din), lambda i: (i, 0)),
                pl.BlockSpec((din, dout), lambda i: (0, 0)),
                pl.BlockSpec((1, dout), lambda i: (0, 0)),
                pl.BlockSpec((tm, dout), lambda i: (i, 0)),
            ],
            out_specs=pl.BlockSpec((tm, dout), lambda i: (i, 0)),
        ),
        compiler_params=pltpu.CompilerParams(dimension_semantics=("parallel",)),
        cost_estimate=cost,
    )(xp, w_t, b.reshape(1, dout), rp)
    return out[:n]


def layernorm_pallas(x, gamma, beta, *, eps=1e-5):
    orig_shape = x.shape
    d = orig_shape[-1]
    x2d = x.reshape(-1, d)
    n = x2d.shape[0]
    tm = _row_tile(n)
    xp = _pad_rows(x2d, tm)
    rows = xp.shape[0]
    out = pl.pallas_call(
        functools.partial(_layernorm_kernel, eps=eps),
        out_shape=jax.ShapeDtypeStruct((rows, d), x.dtype),
        grid_spec=pltpu.PrefetchScalarGridSpec(
            num_scalar_prefetch=0,
            grid=(rows // tm,),
            in_specs=[
                pl.BlockSpec((tm, d), lambda i: (i, 0)),
                pl.BlockSpec((1, d), lambda i: (0, 0)),
                pl.BlockSpec((1, d), lambda i: (0, 0)),
            ],
            out_specs=pl.BlockSpec((tm, d), lambda i: (i, 0)),
        ),
        compiler_params=pltpu.CompilerParams(dimension_semantics=("parallel",)),
    )(xp, gamma.reshape(1, d), beta.reshape(1, d))
    return out[:n].reshape(orig_shape)


def ln_linear_pallas(x2d, gamma, beta, w_t, b, *, eps=1e-5):
    """y = LayerNorm(x2d) @ w_t + b  (fused ln_1 + QKV projection)."""
    n, din = x2d.shape
    dout = w_t.shape[1]
    tm = _row_tile(n)
    xp = _pad_rows(x2d, tm)
    rows = xp.shape[0]
    itm = x2d.dtype.itemsize
    cost = pl.CostEstimate(
        flops=2 * rows * din * dout + 8 * rows * din,
        transcendentals=rows,
        bytes_accessed=itm * (rows * din + din * dout + rows * dout
                              + 2 * din + dout))
    out = pl.pallas_call(
        functools.partial(_ln_linear_kernel, eps=eps),
        out_shape=jax.ShapeDtypeStruct((rows, dout), x2d.dtype),
        grid_spec=pltpu.PrefetchScalarGridSpec(
            num_scalar_prefetch=0,
            grid=(rows // tm,),
            in_specs=[
                pl.BlockSpec((tm, din), lambda i: (i, 0)),
                pl.BlockSpec((1, din), lambda i: (0, 0)),
                pl.BlockSpec((1, din), lambda i: (0, 0)),
                pl.BlockSpec((din, dout), lambda i: (0, 0)),
                pl.BlockSpec((1, dout), lambda i: (0, 0)),
            ],
            out_specs=pl.BlockSpec((tm, dout), lambda i: (i, 0)),
        ),
        compiler_params=pltpu.CompilerParams(dimension_semantics=("parallel",)),
        cost_estimate=cost,
    )(xp, gamma.reshape(1, din), beta.reshape(1, din), w_t, b.reshape(1, dout))
    return out[:n]


def ln_mlp_residual_pallas(x2d, gamma, beta, w1_t, b1, w2_t, b2, *, eps=1e-5):
    """y = x2d + GELU(LayerNorm(x2d) @ w1_t + b1) @ w2_t + b2."""
    n, d = x2d.shape
    mw = w1_t.shape[1]
    tm = _row_tile(n)
    xp = _pad_rows(x2d, tm)
    rows = xp.shape[0]
    itm = x2d.dtype.itemsize
    cost = pl.CostEstimate(
        flops=4 * rows * d * mw + 10 * rows * d,
        transcendentals=rows * (mw + 1),
        bytes_accessed=itm * (2 * rows * d + 2 * d * mw + mw + 3 * d))
    out = pl.pallas_call(
        functools.partial(_ln_mlp_residual_kernel, eps=eps),
        out_shape=jax.ShapeDtypeStruct((rows, d), x2d.dtype),
        grid_spec=pltpu.PrefetchScalarGridSpec(
            num_scalar_prefetch=0,
            grid=(rows // tm,),
            in_specs=[
                pl.BlockSpec((tm, d), lambda i: (i, 0)),
                pl.BlockSpec((1, d), lambda i: (0, 0)),
                pl.BlockSpec((1, d), lambda i: (0, 0)),
                pl.BlockSpec((d, mw), lambda i: (0, 0)),
                pl.BlockSpec((1, mw), lambda i: (0, 0)),
                pl.BlockSpec((mw, d), lambda i: (0, 0)),
                pl.BlockSpec((1, d), lambda i: (0, 0)),
            ],
            out_specs=pl.BlockSpec((tm, d), lambda i: (i, 0)),
        ),
        compiler_params=pltpu.CompilerParams(dimension_semantics=("parallel",)),
        cost_estimate=cost,
    )(xp, gamma.reshape(1, d), beta.reshape(1, d),
      w1_t, b1.reshape(1, mw), w2_t, b2.reshape(1, d))
    return out[:n]


def attention_pallas(qkv, mask_bias, *, num_heads, width, scale):
    """Fused masked MHA on packed QKV.  qkv:(B,S,3W) -> (B,S,W), heads merged."""
    b, s, _ = qkv.shape
    dh = width // num_heads
    itm = qkv.dtype.itemsize
    cost = pl.CostEstimate(
        flops=4 * b * num_heads * s * s * dh,
        transcendentals=b * num_heads * s * s,
        bytes_accessed=itm * (b * s * 4 * width) + 4 * s * s)
    return pl.pallas_call(
        functools.partial(_mha_fused_kernel, num_heads=num_heads, width=width,
                          scale=scale),
        out_shape=jax.ShapeDtypeStruct((b, s, width), qkv.dtype),
        grid_spec=pltpu.PrefetchScalarGridSpec(
            num_scalar_prefetch=0,
            grid=(b,),
            in_specs=[
                pl.BlockSpec((1, s, 3 * width), lambda i: (i, 0, 0)),
                pl.BlockSpec((s, s), lambda i: (0, 0)),
            ],
            out_specs=pl.BlockSpec((1, s, width), lambda i: (i, 0, 0)),
        ),
        compiler_params=pltpu.CompilerParams(dimension_semantics=("parallel",)),
        cost_estimate=cost,
    )(qkv, mask_bias)


# ---------------------------------------------------------------------------
# Encoder forward (wrapper-side reshapes/concats are layout plumbing only)
# ---------------------------------------------------------------------------

def residual_attention_block(x, lp, mask_bias, num_heads):
    b, s, w = x.shape
    dh = w // num_heads
    x2d = x.reshape(b * s, w)
    # ln_1 fused into the QKV projection.
    qkv = ln_linear_pallas(x2d, lp["ln1_g"], lp["ln1_b"],
                           lp["in_w_t"], lp["in_b"]).reshape(b, s, 3 * w)
    # Fused multi-head attention (heads split/merged inside the kernel).
    attn = attention_pallas(qkv, mask_bias, num_heads=num_heads, width=w,
                            scale=dh ** -0.5)
    # out-proj + residual add fused.
    x2d = linear_residual_pallas(attn.reshape(b * s, w), lp["out_w_t"],
                                 lp["out_b"], x2d)
    # ln_2 + MLP + residual fused.
    x2d = ln_mlp_residual_pallas(x2d, lp["ln2_g"], lp["ln2_b"],
                                 lp["fc_w_t"], lp["fc_b"],
                                 lp["proj_w_t"], lp["proj_b"])
    return x2d.reshape(b, s, w)


def titok_encoder_forward(params, cfg, pixel_values, latent_tokens):
    b = pixel_values.shape[0]
    p, g, w = cfg["patch_size"], cfg["grid_size"], cfg["width"]
    l, ts = cfg["num_latent_tokens"], cfg["token_size"]

    # patch_embed: Conv2d(3, W, kernel=P, stride=P, bias) == patchify + matmul
    x = pixel_values.reshape(b, 3, g, p, g, p)
    x = x.transpose(0, 2, 4, 1, 3, 5).reshape(b * g * g, 3 * p * p)
    x = linear_pallas(x, params["patch_w_t"], params["patch_b"]).reshape(b, g * g, w)

    cls = jnp.broadcast_to(params["class_embedding"].reshape(1, 1, w), (b, 1, w))
    x = jnp.concatenate([cls, x], axis=1) + params["positional_embedding"][None]
    lat = (jnp.broadcast_to(latent_tokens[None], (b, l, w))
           + params["latent_positional_embedding"][None])
    x = jnp.concatenate([x, lat], axis=1)                       # (B, S, W)

    x = layernorm_pallas(x, params["ln_pre_g"], params["ln_pre_b"])
    for lp in params["layers"]:
        x = residual_attention_block(x, lp, params["mask_bias"], cfg["num_heads"])

    lat = x[:, 1 + g * g:]                                      # (B, L, W)
    lat = layernorm_pallas(lat, params["ln_post_g"], params["ln_post_b"])

    # is_legacy: raw reshape (B, L, W) -> (B, W, L, 1) — a memory reinterpretation,
    # exactly what torch.reshape does — then 1x1 conv over the channel dim.
    z = lat.reshape(b, w, l)
    z = z.transpose(0, 2, 1).reshape(b * l, w)
    out = linear_pallas(z, params["conv_w_t"], params["conv_b"]).reshape(b, l, ts)
    out = out.transpose(0, 2, 1).reshape(b, ts, 1, l)
    return out


# ---------------------------------------------------------------------------
# Pure-JAX reference (mirrors the PyTorch module semantics)
# ---------------------------------------------------------------------------

def _layernorm_ref(x, g, b, eps=1e-5):
    mean = jnp.mean(x, axis=-1, keepdims=True)
    var = jnp.mean((x - mean) ** 2, axis=-1, keepdims=True)
    return (x - mean) * jax.lax.rsqrt(var + eps) * g + b


def titok_encoder_reference(params, cfg, pixel_values, latent_tokens):
    hi = jax.lax.Precision.HIGHEST
    b = pixel_values.shape[0]
    p, g, w = cfg["patch_size"], cfg["grid_size"], cfg["width"]
    l, ts, nh = cfg["num_latent_tokens"], cfg["token_size"], cfg["num_heads"]
    dh = w // nh

    x = pixel_values.reshape(b, 3, g, p, g, p)
    x = x.transpose(0, 2, 4, 1, 3, 5).reshape(b, g * g, 3 * p * p)
    x = jnp.matmul(x, params["patch_w_t"], precision=hi) + params["patch_b"]
    cls = jnp.broadcast_to(params["class_embedding"].reshape(1, 1, w), (b, 1, w))
    x = jnp.concatenate([cls, x], axis=1) + params["positional_embedding"][None]
    lat = (jnp.broadcast_to(latent_tokens[None], (b, l, w))
           + params["latent_positional_embedding"][None])
    x = jnp.concatenate([x, lat], axis=1)
    x = _layernorm_ref(x, params["ln_pre_g"], params["ln_pre_b"])
    for lp in params["layers"]:
        xn = _layernorm_ref(x, lp["ln1_g"], lp["ln1_b"])
        qkv = jnp.matmul(xn, lp["in_w_t"], precision=hi) + lp["in_b"]
        q, k, v = jnp.split(qkv, 3, axis=-1)
        q = q.reshape(b, -1, nh, dh).transpose(0, 2, 1, 3)
        k = k.reshape(b, -1, nh, dh).transpose(0, 2, 1, 3)
        v = v.reshape(b, -1, nh, dh).transpose(0, 2, 1, 3)
        s = jnp.einsum("bhqd,bhkd->bhqk", q, k, precision=hi) * (dh ** -0.5)
        a = jax.nn.softmax(s + params["mask_bias"], axis=-1)
        o = jnp.einsum("bhqk,bhkd->bhqd", a, v, precision=hi)
        o = o.transpose(0, 2, 1, 3).reshape(b, -1, w)
        o = jnp.matmul(o, lp["out_w_t"], precision=hi) + lp["out_b"]
        x = x + o
        xn2 = _layernorm_ref(x, lp["ln2_g"], lp["ln2_b"])
        h = jax.nn.gelu(jnp.matmul(xn2, lp["fc_w_t"], precision=hi) + lp["fc_b"],
                        approximate=False)
        x = x + jnp.matmul(h, lp["proj_w_t"], precision=hi) + lp["proj_b"]
    lat = x[:, 1 + g * g:]
    lat = _layernorm_ref(lat, params["ln_post_g"], params["ln_post_b"])
    z = lat.reshape(b, w, l)
    out = jnp.einsum("bcl,ct->btl", z, params["conv_w_t"], precision=hi)
    out = out + params["conv_b"][None, :, None]
    return out.reshape(b, ts, 1, l)


# ---------------------------------------------------------------------------
# Parameter init (weights stored pre-transposed as (in, out) for the kernels)
# ---------------------------------------------------------------------------

def init_params(key, cfg):
    p, g, w = cfg["patch_size"], cfg["grid_size"], cfg["width"]
    l, ts, nl = cfg["num_latent_tokens"], cfg["token_size"], cfg["num_layers"]
    mw = int(w * 4.0)
    scale = w ** -0.5
    keys = iter(jax.random.split(key, 7 + 8 * nl))

    def rnd(shape, s=0.02):
        return jax.random.normal(next(keys), shape, jnp.float32) * s

    params = {
        "patch_w_t": rnd((3 * p * p, w)),       # Conv2d(3,W,P,P).weight reshaped + T
        "patch_b": rnd((w,)),
        "class_embedding": rnd((1, w), scale),
        "positional_embedding": rnd((g * g + 1, w), scale),
        "latent_positional_embedding": rnd((l, w), scale),
        "ln_pre_g": jnp.ones((w,), jnp.float32),
        "ln_pre_b": jnp.zeros((w,), jnp.float32),
        "ln_post_g": jnp.ones((w,), jnp.float32),
        "ln_post_b": jnp.zeros((w,), jnp.float32),
        "conv_w_t": rnd((w, ts)),               # Conv2d(W,token_size,1).weight.T
        "conv_b": rnd((ts,)),
        "layers": [],
    }
    for _ in range(nl):
        params["layers"].append({
            "ln1_g": jnp.ones((w,), jnp.float32),
            "ln1_b": jnp.zeros((w,), jnp.float32),
            "in_w_t": rnd((w, 3 * w)),          # MultiheadAttention.in_proj_weight.T
            "in_b": rnd((3 * w,)),
            "out_w_t": rnd((w, w)),             # out_proj.weight.T
            "out_b": rnd((w,)),
            "ln2_g": jnp.ones((w,), jnp.float32),
            "ln2_b": jnp.zeros((w,), jnp.float32),
            "fc_w_t": rnd((w, mw)),             # mlp.c_fc.weight.T
            "fc_b": rnd((mw,)),
            "proj_w_t": rnd((mw, w)),           # mlp.c_proj.weight.T
            "proj_b": rnd((w,)),
        })
    # attn_mask buffer: attn_mask[i, max(num_image_tokens, i+1):] = True (masked),
    # expressed as an additive f32 bias shared by every batch/head.
    num_image = 1 + g * g
    s_tot = num_image + l
    r = jnp.arange(s_tot)[:, None]
    c = jnp.arange(s_tot)[None, :]
    masked = c >= jnp.maximum(r + 1, num_image)
    params["mask_bias"] = jnp.where(masked, -1e30, 0.0).astype(jnp.float32)
    return params


if __name__ == "__main__":
    cfg = dict(
        image_size=32, patch_size=16, grid_size=2,   # 2x2 = 4 image patches (+ class)
        width=256, num_heads=4, num_layers=2,        # small, lane-dense config
        num_latent_tokens=32, token_size=16,
    )
    key = jax.random.PRNGKey(0)
    kp, kx, kl = jax.random.split(key, 3)
    params = init_params(kp, cfg)
    pixel_values = jax.random.normal(
        kx, (2, 3, cfg["image_size"], cfg["image_size"]), jnp.float32)
    latent_tokens = jax.random.normal(
        kl, (cfg["num_latent_tokens"], cfg["width"]), jnp.float32) * cfg["width"] ** -0.5

    run = jax.jit(lambda prm, px, lt: titok_encoder_forward(prm, cfg, px, lt))
    out = jax.block_until_ready(run(params, pixel_values, latent_tokens))

    ref = titok_encoder_reference(params, cfg, pixel_values, latent_tokens)
    assert out.shape == (2, cfg["token_size"], 1, cfg["num_latent_tokens"])
    assert jnp.allclose(out, ref, atol=2e-2, rtol=2e-2), \
        float(jnp.max(jnp.abs(out - ref)))
    print("KERNEL_OK")
</pallas_src>

<mosaic_0001>
module attributes {stable_mosaic.version = 11 : i64} {
  func.func @_linear_kernel(%arg0: i32, %arg1: memref<8x768xf32, #tpu.memory_space<vmem>>, %arg2: memref<768x256xf32, #tpu.memory_space<vmem>>, %arg3: memref<1x256xf32, #tpu.memory_space<vmem>>, %arg4: memref<8x256xf32, #tpu.memory_space<vmem>>) attributes {dimension_semantics = [#tpu.dimension_semantics<parallel>], iteration_bounds = array<i64: 1>, scalar_prefetch = 0 : i64, scratch_operands = 0 : i64, tpu.core_type = #tpu.core_type<tc>, window_params = [{transform_indices = @transform_0, window_bounds = array<i64: 8, 768>}, {pipeline_mode = #tpu.pipeline_mode<synchronous>, transform_indices = @transform_1, window_bounds = array<i64: 768, 256>}, {pipeline_mode = #tpu.pipeline_mode<synchronous>, transform_indices = @transform_2, window_bounds = array<i64: 1, 256>}, {transform_indices = @transform_3, window_bounds = array<i64: 8, 256>}]} {
    %c0 = arith.constant 0 : index
    %c0_0 = arith.constant 0 : index
    %0 = vector.load %arg1[%c0, %c0_0] : memref<8x768xf32, #tpu.memory_space<vmem>>, vector<8x768xf32>
    %c0_1 = arith.constant 0 : index
    %c0_2 = arith.constant 0 : index
    %1 = vector.load %arg2[%c0_1, %c0_2] : memref<768x256xf32, #tpu.memory_space<vmem>>, vector<768x256xf32>
    %cst = arith.constant dense<0.000000e+00> : vector<8x256xf32>
    %2 = tpu.matmul %0, %1, %cst {dimension_numbers = #tpu.dot_dimension_numbers<[1], [0], [0], [1], [0, 0, 1, 1], [], []>} : vector<8x768xf32>, vector<768x256xf32>, vector<8x256xf32> -> vector<8x256xf32>
    %c0_3 = arith.constant 0 : index
    %c0_4 = arith.constant 0 : index
    %3 = vector.load %arg3[%c0_3, %c0_4] : memref<1x256xf32, #tpu.memory_space<vmem>>, vector<1x256xf32>
    %4 = vector.broadcast %3 : vector<1x256xf32> to vector<8x256xf32>
    %5 = arith.addf %2, %4 : vector<8x256xf32>
    %c0_5 = arith.constant 0 : index
    %c0_6 = arith.constant 0 : index
    %6 = vector.load %arg4[%c0_5, %c0_6] : memref<8x256xf32, #tpu.memory_space<vmem>>, vector<8x256xf32>
    tpu.vector_store %arg4[%c0_5, %c0_6], %5 {strides = array<i32>} : memref<8x256xf32, #tpu.memory_space<vmem>>, vector<8x256xf32>,
    return
  }
  func.func @transform_0(%arg0: i32) -> (i32, i32) {
    %c0_i32 = arith.constant 0 : i32
    %c0_i32_0 = arith.constant 0 : i32
    return %arg0, %c0_i32 : i32, i32
  }
  func.func @transform_1(%arg0: i32) -> (i32, i32) {
    %c0_i32 = arith.constant 0 : i32
    %c0_i32_0 = arith.constant 0 : i32
    %c0_i32_1 = arith.constant 0 : i32
    return %c0_i32, %c0_i32_0 : i32, i32
  }
  func.func @transform_2(%arg0: i32) -> (i32, i32) {
    %c0_i32 = arith.constant 0 : i32
    %c0_i32_0 = arith.constant 0 : i32
    %c0_i32_1 = arith.constant 0 : i32
    return %c0_i32, %c0_i32_0 : i32, i32
  }
  func.func @transform_3(%arg0: i32) -> (i32, i32) {
    %c0_i32 = arith.constant 0 : i32
    %c0_i32_0 = arith.constant 0 : i32
    return %arg0, %c0_i32 : i32, i32
  }
}

module attributes {stable_mosaic.version = 11 : i64} {
  func.func @_layernorm_kernel(%arg0: i32, %arg1: memref<80x256xf32, #tpu.memory_space<vmem>>, %arg2: memref<1x256xf32, #tpu.memory_space<vmem>>, %arg3: memref<1x256xf32, #tpu.memory_space<vmem>>, %arg4: memref<80x256xf32, #tpu.memory_space<vmem>>) attributes {dimension_semantics = [#tpu.dimension_semantics<parallel>], iteration_bounds = array<i64: 1>, scalar_prefetch = 0 : i64, scratch_operands = 0 : i64, tpu.core_type = #tpu.core_type<tc>, window_params = [{transform_indices = @transform_0, window_bounds = array<i64: 80, 256>}, {pipeline_mode = #tpu.pipeline_mode<synchronous>, transform_indices = @transform_1, window_bounds = array<i64: 1, 256>}, {pipeline_mode = #tpu.pipeline_mode<synchronous>, transform_indices = @transform_2, window_bounds = array<i64: 1, 256>}, {transform_indices = @transform_3, window_bounds = array<i64: 80, 256>}]} {
    %c0 = arith.constant 0 : index
    %c0_0 = arith.constant 0 : index
    %0 = vector.load %arg1[%c0, %c0_0] : memref<80x256xf32, #tpu.memory_space<vmem>>, vector<80x256xf32>
    %cst = arith.constant dense<0.000000e+00> : vector<80xf32>
    %1 = vector.multi_reduction <add>, %0, %cst [1] : vector<80x256xf32> to vector<80xf32>
    %2 = vector.shape_cast %1 : vector<80xf32> to vector<80x1xf32>
    %cst_1 = arith.constant 2.560000e+02 : f32
    %3 = vector.broadcast %cst_1 : f32 to vector<80x1xf32>
    %4 = arith.divf %2, %3 : vector<80x1xf32>
    %5 = vector.broadcast %4 : vector<80x1xf32> to vector<80x256xf32>
    %6 = arith.subf %0, %5 : vector<80x256xf32>
    %7 = arith.mulf %6, %6 : vector<80x256xf32>
    %cst_2 = arith.constant dense<0.000000e+00> : vector<80xf32>
    %8 = vector.multi_reduction <add>, %7, %cst_2 [1] : vector<80x256xf32> to vector<80xf32>
    %9 = vector.shape_cast %8 : vector<80xf32> to vector<80x1xf32>
    %cst_3 = arith.constant 2.560000e+02 : f32
    %10 = vector.broadcast %cst_3 : f32 to vector<80x1xf32>
    %11 = arith.divf %9, %10 : vector<80x1xf32>
    %cst_4 = arith.constant 9.99999974E-6 : f32
    %12 = vector.broadcast %cst_4 : f32 to vector<80x1xf32>
    %13 = arith.addf %11, %12 : vector<80x1xf32>
    %14 = math.rsqrt %13 : vector<80x1xf32>
    %15 = vector.broadcast %14 : vector<80x1xf32> to vector<80x256xf32>
    %16 = arith.mulf %6, %15 : vector<80x256xf32>
    %c0_5 = arith.constant 0 : index
    %c0_6 = arith.constant 0 : index
    %17 = vector.load %arg2[%c0_5, %c0_6] : memref<1x256xf32, #tpu.memory_space<vmem>>, vector<1x256xf32>
    %18 = vector.broadcast %17 : vector<1x256xf32> to vector<80x256xf32>
    %19 = arith.mulf %16, %18 : vector<80x256xf32>
    %c0_7 = arith.constant 0 : index
    %c0_8 = arith.constant 0 : index
    %20 = vector.load %arg3[%c0_7, %c0_8] : memref<1x256xf32, #tpu.memory_space<vmem>>, vector<1x256xf32>
    %21 = vector.broadcast %20 : vector<1x256xf32> to vector<80x256xf32>
    %22 = arith.addf %19, %21 : vector<80x256xf32>
    %c0_9 = arith.constant 0 : index
    %c0_10 = arith.constant 0 : index
    %23 = vector.load %arg4[%c0_9, %c0_10] : memref<80x256xf32, #tpu.memory_space<vmem>>, vector<80x256xf32>
    tpu.vector_store %arg4[%c0_9, %c0_10], %22 {strides = array<i32>} : memref<80x256xf32, #tpu.memory_space<vmem>>, vector<80x256xf32>,
    return
  }
  func.func @transform_0(%arg0: i32) -> (i32, i32) {
    %c0_i32 = arith.constant 0 : i32
    %c0_i32_0 = arith.constant 0 : i32
    return %arg0, %c0_i32 : i32, i32
  }
  func.func @transform_1(%arg0: i32) -> (i32, i32) {
    %c0_i32 = arith.constant 0 : i32
    %c0_i32_0 = arith.constant 0 : i32
    %c0_i32_1 = arith.constant 0 : i32
    return %c0_i32, %c0_i32_0 : i32, i32
  }
  func.func @transform_2(%arg0: i32) -> (i32, i32) {
    %c0_i32 = arith.constant 0 : i32
    %c0_i32_0 = arith.constant 0 : i32
    %c0_i32_1 = arith.constant 0 : i32
    return %c0_i32, %c0_i32_0 : i32, i32
  }
  func.func @transform_3(%arg0: i32) -> (i32, i32) {
    %c0_i32 = arith.constant 0 : i32
    %c0_i32_0 = arith.constant 0 : i32
    return %arg0, %c0_i32 : i32, i32
  }
}

module attributes {stable_mosaic.version = 11 : i64} {
  func.func @_mha_fused_kernel(%arg0: i32, %arg1: memref<1x37x768xf32, #tpu.memory_space<vmem>>, %arg2: memref<37x37xf32, #tpu.memory_space<vmem>>, %arg3: memref<1x37x256xf32, #tpu.memory_space<vmem>>) attributes {dimension_semantics = [#tpu.dimension_semantics<parallel>], iteration_bounds = array<i64: 2>, scalar_prefetch = 0 : i64, scratch_operands = 0 : i64, tpu.core_type = #tpu.core_type<tc>, window_params = [{transform_indices = @transform_0, window_bounds = array<i64: 1, 37, 768>}, {pipeline_mode = #tpu.pipeline_mode<synchronous>, transform_indices = @transform_1, window_bounds = array<i64: 37, 37>}, {transform_indices = @transform_2, window_bounds = array<i64: 1, 37, 256>}]} {
    %c0 = arith.constant 0 : index
    %c0_0 = arith.constant 0 : index
    %c0_1 = arith.constant 0 : index
    %0 = vector.load %arg1[%c0, %c0_0, %c0_1] : memref<1x37x768xf32, #tpu.memory_space<vmem>>, vector<1x37x768xf32>
    %1 = vector.shape_cast %0 : vector<1x37x768xf32> to vector<37x768xf32>
    %c0_2 = arith.constant 0 : index
    %c0_3 = arith.constant 0 : index
    %2 = vector.load %arg2[%c0_2, %c0_3] : memref<37x37xf32, #tpu.memory_space<vmem>>, vector<37x37xf32>
    %3 = vector.extract_strided_slice %1 {offsets = [0, 0], sizes = [37, 64], strides = [1, 1]} : vector<37x768xf32> to vector<37x64xf32>
    %cst = arith.constant 1.250000e-01 : f32
    %4 = vector.broadcast %cst : f32 to vector<37x64xf32>
    %5 = arith.mulf %3, %4 : vector<37x64xf32>
    %6 = vector.extract_strided_slice %1 {offsets = [0, 256], sizes = [37, 64], strides = [1, 1]} : vector<37x768xf32> to vector<37x64xf32>
    %7 = vector.extract_strided_slice %1 {offsets = [0, 512], sizes = [37, 64], strides = [1, 1]} : vector<37x768xf32> to vector<37x64xf32>
    %8 = tpu.transpose %6, [1, 0] : vector<37x64xf32> -> vector<64x37xf32>
    %cst_4 = arith.constant dense<0.000000e+00> : vector<37x37xf32>
    %9 = tpu.matmul %5, %8, %cst_4 {dimension_numbers = #tpu.dot_dimension_numbers<[1], [0], [0], [1], [0, 0, 1, 1], [], []>} : vector<37x64xf32>, vector<64x37xf32>, vector<37x37xf32> -> vector<37x37xf32>
    %10 = arith.addf %9, %2 : vector<37x37xf32>
    %cst_5 = arith.constant dense<0xFF800000> : vector<37xf32>
    %11 = vector.multi_reduction <maximumf>, %10, %cst_5 [1] : vector<37x37xf32> to vector<37xf32>
    %12 = vector.shape_cast %11 : vector<37xf32> to vector<37x1xf32>
    %13 = vector.broadcast %12 : vector<37x1xf32> to vector<37x37xf32>
    %14 = arith.subf %10, %13 : vector<37x37xf32>
    %15 = math.exp %14 : vector<37x37xf32>
    %cst_6 = arith.constant dense<0.000000e+00> : vector<37xf32>
    %16 = vector.multi_reduction <add>, %15, %cst_6 [1] : vector<37x37xf32> to vector<37xf32>
    %17 = vector.shape_cast %16 : vector<37xf32> to vector<37x1xf32>
    %18 = vector.broadcast %17 : vector<37x1xf32> to vector<37x37xf32>
    %19 = arith.divf %15, %18 : vector<37x37xf32>
    %cst_7 = arith.constant dense<0.000000e+00> : vector<37x64xf32>
    %20 = tpu.matmul %19, %7, %cst_7 {dimension_numbers = #tpu.dot_dimension_numbers<[1], [0], [0], [1], [0, 0, 1, 1], [], []>} : vector<37x37xf32>, vector<37x64xf32>, vector<37x64xf32> -> vector<37x64xf32>
    %21 = vector.extract_strided_slice %1 {offsets = [0, 64], sizes = [37, 64], strides = [1, 1]} : vector<37x768xf32> to vector<37x64xf32>
    %cst_8 = arith.constant 1.250000e-01 : f32
    %22 = vector.broadcast %cst_8 : f32 to vector<37x64xf32>
    %23 = arith.mulf %21, %22 : vector<37x64xf32>
    %24 = vector.extract_strided_slice %1 {offsets = [0, 320], sizes = [37, 64], strides = [1, 1]} : vector<37x768xf32> to vector<37x64xf32>
    %25 = vector.extract_strided_slice %1 {offsets = [0, 576], sizes = [37, 64], strides = [1, 1]} : vector<37x768xf32> to vector<37x64xf32>
    %26 = tpu.transpose %24, [1, 0] : vector<37x64xf32> -> vector<64x37xf32>
    %cst_9 = arith.constant dense<0.000000e+00> : vector<37x37xf32>
    %27 = tpu.matmul %23, %26, %cst_9 {dimension_numbers = #tpu.dot_dimension_numbers<[1], [0], [0], [1], [0, 0, 1, 1], [], []>} : vector<37x64xf32>, vector<64x37xf32>, vector<37x37xf32> -> vector<37x37xf32>
    %28 = arith.addf %27, %2 : vector<37x37xf32>
    %cst_10 = arith.constant dense<0xFF800000> : vector<37xf32>
    %29 = vector.multi_reduction <maximumf>, %28, %cst_10 [1] : vector<37x37xf32> to vector<37xf32>
    %30 = vector.shape_cast %29 : vector<37xf32> to vector<37x1xf32>
    %31 = vector.broadcast %30 : vector<37x1xf32> to vector<37x37xf32>
    %32 = arith.subf %28, %31 : vector<37x37xf32>
    %33 = math.exp %32 : vector<37x37xf32>
    %cst_11 = arith.constant dense<0.000000e+00> : vector<37xf32>
    %34 = vector.multi_reduction <add>, %33, %cst_11 [1] : vector<37x37xf32> to vector<37xf32>
    %35 = vector.shape_cast %34 : vector<37xf32> to vector<37x1xf32>
    %36 = vector.broadcast %35 : vector<37x1xf32> to vector<37x37xf32>
    %37 = arith.divf %33, %36 : vector<37x37xf32>
    %cst_12 = arith.constant dense<0.000000e+00> : vector<37x64xf32>
    %38 = tpu.matmul %37, %25, %cst_12 {dimension_numbers = #tpu.dot_dimension_numbers<[1], [0], [0], [1], [0, 0, 1, 1], [], []>} : vector<37x37xf32>, vector<37x64xf32>, vector<37x64xf32> -> vector<37x64xf32>
    %39 = vector.extract_strided_slice %1 {offsets = [0, 128], sizes = [37, 64], strides = [1, 1]} : vector<37x768xf32> to vector<37x64xf32>
    %cst_13 = arith.constant 1.250000e-01 : f32
    %40 = vector.broadcast %cst_13 : f32 to vector<37x64xf32>
    %41 = arith.mulf %39, %40 : vector<37x64xf32>
    %42 = vector.extract_strided_slice %1 {offsets = [0, 384], sizes = [37, 64], strides = [1, 1]} : vector<37x768xf32> to vector<37x64xf32>
    %43 = vector.extract_strided_slice %1 {offsets = [0, 640], sizes = [37, 64], strides = [1, 1]} : vector<37x768xf32> to vector<37x64xf32>
    %44 = tpu.transpose %42, [1, 0] : vector<37x64xf32> -> vector<64x37xf32>
    %cst_14 = arith.constant dense<0.000000e+00> : vector<37x37xf32>
    %45 = tpu.matmul %41, %44, %cst_14 {dimension_numbers = #tpu.dot_dimension_numbers<[1], [0], [0], [1], [0, 0, 1, 1], [], []>} : vector<37x64xf32>, vector<64x37xf32>, vector<37x37xf32> -> vector<37x37xf32>
    %46 = arith.addf %45, %2 : vector<37x37xf32>
    %cst_15 = arith.constant dense<0xFF800000> : vector<37xf32>
    %47 = vector.multi_reduction <maximumf>, %46, %cst_15 [1] : vector<37x37xf32> to vector<37xf32>
    %48 = vector.shape_cast %47 : vector<37xf32> to vector<37x1xf32>
    %49 = vector.broadcast %48 : vector<37x1xf32> to vector<37x37xf32>
    %50 = arith.subf %46, %49 : vector<37x37xf32>
    %51 = math.exp %50 : vector<37x37xf32>
    %cst_16 = arith.constant dense<0.000000e+00> : vector<37xf32>
    %52 = vector.multi_reduction <add>, %51, %cst_16 [1] : vector<37x37xf32> to vector<37xf32>
    %53 = vector.shape_cast %52 : vector<37xf32> to vector<37x1xf32>
    %54 = vector.broadcast %53 : vector<37x1xf32> to vector<37x37xf32>
    %55 = arith.divf %51, %54 : vector<37x37xf32>
    %cst_17 = arith.constant dense<0.000000e+00> : vector<37x64xf32>
    %56 = tpu.matmul %55, %43, %cst_17 {dimension_numbers = #tpu.dot_dimension_numbers<[1], [0], [0], [1], [0, 0, 1, 1], [], []>} : vector<37x37xf32>, vector<37x64xf32>, vector<37x64xf32> -> vector<37x64xf32>
    %57 = vector.extract_strided_slice %1 {offsets = [0, 192], sizes = [37, 64], strides = [1, 1]} : vector<37x768xf32> to vector<37x64xf32>
    %cst_18 = arith.constant 1.250000e-01 : f32
    %58 = vector.broadcast %cst_18 : f32 to vector<37x64xf32>
    %59 = arith.mulf %57, %58 : vector<37x64xf32>
    %60 = vector.extract_strided_slice %1 {offsets = [0, 448], sizes = [37, 64], strides = [1, 1]} : vector<37x768xf32> to vector<37x64xf32>
    %61 = vector.extract_strided_slice %1 {offsets = [0, 704], sizes = [37, 64], strides = [1, 1]} : vector<37x768xf32> to vector<37x64xf32>
    %62 = tpu.transpose %60, [1, 0] : vector<37x64xf32> -> vector<64x37xf32>
    %cst_19 = arith.constant dense<0.000000e+00> : vector<37x37xf32>
    %63 = tpu.matmul %59, %62, %cst_19 {dimension_numbers = #tpu.dot_dimension_numbers<[1], [0], [0], [1], [0, 0, 1, 1], [], []>} : vector<37x64xf32>, vector<64x37xf32>, vector<37x37xf32> -> vector<37x37xf32>
    %64 = arith.addf %63, %2 : vector<37x37xf32>
    %cst_20 = arith.constant dense<0xFF800000> : vector<37xf32>
    %65 = vector.multi_reduction <maximumf>, %64, %cst_20 [1] : vector<37x37xf32> to vector<37xf32>
    %66 = vector.shape_cast %65 : vector<37xf32> to vector<37x1xf32>
    %67 = vector.broadcast %66 : vector<37x1xf32> to vector<37x37xf32>
    %68 = arith.subf %64, %67 : vector<37x37xf32>
    %69 = math.exp %68 : vector<37x37xf32>
    %cst_21 = arith.constant dense<0.000000e+00> : vector<37xf32>
    %70 = vector.multi_reduction <add>, %69, %cst_21 [1] : vector<37x37xf32> to vector<37xf32>
    %71 = vector.shape_cast %70 : vector<37xf32> to vector<37x1xf32>
    %72 = vector.broadcast %71 : vector<37x1xf32> to vector<37x37xf32>
    %73 = arith.divf %69, %72 : vector<37x37xf32>
    %cst_22 = arith.constant dense<0.000000e+00> : vector<37x64xf32>
    %74 = tpu.matmul %73, %61, %cst_22 {dimension_numbers = #tpu.dot_dimension_numbers<[1], [0], [0], [1], [0, 0, 1, 1], [], []>} : vector<37x37xf32>, vector<37x64xf32>, vector<37x64xf32> -> vector<37x64xf32>
    %75 = tpu.concatenate %20, %38, %56, %74 in 1 : vector<37x64xf32>, vector<37x64xf32>, vector<37x64xf32>, vector<37x64xf32> -> vector<37x256xf32>
    %c0_23 = arith.constant 0 : index
    %c0_24 = arith.constant 0 : index
    %c0_25 = arith.constant 0 : index
    %76 = vector.load %arg3[%c0_23, %c0_24, %c0_25] : memref<1x37x256xf32, #tpu.memory_space<vmem>>, vector<1x37x256xf32>
    %77 = vector.shape_cast %76 : vector<1x37x256xf32> to vector<37x256xf32>
    %78 = vector.shape_cast %75 : vector<37x256xf32> to vector<1x37x256xf32>
    tpu.vector_store %arg3[%c0_23, %c0_24, %c0_25], %78 {strides = array<i32>} : memref<1x37x256xf32, #tpu.memory_space<vmem>>, vector<1x37x256xf32>,
    return
  }
  func.func @transform_0(%arg0: i32) -> (i32, i32, i32) {
    %c0_i32 = arith.constant 0 : i32
    %c0_i32_0 = arith.constant 0 : i32
    %c0_i32_1 = arith.constant 0 : i32
    return %arg0, %c0_i32, %c0_i32_0 : i32, i32, i32
  }
  func.func @transform_1(%arg0: i32) -> (i32, i32) {
    %c0_i32 = arith.constant 0 : i32
    %c0_i32_0 = arith.constant 0 : i32
    %c0_i32_1 = arith.constant 0 : i32
    return %c0_i32, %c0_i32_0 : i32, i32
  }
  func.func @transform_2(%arg0: i32) -> (i32, i32, i32) {
    %c0_i32 = arith.constant 0 : i32
    %c0_i32_0 = arith.constant 0 : i32
    %c0_i32_1 = arith.constant 0 : i32
    return %arg0, %c0_i32, %c0_i32_0 : i32, i32, i32
  }
}

module attributes {stable_mosaic.version = 11 : i64} {
  func.func @_ln_linear_kernel(%arg0: i32, %arg1: memref<80x256xf32, #tpu.memory_space<vmem>>, %arg2: memref<1x256xf32, #tpu.memory_space<vmem>>, %arg3: memref<1x256xf32, #tpu.memory_space<vmem>>, %arg4: memref<256x768xf32, #tpu.memory_space<vmem>>, %arg5: memref<1x768xf32, #tpu.memory_space<vmem>>, %arg6: memref<80x768xf32, #tpu.memory_space<vmem>>) attributes {dimension_semantics = [#tpu.dimension_semantics<parallel>], iteration_bounds = array<i64: 1>, scalar_prefetch = 0 : i64, scratch_operands = 0 : i64, tpu.core_type = #tpu.core_type<tc>, window_params = [{transform_indices = @transform_0, window_bounds = array<i64: 80, 256>}, {pipeline_mode = #tpu.pipeline_mode<synchronous>, transform_indices = @transform_1, window_bounds = array<i64: 1, 256>}, {pipeline_mode = #tpu.pipeline_mode<synchronous>, transform_indices = @transform_2, window_bounds = array<i64: 1, 256>}, {pipeline_mode = #tpu.pipeline_mode<synchronous>, transform_indices = @transform_3, window_bounds = array<i64: 256, 768>}, {pipeline_mode = #tpu.pipeline_mode<synchronous>, transform_indices = @transform_4, window_bounds = array<i64: 1, 768>}, {transform_indices = @transform_5, window_bounds = array<i64: 80, 768>}]} {
    %c0 = arith.constant 0 : index
    %c0_0 = arith.constant 0 : index
    %0 = vector.load %arg1[%c0, %c0_0] : memref<80x256xf32, #tpu.memory_space<vmem>>, vector<80x256xf32>
    %cst = arith.constant dense<0.000000e+00> : vector<80xf32>
    %1 = vector.multi_reduction <add>, %0, %cst [1] : vector<80x256xf32> to vector<80xf32>
    %2 = vector.shape_cast %1 : vector<80xf32> to vector<80x1xf32>
    %cst_1 = arith.constant 2.560000e+02 : f32
    %3 = vector.broadcast %cst_1 : f32 to vector<80x1xf32>
    %4 = arith.divf %2, %3 : vector<80x1xf32>
    %5 = vector.broadcast %4 : vector<80x1xf32> to vector<80x256xf32>
    %6 = arith.subf %0, %5 : vector<80x256xf32>
    %7 = arith.mulf %6, %6 : vector<80x256xf32>
    %cst_2 = arith.constant dense<0.000000e+00> : vector<80xf32>
    %8 = vector.multi_reduction <add>, %7, %cst_2 [1] : vector<80x256xf32> to vector<80xf32>
    %9 = vector.shape_cast %8 : vector<80xf32> to vector<80x1xf32>
    %cst_3 = arith.constant 2.560000e+02 : f32
    %10 = vector.broadcast %cst_3 : f32 to vector<80x1xf32>
    %11 = arith.divf %9, %10 : vector<80x1xf32>
    %cst_4 = arith.constant 9.99999974E-6 : f32
    %12 = vector.broadcast %cst_4 : f32 to vector<80x1xf32>
    %13 = arith.addf %11, %12 : vector<80x1xf32>
    %14 = math.rsqrt %13 : vector<80x1xf32>
    %15 = vector.broadcast %14 : vector<80x1xf32> to vector<80x256xf32>
    %16 = arith.mulf %6, %15 : vector<80x256xf32>
    %c0_5 = arith.constant 0 : index
    %c0_6 = arith.constant 0 : index
    %17 = vector.load %arg2[%c0_5, %c0_6] : memref<1x256xf32, #tpu.memory_space<vmem>>, vector<1x256xf32>
    %18 = vector.broadcast %17 : vector<1x256xf32> to vector<80x256xf32>
    %19 = arith.mulf %16, %18 : vector<80x256xf32>
    %c0_7 = arith.constant 0 : index
    %c0_8 = arith.constant 0 : index
    %20 = vector.load %arg3[%c0_7, %c0_8] : memref<1x256xf32, #tpu.memory_space<vmem>>, vector<1x256xf32>
    %21 = vector.broadcast %20 : vector<1x256xf32> to vector<80x256xf32>
    %22 = arith.addf %19, %21 : vector<80x256xf32>
    %c0_9 = arith.constant 0 : index
    %c0_10 = arith.constant 0 : index
    %23 = vector.load %arg4[%c0_9, %c0_10] : memref<256x768xf32, #tpu.memory_space<vmem>>, vector<256x768xf32>
    %cst_11 = arith.constant dense<0.000000e+00> : vector<80x768xf32>
    %24 = tpu.matmul %22, %23, %cst_11 {dimension_numbers = #tpu.dot_dimension_numbers<[1], [0], [0], [1], [0, 0, 1, 1], [], []>} : vector<80x256xf32>, vector<256x768xf32>, vector<80x768xf32> -> vector<80x768xf32>
    %c0_12 = arith.constant 0 : index
    %c0_13 = arith.constant 0 : index
    %25 = vector.load %arg5[%c0_12, %c0_13] : memref<1x768xf32, #tpu.memory_space<vmem>>, vector<1x768xf32>
    %26 = vector.broadcast %25 : vector<1x768xf32> to vector<80x768xf32>
    %27 = arith.addf %24, %26 : vector<80x768xf32>
    %c0_14 = arith.constant 0 : index
    %c0_15 = arith.constant 0 : index
    %28 = vector.load %arg6[%c0_14, %c0_15] : memref<80x768xf32, #tpu.memory_space<vmem>>, vector<80x768xf32>
    tpu.vector_store %arg6[%c0_14, %c0_15], %27 {strides = array<i32>} : memref<80x768xf32, #tpu.memory_space<vmem>>, vector<80x768xf32>,
    return
  }
  func.func @transform_0(%arg0: i32) -> (i32, i32) {
    %c0_i32 = arith.constant 0 : i32
    %c0_i32_0 = arith.constant 0 : i32
    return %arg0, %c0_i32 : i32, i32
  }
  func.func @transform_1(%arg0: i32) -> (i32, i32) {
    %c0_i32 = arith.constant 0 : i32
    %c0_i32_0 = arith.constant 0 : i32
    %c0_i32_1 = arith.constant 0 : i32
    return %c0_i32, %c0_i32_0 : i32, i32
  }
  func.func @transform_2(%arg0: i32) -> (i32, i32) {
    %c0_i32 = arith.constant 0 : i32
    %c0_i32_0 = arith.constant 0 : i32
    %c0_i32_1 = arith.constant 0 : i32
    return %c0_i32, %c0_i32_0 : i32, i32
  }
  func.func @transform_3(%arg0: i32) -> (i32, i32) {
    %c0_i32 = arith.constant 0 : i32
    %c0_i32_0 = arith.constant 0 : i32
    %c0_i32_1 = arith.constant 0 : i32
    return %c0_i32, %c0_i32_0 : i32, i32
  }
  func.func @transform_4(%arg0: i32) -> (i32, i32) {
    %c0_i32 = arith.constant 0 : i32
    %c0_i32_0 = arith.constant 0 : i32
    %c0_i32_1 = arith.constant 0 : i32
    return %c0_i32, %c0_i32_0 : i32, i32
  }
  func.func @transform_5(%arg0: i32) -> (i32, i32) {
    %c0_i32 = arith.constant 0 : i32
    %c0_i32_0 = arith.constant 0 : i32
    return %arg0, %c0_i32 : i32, i32
  }
}

module attributes {stable_mosaic.version = 11 : i64} {
  func.func @_linear_residual_kernel(%arg0: i32, %arg1: memref<80x256xf32, #tpu.memory_space<vmem>>, %arg2: memref<256x256xf32, #tpu.memory_space<vmem>>, %arg3: memref<1x256xf32, #tpu.memory_space<vmem>>, %arg4: memref<80x256xf32, #tpu.memory_space<vmem>>, %arg5: memref<80x256xf32, #tpu.memory_space<vmem>>) attributes {dimension_semantics = [#tpu.dimension_semantics<parallel>], iteration_bounds = array<i64: 1>, scalar_prefetch = 0 : i64, scratch_operands = 0 : i64, tpu.core_type = #tpu.core_type<tc>, window_params = [{transform_indices = @transform_0, window_bounds = array<i64: 80, 256>}, {pipeline_mode = #tpu.pipeline_mode<synchronous>, transform_indices = @transform_1, window_bounds = array<i64: 256, 256>}, {pipeline_mode = #tpu.pipeline_mode<synchronous>, transform_indices = @transform_2, window_bounds = array<i64: 1, 256>}, {transform_indices = @transform_3, window_bounds = array<i64: 80, 256>}, {transform_indices = @transform_4, window_bounds = array<i64: 80, 256>}]} {
    %c0 = arith.constant 0 : index
    %c0_0 = arith.constant 0 : index
    %0 = vector.load %arg1[%c0, %c0_0] : memref<80x256xf32, #tpu.memory_space<vmem>>, vector<80x256xf32>
    %c0_1 = arith.constant 0 : index
    %c0_2 = arith.constant 0 : index
    %1 = vector.load %arg2[%c0_1, %c0_2] : memref<256x256xf32, #tpu.memory_space<vmem>>, vector<256x256xf32>
    %cst = arith.constant dense<0.000000e+00> : vector<80x256xf32>
    %2 = tpu.matmul %0, %1, %cst {dimension_numbers = #tpu.dot_dimension_numbers<[1], [0], [0], [1], [0, 0, 1, 1], [], []>} : vector<80x256xf32>, vector<256x256xf32>, vector<80x256xf32> -> vector<80x256xf32>
    %c0_3 = arith.constant 0 : index
    %c0_4 = arith.constant 0 : index
    %3 = vector.load %arg3[%c0_3, %c0_4] : memref<1x256xf32, #tpu.memory_space<vmem>>, vector<1x256xf32>
    %4 = vector.broadcast %3 : vector<1x256xf32> to vector<80x256xf32>
    %5 = arith.addf %2, %4 : vector<80x256xf32>
    %c0_5 = arith.constant 0 : index
    %c0_6 = arith.constant 0 : index
    %6 = vector.load %arg4[%c0_5, %c0_6] : memref<80x256xf32, #tpu.memory_space<vmem>>, vector<80x256xf32>
    %7 = arith.addf %5, %6 : vector<80x256xf32>
    %c0_7 = arith.constant 0 : index
    %c0_8 = arith.constant 0 : index
    %8 = vector.load %arg5[%c0_7, %c0_8] : memref<80x256xf32, #tpu.memory_space<vmem>>, vector<80x256xf32>
    tpu.vector_store %arg5[%c0_7, %c0_8], %7 {strides = array<i32>} : memref<80x256xf32, #tpu.memory_space<vmem>>, vector<80x256xf32>,
    return
  }
  func.func @transform_0(%arg0: i32) -> (i32, i32) {
    %c0_i32 = arith.constant 0 : i32
    %c0_i32_0 = arith.constant 0 : i32
    return %arg0, %c0_i32 : i32, i32
  }
  func.func @transform_1(%arg0: i32) -> (i32, i32) {
    %c0_i32 = arith.constant 0 : i32
    %c0_i32_0 = arith.constant 0 : i32
    %c0_i32_1 = arith.constant 0 : i32
    return %c0_i32, %c0_i32_0 : i32, i32
  }
  func.func @transform_2(%arg0: i32) -> (i32, i32) {
    %c0_i32 = arith.constant 0 : i32
    %c0_i32_0 = arith.constant 0 : i32
    %c0_i32_1 = arith.constant 0 : i32
    return %c0_i32, %c0_i32_0 : i32, i32
  }
  func.func @transform_3(%arg0: i32) -> (i32, i32) {
    %c0_i32 = arith.constant 0 : i32
    %c0_i32_0 = arith.constant 0 : i32
    return %arg0, %c0_i32 : i32, i32
  }
  func.func @transform_4(%arg0: i32) -> (i32, i32) {
    %c0_i32 = arith.constant 0 : i32
    %c0_i32_0 = arith.constant 0 : i32
    return %arg0, %c0_i32 : i32, i32
  }
}

module attributes {stable_mosaic.version = 11 : i64} {
  func.func @_ln_mlp_residual_kernel(%arg0: i32, %arg1: memref<80x256xf32, #tpu.memory_space<vmem>>, %arg2: memref<1x256xf32, #tpu.memory_space<vmem>>, %arg3: memref<1x256xf32, #tpu.memory_space<vmem>>, %arg4: memref<256x1024xf32, #tpu.memory_space<vmem>>, %arg5: memref<1x1024xf32, #tpu.memory_space<vmem>>, %arg6: memref<1024x256xf32, #tpu.memory_space<vmem>>, %arg7: memref<1x256xf32, #tpu.memory_space<vmem>>, %arg8: memref<80x256xf32, #tpu.memory_space<vmem>>) attributes {dimension_semantics = [#tpu.dimension_semantics<parallel>], iteration_bounds = array<i64: 1>, scalar_prefetch = 0 : i64, scratch_operands = 0 : i64, tpu.core_type = #tpu.core_type<tc>, window_params = [{transform_indices = @transform_0, window_bounds = array<i64: 80, 256>}, {pipeline_mode = #tpu.pipeline_mode<synchronous>, transform_indices = @transform_1, window_bounds = array<i64: 1, 256>}, {pipeline_mode = #tpu.pipeline_mode<synchronous>, transform_indices = @transform_2, window_bounds = array<i64: 1, 256>}, {pipeline_mode = #tpu.pipeline_mode<synchronous>, transform_indices = @transform_3, window_bounds = array<i64: 256, 1024>}, {pipeline_mode = #tpu.pipeline_mode<synchronous>, transform_indices = @transform_4, window_bounds = array<i64: 1, 1024>}, {pipeline_mode = #tpu.pipeline_mode<synchronous>, transform_indices = @transform_5, window_bounds = array<i64: 1024, 256>}, {pipeline_mode = #tpu.pipeline_mode<synchronous>, transform_indices = @transform_6, window_bounds = array<i64: 1, 256>}, {transform_indices = @transform_7, window_bounds = array<i64: 80, 256>}]} {
    %c0 = arith.constant 0 : index
    %c0_0 = arith.constant 0 : index
    %0 = vector.load %arg1[%c0, %c0_0] : memref<80x256xf32, #tpu.memory_space<vmem>>, vector<80x256xf32>
    %cst = arith.constant dense<0.000000e+00> : vector<80xf32>
    %1 = vector.multi_reduction <add>, %0, %cst [1] : vector<80x256xf32> to vector<80xf32>
    %2 = vector.shape_cast %1 : vector<80xf32> to vector<80x1xf32>
    %cst_1 = arith.constant 2.560000e+02 : f32
    %3 = vector.broadcast %cst_1 : f32 to vector<80x1xf32>
    %4 = arith.divf %2, %3 : vector<80x1xf32>
    %5 = vector.broadcast %4 : vector<80x1xf32> to vector<80x256xf32>
    %6 = arith.subf %0, %5 : vector<80x256xf32>
    %7 = arith.mulf %6, %6 : vector<80x256xf32>
    %cst_2 = arith.constant dense<0.000000e+00> : vector<80xf32>
    %8 = vector.multi_reduction <add>, %7, %cst_2 [1] : vector<80x256xf32> to vector<80xf32>
    %9 = vector.shape_cast %8 : vector<80xf32> to vector<80x1xf32>
    %cst_3 = arith.constant 2.560000e+02 : f32
    %10 = vector.broadcast %cst_3 : f32 to vector<80x1xf32>
    %11 = arith.divf %9, %10 : vector<80x1xf32>
    %cst_4 = arith.constant 9.99999974E-6 : f32
    %12 = vector.broadcast %cst_4 : f32 to vector<80x1xf32>
    %13 = arith.addf %11, %12 : vector<80x1xf32>
    %14 = math.rsqrt %13 : vector<80x1xf32>
    %15 = vector.broadcast %14 : vector<80x1xf32> to vector<80x256xf32>
    %16 = arith.mulf %6, %15 : vector<80x256xf32>
    %c0_5 = arith.constant 0 : index
    %c0_6 = arith.constant 0 : index
    %17 = vector.load %arg2[%c0_5, %c0_6] : memref<1x256xf32, #tpu.memory_space<vmem>>, vector<1x256xf32>
    %18 = vector.broadcast %17 : vector<1x256xf32> to vector<80x256xf32>
    %19 = arith.mulf %16, %18 : vector<80x256xf32>
    %c0_7 = arith.constant 0 : index
    %c0_8 = arith.constant 0 : index
    %20 = vector.load %arg3[%c0_7, %c0_8] : memref<1x256xf32, #tpu.memory_space<vmem>>, vector<1x256xf32>
    %21 = vector.broadcast %20 : vector<1x256xf32> to vector<80x256xf32>
    %22 = arith.addf %19, %21 : vector<80x256xf32>
    %c0_9 = arith.constant 0 : index
    %c0_10 = arith.constant 0 : index
    %23 = vector.load %arg4[%c0_9, %c0_10] : memref<256x1024xf32, #tpu.memory_space<vmem>>, vector<256x1024xf32>
    %cst_11 = arith.constant dense<0.000000e+00> : vector<80x1024xf32>
    %24 = tpu.matmul %22, %23, %cst_11 {dimension_numbers = #tpu.dot_dimension_numbers<[1], [0], [0], [1], [0, 0, 1, 1], [], []>} : vector<80x256xf32>, vector<256x1024xf32>, vector<80x1024xf32> -> vector<80x1024xf32>
    %c0_12 = arith.constant 0 : index
    %c0_13 = arith.constant 0 : index
    %25 = vector.load %arg5[%c0_12, %c0_13] : memref<1x1024xf32, #tpu.memory_space<vmem>>, vector<1x1024xf32>
    %26 = vector.broadcast %25 : vector<1x1024xf32> to vector<80x1024xf32>
    %27 = arith.addf %24, %26 : vector<80x1024xf32>
    %cst_14 = arith.constant 5.000000e-01 : f32
    %28 = vector.broadcast %cst_14 : f32 to vector<80x1024xf32>
    %29 = arith.mulf %28, %27 : vector<80x1024xf32>
    %cst_15 = arith.constant 0.707106769 : f32
    %30 = vector.broadcast %cst_15 : f32 to vector<80x1024xf32>
    %31 = arith.mulf %27, %30 : vector<80x1024xf32>
    %cst_16 = arith.constant 0.000000e+00 : f32
    %32 = vector.broadcast %cst_16 : f32 to vector<80x1024xf32>
    %33 = arith.cmpf oge, %31, %32 : vector<80x1024xf32>
    %cst_17 = arith.constant 1.000000e+00 : f32
    %cst_18 = arith.constant -1.000000e+00 : f32
    %34 = vector.broadcast %cst_17 : f32 to vector<80x1024xf32>
    %35 = vector.broadcast %cst_18 : f32 to vector<80x1024xf32>
    %36 = arith.select %33, %34, %35 : vector<80x1024xi1>, vector<80x1024xf32>
    %37 = math.absf %31 : vector<80x1024xf32>
    %cst_19 = arith.constant 0.327591091 : f32
    %38 = vector.broadcast %cst_19 : f32 to vector<80x1024xf32>
    %39 = arith.mulf %38, %37 : vector<80x1024xf32>
    %cst_20 = arith.constant 1.000000e+00 : f32
    %40 = vector.broadcast %cst_20 : f32 to vector<80x1024xf32>
    %41 = arith.addf %40, %39 : vector<80x1024xf32>
    %cst_21 = arith.constant 1.000000e+00 : f32
    %42 = vector.broadcast %cst_21 : f32 to vector<80x1024xf32>
    %43 = arith.divf %42, %41 : vector<80x1024xf32>
    %cst_22 = arith.constant 1.06140542 : f32
    %44 = vector.broadcast %cst_22 : f32 to vector<80x1024xf32>
    %45 = arith.mulf %44, %43 : vector<80x1024xf32>
    %cst_23 = arith.constant -1.45315206 : f32
    %46 = vector.broadcast %cst_23 : f32 to vector<80x1024xf32>
    %47 = arith.addf %45, %46 : vector<80x1024xf32>
    %48 = arith.mulf %47, %43 : vector<80x1024xf32>
    %cst_24 = arith.constant 1.42141378 : f32
    %49 = vector.broadcast %cst_24 : f32 to vector<80x1024xf32>
    %50 = arith.addf %48, %49 : vector<80x1024xf32>
    %51 = arith.mulf %50, %43 : vector<80x1024xf32>
    %cst_25 = arith.constant -0.284496725 : f32
    %52 = vector.broadcast %cst_25 : f32 to vector<80x1024xf32>
    %53 = arith.addf %51, %52 : vector<80x1024xf32>
    %54 = arith.mulf %53, %43 : vector<80x1024xf32>
    %cst_26 = arith.constant 0.254829586 : f32
    %55 = vector.broadcast %cst_26 : f32 to vector<80x1024xf32>
    %56 = arith.addf %54, %55 : vector<80x1024xf32>
    %57 = arith.mulf %56, %43 : vector<80x1024xf32>
    %cst_27 = arith.constant 0.000000e+00 : f32
    %58 = vector.broadcast %cst_27 : f32 to vector<80x1024xf32>
    %59 = arith.subf %58, %37 : vector<80x1024xf32>
    %60 = arith.mulf %59, %37 : vector<80x1024xf32>
    %61 = math.exp %60 : vector<80x1024xf32>
    %62 = arith.mulf %57, %61 : vector<80x1024xf32>
    %cst_28 = arith.constant 1.000000e+00 : f32
    %63 = vector.broadcast %cst_28 : f32 to vector<80x1024xf32>
    %64 = arith.subf %63, %62 : vector<80x1024xf32>
    %65 = arith.mulf %36, %64 : vector<80x1024xf32>
    %cst_29 = arith.constant 1.000000e+00 : f32
    %66 = vector.broadcast %cst_29 : f32 to vector<80x1024xf32>
    %67 = arith.addf %66, %65 : vector<80x1024xf32>
    %68 = arith.mulf %29, %67 : vector<80x1024xf32>
    %c0_30 = arith.constant 0 : index
    %c0_31 = arith.constant 0 : index
    %69 = vector.load %arg6[%c0_30, %c0_31] : memref<1024x256xf32, #tpu.memory_space<vmem>>, vector<1024x256xf32>
    %cst_32 = arith.constant dense<0.000000e+00> : vector<80x256xf32>
    %70 = tpu.matmul %68, %69, %cst_32 {dimension_numbers = #tpu.dot_dimension_numbers<[1], [0], [0], [1], [0, 0, 1, 1], [], []>} : vector<80x1024xf32>, vector<1024x256xf32>, vector<80x256xf32> -> vector<80x256xf32>
    %71 = arith.addf %0, %70 : vector<80x256xf32>
    %c0_33 = arith.constant 0 : index
    %c0_34 = arith.constant 0 : index
    %72 = vector.load %arg7[%c0_33, %c0_34] : memref<1x256xf32, #tpu.memory_space<vmem>>, vector<1x256xf32>
    %73 = vector.broadcast %72 : vector<1x256xf32> to vector<80x256xf32>
    %74 = arith.addf %71, %73 : vector<80x256xf32>
    %c0_35 = arith.constant 0 : index
    %c0_36 = arith.constant 0 : index
    %75 = vector.load %arg8[%c0_35, %c0_36] : memref<80x256xf32, #tpu.memory_space<vmem>>, vector<80x256xf32>
    tpu.vector_store %arg8[%c0_35, %c0_36], %74 {strides = array<i32>} : memref<80x256xf32, #tpu.memory_space<vmem>>, vector<80x256xf32>,
    return
  }
  func.func @transform_0(%arg0: i32) -> (i32, i32) {
    %c0_i32 = arith.constant 0 : i32
    %c0_i32_0 = arith.constant 0 : i32
    return %arg0, %c0_i32 : i32, i32
  }
  func.func @transform_1(%arg0: i32) -> (i32, i32) {
    %c0_i32 = arith.constant 0 : i32
    %c0_i32_0 = arith.constant 0 : i32
    %c0_i32_1 = arith.constant 0 : i32
    return %c0_i32, %c0_i32_0 : i32, i32
  }
  func.func @transform_2(%arg0: i32) -> (i32, i32) {
    %c0_i32 = arith.constant 0 : i32
    %c0_i32_0 = arith.constant 0 : i32
    %c0_i32_1 = arith.constant 0 : i32
    return %c0_i32, %c0_i32_0 : i32, i32
  }
  func.func @transform_3(%arg0: i32) -> (i32, i32) {
    %c0_i32 = arith.constant 0 : i32
    %c0_i32_0 = arith.constant 0 : i32
    %c0_i32_1 = arith.constant 0 : i32
    return %c0_i32, %c0_i32_0 : i32, i32
  }
  func.func @transform_4(%arg0: i32) -> (i32, i32) {
    %c0_i32 = arith.constant 0 : i32
    %c0_i32_0 = arith.constant 0 : i32
    %c0_i32_1 = arith.constant 0 : i32
    return %c0_i32, %c0_i32_0 : i32, i32
  }
  func.func @transform_5(%arg0: i32) -> (i32, i32) {
    %c0_i32 = arith.constant 0 : i32
    %c0_i32_0 = arith.constant 0 : i32
    %c0_i32_1 = arith.constant 0 : i32
    return %c0_i32, %c0_i32_0 : i32, i32
  }
  func.func @transform_6(%arg0: i32) -> (i32, i32) {
    %c0_i32 = arith.constant 0 : i32
    %c0_i32_0 = arith.constant 0 : i32
    %c0_i32_1 = arith.constant 0 : i32
    return %c0_i32, %c0_i32_0 : i32, i32
  }
  func.func @transform_7(%arg0: i32) -> (i32, i32) {
    %c0_i32 = arith.constant 0 : i32
    %c0_i32_0 = arith.constant 0 : i32
    return %arg0, %c0_i32 : i32, i32
  }
}

module attributes {stable_mosaic.version = 11 : i64} {
  func.func @_layernorm_kernel(%arg0: i32, %arg1: memref<64x256xf32, #tpu.memory_space<vmem>>, %arg2: memref<1x256xf32, #tpu.memory_space<vmem>>, %arg3: memref<1x256xf32, #tpu.memory_space<vmem>>, %arg4: memref<64x256xf32, #tpu.memory_space<vmem>>) attributes {dimension_semantics = [#tpu.dimension_semantics<parallel>], iteration_bounds = array<i64: 1>, scalar_prefetch = 0 : i64, scratch_operands = 0 : i64, tpu.core_type = #tpu.core_type<tc>, window_params = [{transform_indices = @transform_0, window_bounds = array<i64: 64, 256>}, {pipeline_mode = #tpu.pipeline_mode<synchronous>, transform_indices = @transform_1, window_bounds = array<i64: 1, 256>}, {pipeline_mode = #tpu.pipeline_mode<synchronous>, transform_indices = @transform_2, window_bounds = array<i64: 1, 256>}, {transform_indices = @transform_3, window_bounds = array<i64: 64, 256>}]} {
    %c0 = arith.constant 0 : index
    %c0_0 = arith.constant 0 : index
    %0 = vector.load %arg1[%c0, %c0_0] : memref<64x256xf32, #tpu.memory_space<vmem>>, vector<64x256xf32>
    %cst = arith.constant dense<0.000000e+00> : vector<64xf32>
    %1 = vector.multi_reduction <add>, %0, %cst [1] : vector<64x256xf32> to vector<64xf32>
    %2 = vector.shape_cast %1 : vector<64xf32> to vector<64x1xf32>
    %cst_1 = arith.constant 2.560000e+02 : f32
    %3 = vector.broadcast %cst_1 : f32 to vector<64x1xf32>
    %4 = arith.divf %2, %3 : vector<64x1xf32>
    %5 = vector.broadcast %4 : vector<64x1xf32> to vector<64x256xf32>
    %6 = arith.subf %0, %5 : vector<64x256xf32>
    %7 = arith.mulf %6, %6 : vector<64x256xf32>
    %cst_2 = arith.constant dense<0.000000e+00> : vector<64xf32>
    %8 = vector.multi_reduction <add>, %7, %cst_2 [1] : vector<64x256xf32> to vector<64xf32>
    %9 = vector.shape_cast %8 : vector<64xf32> to vector<64x1xf32>
    %cst_3 = arith.constant 2.560000e+02 : f32
    %10 = vector.broadcast %cst_3 : f32 to vector<64x1xf32>
    %11 = arith.divf %9, %10 : vector<64x1xf32>
    %cst_4 = arith.constant 9.99999974E-6 : f32
    %12 = vector.broadcast %cst_4 : f32 to vector<64x1xf32>
    %13 = arith.addf %11, %12 : vector<64x1xf32>
    %14 = math.rsqrt %13 : vector<64x1xf32>
    %15 = vector.broadcast %14 : vector<64x1xf32> to vector<64x256xf32>
    %16 = arith.mulf %6, %15 : vector<64x256xf32>
    %c0_5 = arith.constant 0 : index
    %c0_6 = arith.constant 0 : index
    %17 = vector.load %arg2[%c0_5, %c0_6] : memref<1x256xf32, #tpu.memory_space<vmem>>, vector<1x256xf32>
    %18 = vector.broadcast %17 : vector<1x256xf32> to vector<64x256xf32>
    %19 = arith.mulf %16, %18 : vector<64x256xf32>
    %c0_7 = arith.constant 0 : index
    %c0_8 = arith.constant 0 : index
    %20 = vector.load %arg3[%c0_7, %c0_8] : memref<1x256xf32, #tpu.memory_space<vmem>>, vector<1x256xf32>
    %21 = vector.broadcast %20 : vector<1x256xf32> to vector<64x256xf32>
    %22 = arith.addf %19, %21 : vector<64x256xf32>
    %c0_9 = arith.constant 0 : index
    %c0_10 = arith.constant 0 : index
    %23 = vector.load %arg4[%c0_9, %c0_10] : memref<64x256xf32, #tpu.memory_space<vmem>>, vector<64x256xf32>
    tpu.vector_store %arg4[%c0_9, %c0_10], %22 {strides = array<i32>} : memref<64x256xf32, #tpu.memory_space<vmem>>, vector<64x256xf32>,
    return
  }
  func.func @transform_0(%arg0: i32) -> (i32, i32) {
    %c0_i32 = arith.constant 0 : i32
    %c0_i32_0 = arith.constant 0 : i32
    return %arg0, %c0_i32 : i32, i32
  }
  func.func @transform_1(%arg0: i32) -> (i32, i32) {
    %c0_i32 = arith.constant 0 : i32
    %c0_i32_0 = arith.constant 0 : i32
    %c0_i32_1 = arith.constant 0 : i32
    return %c0_i32, %c0_i32_0 : i32, i32
  }
  func.func @transform_2(%arg0: i32) -> (i32, i32) {
    %c0_i32 = arith.constant 0 : i32
    %c0_i32_0 = arith.constant 0 : i32
    %c0_i32_1 = arith.constant 0 : i32
    return %c0_i32, %c0_i32_0 : i32, i32
  }
  func.func @transform_3(%arg0: i32) -> (i32, i32) {
    %c0_i32 = arith.constant 0 : i32
    %c0_i32_0 = arith.constant 0 : i32
    return %arg0, %c0_i32 : i32, i32
  }
}

module attributes {stable_mosaic.version = 11 : i64} {
  func.func @_linear_kernel(%arg0: i32, %arg1: memref<64x256xf32, #tpu.memory_space<vmem>>, %arg2: memref<256x16xf32, #tpu.memory_space<vmem>>, %arg3: memref<1x16xf32, #tpu.memory_space<vmem>>, %arg4: memref<64x16xf32, #tpu.memory_space<vmem>>) attributes {dimension_semantics = [#tpu.dimension_semantics<parallel>], iteration_bounds = array<i64: 1>, scalar_prefetch = 0 : i64, scratch_operands = 0 : i64, tpu.core_type = #tpu.core_type<tc>, window_params = [{transform_indices = @transform_0, window_bounds = array<i64: 64, 256>}, {pipeline_mode = #tpu.pipeline_mode<synchronous>, transform_indices = @transform_1, window_bounds = array<i64: 256, 16>}, {pipeline_mode = #tpu.pipeline_mode<synchronous>, transform_indices = @transform_2, window_bounds = array<i64: 1, 16>}, {transform_indices = @transform_3, window_bounds = array<i64: 64, 16>}]} {
    %c0 = arith.constant 0 : index
    %c0_0 = arith.constant 0 : index
    %0 = vector.load %arg1[%c0, %c0_0] : memref<64x256xf32, #tpu.memory_space<vmem>>, vector<64x256xf32>
    %c0_1 = arith.constant 0 : index
    %c0_2 = arith.constant 0 : index
    %1 = vector.load %arg2[%c0_1, %c0_2] : memref<256x16xf32, #tpu.memory_space<vmem>>, vector<256x16xf32>
    %cst = arith.constant dense<0.000000e+00> : vector<64x16xf32>
    %2 = tpu.matmul %0, %1, %cst {dimension_numbers = #tpu.dot_dimension_numbers<[1], [0], [0], [1], [0, 0, 1, 1], [], []>} : vector<64x256xf32>, vector<256x16xf32>, vector<64x16xf32> -> vector<64x16xf32>
    %c0_3 = arith.constant 0 : index
    %c0_4 = arith.constant 0 : index
    %3 = vector.load %arg3[%c0_3, %c0_4] : memref<1x16xf32, #tpu.memory_space<vmem>>, vector<1x16xf32>
    %4 = vector.broadcast %3 : vector<1x16xf32> to vector<64x16xf32>
    %5 = arith.addf %2, %4 : vector<64x16xf32>
    %c0_5 = arith.constant 0 : index
    %c0_6 = arith.constant 0 : index
    %6 = vector.load %arg4[%c0_5, %c0_6] : memref<64x16xf32, #tpu.memory_space<vmem>>, vector<64x16xf32>
    tpu.vector_store %arg4[%c0_5, %c0_6], %5 {strides = array<i32>} : memref<64x16xf32, #tpu.memory_space<vmem>>, vector<64x16xf32>,
    return
  }
  func.func @transform_0(%arg0: i32) -> (i32, i32) {
    %c0_i32 = arith.constant 0 : i32
    %c0_i32_0 = arith.constant 0 : i32
    return %arg0, %c0_i32 : i32, i32
  }
  func.func @transform_1(%arg0: i32) -> (i32, i32) {
    %c0_i32 = arith.constant 0 : i32
    %c0_i32_0 = arith.constant 0 : i32
    %c0_i32_1 = arith.constant 0 : i32
    return %c0_i32, %c0_i32_0 : i32, i32
  }
  func.func @transform_2(%arg0: i32) -> (i32, i32) {
    %c0_i32 = arith.constant 0 : i32
    %c0_i32_0 = arith.constant 0 : i32
    %c0_i32_1 = arith.constant 0 : i32
    return %c0_i32, %c0_i32_0 : i32, i32
  }
  func.func @transform_3(%arg0: i32) -> (i32, i32) {
    %c0_i32 = arith.constant 0 : i32
    %c0_i32_0 = arith.constant 0 : i32
    return %arg0, %c0_i32 : i32, i32
  }
}

</mosaic_0001>

<llo_original>
// kernel: _lambda_.12
$region0: #{_lambda_.12}
  #allocation0 [shape = 'u32[]', space=smem, size = 0x4, offset = 0x4, fixed_abs, tag = 'smem constant byte address 0x4 - core index']
  #allocation1 [shape = 'u32[72,128]{1,0:T(1,128)}', space=vmem, size = 0x9000, scoped, tag = 'internal scratch']
  %s0 = inlined_call_operand.vmem [shape: f32[8,768], index: 0, kind: input, shape index: {}]
  %s1 = inlined_call_operand.vmem [shape: f32[768,256], index: 1, kind: input, shape index: {}]
  %s2 = inlined_call_operand.vmem [shape: f32[1,256], index: 2, kind: input, shape index: {}]
  %s3 = inlined_call_operand.vmem [shape: f32[8,256], index: 3, kind: output, shape index: {}]
  %s4 = sld [smem:[#allocation0]]
  $region22: #{_lambda_.12} parent=0
    _
  %s6 = ssub.s32 1, %s4
  %s7 = scalar_select 0, %s6, %s4
  // Predicated region
  $region2: #{_lambda_.12} parent=0 // pred_check
    _
  $region3: #{_lambda_.12} parent=0 // pred_check_branch
    %9 = sbr.rel (0) target = $region5
  $region4: #{_lambda_.12} parent=0 // pred_region
    _
  $region5: #{_lambda_.12} parent=0 // pred_fallthru
    _
  // Predicated region
  $region6: #{_lambda_.12} parent=0 // pred_check
    _
  $region7: #{_lambda_.12} parent=0 // pred_check_branch
    %11 = sbr.rel (0) target = $region9
  $region8: #{_lambda_.12} parent=0 // pred_region
    _
  $region9: #{_lambda_.12} parent=0 // pred_fallthru
    _
  // Predicated region
  $region10: #{_lambda_.12} parent=0 // pred_check
    _
  $region11: #{_lambda_.12} parent=0 // pred_check_branch
    %13 = sbr.rel (0) target = $region13
  $region12: #{_lambda_.12} parent=0 // pred_region
    _
  $region13: #{_lambda_.12} parent=0 // pred_fallthru
    _
  %v14 = vld [vmem:[%s0] sm:$0xff]
  %v15 = vld [vmem:[%s0 + $0x8] sm:$0xff]
  %v16 = vld [vmem:[%s0 + $0x10] sm:$0xff]
  %v17 = vld [vmem:[%s0 + $0x18] sm:$0xff]
  %v18 = vld [vmem:[%s0 + $0x20] sm:$0xff]
  %v19 = vld [vmem:[%s0 + $0x28] sm:$0xff]
  %v20 = vld [vmem:[%s1] sm:$0xff]
  %v21 = vld [vmem:[%s1 + $0x8] sm:$0xff]
  %v22 = vld [vmem:[%s1 + $0x10] sm:$0xff]
  %v23 = vld [vmem:[%s1 + $0x18] sm:$0xff]
  %v24 = vld [vmem:[%s1 + $0x20] sm:$0xff]
  %v25 = vld [vmem:[%s1 + $0x28] sm:$0xff]
  %v26 = vld [vmem:[%s1 + $0x30] sm:$0xff]
  %v27 = vld [vmem:[%s1 + $0x38] sm:$0xff]
  %v28 = vld [vmem:[%s1 + $0x40] sm:$0xff]
  %v29 = vld [vmem:[%s1 + $0x48] sm:$0xff]
  %v30 = vld [vmem:[%s1 + $0x50] sm:$0xff]
  %v31 = vld [vmem:[%s1 + $0x58] sm:$0xff]
  %v32 = vld [vmem:[%s1 + $0x60] sm:$0xff]
  %v33 = vld [vmem:[%s1 + $0x68] sm:$0xff]
  %v34 = vld [vmem:[%s1 + $0x70] sm:$0xff]
  %v35 = vld [vmem:[%s1 + $0x78] sm:$0xff]
  %v36 = vld [vmem:[%s1 + $0x80] sm:$0xff]
  %v37 = vld [vmem:[%s1 + $0x88] sm:$0xff]
  %v38 = vld [vmem:[%s1 + $0x90] sm:$0xff]
  %v39 = vld [vmem:[%s1 + $0x98] sm:$0xff]
  %v40 = vld [vmem:[%s1 + $0xa0] sm:$0xff]
  %v41 = vld [vmem:[%s1 + $0xa8] sm:$0xff]
  %v42 = vld [vmem:[%s1 + $0xb0] sm:$0xff]
  %v43 = vld [vmem:[%s1 + $0xb8] sm:$0xff]
  %v44 = vld [vmem:[%s1 + $0xc0] sm:$0xff]
  %v45 = vld [vmem:[%s1 + $0xc8] sm:$0xff]
  %v46 = vld [vmem:[%s1 + $0xd0] sm:$0xff]
  %v47 = vld [vmem:[%s1 + $0xd8] sm:$0xff]
  %v48 = vld [vmem:[%s1 + $0xe0] sm:$0xff]
  %v49 = vld [vmem:[%s1 + $0xe8] sm:$0xff]
  %v50 = vld [vmem:[%s1 + $0xf0] sm:$0xff]
  %v51 = vld [vmem:[%s1 + $0xf8] sm:$0xff]
  %v52 = vld [vmem:[%s1 + $0x100] sm:$0xff]
  %v53 = vld [vmem:[%s1 + $0x108] sm:$0xff]
  %v54 = vld [vmem:[%s1 + $0x110] sm:$0xff]
  %v55 = vld [vmem:[%s1 + $0x118] sm:$0xff]
  %v56 = vld [vmem:[%s1 + $0x120] sm:$0xff]
  %v57 = vld [vmem:[%s1 + $0x128] sm:$0xff]
  %v58 = vld [vmem:[%s1 + $0x130] sm:$0xff]
  %v59 = vld [vmem:[%s1 + $0x138] sm:$0xff]
  %v60 = vld [vmem:[%s1 + $0x140] sm:$0xff]
  %v61 = vld [vmem:[%s1 + $0x148] sm:$0xff]
  %v62 = vld [vmem:[%s1 + $0x150] sm:$0xff]
  %v63 = vld [vmem:[%s1 + $0x158] sm:$0xff]
  %v64 = vld [vmem:[%s1 + $0x160] sm:$0xff]
  %v65 = vld [vmem:[%s1 + $0x168] sm:$0xff]
  %v66 = vld [vmem:[%s1 + $0x170] sm:$0xff]
  %v67 = vld [vmem:[%s1 + $0x178] sm:$0xff]
  %v68 = vld [vmem:[%s1 + $0x180] sm:$0xff]
  %v69 = vld [vmem:[%s1 + $0x188] sm:$0xff]
  %v70 = vld [vmem:[%s1 + $0x190] sm:$0xff]
  %v71 = vld [vmem:[%s1 + $0x198] sm:$0xff]
  %v72 = vld [vmem:[%s1 + $0x1a0] sm:$0xff]
  %v73 = vld [vmem:[%s1 + $0x1a8] sm:$0xff]
  %v74 = vld [vmem:[%s1 + $0x1b0] sm:$0xff]
  %v75 = vld [vmem:[%s1 + $0x1b8] sm:$0xff]
  %v76 = vld [vmem:[%s1 + $0x1c0] sm:$0xff]
  %v77 = vld [vmem:[%s1 + $0x1c8] sm:$0xff]
  %v78 = vld [vmem:[%s1 + $0x1d0] sm:$0xff]
  %v79 = vld [vmem:[%s1 + $0x1d8] sm:$0xff]
  %v80 = vld [vmem:[%s1 + $0x1e0] sm:$0xff]
  %v81 = vld [vmem:[%s1 + $0x1e8] sm:$0xff]
  %v82 = vld [vmem:[%s1 + $0x1f0] sm:$0xff]
  %v83 = vld [vmem:[%s1 + $0x1f8] sm:$0xff]
  %v84 = vld [vmem:[%s1 + $0x200] sm:$0xff]
  %v85 = vld [vmem:[%s1 + $0x208] sm:$0xff]
  %v86 = vld [vmem:[%s1 + $0x210] sm:$0xff]
  %v87 = vld [vmem:[%s1 + $0x218] sm:$0xff]
  %v88 = vld [vmem:[%s1 + $0x220] sm:$0xff]
  %v89 = vld [vmem:[%s1 + $0x228] sm:$0xff]
  %v90 = vld [vmem:[%s1 + $0x230] sm:$0xff]
  %v91 = vld [vmem:[%s1 + $0x238] sm:$0xff]
  %v92 = vld [vmem:[%s1 + $0x240] sm:$0xff]
  %v93 = vld [vmem:[%s1 + $0x248] sm:$0xff]
  %v94 = vld [vmem:[%s1 + $0x250] sm:$0xff]
  %v95 = vld [vmem:[%s1 + $0x258] sm:$0xff]
  %v96 = vld [vmem:[%s1 + $0x260] sm:$0xff]
  %v97 = vld [vmem:[%s1 + $0x268] sm:$0xff]
  %v98 = vld [vmem:[%s1 + $0x270] sm:$0xff]
  %v99 = vld [vmem:[%s1 + $0x278] sm:$0xff]
  %v100 = vld [vmem:[%s1 + $0x280] sm:$0xff]
  %v101 = vld [vmem:[%s1 + $0x288] sm:$0xff]
  %v102 = vld [vmem:[%s1 + $0x290] sm:$0xff]
  %v103 = vld [vmem:[%s1 + $0x298] sm:$0xff]
  %v104 = vld [vmem:[%s1 + $0x2a0] sm:$0xff]
  %v105 = vld [vmem:[%s1 + $0x2a8] sm:$0xff]
  %v106 = vld [vmem:[%s1 + $0x2b0] sm:$0xff]
  %v107 = vld [vmem:[%s1 + $0x2b8] sm:$0xff]
  %v108 = vld [vmem:[%s1 + $0x2c0] sm:$0xff]
  %v109 = vld [vmem:[%s1 + $0x2c8] sm:$0xff]
  %v110 = vld [vmem:[%s1 + $0x2d0] sm:$0xff]
  %v111 = vld [vmem:[%s1 + $0x2d8] sm:$0xff]
  %v112 = vld [vmem:[%s1 + $0x2e0] sm:$0xff]
  %v113 = vld [vmem:[%s1 + $0x2e8] sm:$0xff]
  %v114 = vld [vmem:[%s1 + $0x2f0] sm:$0xff]
  %v115 = vld [vmem:[%s1 + $0x2f8] sm:$0xff]
  %v116 = vld [vmem:[%s1 + $0x300] sm:$0xff]
  %v117 = vld [vmem:[%s1 + $0x308] sm:$0xff]
  %v118 = vld [vmem:[%s1 + $0x310] sm:$0xff]
  %v119 = vld [vmem:[%s1 + $0x318] sm:$0xff]
  %v120 = vld [vmem:[%s1 + $0x320] sm:$0xff]
  %v121 = vld [vmem:[%s1 + $0x328] sm:$0xff]
  %v122 = vld [vmem:[%s1 + $0x330] sm:$0xff]
  %v123 = vld [vmem:[%s1 + $0x338] sm:$0xff]
  %v124 = vld [vmem:[%s1 + $0x340] sm:$0xff]
  %v125 = vld [vmem:[%s1 + $0x348] sm:$0xff]
  %v126 = vld [vmem:[%s1 + $0x350] sm:$0xff]
  %v127 = vld [vmem:[%s1 + $0x358] sm:$0xff]
  %v128 = vld [vmem:[%s1 + $0x360] sm:$0xff]
  %v129 = vld [vmem:[%s1 + $0x368] sm:$0xff]
  %v130 = vld [vmem:[%s1 + $0x370] sm:$0xff]
  %v131 = vld [vmem:[%s1 + $0x378] sm:$0xff]
  %v132 = vld [vmem:[%s1 + $0x380] sm:$0xff]
  %v133 = vld [vmem:[%s1 + $0x388] sm:$0xff]
  %v134 = vld [vmem:[%s1 + $0x390] sm:$0xff]
  %v135 = vld [vmem:[%s1 + $0x398] sm:$0xff]
  %v136 = vld [vmem:[%s1 + $0x3a0] sm:$0xff]
  %v137 = vld [vmem:[%s1 + $0x3a8] sm:$0xff]
  %v138 = vld [vmem:[%s1 + $0x3b0] sm:$0xff]
  %v139 = vld [vmem:[%s1 + $0x3b8] sm:$0xff]
  %v140 = vld [vmem:[%s1 + $0x3c0] sm:$0xff]
  %v141 = vld [vmem:[%s1 + $0x3c8] sm:$0xff]
  %v142 = vld [vmem:[%s1 + $0x3d0] sm:$0xff]
  %v143 = vld [vmem:[%s1 + $0x3d8] sm:$0xff]
  %v144 = vld [vmem:[%s1 + $0x3e0] sm:$0xff]
  %v145 = vld [vmem:[%s1 + $0x3e8] sm:$0xff]
  %v146 = vld [vmem:[%s1 + $0x3f0] sm:$0xff]
  %v147 = vld [vmem:[%s1 + $0x3f8] sm:$0xff]
  %v148 = vld [vmem:[%s1 + $0x400] sm:$0xff]
  %v149 = vld [vmem:[%s1 + $0x408] sm:$0xff]
  %v150 = vld [vmem:[%s1 + $0x410] sm:$0xff]
  %v151 = vld [vmem:[%s1 + $0x418] sm:$0xff]
  %v152 = vld [vmem:[%s1 + $0x420] sm:$0xff]
  %v153 = vld [vmem:[%s1 + $0x428] sm:$0xff]
  %v154 = vld [vmem:[%s1 + $0x430] sm:$0xff]
  %v155 = vld [vmem:[%s1 + $0x438] sm:$0xff]
  %v156 = vld [vmem:[%s1 + $0x440] sm:$0xff]
  %v157 = vld [vmem:[%s1 + $0x448] sm:$0xff]
  %v158 = vld [vmem:[%s1 + $0x450] sm:$0xff]
  %v159 = vld [vmem:[%s1 + $0x458] sm:$0xff]
  %v160 = vld [vmem:[%s1 + $0x460] sm:$0xff]
  %v161 = vld [vmem:[%s1 + $0x468] sm:$0xff]
  %v162 = vld [vmem:[%s1 + $0x470] sm:$0xff]
  %v163 = vld [vmem:[%s1 + $0x478] sm:$0xff]
  %v164 = vld [vmem:[%s1 + $0x480] sm:$0xff]
  %v165 = vld [vmem:[%s1 + $0x488] sm:$0xff]
  %v166 = vld [vmem:[%s1 + $0x490] sm:$0xff]
  %v167 = vld [vmem:[%s1 + $0x498] sm:$0xff]
  %v168 = vld [vmem:[%s1 + $0x4a0] sm:$0xff]
  %v169 = vld [vmem:[%s1 + $0x4a8] sm:$0xff]
  %v170 = vld [vmem:[%s1 + $0x4b0] sm:$0xff]
  %v171 = vld [vmem:[%s1 + $0x4b8] sm:$0xff]
  %v172 = vld [vmem:[%s1 + $0x4c0] sm:$0xff]
  %v173 = vld [vmem:[%s1 + $0x4c8] sm:$0xff]
  %v174 = vld [vmem:[%s1 + $0x4d0] sm:$0xff]
  %v175 = vld [vmem:[%s1 + $0x4d8] sm:$0xff]
  %v176 = vld [vmem:[%s1 + $0x4e0] sm:$0xff]
  %v177 = vld [vmem:[%s1 + $0x4e8] sm:$0xff]
  %v178 = vld [vmem:[%s1 + $0x4f0] sm:$0xff]
  %v179 = vld [vmem:[%s1 + $0x4f8] sm:$0xff]
  %v180 = vld [vmem:[%s1 + $0x500] sm:$0xff]
  %v181 = vld [vmem:[%s1 + $0x508] sm:$0xff]
  %v182 = vld [vmem:[%s1 + $0x510] sm:$0xff]
  %v183 = vld [vmem:[%s1 + $0x518] sm:$0xff]
  %v184 = vld [vmem:[%s1 + $0x520] sm:$0xff]
  %v185 = vld [vmem:[%s1 + $0x528] sm:$0xff]
  %v186 = vld [vmem:[%s1 + $0x530] sm:$0xff]
  %v187 = vld [vmem:[%s1 + $0x538] sm:$0xff]
  %v188 = vld [vmem:[%s1 + $0x540] sm:$0xff]
  %v189 = vld [vmem:[%s1 + $0x548] sm:$0xff]
  %v190 = vld [vmem:[%s1 + $0x550] sm:$0xff]
  %v191 = vld [vmem:[%s1 + $0x558] sm:$0xff]
  %v192 = vld [vmem:[%s1 + $0x560] sm:$0xff]
  %v193 = vld [vmem:[%s1 + $0x568] sm:$0xff]
  %v194 = vld [vmem:[%s1 + $0x570] sm:$0xff]
  %v195 = vld [vmem:[%s1 + $0x578] sm:$0xff]
  %v196 = vld [vmem:[%s1 + $0x580] sm:$0xff]
  %v197 = vld [vmem:[%s1 + $0x588] sm:$0xff]
  %v198 = vld [vmem:[%s1 + $0x590] sm:$0xff]
  %v199 = vld [vmem:[%s1 + $0x598] sm:$0xff]
  %v200 = vld [vmem:[%s1 + $0x5a0] sm:$0xff]
  %v201 = vld [vmem:[%s1 + $0x5a8] sm:$0xff]
  %v202 = vld [vmem:[%s1 + $0x5b0] sm:$0xff]
  %v203 = vld [vmem:[%s1 + $0x5b8] sm:$0xff]
  %v204 = vld [vmem:[%s1 + $0x5c0] sm:$0xff]
  %v205 = vld [vmem:[%s1 + $0x5c8] sm:$0xff]
  %v206 = vld [vmem:[%s1 + $0x5d0] sm:$0xff]
  %v207 = vld [vmem:[%s1 + $0x5d8] sm:$0xff]
  %v208 = vld [vmem:[%s1 + $0x5e0] sm:$0xff]
  %v209 = vld [vmem:[%s1 + $0x5e8] sm:$0xff]
  %v210 = vld [vmem:[%s1 + $0x5f0] sm:$0xff]
  %v211 = vld [vmem:[%s1 + $0x5f8] sm:$0xff]
  %v212 = vld [vmem:[%s2] sm:$0x3]
  %v214 = vperm.slane %v212, 0
  %v215 = vperm.slane %v212, 1
  %218 = vmatpush.msra.mxu0 %v50
  %219 = vmatpush.msra.mxu0 %v48
  %220 = vmatpush.msra.mxu0 %v46
  %221 = vmatpush.msra.mxu0 %v44
  %222 = vmatpush.msra.mxu0 %v42
  %223 = vmatpush.msra.mxu0 %v40
  %224 = vmatpush.msra.mxu0 %v38
  %225 = vmatpush.msra.mxu0 %v36
  %226 = vmatpush.msra.mxu0 %v34
  %227 = vmatpush.msra.mxu0 %v32
  %228 = vmatpush.msra.mxu0 %v30
  %229 = vmatpush.msra.mxu0 %v28
  %230 = vmatpush.msra.mxu0 %v26
  %231 = vmatpush.msra.mxu0 %v24
  %232 = vmatpush.msra.mxu0 %v22
  %233 = vmatpush.msra.mxu0 %v20
  %234 = vmatmul.f32.gmra.mxu0 %v14
  %v235 = vpop.f32.mrf.mxu0
  %v236 = vadd.f32 %v214, %v235
  %237 = vdwg.mxu0
  %238 = vmatpush.msra.mxu0 %v82
  %239 = vmatpush.msra.mxu0 %v80
  %240 = vmatpush.msra.mxu0 %v78
  %241 = vmatpush.msra.mxu0 %v76
  %242 = vmatpush.msra.mxu0 %v74
  %243 = vmatpush.msra.mxu0 %v72
  %244 = vmatpush.msra.mxu0 %v70
  %245 = vmatpush.msra.mxu0 %v68
  %246 = vmatpush.msra.mxu0 %v66
  %247 = vmatpush.msra.mxu0 %v64
  %248 = vmatpush.msra.mxu0 %v62
  %249 = vmatpush.msra.mxu0 %v60
  %250 = vmatpush.msra.mxu0 %v58
  %251 = vmatpush.msra.mxu0 %v56
  %252 = vmatpush.msra.mxu0 %v54
  %253 = vmatpush.msra.mxu0 %v52
  %254 = vmatmul.f32.gmra.mxu0 %v15
  %v255 = vpop.f32.mrf.mxu0
  %v256 = vadd.f32 %v236, %v255
  %257 = vdwg.mxu0
  %258 = vmatpush.msra.mxu0 %v114
  %259 = vmatpush.msra.mxu0 %v112
  %260 = vmatpush.msra.mxu0 %v110
  %261 = vmatpush.msra.mxu0 %v108
  %262 = vmatpush.msra.mxu0 %v106
  %263 = vmatpush.msra.mxu0 %v104
  %264 = vmatpush.msra.mxu0 %v102
  %265 = vmatpush.msra.mxu0 %v100
  %266 = vmatpush.msra.mxu0 %v98
  %267 = vmatpush.msra.mxu0 %v96
  %268 = vmatpush.msra.mxu0 %v94
  %269 = vmatpush.msra.mxu0 %v92
  %270 = vmatpush.msra.mxu0 %v90
  %271 = vmatpush.msra.mxu0 %v88
  %272 = vmatpush.msra.mxu0 %v86
  %273 = vmatpush.msra.mxu0 %v84
  %274 = vmatmul.f32.gmra.mxu0 %v16
  %v275 = vpop.f32.mrf.mxu0
  %v276 = vadd.f32 %v256, %v275
  %277 = vdwg.mxu0
  %278 = vmatpush.msra.mxu0 %v146
  %279 = vmatpush.msra.mxu0 %v144
  %280 = vmatpush.msra.mxu0 %v142
  %281 = vmatpush.msra.mxu0 %v140
  %282 = vmatpush.msra.mxu0 %v138
  %283 = vmatpush.msra.mxu0 %v136
  %284 = vmatpush.msra.mxu0 %v134
  %285 = vmatpush.msra.mxu0 %v132
  %286 = vmatpush.msra.mxu0 %v130
  %287 = vmatpush.msra.mxu0 %v128
  %288 = vmatpush.msra.mxu0 %v126
  %289 = vmatpush.msra.mxu0 %v124
  %290 = vmatpush.msra.mxu0 %v122
  %291 = vmatpush.msra.mxu0 %v120
  %292 = vmatpush.msra.mxu0 %v118
  %293 = vmatpush.msra.mxu0 %v116
  %294 = vmatmul.f32.gmra.mxu0 %v17
  %v295 = vpop.f32.mrf.mxu0
  %v296 = vadd.f32 %v276, %v295
  %297 = vdwg.mxu0
  %298 = vmatpush.msra.mxu0 %v178
  %299 = vmatpush.msra.mxu0 %v176
  %300 = vmatpush.msra.mxu0 %v174
  %301 = vmatpush.msra.mxu0 %v172
  %302 = vmatpush.msra.mxu0 %v170
  %303 = vmatpush.msra.mxu0 %v168
  %304 = vmatpush.msra.mxu0 %v166
  %305 = vmatpush.msra.mxu0 %v164
  %306 = vmatpush.msra.mxu0 %v162
  %307 = vmatpush.msra.mxu0 %v160
  %308 = vmatpush.msra.mxu0 %v158
  %309 = vmatpush.msra.mxu0 %v156
  %310 = vmatpush.msra.mxu0 %v154
  %311 = vmatpush.msra.mxu0 %v152
  %312 = vmatpush.msra.mxu0 %v150
  %313 = vmatpush.msra.mxu0 %v148
  %314 = vmatmul.f32.gmra.mxu0 %v18
  %v315 = vpop.f32.mrf.mxu0
  %v316 = vadd.f32 %v296, %v315
  %317 = vdwg.mxu0
  %318 = vmatpush.msra.mxu0 %v210
  %319 = vmatpush.msra.mxu0 %v208
  %320 = vmatpush.msra.mxu0 %v206
  %321 = vmatpush.msra.mxu0 %v204
  %322 = vmatpush.msra.mxu0 %v202
  %323 = vmatpush.msra.mxu0 %v200
  %324 = vmatpush.msra.mxu0 %v198
  %325 = vmatpush.msra.mxu0 %v196
  %326 = vmatpush.msra.mxu0 %v194
  %327 = vmatpush.msra.mxu0 %v192
  %328 = vmatpush.msra.mxu0 %v190
  %329 = vmatpush.msra.mxu0 %v188
  %330 = vmatpush.msra.mxu0 %v186
  %331 = vmatpush.msra.mxu0 %v184
  %332 = vmatpush.msra.mxu0 %v182
  %333 = vmatpush.msra.mxu0 %v180
  %334 = vmatmul.f32.gmra.mxu0 %v19
  %v335 = vpop.f32.mrf.mxu0
  %v336 = vadd.f32 %v316, %v335
  %337 = vdwg.mxu0
  %338 = vmatpush.msra.mxu0 %v51
  %339 = vmatpush.msra.mxu0 %v49
  %340 = vmatpush.msra.mxu0 %v47
  %341 = vmatpush.msra.mxu0 %v45
  %342 = vmatpush.msra.mxu0 %v43
  %343 = vmatpush.msra.mxu0 %v41
  %344 = vmatpush.msra.mxu0 %v39
  %345 = vmatpush.msra.mxu0 %v37
  %346 = vmatpush.msra.mxu0 %v35
  %347 = vmatpush.msra.mxu0 %v33
  %348 = vmatpush.msra.mxu0 %v31
  %349 = vmatpush.msra.mxu0 %v29
  %350 = vmatpush.msra.mxu0 %v27
  %351 = vmatpush.msra.mxu0 %v25
  %352 = vmatpush.msra.mxu0 %v23
  %353 = vmatpush.msra.mxu0 %v21
  %354 = vmatmul.f32.gmra.mxu0 %v14
  %v355 = vpop.f32.mrf.mxu0
  %v356 = vadd.f32 %v215, %v355
  %357 = vdwg.mxu0
  %358 = vmatpush.msra.mxu0 %v83
  %359 = vmatpush.msra.mxu0 %v81
  %360 = vmatpush.msra.mxu0 %v79
  %361 = vmatpush.msra.mxu0 %v77
  %362 = vmatpush.msra.mxu0 %v75
  %363 = vmatpush.msra.mxu0 %v73
  %364 = vmatpush.msra.mxu0 %v71
  %365 = vmatpush.msra.mxu0 %v69
  %366 = vmatpush.msra.mxu0 %v67
  %367 = vmatpush.msra.mxu0 %v65
  %368 = vmatpush.msra.mxu0 %v63
  %369 = vmatpush.msra.mxu0 %v61
  %370 = vmatpush.msra.mxu0 %v59
  %371 = vmatpush.msra.mxu0 %v57
  %372 = vmatpush.msra.mxu0 %v55
  %373 = vmatpush.msra.mxu0 %v53
  %374 = vmatmul.f32.gmra.mxu0 %v15
  %v375 = vpop.f32.mrf.mxu0
  %v376 = vadd.f32 %v356, %v375
  %377 = vdwg.mxu0
  %378 = vmatpush.msra.mxu0 %v115
  %379 = vmatpush.msra.mxu0 %v113
  %380 = vmatpush.msra.mxu0 %v111
  %381 = vmatpush.msra.mxu0 %v109
  %382 = vmatpush.msra.mxu0 %v107
  %383 = vmatpush.msra.mxu0 %v105
  %384 = vmatpush.msra.mxu0 %v103
  %385 = vmatpush.msra.mxu0 %v101
  %386 = vmatpush.msra.mxu0 %v99
  %387 = vmatpush.msra.mxu0 %v97
  %388 = vmatpush.msra.mxu0 %v95
  %389 = vmatpush.msra.mxu0 %v93
  %390 = vmatpush.msra.mxu0 %v91
  %391 = vmatpush.msra.mxu0 %v89
  %392 = vmatpush.msra.mxu0 %v87
  %393 = vmatpush.msra.mxu0 %v85
  %394 = vmatmul.f32.gmra.mxu0 %v16
  %v395 = vpop.f32.mrf.mxu0
  %v396 = vadd.f32 %v376, %v395
  %397 = vdwg.mxu0
  %398 = vmatpush.msra.mxu0 %v147
  %399 = vmatpush.msra.mxu0 %v145
  %400 = vmatpush.msra.mxu0 %v143
  %401 = vmatpush.msra.mxu0 %v141
  %402 = vmatpush.msra.mxu0 %v139
  %403 = vmatpush.msra.mxu0 %v137
  %404 = vmatpush.msra.mxu0 %v135
  %405 = vmatpush.msra.mxu0 %v133
  %406 = vmatpush.msra.mxu0 %v131
  %407 = vmatpush.msra.mxu0 %v129
  %408 = vmatpush.msra.mxu0 %v127
  %409 = vmatpush.msra.mxu0 %v125
  %410 = vmatpush.msra.mxu0 %v123
  %411 = vmatpush.msra.mxu0 %v121
  %412 = vmatpush.msra.mxu0 %v119
  %413 = vmatpush.msra.mxu0 %v117
  %414 = vmatmul.f32.gmra.mxu0 %v17
  %v415 = vpop.f32.mrf.mxu0
  %v416 = vadd.f32 %v396, %v415
  %417 = vdwg.mxu0
  %418 = vmatpush.msra.mxu0 %v179
  %419 = vmatpush.msra.mxu0 %v177
  %420 = vmatpush.msra.mxu0 %v175
  %421 = vmatpush.msra.mxu0 %v173
  %422 = vmatpush.msra.mxu0 %v171
  %423 = vmatpush.msra.mxu0 %v169
  %424 = vmatpush.msra.mxu0 %v167
  %425 = vmatpush.msra.mxu0 %v165
  %426 = vmatpush.msra.mxu0 %v163
  %427 = vmatpush.msra.mxu0 %v161
  %428 = vmatpush.msra.mxu0 %v159
  %429 = vmatpush.msra.mxu0 %v157
  %430 = vmatpush.msra.mxu0 %v155
  %431 = vmatpush.msra.mxu0 %v153
  %432 = vmatpush.msra.mxu0 %v151
  %433 = vmatpush.msra.mxu0 %v149
  %434 = vmatmul.f32.gmra.mxu0 %v18
  %v435 = vpop.f32.mrf.mxu0
  %v436 = vadd.f32 %v416, %v435
  %437 = vdwg.mxu0
  %438 = vmatpush.msra.mxu0 %v211
  %439 = vmatpush.msra.mxu0 %v209
  %440 = vmatpush.msra.mxu0 %v207
  %441 = vmatpush.msra.mxu0 %v205
  %442 = vmatpush.msra.mxu0 %v203
  %443 = vmatpush.msra.mxu0 %v201
  %444 = vmatpush.msra.mxu0 %v199
  %445 = vmatpush.msra.mxu0 %v197
  %446 = vmatpush.msra.mxu0 %v195
  %447 = vmatpush.msra.mxu0 %v193
  %448 = vmatpush.msra.mxu0 %v191
  %449 = vmatpush.msra.mxu0 %v189
  %450 = vmatpush.msra.mxu0 %v187
  %451 = vmatpush.msra.mxu0 %v185
  %452 = vmatpush.msra.mxu0 %v183
  %453 = vmatpush.msra.mxu0 %v181
  %454 = vmatmul.f32.gmra.mxu0 %v19
  %v455 = vpop.f32.mrf.mxu0
  %v456 = vadd.f32 %v436, %v455
  %457 = vdwg.mxu0
  %458 = vst [vmem:[%s3] sm:$0xff] %v336
  %459 = vst [vmem:[%s3 + $0x8] sm:$0xff] %v456
  // Predicated region
  $region14: #{_lambda_.12} parent=0 // pred_check
    _
  $region15: #{_lambda_.12} parent=0 // pred_check_branch
    %461 = sbr.rel (0) target = $region17
  $region16: #{_lambda_.12} parent=0 // pred_region
    _
  $region17: #{_lambda_.12} parent=0 // pred_fallthru
    _
  // Predicated region
  $region18: #{_lambda_.12} parent=0 // pred_check
    _
  $region19: #{_lambda_.12} parent=0 // pred_check_branch
    %463 = sbr.rel (0) target = $region21
  $region20: #{_lambda_.12} parent=0 // pred_region
    _
  $region21: #{_lambda_.12} parent=0 // pred_fallthru
    _

// kernel: _lambda_.13
$region0: #{_lambda_.13}
  #allocation0 [shape = 'u32[]', space=smem, size = 0x4, offset = 0x4, fixed_abs, tag = 'smem constant byte address 0x4 - core index']
  #allocation1 [shape = 'u32[72,128]{1,0:T(1,128)}', space=vmem, size = 0x9000, scoped, tag = 'internal scratch']
  %s0 = inlined_call_operand.vmem [shape: f32[80,256], index: 0, kind: input, shape index: {}]
  %s1 = inlined_call_operand.vmem [shape: f32[1,256], index: 1, kind: input, shape index: {}]
  %s2 = inlined_call_operand.vmem [shape: f32[1,256], index: 2, kind: input, shape index: {}]
  %s3 = inlined_call_operand.vmem [shape: f32[80,256], index: 3, kind: output, shape index: {}]
  %s4 = sld [smem:[#allocation0]]
  $region22: #{_lambda_.13} parent=0
    _
  %s6 = ssub.s32 1, %s4
  %s7 = scalar_select 0, %s6, %s4
  // Predicated region
  $region2: #{_lambda_.13} parent=0 // pred_check
    _
  $region3: #{_lambda_.13} parent=0 // pred_check_branch
    %9 = sbr.rel (0) target = $region5
  $region4: #{_lambda_.13} parent=0 // pred_region
    _
  $region5: #{_lambda_.13} parent=0 // pred_fallthru
    _
  // Predicated region
  $region6: #{_lambda_.13} parent=0 // pred_check
    _
  $region7: #{_lambda_.13} parent=0 // pred_check_branch
    %11 = sbr.rel (0) target = $region9
  $region8: #{_lambda_.13} parent=0 // pred_region
    _
  $region9: #{_lambda_.13} parent=0 // pred_fallthru
    _
  // Predicated region
  $region10: #{_lambda_.13} parent=0 // pred_check
    _
  $region11: #{_lambda_.13} parent=0 // pred_check_branch
    %13 = sbr.rel (0) target = $region13
  $region12: #{_lambda_.13} parent=0 // pred_region
    _
  $region13: #{_lambda_.13} parent=0 // pred_fallthru
    _
  %v14 = vld [vmem:[%s0] sm:$0xff]
  %v15 = vld [vmem:[%s0 + $0x8] sm:$0xff]
  %v16 = vld [vmem:[%s0 + $0x10] sm:$0xff]
  %v17 = vld [vmem:[%s0 + $0x18] sm:$0xff]
  %v18 = vld [vmem:[%s0 + $0x20] sm:$0xff]
  %v19 = vld [vmem:[%s0 + $0x28] sm:$0xff]
  %v20 = vld [vmem:[%s0 + $0x30] sm:$0xff]
  %v21 = vld [vmem:[%s0 + $0x38] sm:$0xff]
  %v22 = vld [vmem:[%s0 + $0x40] sm:$0xff]
  %v23 = vld [vmem:[%s0 + $0x48] sm:$0xff]
  %v24 = vld [vmem:[%s0 + $0x50] sm:$0xff]
  %v25 = vld [vmem:[%s0 + $0x58] sm:$0xff]
  %v26 = vld [vmem:[%s0 + $0x60] sm:$0xff]
  %v27 = vld [vmem:[%s0 + $0x68] sm:$0xff]
  %v28 = vld [vmem:[%s0 + $0x70] sm:$0xff]
  %v29 = vld [vmem:[%s0 + $0x78] sm:$0xff]
  %v30 = vld [vmem:[%s0 + $0x80] sm:$0xff]
  %v31 = vld [vmem:[%s0 + $0x88] sm:$0xff]
  %v32 = vld [vmem:[%s0 + $0x90] sm:$0xff]
  %v33 = vld [vmem:[%s0 + $0x98] sm:$0xff]
  %v34 = vadd.f32 %v14, %v15
  %35 = vadd.xlane.f32.xlu0 %v34
  %v36 = vpop.xlane.xlu0 %35
  %v37 = vadd.f32 %v16, %v17
  %38 = vadd.xlane.f32.xlu0 %v37
  %v39 = vpop.xlane.xlu0 %38
  %v40 = vadd.f32 %v18, %v19
  %41 = vadd.xlane.f32.xlu0 %v40
  %v42 = vpop.xlane.xlu0 %41
  %v43 = vadd.f32 %v20, %v21
  %44 = vadd.xlane.f32.xlu0 %v43
  %v45 = vpop.xlane.xlu0 %44
  %v46 = vadd.f32 %v22, %v23
  %47 = vadd.xlane.f32.xlu0 %v46
  %v48 = vpop.xlane.xlu0 %47
  %v49 = vadd.f32 %v24, %v25
  %50 = vadd.xlane.f32.xlu0 %v49
  %v51 = vpop.xlane.xlu0 %50
  %v52 = vadd.f32 %v26, %v27
  %53 = vadd.xlane.f32.xlu0 %v52
  %v54 = vpop.xlane.xlu0 %53
  %v55 = vadd.f32 %v28, %v29
  %56 = vadd.xlane.f32.xlu0 %v55
  %v57 = vpop.xlane.xlu0 %56
  %v58 = vadd.f32 %v30, %v31
  %59 = vadd.xlane.f32.xlu0 %v58
  %v60 = vpop.xlane.xlu0 %59
  %v61 = vadd.f32 %v32, %v33
  %62 = vadd.xlane.f32.xlu0 %v61
  %v63 = vpop.xlane.xlu0 %62
  %v64 = vrcp.pop 256.0
  %v65 = vmul.f32 256.0, %v64
  %v66 = vsub.f32 1.0, %v65
  %v67 = vmul.f32 %v64, %v66
  %v68 = vadd.f32 %v64, %v67
  %vm69 = vweird.f32 %v64
  %v70 = vsel %vm69, %v64, %v68
  %v71 = vmul.f32 %v36, %v70
  %v72 = vmul.f32 %v39, %v70
  %v73 = vmul.f32 %v42, %v70
  %v74 = vmul.f32 %v45, %v70
  %v75 = vmul.f32 %v48, %v70
  %v76 = vmul.f32 %v51, %v70
  %v77 = vmul.f32 %v54, %v70
  %v78 = vmul.f32 %v57, %v70
  %v79 = vmul.f32 %v60, %v70
  %v80 = vmul.f32 %v63, %v70
  %v81 = vsub.f32 %v14, %v71
  %v82 = vsub.f32 %v15, %v71
  %v83 = vsub.f32 %v16, %v72
  %v84 = vsub.f32 %v17, %v72
  %v85 = vsub.f32 %v18, %v73
  %v86 = vsub.f32 %v19, %v73
  %v87 = vsub.f32 %v20, %v74
  %v88 = vsub.f32 %v21, %v74
  %v89 = vsub.f32 %v22, %v75
  %v90 = vsub.f32 %v23, %v75
  %v91 = vsub.f32 %v24, %v76
  %v92 = vsub.f32 %v25, %v76
  %v93 = vsub.f32 %v26, %v77
  %v94 = vsub.f32 %v27, %v77
  %v95 = vsub.f32 %v28, %v78
  %v96 = vsub.f32 %v29, %v78
  %v97 = vsub.f32 %v30, %v79
  %v98 = vsub.f32 %v31, %v79
  %v99 = vsub.f32 %v32, %v80
  %v100 = vsub.f32 %v33, %v80
  %v101 = vmul.f32 %v81, %v81
  %v102 = vmul.f32 %v82, %v82
  %v103 = vmul.f32 %v83, %v83
  %v104 = vmul.f32 %v84, %v84
  %v105 = vmul.f32 %v85, %v85
  %v106 = vmul.f32 %v86, %v86
  %v107 = vmul.f32 %v87, %v87
  %v108 = vmul.f32 %v88, %v88
  %v109 = vmul.f32 %v89, %v89
  %v110 = vmul.f32 %v90, %v90
  %v111 = vmul.f32 %v91, %v91
  %v112 = vmul.f32 %v92, %v92
  %v113 = vmul.f32 %v93, %v93
  %v114 = vmul.f32 %v94, %v94
  %v115 = vmul.f32 %v95, %v95
  %v116 = vmul.f32 %v96, %v96
  %v117 = vmul.f32 %v97, %v97
  %v118 = vmul.f32 %v98, %v98
  %v119 = vmul.f32 %v99, %v99
  %v120 = vmul.f32 %v100, %v100
  %v121 = vadd.f32 %v101, %v102
  %122 = vadd.xlane.f32.xlu0 %v121
  %v123 = vpop.xlane.xlu0 %122
  %v124 = vadd.f32 %v103, %v104
  %125 = vadd.xlane.f32.xlu0 %v124
  %v126 = vpop.xlane.xlu0 %125
  %v127 = vadd.f32 %v105, %v106
  %128 = vadd.xlane.f32.xlu0 %v127
  %v129 = vpop.xlane.xlu0 %128
  %v130 = vadd.f32 %v107, %v108
  %131 = vadd.xlane.f32.xlu0 %v130
  %v132 = vpop.xlane.xlu0 %131
  %v133 = vadd.f32 %v109, %v110
  %134 = vadd.xlane.f32.xlu0 %v133
  %v135 = vpop.xlane.xlu0 %134
  %v136 = vadd.f32 %v111, %v112
  %137 = vadd.xlane.f32.xlu0 %v136
  %v138 = vpop.xlane.xlu0 %137
  %v139 = vadd.f32 %v113, %v114
  %140 = vadd.xlane.f32.xlu0 %v139
  %v141 = vpop.xlane.xlu0 %140
  %v142 = vadd.f32 %v115, %v116
  %143 = vadd.xlane.f32.xlu0 %v142
  %v144 = vpop.xlane.xlu0 %143
  %v145 = vadd.f32 %v117, %v118
  %146 = vadd.xlane.f32.xlu0 %v145
  %v147 = vpop.xlane.xlu0 %146
  %v148 = vadd.f32 %v119, %v120
  %149 = vadd.xlane.f32.xlu0 %v148
  %v150 = vpop.xlane.xlu0 %149
  %v151 = vmul.f32 %v123, %v70
  %v152 = vmul.f32 %v126, %v70
  %v153 = vmul.f32 %v129, %v70
  %v154 = vmul.f32 %v132, %v70
  %v155 = vmul.f32 %v135, %v70
  %v156 = vmul.f32 %v138, %v70
  %v157 = vmul.f32 %v141, %v70
  %v158 = vmul.f32 %v144, %v70
  %v159 = vmul.f32 %v147, %v70
  %v160 = vmul.f32 %v150, %v70
  %v161 = vadd.f32 %v151, 1e-05
  %v162 = vadd.f32 %v152, 1e-05
  %v163 = vadd.f32 %v153, 1e-05
  %v164 = vadd.f32 %v154, 1e-05
  %v165 = vadd.f32 %v155, 1e-05
  %v166 = vadd.f32 %v156, 1e-05
  %v167 = vadd.f32 %v157, 1e-05
  %v168 = vadd.f32 %v158, 1e-05
  %v169 = vadd.f32 %v159, 1e-05
  %v170 = vadd.f32 %v160, 1e-05
  %v171 = vrsqrt.pop %v161
  %v172 = vmul.f32 %v171, %v161
  %v173 = vmul.f32 %v172, %v171
  %v174 = vmul.f32 0.5, %v173
  %v175 = vsub.f32 1.5, %v174
  %v176 = vmul.f32 %v171, %v175
  %vm177 = vweird.f32 %v161
  %vm178 = vweird.f32 %v171
  %vm179 = vmor %vm177, %vm178
  %v180 = vsel %vm179, %v171, %v176
  %v181 = vrsqrt.pop %v162
  %v182 = vmul.f32 %v181, %v162
  %v183 = vmul.f32 %v182, %v181
  %v184 = vmul.f32 0.5, %v183
  %v185 = vsub.f32 1.5, %v184
  %v186 = vmul.f32 %v181, %v185
  %vm187 = vweird.f32 %v162
  %vm188 = vweird.f32 %v181
  %vm189 = vmor %vm187, %vm188
  %v190 = vsel %vm189, %v181, %v186
  %v191 = vrsqrt.pop %v163
  %v192 = vmul.f32 %v191, %v163
  %v193 = vmul.f32 %v192, %v191
  %v194 = vmul.f32 0.5, %v193
  %v195 = vsub.f32 1.5, %v194
  %v196 = vmul.f32 %v191, %v195
  %vm197 = vweird.f32 %v163
  %vm198 = vweird.f32 %v191
  %vm199 = vmor %vm197, %vm198
  %v200 = vsel %vm199, %v191, %v196
  %v201 = vrsqrt.pop %v164
  %v202 = vmul.f32 %v201, %v164
  %v203 = vmul.f32 %v202, %v201
  %v204 = vmul.f32 0.5, %v203
  %v205 = vsub.f32 1.5, %v204
  %v206 = vmul.f32 %v201, %v205
  %vm207 = vweird.f32 %v164
  %vm208 = vweird.f32 %v201
  %vm209 = vmor %vm207, %vm208
  %v210 = vsel %vm209, %v201, %v206
  %v211 = vrsqrt.pop %v165
  %v212 = vmul.f32 %v211, %v165
  %v213 = vmul.f32 %v212, %v211
  %v214 = vmul.f32 0.5, %v213
  %v215 = vsub.f32 1.5, %v214
  %v216 = vmul.f32 %v211, %v215
  %vm217 = vweird.f32 %v165
  %vm218 = vweird.f32 %v211
  %vm219 = vmor %vm217, %vm218
  %v220 = vsel %vm219, %v211, %v216
  %v221 = vrsqrt.pop %v166
  %v222 = vmul.f32 %v221, %v166
  %v223 = vmul.f32 %v222, %v221
  %v224 = vmul.f32 0.5, %v223
  %v225 = vsub.f32 1.5, %v224
  %v226 = vmul.f32 %v221, %v225
  %vm227 = vweird.f32 %v166
  %vm228 = vweird.f32 %v221
  %vm229 = vmor %vm227, %vm228
  %v230 = vsel %vm229, %v221, %v226
  %v231 = vrsqrt.pop %v167
  %v232 = vmul.f32 %v231, %v167
  %v233 = vmul.f32 %v232, %v231
  %v234 = vmul.f32 0.5, %v233
  %v235 = vsub.f32 1.5, %v234
  %v236 = vmul.f32 %v231, %v235
  %vm237 = vweird.f32 %v167
  %vm238 = vweird.f32 %v231
  %vm239 = vmor %vm237, %vm238
  %v240 = vsel %vm239, %v231, %v236
  %v241 = vrsqrt.pop %v168
  %v242 = vmul.f32 %v241, %v168
  %v243 = vmul.f32 %v242, %v241
  %v244 = vmul.f32 0.5, %v243
  %v245 = vsub.f32 1.5, %v244
  %v246 = vmul.f32 %v241, %v245
  %vm247 = vweird.f32 %v168
  %vm248 = vweird.f32 %v241
  %vm249 = vmor %vm247, %vm248
  %v250 = vsel %vm249, %v241, %v246
  %v251 = vrsqrt.pop %v169
  %v252 = vmul.f32 %v251, %v169
  %v253 = vmul.f32 %v252, %v251
  %v254 = vmul.f32 0.5, %v253
  %v255 = vsub.f32 1.5, %v254
  %v256 = vmul.f32 %v251, %v255
  %vm257 = vweird.f32 %v169
  %vm258 = vweird.f32 %v251
  %vm259 = vmor %vm257, %vm258
  %v260 = vsel %vm259, %v251, %v256
  %v261 = vrsqrt.pop %v170
  %v262 = vmul.f32 %v261, %v170
  %v263 = vmul.f32 %v262, %v261
  %v264 = vmul.f32 0.5, %v263
  %v265 = vsub.f32 1.5, %v264
  %v266 = vmul.f32 %v261, %v265
  %vm267 = vweird.f32 %v170
  %vm268 = vweird.f32 %v261
  %vm269 = vmor %vm267, %vm268
  %v270 = vsel %vm269, %v261, %v266
  %v271 = vmul.f32 %v81, %v180
  %v272 = vmul.f32 %v82, %v180
  %v273 = vmul.f32 %v83, %v190
  %v274 = vmul.f32 %v84, %v190
  %v275 = vmul.f32 %v85, %v200
  %v276 = vmul.f32 %v86, %v200
  %v277 = vmul.f32 %v87, %v210
  %v278 = vmul.f32 %v88, %v210
  %v279 = vmul.f32 %v89, %v220
  %v280 = vmul.f32 %v90, %v220
  %v281 = vmul.f32 %v91, %v230
  %v282 = vmul.f32 %v92, %v230
  %v283 = vmul.f32 %v93, %v240
  %v284 = vmul.f32 %v94, %v240
  %v285 = vmul.f32 %v95, %v250
  %v286 = vmul.f32 %v96, %v250
  %v287 = vmul.f32 %v97, %v260
  %v288 = vmul.f32 %v98, %v260
  %v289 = vmul.f32 %v99, %v270
  %v290 = vmul.f32 %v100, %v270
  %v291 = vld [vmem:[%s1] sm:$0x3]
  %v293 = vperm.slane %v291, 0
  %v294 = vperm.slane %v291, 1
  %v297 = vmul.f32 %v271, %v293
  %v298 = vmul.f32 %v272, %v294
  %v299 = vmul.f32 %v273, %v293
  %v300 = vmul.f32 %v274, %v294
  %v301 = vmul.f32 %v275, %v293
  %v302 = vmul.f32 %v276, %v294
  %v303 = vmul.f32 %v277, %v293
  %v304 = vmul.f32 %v278, %v294
  %v305 = vmul.f32 %v279, %v293
  %v306 = vmul.f32 %v280, %v294
  %v307 = vmul.f32 %v281, %v293
  %v308 = vmul.f32 %v282, %v294
  %v309 = vmul.f32 %v283, %v293
  %v310 = vmul.f32 %v284, %v294
  %v311 = vmul.f32 %v285, %v293
  %v312 = vmul.f32 %v286, %v294
  %v313 = vmul.f32 %v287, %v293
  %v314 = vmul.f32 %v288, %v294
  %v315 = vmul.f32 %v289, %v293
  %v316 = vmul.f32 %v290, %v294
  %v317 = vld [vmem:[%s2] sm:$0x3]
  %v319 = vperm.slane %v317, 0
  %v320 = vperm.slane %v317, 1
  %v323 = vadd.f32 %v297, %v319
  %v324 = vadd.f32 %v298, %v320
  %v325 = vadd.f32 %v299, %v319
  %v326 = vadd.f32 %v300, %v320
  %v327 = vadd.f32 %v301, %v319
  %v328 = vadd.f32 %v302, %v320
  %v329 = vadd.f32 %v303, %v319
  %v330 = vadd.f32 %v304, %v320
  %v331 = vadd.f32 %v305, %v319
  %v332 = vadd.f32 %v306, %v320
  %v333 = vadd.f32 %v307, %v319
  %v334 = vadd.f32 %v308, %v320
  %v335 = vadd.f32 %v309, %v319
  %v336 = vadd.f32 %v310, %v320
  %v337 = vadd.f32 %v311, %v319
  %v338 = vadd.f32 %v312, %v320
  %v339 = vadd.f32 %v313, %v319
  %v340 = vadd.f32 %v314, %v320
  %v341 = vadd.f32 %v315, %v319
  %v342 = vadd.f32 %v316, %v320
  %343 = vst [vmem:[%s3] sm:$0xff] %v323
  %344 = vst [vmem:[%s3 + $0x8] sm:$0xff] %v324
  %345 = vst [vmem:[%s3 + $0x10] sm:$0xff] %v325
  %346 = vst [vmem:[%s3 + $0x18] sm:$0xff] %v326
  %347 = vst [vmem:[%s3 + $0x20] sm:$0xff] %v327
  %348 = vst [vmem:[%s3 + $0x28] sm:$0xff] %v328
  %349 = vst [vmem:[%s3 + $0x30] sm:$0xff] %v329
  %350 = vst [vmem:[%s3 + $0x38] sm:$0xff] %v330
  %351 = vst [vmem:[%s3 + $0x40] sm:$0xff] %v331
  %352 = vst [vmem:[%s3 + $0x48] sm:$0xff] %v332
  %353 = vst [vmem:[%s3 + $0x50] sm:$0xff] %v333
  %354 = vst [vmem:[%s3 + $0x58] sm:$0xff] %v334
  %355 = vst [vmem:[%s3 + $0x60] sm:$0xff] %v335
  %356 = vst [vmem:[%s3 + $0x68] sm:$0xff] %v336
  %357 = vst [vmem:[%s3 + $0x70] sm:$0xff] %v337
  %358 = vst [vmem:[%s3 + $0x78] sm:$0xff] %v338
  %359 = vst [vmem:[%s3 + $0x80] sm:$0xff] %v339
  %360 = vst [vmem:[%s3 + $0x88] sm:$0xff] %v340
  %361 = vst [vmem:[%s3 + $0x90] sm:$0xff] %v341
  %362 = vst [vmem:[%s3 + $0x98] sm:$0xff] %v342
  // Predicated region
  $region14: #{_lambda_.13} parent=0 // pred_check
    _
  $region15: #{_lambda_.13} parent=0 // pred_check_branch
    %364 = sbr.rel (0) target = $region17
  $region16: #{_lambda_.13} parent=0 // pred_region
    _
  $region17: #{_lambda_.13} parent=0 // pred_fallthru
    _
  // Predicated region
  $region18: #{_lambda_.13} parent=0 // pred_check
    _
  $region19: #{_lambda_.13} parent=0 // pred_check_branch
    %366 = sbr.rel (0) target = $region21
  $region20: #{_lambda_.13} parent=0 // pred_region
    _
  $region21: #{_lambda_.13} parent=0 // pred_fallthru
    _

// kernel: _lambda_.15
$region0: #{_lambda_.15}
  #allocation0 [shape = 'u32[]', space=smem, size = 0x4, offset = 0x4, fixed_abs, tag = 'smem constant byte address 0x4 - core index']
  #allocation1 [shape = 'u32[72,128]{1,0:T(1,128)}', space=vmem, size = 0x9000, scoped, tag = 'internal scratch']
  %s0 = inlined_call_operand.vmem [shape: f32[2,37,768], index: 0, kind: input, shape index: {}]
  %s1 = inlined_call_operand.vmem [shape: f32[37,37], index: 1, kind: input, shape index: {}]
  %s2 = inlined_call_operand.vmem [shape: f32[2,37,256], index: 2, kind: output, shape index: {}]
  %s3 = sld [smem:[#allocation0]]
  $region41: #{_lambda_.15} parent=0
    _
  %s5 = ssub.s32 1, %s3
  %s6 = scalar_select 0, %s5, %s3
  loop: start=0, step=1, limit=4
  $region2: #{_lambda_.15} parent=0 // loop_pre_header
    _
  $region3: #{_lambda_.15} parent=0 // loop_header
    %s8 = sphi 0, %s12
    %p9 = scmp.ge.s32.totalorder %s8, 4
    %s18 = sphi 0, %s20
    %s21 = sphi 0, %s18
    %s22 = sphi 0, %s21
    %s38 = sphi 0, %s22
    %s42 = sphi 0, %s42
    %s44 = sphi 0, %s42
    %s45 = sphi 0, %s44
    %s59 = sphi 0, %s45
    %s65 = sphi 0, %s67
    %s68 = sphi 0, %s65
    %s69 = sphi 0, %s68
    %s85 = sphi 0, %s69
  $region4: #{_lambda_.15} parent=0 // loop_header_branch
    %11 = sbr.rel (%p9) target = $region8
  $region5: #{_lambda_.15} parent=0 // loop_body
    %s13 = ssub.s32 %s8, 1
    %s14 = ssub.s32 %s8, 2
    %s15 = sadd.s32 %s8, 1
    %s16 = ssub.s32 %s8, %s15
    %p17 = scmp.eq.s32.totalorder %s16, 0
    %s19 = sadd.s32 %s18, 1
    %s20 = scalar_select %p17, %s18, %s19
    %p23 = pneg %p17
    %p24 = scmp.eq.s32.totalorder %s8, 1
    %p25 = por %p23, %p24
    %p26 = scmp.ne.s32.totalorder %s18, %s21
    %p27 = scmp.eq.s32.totalorder %s8, 0
    %p28 = por %p26, %p27
    %p29 = scmp.ne.s32.totalorder %s18, %s21
    %p30 = scmp.eq.s32.totalorder %s13, 1
    %p31 = por %p29, %p30
    %p32 = scmp.ne.s32.totalorder %s21, %s22
    %p33 = scmp.eq.s32.totalorder %s13, 0
    %p34 = por %p32, %p33
    %p35 = scmp.ne.s32.totalorder %s21, %s22
    %p36 = scmp.eq.s32.totalorder %s14, 1
    %p37 = por %p35, %p36
    %p39 = scmp.ne.s32.totalorder %s22, %s38
    %p40 = scmp.eq.s32.totalorder %s14, 0
    %p41 = por %p39, %p40
    %s43 = sadd.s32 %s42, 1
    %p46 = scmp.eq.s32.totalorder %s8, 1
    %p47 = scmp.ne.s32.totalorder %s42, %s44
    %p48 = scmp.eq.s32.totalorder %s8, 0
    %p49 = por %p47, %p48
    %p50 = scmp.ne.s32.totalorder %s42, %s44
    %p51 = scmp.eq.s32.totalorder %s13, 1
    %p52 = por %p50, %p51
    %p53 = scmp.ne.s32.totalorder %s44, %s45
    %p54 = scmp.eq.s32.totalorder %s13, 0
    %p55 = por %p53, %p54
    %p56 = scmp.ne.s32.totalorder %s44, %s45
    %p57 = scmp.eq.s32.totalorder %s14, 1
    %p58 = por %p56, %p57
    %p60 = scmp.ne.s32.totalorder %s45, %s59
    %p61 = scmp.eq.s32.totalorder %s14, 0
    %p62 = por %p60, %p61
    %s63 = ssub.s32 %s8, %s15
    %p64 = scmp.eq.s32.totalorder %s63, 0
    %s66 = sadd.s32 %s65, 1
    %s67 = scalar_select %p64, %s65, %s66
    %p70 = pneg %p64
    %p71 = scmp.eq.s32.totalorder %s8, 1
    %p72 = por %p70, %p71
    %p73 = scmp.ne.s32.totalorder %s65, %s68
    %p74 = scmp.eq.s32.totalorder %s8, 0
    %p75 = por %p73, %p74
    %p76 = scmp.ne.s32.totalorder %s65, %s68
    %p77 = scmp.eq.s32.totalorder %s13, 1
    %p78 = por %p76, %p77
    %p79 = scmp.ne.s32.totalorder %s68, %s69
    %p80 = scmp.eq.s32.totalorder %s13, 0
    %p81 = por %p79, %p80
    %p82 = scmp.ne.s32.totalorder %s68, %s69
    %p83 = scmp.eq.s32.totalorder %s14, 1
    %p84 = por %p82, %p83
    %p86 = scmp.ne.s32.totalorder %s69, %s85
    %p87 = scmp.eq.s32.totalorder %s14, 0
    %p88 = por %p86, %p87
    %p89 = scmp.le.s32.totalorder 1, %s8
    %p90 = scmp.lt.s32.totalorder %s8, 3
    %p91 = pnand %p89, %p90
    %p92 = pneg %p91
    // Predicated region
    $region9: #{_lambda_.15} parent=5 // pred_check
      _
    $region10: #{_lambda_.15} parent=5 // pred_check_branch
      %94 = sbr.rel (%p91) target = $region12
    $region11: #{_lambda_.15} parent=5 // pred_region
      %s95 = ssub.s32 %s8, 1
      // Predicated region
      $region13: #{_lambda_.15} parent=11 // pred_check
        %p96 = pneg %p55
      $region14: #{_lambda_.15} parent=11 // pred_check_branch
        %98 = sbr.rel (%p96) target = $region16
      $region15: #{_lambda_.15} parent=11 // pred_region
        _
      $region16: #{_lambda_.15} parent=11 // pred_fallthru
        _
    $region12: #{_lambda_.15} parent=5 // pred_fallthru
      _
    %p99 = scmp.lt.s32.totalorder %s8, 2
    // Predicated region
    $region17: #{_lambda_.15} parent=5 // pred_check
      %p100 = pneg %p99
    $region18: #{_lambda_.15} parent=5 // pred_check_branch
      %102 = sbr.rel (%p100) target = $region20
    $region19: #{_lambda_.15} parent=5 // pred_region
      // Predicated region
      $region21: #{_lambda_.15} parent=19 // pred_check
        %p103 = pneg %p28
      $region22: #{_lambda_.15} parent=19 // pred_check_branch
        %105 = sbr.rel (%p103) target = $region24
      $region23: #{_lambda_.15} parent=19 // pred_region
        %p106 = scmp.lt.s32.totalorder %s8, 1
        %s107 = scalar_select %p106, %s8, 1
        %s108 = smul.addr %s107, 30
        %s109 = smul.addr %s108, 8
        %s110 = scalar_lea.vmem %s0, %s109
      $region24: #{_lambda_.15} parent=19 // pred_fallthru
        _
    $region20: #{_lambda_.15} parent=5 // pred_fallthru
      _
    %p111 = scmp.le.s32.totalorder 1, %s8
    %p112 = scmp.lt.s32.totalorder %s8, 3
    %p113 = pnand %p111, %p112
    %p114 = pneg %p113
    // Predicated region
    $region25: #{_lambda_.15} parent=5 // pred_check
      _
    $region26: #{_lambda_.15} parent=5 // pred_check_branch
      %116 = sbr.rel (%p113) target = $region28
    $region27: #{_lambda_.15} parent=5 // pred_region
      %s117 = ssub.s32 %s8, 1
      %p118 = scmp.lt.s32.totalorder %s13, 1
      %s119 = scalar_select %p118, %s13, 1
      %s120 = smul.addr %s119, 30
      %s121 = smul.addr %s120, 8
      %s122 = scalar_lea.vmem %s0, %s121
      %p123 = pneg %p34
      %p124 = pneg %p31
      %p125 = pneg %p55
      %p126 = pneg %p52
      %p127 = pneg %p81
      %p128 = pneg %p78
      %p129 = scmp.lt.s32.totalorder %s13, 1
      %s130 = scalar_select %p129, %s13, 1
      %s131 = smul.addr %s130, 10
      %s132 = smul.addr %s131, 8
      %s133 = scalar_lea.vmem %s2, %s132
      %p134 = scmp.lt.s32.totalorder %s13, 1
      %s135 = scalar_select %p134, %s13, 1
      %s136 = smul.addr %s135, 30
      %s137 = smul.addr %s136, 8
      %s138 = scalar_lea.vmem %s0, %s137
      %p139 = scmp.lt.s32.totalorder %s13, 1
      %s140 = scalar_select %p139, %s13, 1
      %s141 = smul.addr %s140, 10
      %s142 = smul.addr %s141, 8
      %s143 = scalar_lea.vmem %s2, %s142
      %v144 = vld [vmem:[%s138] sm:$0xff]
      %v145 = vld [vmem:[%s138 + $0x8] sm:$0xff]
      %v146 = vld [vmem:[%s138 + $0x10] sm:$0xff]
      %v147 = vld [vmem:[%s138 + $0x18] sm:$0xff]
      %v148 = vld [vmem:[%s138 + $0x20] sm:$0xff]
      %v149 = vld [vmem:[%s138 + $0x28] sm:$0xff]
      %v150 = vld [vmem:[%s138 + $0x30] sm:$0xff]
      %v151 = vld [vmem:[%s138 + $0x38] sm:$0xff]
      %v152 = vld [vmem:[%s138 + $0x40] sm:$0xff]
      %v153 = vld [vmem:[%s138 + $0x48] sm:$0xff]
      %v154 = vld [vmem:[%s138 + $0x50] sm:$0xff]
      %v155 = vld [vmem:[%s138 + $0x58] sm:$0xff]
      %v156 = vld [vmem:[%s138 + $0x60] sm:$0xff]
      %v157 = vld [vmem:[%s138 + $0x68] sm:$0xff]
      %v158 = vld [vmem:[%s138 + $0x70] sm:$0xff]
      %v159 = vld [vmem:[%s138 + $0x78] sm:$0xff]
      %v160 = vld [vmem:[%s138 + $0x80] sm:$0xff]
      %v161 = vld [vmem:[%s138 + $0x88] sm:$0xff]
      %v162 = vld [vmem:[%s138 + $0x90] sm:$0xff]
      %v163 = vld [vmem:[%s138 + $0x98] sm:$0xff]
      %v164 = vld [vmem:[%s138 + $0xa0] sm:$0xff]
      %v165 = vld [vmem:[%s138 + $0xa8] sm:$0xff]
      %v166 = vld [vmem:[%s138 + $0xb0] sm:$0xff]
      %v167 = vld [vmem:[%s138 + $0xb8] sm:$0xff]
      %v168 = vld [vmem:[%s138 + $0xc0] sm:$0x1f]
      %v169 = vld [vmem:[%s138 + $0xc8] sm:$0x1f]
      %v170 = vld [vmem:[%s138 + $0xd0] sm:$0x1f]
      %v171 = vld [vmem:[%s138 + $0xd8] sm:$0x1f]
      %v172 = vld [vmem:[%s138 + $0xe0] sm:$0x1f]
      %v173 = vld [vmem:[%s138 + $0xe8] sm:$0x1f]
      %v174 = vld [vmem:[%s1] sm:$0xff]
      %v175 = vld [vmem:[%s1 + $0x8] sm:$0xff]
      %v176 = vld [vmem:[%s1 + $0x10] sm:$0xff]
      %v177 = vld [vmem:[%s1 + $0x18] sm:$0xff]
      %v178 = vld [vmem:[%s1 + $0x20] sm:$0x1f]
      %v179 = vmul.f32 %v144, 0.125
      %v180 = vmul.f32 %v150, 0.125
      %v181 = vmul.f32 %v156, 0.125
      %v182 = vmul.f32 %v162, 0.125
      %v183 = vmul.f32 %v168, 0.125
      %vm184 = vcmask 523264
      %v186 = vsel %vm184, %v179, 0
      %v189 = vsel %vm184, %v180, 0
      %v192 = vsel %vm184, %v181, 0
      %v195 = vsel %vm184, %v182, 0
      %v198 = vsel %vm184, %v183, 0
      %v201 = vsel %vm184, %v146, 0
      %v204 = vsel %vm184, %v152, 0
      %v207 = vsel %vm184, %v158, 0
      %v210 = vsel %vm184, %v164, 0
      %v213 = vsel %vm184, %v170, 0
      %215 = vmatpush.xpose.msra.mxu0 0.0
      %216 = vmatpush.xpose.msra.mxu0 0.0
      %217 = vmatpush.xpose.msra.mxu0 0.0
      %218 = vmatpush.xpose.msra.mxu0 0.0
      %219 = vmatpush.xpose.msra.mxu0 0.0
      %220 = vmatpush.xpose.msra.mxu0 0.0
      %221 = vmatpush.xpose.msra.mxu0 0.0
      %222 = vmatpush.xpose.msra.mxu0 0.0
      %223 = vmatpush.xpose.msra.mxu0 0.0
      %224 = vmatpush.xpose.msra.mxu0 0.0
      %225 = vmatpush.xpose.msra.mxu0 0.0
      %226 = vmatpush.xpose.msra.mxu0 %v213
      %227 = vmatpush.xpose.msra.mxu0 %v210
      %228 = vmatpush.xpose.msra.mxu0 %v207
      %229 = vmatpush.xpose.msra.mxu0 %v204
      %230 = vmatpush.xpose.msra.mxu0 %v201
      %231 = vmatmul.f32.gmra.mxu0 %v186
      %v232 = vpop.f32.mrf.mxu0
      %v233 = vadd.f32 %v174, %v232
      %234 = vmatmul.f32.gmra.mxu0 %v189
      %v235 = vpop.f32.mrf.mxu0
      %v236 = vadd.f32 %v175, %v235
      %237 = vmatmul.f32.gmra.mxu0 %v192
      %v238 = vpop.f32.mrf.mxu0
      %v239 = vadd.f32 %v176, %v238
      %240 = vmatmul.f32.gmra.mxu0 %v195
      %v241 = vpop.f32.mrf.mxu0
      %v242 = vadd.f32 %v177, %v241
      %243 = vmatmul.f32.gmra.mxu0 %v198
      %v244 = vpop.f32.mrf.mxu0
      %v245 = vadd.f32 %v178, %v244
      %246 = vdwg.mxu0
      %vm247 = vcmask 302080
      %v248 = vsel %vm247, %v233, -inf
      %249 = vmax.xlane.f32.xlu0 %v248
      %v250 = vpop.xlane.xlu0 %249
      %v251 = vsel %vm247, %v236, -inf
      %252 = vmax.xlane.f32.xlu0 %v251
      %v253 = vpop.xlane.xlu0 %252
      %v254 = vsel %vm247, %v239, -inf
      %255 = vmax.xlane.f32.xlu0 %v254
      %v256 = vpop.xlane.xlu0 %255
      %v257 = vsel %vm247, %v242, -inf
      %258 = vmax.xlane.f32.xlu0 %v257
      %v259 = vpop.xlane.xlu0 %258
      %vm260 = vcmask 299008
      %v261 = vsel %vm260, %v245, -inf
      %262 = vmax.xlane.f32.xlu0 %v261
      %v263 = vpop.xlane.xlu0 %262
      %v264 = vsub.f32 %v233, %v250
      %v265 = vsub.f32 %v236, %v253
      %v266 = vsub.f32 %v239, %v256
      %v267 = vsub.f32 %v242, %v259
      %v268 = vsub.f32 %v245, %v263
      %v269 = vmul.f32 %v264, 1.442695
      %v270 = vpow.pop %v269
      %v271 = vmul.f32 %v265, 1.442695
      %v272 = vpow.pop %v271
      %v273 = vmul.f32 %v266, 1.442695
      %v274 = vpow.pop %v273
      %v275 = vmul.f32 %v267, 1.442695
      %v276 = vpow.pop %v275
      %v277 = vmul.f32 %v268, 1.442695
      %v278 = vpow.pop %v277
      %v279 = vsel %vm247, %v270, 0.0
      %280 = vadd.xlane.f32.xlu0 %v279
      %v281 = vpop.xlane.xlu0 %280
      %v282 = vsel %vm247, %v272, 0.0
      %283 = vadd.xlane.f32.xlu0 %v282
      %v284 = vpop.xlane.xlu0 %283
      %v285 = vsel %vm247, %v274, 0.0
      %286 = vadd.xlane.f32.xlu0 %v285
      %v287 = vpop.xlane.xlu0 %286
      %v288 = vsel %vm247, %v276, 0.0
      %289 = vadd.xlane.f32.xlu0 %v288
      %v290 = vpop.xlane.xlu0 %289
      %v291 = vsel %vm260, %v278, 0.0
      %292 = vadd.xlane.f32.xlu0 %v291
      %v293 = vpop.xlane.xlu0 %292
      %v294 = vrcp.pop %v281
      %v295 = vmul.f32 %v281, %v294
      %v296 = vsub.f32 1.0, %v295
      %v297 = vmul.f32 %v294, %v296
      %v298 = vadd.f32 %v294, %v297
      %vm299 = vweird.f32 %v281
      %vm300 = vweird.f32 %v294
      %vm301 = vmor %vm299, %vm300
      %v302 = vsel %vm301, %v294, %v298
      %v303 = vand.u32 2147483647, %v281
      %vm304 = vcmp.eq.f32.partialorder %v303, 8.507059e+37
      %v305 = vand.u32 %v281, 2147483648
      %v306 = vor.u32 1.1754944e-38, %v305
      %v307 = vsel %vm304, %v306, %v302
      %v308 = vmul.f32 %v270, %v307
      %v309 = vrcp.pop %v284
      %v310 = vmul.f32 %v284, %v309
      %v311 = vsub.f32 1.0, %v310
      %v312 = vmul.f32 %v309, %v311
      %v313 = vadd.f32 %v309, %v312
      %vm314 = vweird.f32 %v284
      %vm315 = vweird.f32 %v309
      %vm316 = vmor %vm314, %vm315
      %v317 = vsel %vm316, %v309, %v313
      %v318 = vand.u32 2147483647, %v284
      %vm319 = vcmp.eq.f32.partialorder %v318, 8.507059e+37
      %v320 = vand.u32 %v284, 2147483648
      %v321 = vor.u32 1.1754944e-38, %v320
      %v322 = vsel %vm319, %v321, %v317
      %v323 = vmul.f32 %v272, %v322
      %v324 = vrcp.pop %v287
      %v325 = vmul.f32 %v287, %v324
      %v326 = vsub.f32 1.0, %v325
      %v327 = vmul.f32 %v324, %v326
      %v328 = vadd.f32 %v324, %v327
      %vm329 = vweird.f32 %v287
      %vm330 = vweird.f32 %v324
      %vm331 = vmor %vm329, %vm330
      %v332 = vsel %vm331, %v324, %v328
      %v333 = vand.u32 2147483647, %v287
      %vm334 = vcmp.eq.f32.partialorder %v333, 8.507059e+37
      %v335 = vand.u32 %v287, 2147483648
      %v336 = vor.u32 1.1754944e-38, %v335
      %v337 = vsel %vm334, %v336, %v332
      %v338 = vmul.f32 %v274, %v337
      %v339 = vrcp.pop %v290
      %v340 = vmul.f32 %v290, %v339
      %v341 = vsub.f32 1.0, %v340
      %v342 = vmul.f32 %v339, %v341
      %v343 = vadd.f32 %v339, %v342
      %vm344 = vweird.f32 %v290
      %vm345 = vweird.f32 %v339
      %vm346 = vmor %vm344, %vm345
      %v347 = vsel %vm346, %v339, %v343
      %v348 = vand.u32 2147483647, %v290
      %vm349 = vcmp.eq.f32.partialorder %v348, 8.507059e+37
      %v350 = vand.u32 %v290, 2147483648
      %v351 = vor.u32 1.1754944e-38, %v350
      %v352 = vsel %vm349, %v351, %v347
      %v353 = vmul.f32 %v276, %v352
      %v354 = vrcp.pop %v293
      %v355 = vmul.f32 %v293, %v354
      %v356 = vsub.f32 1.0, %v355
      %v357 = vmul.f32 %v354, %v356
      %v358 = vadd.f32 %v354, %v357
      %vm359 = vweird.f32 %v293
      %vm360 = vweird.f32 %v354
      %vm361 = vmor %vm359, %vm360
      %v362 = vsel %vm361, %v354, %v358
      %v363 = vand.u32 2147483647, %v293
      %vm364 = vcmp.eq.f32.partialorder %v363, 8.507059e+37
      %v365 = vand.u32 %v293, 2147483648
      %v366 = vor.u32 1.1754944e-38, %v365
      %v367 = vsel %vm364, %v366, %v362
      %v368 = vmul.f32 %v278, %v367
      %v370 = vsel %vm247, %v308, 0
      %v373 = vsel %vm247, %v323, 0
      %v376 = vsel %vm247, %v338, 0
      %v379 = vsel %vm247, %v353, 0
      %v382 = vsel %vm247, %v368, 0
      %vm384 = vcmask 1044480
      %v386 = vsel %vm384, %v172, 0
      %388 = vmatpush.msra.mxu0 0.0
      %389 = vmatpush.msra.mxu0 0.0
      %390 = vmatpush.msra.mxu0 0.0
      %391 = vmatpush.msra.mxu0 0.0
      %392 = vmatpush.msra.mxu0 0.0
      %393 = vmatpush.msra.mxu0 0.0
      %394 = vmatpush.msra.mxu0 0.0
      %395 = vmatpush.msra.mxu0 0.0
      %396 = vmatpush.msra.mxu0 0.0
      %397 = vmatpush.msra.mxu0 0.0
      %398 = vmatpush.msra.mxu0 0.0
      %399 = vmatpush.msra.mxu0 %v386
      %400 = vmatpush.msra.mxu0 %v166
      %401 = vmatpush.msra.mxu0 %v160
      %402 = vmatpush.msra.mxu0 %v154
      %403 = vmatpush.msra.mxu0 %v148
      %404 = vmatmul.f32.gmra.mxu0 %v370
      %v405 = vpop.f32.mrf.mxu0
      %v406 = vadd.f32 0.0, %v405
      %407 = vmatmul.f32.gmra.mxu0 %v373
      %v408 = vpop.f32.mrf.mxu0
      %v409 = vadd.f32 0.0, %v408
      %410 = vmatmul.f32.gmra.mxu0 %v376
      %v411 = vpop.f32.mrf.mxu0
      %v412 = vadd.f32 0.0, %v411
      %413 = vmatmul.f32.gmra.mxu0 %v379
      %v414 = vpop.f32.mrf.mxu0
      %v415 = vadd.f32 0.0, %v414
      %416 = vmatmul.f32.gmra.mxu0 %v382
      %v417 = vpop.f32.mrf.mxu0
      %v418 = vadd.f32 0.0, %v417
      %419 = vdwg.mxu0
      %420 = vrot.lane.b32.xlu0 %v179, 64
      %v421 = vpop.permute.xlu0 %420
      %422 = vrot.lane.b32.xlu0 %v180, 64
      %v423 = vpop.permute.xlu0 %422
      %424 = vrot.lane.b32.xlu0 %v181, 64
      %v425 = vpop.permute.xlu0 %424
      %426 = vrot.lane.b32.xlu0 %v182, 64
      %v427 = vpop.permute.xlu0 %426
      %428 = vrot.lane.b32.xlu0 %v183, 64
      %v429 = vpop.permute.xlu0 %428
      %430 = vrot.lane.b32.xlu0 %v146, 64
      %v431 = vpop.permute.xlu0 %430
      %432 = vrot.lane.b32.xlu0 %v152, 64
      %v433 = vpop.permute.xlu0 %432
      %434 = vrot.lane.b32.xlu0 %v158, 64
      %v435 = vpop.permute.xlu0 %434
      %436 = vrot.lane.b32.xlu0 %v164, 64
      %v437 = vpop.permute.xlu0 %436
      %438 = vrot.lane.b32.xlu0 %v170, 64
      %v439 = vpop.permute.xlu0 %438
      %v440 = vsel %vm184, %v421, 0
      %v442 = vsel %vm184, %v423, 0
      %v444 = vsel %vm184, %v425, 0
      %v446 = vsel %vm184, %v427, 0
      %v448 = vsel %vm184, %v429, 0
      %v450 = vsel %vm184, %v431, 0
      %v452 = vsel %vm184, %v433, 0
      %v454 = vsel %vm184, %v435, 0
      %v456 = vsel %vm184, %v437, 0
      %v458 = vsel %vm184, %v439, 0
      %460 = vmatpush.xpose.msra.mxu0 0.0
      %461 = vmatpush.xpose.msra.mxu0 0.0
      %462 = vmatpush.xpose.msra.mxu0 0.0
      %463 = vmatpush.xpose.msra.mxu0 0.0
      %464 = vmatpush.xpose.msra.mxu0 0.0
      %465 = vmatpush.xpose.msra.mxu0 0.0
      %466 = vmatpush.xpose.msra.mxu0 0.0
      %467 = vmatpush.xpose.msra.mxu0 0.0
      %468 = vmatpush.xpose.msra.mxu0 0.0
      %469 = vmatpush.xpose.msra.mxu0 0.0
      %470 = vmatpush.xpose.msra.mxu0 0.0
      %471 = vmatpush.xpose.msra.mxu0 %v458
      %472 = vmatpush.xpose.msra.mxu0 %v456
      %473 = vmatpush.xpose.msra.mxu0 %v454
      %474 = vmatpush.xpose.msra.mxu0 %v452
      %475 = vmatpush.xpose.msra.mxu0 %v450
      %476 = vmatmul.f32.gmra.mxu0 %v440
      %v477 = vpop.f32.mrf.mxu0
      %v478 = vadd.f32 %v174, %v477
      %479 = vmatmul.f32.gmra.mxu0 %v442
      %v480 = vpop.f32.mrf.mxu0
      %v481 = vadd.f32 %v175, %v480
      %482 = vmatmul.f32.gmra.mxu0 %v444
      %v483 = vpop.f32.mrf.mxu0
      %v484 = vadd.f32 %v176, %v483
      %485 = vmatmul.f32.gmra.mxu0 %v446
      %v486 = vpop.f32.mrf.mxu0
      %v487 = vadd.f32 %v177, %v486
      %488 = vmatmul.f32.gmra.mxu0 %v448
      %v489 = vpop.f32.mrf.mxu0
      %v490 = vadd.f32 %v178, %v489
      %491 = vdwg.mxu0
      %v492 = vsel %vm247, %v478, -inf
      %493 = vmax.xlane.f32.xlu0 %v492
      %v494 = vpop.xlane.xlu0 %493
      %v495 = vsel %vm247, %v481, -inf
      %496 = vmax.xlane.f32.xlu0 %v495
      %v497 = vpop.xlane.xlu0 %496
      %v498 = vsel %vm247, %v484, -inf
      %499 = vmax.xlane.f32.xlu0 %v498
      %v500 = vpop.xlane.xlu0 %499
      %v501 = vsel %vm247, %v487, -inf
      %502 = vmax.xlane.f32.xlu0 %v501
      %v503 = vpop.xlane.xlu0 %502
      %v504 = vsel %vm260, %v490, -inf
      %505 = vmax.xlane.f32.xlu0 %v504
      %v506 = vpop.xlane.xlu0 %505
      %v507 = vsub.f32 %v478, %v494
      %v508 = vsub.f32 %v481, %v497
      %v509 = vsub.f32 %v484, %v500
      %v510 = vsub.f32 %v487, %v503
      %v511 = vsub.f32 %v490, %v506
      %v512 = vmul.f32 %v507, 1.442695
      %v513 = vpow.pop %v512
      %v514 = vmul.f32 %v508, 1.442695
      %v515 = vpow.pop %v514
      %v516 = vmul.f32 %v509, 1.442695
      %v517 = vpow.pop %v516
      %v518 = vmul.f32 %v510, 1.442695
      %v519 = vpow.pop %v518
      %v520 = vmul.f32 %v511, 1.442695
      %v521 = vpow.pop %v520
      %v522 = vsel %vm247, %v513, 0.0
      %523 = vadd.xlane.f32.xlu0 %v522
      %v524 = vpop.xlane.xlu0 %523
      %v525 = vsel %vm247, %v515, 0.0
      %526 = vadd.xlane.f32.xlu0 %v525
      %v527 = vpop.xlane.xlu0 %526
      %v528 = vsel %vm247, %v517, 0.0
      %529 = vadd.xlane.f32.xlu0 %v528
      %v530 = vpop.xlane.xlu0 %529
      %v531 = vsel %vm247, %v519, 0.0
      %532 = vadd.xlane.f32.xlu0 %v531
      %v533 = vpop.xlane.xlu0 %532
      %v534 = vsel %vm260, %v521, 0.0
      %535 = vadd.xlane.f32.xlu0 %v534
      %v536 = vpop.xlane.xlu0 %535
      %v537 = vrcp.pop %v524
      %v538 = vmul.f32 %v524, %v537
      %v539 = vsub.f32 1.0, %v538
      %v540 = vmul.f32 %v537, %v539
      %v541 = vadd.f32 %v537, %v540
      %vm542 = vweird.f32 %v524
      %vm543 = vweird.f32 %v537
      %vm544 = vmor %vm542, %vm543
      %v545 = vsel %vm544, %v537, %v541
      %v546 = vand.u32 2147483647, %v524
      %vm547 = vcmp.eq.f32.partialorder %v546, 8.507059e+37
      %v548 = vand.u32 %v524, 2147483648
      %v549 = vor.u32 1.1754944e-38, %v548
      %v550 = vsel %vm547, %v549, %v545
      %v551 = vmul.f32 %v513, %v550
      %v552 = vrcp.pop %v527
      %v553 = vmul.f32 %v527, %v552
      %v554 = vsub.f32 1.0, %v553
      %v555 = vmul.f32 %v552, %v554
      %v556 = vadd.f32 %v552, %v555
      %vm557 = vweird.f32 %v527
      %vm558 = vweird.f32 %v552
      %vm559 = vmor %vm557, %vm558
      %v560 = vsel %vm559, %v552, %v556
      %v561 = vand.u32 2147483647, %v527
      %vm562 = vcmp.eq.f32.partialorder %v561, 8.507059e+37
      %v563 = vand.u32 %v527, 2147483648
      %v564 = vor.u32 1.1754944e-38, %v563
      %v565 = vsel %vm562, %v564, %v560
      %v566 = vmul.f32 %v515, %v565
      %v567 = vrcp.pop %v530
      %v568 = vmul.f32 %v530, %v567
      %v569 = vsub.f32 1.0, %v568
      %v570 = vmul.f32 %v567, %v569
      %v571 = vadd.f32 %v567, %v570
      %vm572 = vweird.f32 %v530
      %vm573 = vweird.f32 %v567
      %vm574 = vmor %vm572, %vm573
      %v575 = vsel %vm574, %v567, %v571
      %v576 = vand.u32 2147483647, %v530
      %vm577 = vcmp.eq.f32.partialorder %v576, 8.507059e+37
      %v578 = vand.u32 %v530, 2147483648
      %v579 = vor.u32 1.1754944e-38, %v578
      %v580 = vsel %vm577, %v579, %v575
      %v581 = vmul.f32 %v517, %v580
      %v582 = vrcp.pop %v533
      %v583 = vmul.f32 %v533, %v582
      %v584 = vsub.f32 1.0, %v583
      %v585 = vmul.f32 %v582, %v584
      %v586 = vadd.f32 %v582, %v585
      %vm587 = vweird.f32 %v533
      %vm588 = vweird.f32 %v582
      %vm589 = vmor %vm587, %vm588
      %v590 = vsel %vm589, %v582, %v586
      %v591 = vand.u32 2147483647, %v533
      %vm592 = vcmp.eq.f32.partialorder %v591, 8.507059e+37
      %v593 = vand.u32 %v533, 2147483648
      %v594 = vor.u32 1.1754944e-38, %v593
      %v595 = vsel %vm592, %v594, %v590
      %v596 = vmul.f32 %v519, %v595
      %v597 = vrcp.pop %v536
      %v598 = vmul.f32 %v536, %v597
      %v599 = vsub.f32 1.0, %v598
      %v600 = vmul.f32 %v597, %v599
      %v601 = vadd.f32 %v597, %v600
      %vm602 = vweird.f32 %v536
      %vm603 = vweird.f32 %v597
      %vm604 = vmor %vm602, %vm603
      %v605 = vsel %vm604, %v597, %v601
      %v606 = vand.u32 2147483647, %v536
      %vm607 = vcmp.eq.f32.partialorder %v606, 8.507059e+37
      %v608 = vand.u32 %v536, 2147483648
      %v609 = vor.u32 1.1754944e-38, %v608
      %v610 = vsel %vm607, %v609, %v605
      %v611 = vmul.f32 %v521, %v610
      %616 = vrot.lane.b32.xlu0 %v148, 64
      %v617 = vpop.permute.xlu0 %616
      %618 = vrot.lane.b32.xlu0 %v154, 64
      %v619 = vpop.permute.xlu0 %618
      %620 = vrot.lane.b32.xlu0 %v160, 64
      %v621 = vpop.permute.xlu0 %620
      %622 = vrot.lane.b32.xlu0 %v166, 64
      %v623 = vpop.permute.xlu0 %622
      %624 = vrot.lane.b32.xlu0 %v172, 64
      %v625 = vpop.permute.xlu0 %624
      %v631 = vsel %vm247, %v551, 0
      %v634 = vsel %vm247, %v566, 0
      %v637 = vsel %vm247, %v581, 0
      %v640 = vsel %vm247, %v596, 0
      %v643 = vsel %vm247, %v611, 0
      %v645 = vsel %vm384, %v625, 0
      %647 = vmatpush.msra.mxu0 0.0
      %648 = vmatpush.msra.mxu0 0.0
      %649 = vmatpush.msra.mxu0 0.0
      %650 = vmatpush.msra.mxu0 0.0
      %651 = vmatpush.msra.mxu0 0.0
      %652 = vmatpush.msra.mxu0 0.0
      %653 = vmatpush.msra.mxu0 0.0
      %654 = vmatpush.msra.mxu0 0.0
      %655 = vmatpush.msra.mxu0 0.0
      %656 = vmatpush.msra.mxu0 0.0
      %657 = vmatpush.msra.mxu0 0.0
      %658 = vmatpush.msra.mxu0 %v645
      %659 = vmatpush.msra.mxu0 %v623
      %660 = vmatpush.msra.mxu0 %v621
      %661 = vmatpush.msra.mxu0 %v619
      %662 = vmatpush.msra.mxu0 %v617
      %663 = vmatmul.f32.gmra.mxu0 %v631
      %v664 = vpop.f32.mrf.mxu0
      %v665 = vadd.f32 0.0, %v664
      %666 = vmatmul.f32.gmra.mxu0 %v634
      %v667 = vpop.f32.mrf.mxu0
      %v668 = vadd.f32 0.0, %v667
      %669 = vmatmul.f32.gmra.mxu0 %v637
      %v670 = vpop.f32.mrf.mxu0
      %v671 = vadd.f32 0.0, %v670
      %672 = vmatmul.f32.gmra.mxu0 %v640
      %v673 = vpop.f32.mrf.mxu0
      %v674 = vadd.f32 0.0, %v673
      %675 = vmatmul.f32.gmra.mxu0 %v643
      %v676 = vpop.f32.mrf.mxu0
      %v677 = vadd.f32 0.0, %v676
      %678 = vdwg.mxu0
      %v679 = vmul.f32 %v145, 0.125
      %v680 = vmul.f32 %v151, 0.125
      %v681 = vmul.f32 %v157, 0.125
      %v682 = vmul.f32 %v163, 0.125
      %v683 = vmul.f32 %v169, 0.125
      %v685 = vsel %vm184, %v679, 0
      %v688 = vsel %vm184, %v680, 0
      %v691 = vsel %vm184, %v681, 0
      %v694 = vsel %vm184, %v682, 0
      %v697 = vsel %vm184, %v683, 0
      %v700 = vsel %vm184, %v147, 0
      %v703 = vsel %vm184, %v153, 0
      %v706 = vsel %vm184, %v159, 0
      %v709 = vsel %vm184, %v165, 0
      %v712 = vsel %vm184, %v171, 0
      %714 = vmatpush.xpose.msra.mxu0 0.0
      %715 = vmatpush.xpose.msra.mxu0 0.0
      %716 = vmatpush.xpose.msra.mxu0 0.0
      %717 = vmatpush.xpose.msra.mxu0 0.0
      %718 = vmatpush.xpose.msra.mxu0 0.0
      %719 = vmatpush.xpose.msra.mxu0 0.0
      %720 = vmatpush.xpose.msra.mxu0 0.0
      %721 = vmatpush.xpose.msra.mxu0 0.0
      %722 = vmatpush.xpose.msra.mxu0 0.0
      %723 = vmatpush.xpose.msra.mxu0 0.0
      %724 = vmatpush.xpose.msra.mxu0 0.0
      %725 = vmatpush.xpose.msra.mxu0 %v712
      %726 = vmatpush.xpose.msra.mxu0 %v709
      %727 = vmatpush.xpose.msra.mxu0 %v706
      %728 = vmatpush.xpose.msra.mxu0 %v703
      %729 = vmatpush.xpose.msra.mxu0 %v700
      %730 = vmatmul.f32.gmra.mxu0 %v685
      %v731 = vpop.f32.mrf.mxu0
      %v732 = vadd.f32 %v174, %v731
      %733 = vmatmul.f32.gmra.mxu0 %v688
      %v734 = vpop.f32.mrf.mxu0
      %v735 = vadd.f32 %v175, %v734
      %736 = vmatmul.f32.gmra.mxu0 %v691
      %v737 = vpop.f32.mrf.mxu0
      %v738 = vadd.f32 %v176, %v737
      %739 = vmatmul.f32.gmra.mxu0 %v694
      %v740 = vpop.f32.mrf.mxu0
      %v741 = vadd.f32 %v177, %v740
      %742 = vmatmul.f32.gmra.mxu0 %v697
      %v743 = vpop.f32.mrf.mxu0
      %v744 = vadd.f32 %v178, %v743
      %745 = vdwg.mxu0
      %v746 = vsel %vm247, %v732, -inf
      %747 = vmax.xlane.f32.xlu0 %v746
      %v748 = vpop.xlane.xlu0 %747
      %v749 = vsel %vm247, %v735, -inf
      %750 = vmax.xlane.f32.xlu0 %v749
      %v751 = vpop.xlane.xlu0 %750
      %v752 = vsel %vm247, %v738, -inf
      %753 = vmax.xlane.f32.xlu0 %v752
      %v754 = vpop.xlane.xlu0 %753
      %v755 = vsel %vm247, %v741, -inf
      %756 = vmax.xlane.f32.xlu0 %v755
      %v757 = vpop.xlane.xlu0 %756
      %v758 = vsel %vm260, %v744, -inf
      %759 = vmax.xlane.f32.xlu0 %v758
      %v760 = vpop.xlane.xlu0 %759
      %v761 = vsub.f32 %v732, %v748
      %v762 = vsub.f32 %v735, %v751
      %v763 = vsub.f32 %v738, %v754
      %v764 = vsub.f32 %v741, %v757
      %v765 = vsub.f32 %v744, %v760
      %v766 = vmul.f32 %v761, 1.442695
      %v767 = vpow.pop %v766
      %v768 = vmul.f32 %v762, 1.442695
      %v769 = vpow.pop %v768
      %v770 = vmul.f32 %v763, 1.442695
      %v771 = vpow.pop %v770
      %v772 = vmul.f32 %v764, 1.442695
      %v773 = vpow.pop %v772
      %v774 = vmul.f32 %v765, 1.442695
      %v775 = vpow.pop %v774
      %v776 = vsel %vm247, %v767, 0.0
      %777 = vadd.xlane.f32.xlu0 %v776
      %v778 = vpop.xlane.xlu0 %777
      %v779 = vsel %vm247, %v769, 0.0
      %780 = vadd.xlane.f32.xlu0 %v779
      %v781 = vpop.xlane.xlu0 %780
      %v782 = vsel %vm247, %v771, 0.0
      %783 = vadd.xlane.f32.xlu0 %v782
      %v784 = vpop.xlane.xlu0 %783
      %v785 = vsel %vm247, %v773, 0.0
      %786 = vadd.xlane.f32.xlu0 %v785
      %v787 = vpop.xlane.xlu0 %786
      %v788 = vsel %vm260, %v775, 0.0
      %789 = vadd.xlane.f32.xlu0 %v788
      %v790 = vpop.xlane.xlu0 %789
      %v791 = vrcp.pop %v778
      %v792 = vmul.f32 %v778, %v791
      %v793 = vsub.f32 1.0, %v792
      %v794 = vmul.f32 %v791, %v793
      %v795 = vadd.f32 %v791, %v794
      %vm796 = vweird.f32 %v778
      %vm797 = vweird.f32 %v791
      %vm798 = vmor %vm796, %vm797
      %v799 = vsel %vm798, %v791, %v795
      %v800 = vand.u32 2147483647, %v778
      %vm801 = vcmp.eq.f32.partialorder %v800, 8.507059e+37
      %v802 = vand.u32 %v778, 2147483648
      %v803 = vor.u32 1.1754944e-38, %v802
      %v804 = vsel %vm801, %v803, %v799
      %v805 = vmul.f32 %v767, %v804
      %v806 = vrcp.pop %v781
      %v807 = vmul.f32 %v781, %v806
      %v808 = vsub.f32 1.0, %v807
      %v809 = vmul.f32 %v806, %v808
      %v810 = vadd.f32 %v806, %v809
      %vm811 = vweird.f32 %v781
      %vm812 = vweird.f32 %v806
      %vm813 = vmor %vm811, %vm812
      %v814 = vsel %vm813, %v806, %v810
      %v815 = vand.u32 2147483647, %v781
      %vm816 = vcmp.eq.f32.partialorder %v815, 8.507059e+37
      %v817 = vand.u32 %v781, 2147483648
      %v818 = vor.u32 1.1754944e-38, %v817
      %v819 = vsel %vm816, %v818, %v814
      %v820 = vmul.f32 %v769, %v819
      %v821 = vrcp.pop %v784
      %v822 = vmul.f32 %v784, %v821
      %v823 = vsub.f32 1.0, %v822
      %v824 = vmul.f32 %v821, %v823
      %v825 = vadd.f32 %v821, %v824
      %vm826 = vweird.f32 %v784
      %vm827 = vweird.f32 %v821
      %vm828 = vmor %vm826, %vm827
      %v829 = vsel %vm828, %v821, %v825
      %v830 = vand.u32 2147483647, %v784
      %vm831 = vcmp.eq.f32.partialorder %v830, 8.507059e+37
      %v832 = vand.u32 %v784, 2147483648
      %v833 = vor.u32 1.1754944e-38, %v832
      %v834 = vsel %vm831, %v833, %v829
      %v835 = vmul.f32 %v771, %v834
      %v836 = vrcp.pop %v787
      %v837 = vmul.f32 %v787, %v836
      %v838 = vsub.f32 1.0, %v837
      %v839 = vmul.f32 %v836, %v838
      %v840 = vadd.f32 %v836, %v839
      %vm841 = vweird.f32 %v787
      %vm842 = vweird.f32 %v836
      %vm843 = vmor %vm841, %vm842
      %v844 = vsel %vm843, %v836, %v840
      %v845 = vand.u32 2147483647, %v787
      %vm846 = vcmp.eq.f32.partialorder %v845, 8.507059e+37
      %v847 = vand.u32 %v787, 2147483648
      %v848 = vor.u32 1.1754944e-38, %v847
      %v849 = vsel %vm846, %v848, %v844
      %v850 = vmul.f32 %v773, %v849
      %v851 = vrcp.pop %v790
      %v852 = vmul.f32 %v790, %v851
      %v853 = vsub.f32 1.0, %v852
      %v854 = vmul.f32 %v851, %v853
      %v855 = vadd.f32 %v851, %v854
      %vm856 = vweird.f32 %v790
      %vm857 = vweird.f32 %v851
      %vm858 = vmor %vm856, %vm857
      %v859 = vsel %vm858, %v851, %v855
      %v860 = vand.u32 2147483647, %v790
      %vm861 = vcmp.eq.f32.partialorder %v860, 8.507059e+37
      %v862 = vand.u32 %v790, 2147483648
      %v863 = vor.u32 1.1754944e-38, %v862
      %v864 = vsel %vm861, %v863, %v859
      %v865 = vmul.f32 %v775, %v864
      %v867 = vsel %vm247, %v805, 0
      %v870 = vsel %vm247, %v820, 0
      %v873 = vsel %vm247, %v835, 0
      %v876 = vsel %vm247, %v850, 0
      %v879 = vsel %vm247, %v865, 0
      %v882 = vsel %vm384, %v173, 0
      %884 = vmatpush.msra.mxu0 0.0
      %885 = vmatpush.msra.mxu0 0.0
      %886 = vmatpush.msra.mxu0 0.0
      %887 = vmatpush.msra.mxu0 0.0
      %888 = vmatpush.msra.mxu0 0.0
      %889 = vmatpush.msra.mxu0 0.0
      %890 = vmatpush.msra.mxu0 0.0
      %891 = vmatpush.msra.mxu0 0.0
      %892 = vmatpush.msra.mxu0 0.0
      %893 = vmatpush.msra.mxu0 0.0
      %894 = vmatpush.msra.mxu0 0.0
      %895 = vmatpush.msra.mxu0 %v882
      %896 = vmatpush.msra.mxu0 %v167
      %897 = vmatpush.msra.mxu0 %v161
      %898 = vmatpush.msra.mxu0 %v155
      %899 = vmatpush.msra.mxu0 %v149
      %900 = vmatmul.f32.gmra.mxu0 %v867
      %v901 = vpop.f32.mrf.mxu0
      %v902 = vadd.f32 0.0, %v901
      %903 = vmatmul.f32.gmra.mxu0 %v870
      %v904 = vpop.f32.mrf.mxu0
      %v905 = vadd.f32 0.0, %v904
      %906 = vmatmul.f32.gmra.mxu0 %v873
      %v907 = vpop.f32.mrf.mxu0
      %v908 = vadd.f32 0.0, %v907
      %909 = vmatmul.f32.gmra.mxu0 %v876
      %v910 = vpop.f32.mrf.mxu0
      %v911 = vadd.f32 0.0, %v910
      %912 = vmatmul.f32.gmra.mxu0 %v879
      %v913 = vpop.f32.mrf.mxu0
      %v914 = vadd.f32 0.0, %v913
      %915 = vdwg.mxu0
      %916 = vrot.lane.b32.xlu0 %v679, 64
      %v917 = vpop.permute.xlu0 %916
      %918 = vrot.lane.b32.xlu0 %v680, 64
      %v919 = vpop.permute.xlu0 %918
      %920 = vrot.lane.b32.xlu0 %v681, 64
      %v921 = vpop.permute.xlu0 %920
      %922 = vrot.lane.b32.xlu0 %v682, 64
      %v923 = vpop.permute.xlu0 %922
      %924 = vrot.lane.b32.xlu0 %v683, 64
      %v925 = vpop.permute.xlu0 %924
      %926 = vrot.lane.b32.xlu0 %v147, 64
      %v927 = vpop.permute.xlu0 %926
      %928 = vrot.lane.b32.xlu0 %v153, 64
      %v929 = vpop.permute.xlu0 %928
      %930 = vrot.lane.b32.xlu0 %v159, 64
      %v931 = vpop.permute.xlu0 %930
      %932 = vrot.lane.b32.xlu0 %v165, 64
      %v933 = vpop.permute.xlu0 %932
      %934 = vrot.lane.b32.xlu0 %v171, 64
      %v935 = vpop.permute.xlu0 %934
      %v936 = vsel %vm184, %v917, 0
      %v938 = vsel %vm184, %v919, 0
      %v940 = vsel %vm184, %v921, 0
      %v942 = vsel %vm184, %v923, 0
      %v944 = vsel %vm184, %v925, 0
      %v946 = vsel %vm184, %v927, 0
      %v948 = vsel %vm184, %v929, 0
      %v950 = vsel %vm184, %v931, 0
      %v952 = vsel %vm184, %v933, 0
      %v954 = vsel %vm184, %v935, 0
      %956 = vmatpush.xpose.msra.mxu0 0.0
      %957 = vmatpush.xpose.msra.mxu0 0.0
      %958 = vmatpush.xpose.msra.mxu0 0.0
      %959 = vmatpush.xpose.msra.mxu0 0.0
      %960 = vmatpush.xpose.msra.mxu0 0.0
      %961 = vmatpush.xpose.msra.mxu0 0.0
      %962 = vmatpush.xpose.msra.mxu0 0.0
      %963 = vmatpush.xpose.msra.mxu0 0.0
      %964 = vmatpush.xpose.msra.mxu0 0.0
      %965 = vmatpush.xpose.msra.mxu0 0.0
      %966 = vmatpush.xpose.msra.mxu0 0.0
      %967 = vmatpush.xpose.msra.mxu0 %v954
      %968 = vmatpush.xpose.msra.mxu0 %v952
      %969 = vmatpush.xpose.msra.mxu0 %v950
      %970 = vmatpush.xpose.msra.mxu0 %v948
      %971 = vmatpush.xpose.msra.mxu0 %v946
      %972 = vmatmul.f32.gmra.mxu0 %v936
      %v973 = vpop.f32.mrf.mxu0
      %v974 = vadd.f32 %v174, %v973
      %975 = vmatmul.f32.gmra.mxu0 %v938
      %v976 = vpop.f32.mrf.mxu0
      %v977 = vadd.f32 %v175, %v976
      %978 = vmatmul.f32.gmra.mxu0 %v940
      %v979 = vpop.f32.mrf.mxu0
      %v980 = vadd.f32 %v176, %v979
      %981 = vmatmul.f32.gmra.mxu0 %v942
      %v982 = vpop.f32.mrf.mxu0
      %v983 = vadd.f32 %v177, %v982
      %984 = vmatmul.f32.gmra.mxu0 %v944
      %v985 = vpop.f32.mrf.mxu0
      %v986 = vadd.f32 %v178, %v985
      %987 = vdwg.mxu0
      %v988 = vsel %vm247, %v974, -inf
      %989 = vmax.xlane.f32.xlu0 %v988
      %v990 = vpop.xlane.xlu0 %989
      %v991 = vsel %vm247, %v977, -inf
      %992 = vmax.xlane.f32.xlu0 %v991
      %v993 = vpop.xlane.xlu0 %992
      %v994 = vsel %vm247, %v980, -inf
      %995 = vmax.xlane.f32.xlu0 %v994
      %v996 = vpop.xlane.xlu0 %995
      %v997 = vsel %vm247, %v983, -inf
      %998 = vmax.xlane.f32.xlu0 %v997
      %v999 = vpop.xlane.xlu0 %998
      %v1000 = vsel %vm260, %v986, -inf
      %1001 = vmax.xlane.f32.xlu0 %v1000
      %v1002 = vpop.xlane.xlu0 %1001
      %v1003 = vsub.f32 %v974, %v990
      %v1004 = vsub.f32 %v977, %v993
      %v1005 = vsub.f32 %v980, %v996
      %v1006 = vsub.f32 %v983, %v999
      %v1007 = vsub.f32 %v986, %v1002
      %v1008 = vmul.f32 %v1003, 1.442695
      %v1009 = vpow.pop %v1008
      %v1010 = vmul.f32 %v1004, 1.442695
      %v1011 = vpow.pop %v1010
      %v1012 = vmul.f32 %v1005, 1.442695
      %v1013 = vpow.pop %v1012
      %v1014 = vmul.f32 %v1006, 1.442695
      %v1015 = vpow.pop %v1014
      %v1016 = vmul.f32 %v1007, 1.442695
      %v1017 = vpow.pop %v1016
      %v1018 = vsel %vm247, %v1009, 0.0
      %1019 = vadd.xlane.f32.xlu0 %v1018
      %v1020 = vpop.xlane.xlu0 %1019
      %v1021 = vsel %vm247, %v1011, 0.0
      %1022 = vadd.xlane.f32.xlu0 %v1021
      %v1023 = vpop.xlane.xlu0 %1022
      %v1024 = vsel %vm247, %v1013, 0.0
      %1025 = vadd.xlane.f32.xlu0 %v1024
      %v1026 = vpop.xlane.xlu0 %1025
      %v1027 = vsel %vm247, %v1015, 0.0
      %1028 = vadd.xlane.f32.xlu0 %v1027
      %v1029 = vpop.xlane.xlu0 %1028
      %v1030 = vsel %vm260, %v1017, 0.0
      %1031 = vadd.xlane.f32.xlu0 %v1030
      %v1032 = vpop.xlane.xlu0 %1031
      %v1033 = vrcp.pop %v1020
      %v1034 = vmul.f32 %v1020, %v1033
      %v1035 = vsub.f32 1.0, %v1034
      %v1036 = vmul.f32 %v1033, %v1035
      %v1037 = vadd.f32 %v1033, %v1036
      %vm1038 = vweird.f32 %v1020
      %vm1039 = vweird.f32 %v1033
      %vm1040 = vmor %vm1038, %vm1039
      %v1041 = vsel %vm1040, %v1033, %v1037
      %v1042 = vand.u32 2147483647, %v1020
      %vm1043 = vcmp.eq.f32.partialorder %v1042, 8.507059e+37
      %v1044 = vand.u32 %v1020, 2147483648
      %v1045 = vor.u32 1.1754944e-38, %v1044
      %v1046 = vsel %vm1043, %v1045, %v1041
      %v1047 = vmul.f32 %v1009, %v1046
      %v1048 = vrcp.pop %v1023
      %v1049 = vmul.f32 %v1023, %v1048
      %v1050 = vsub.f32 1.0, %v1049
      %v1051 = vmul.f32 %v1048, %v1050
      %v1052 = vadd.f32 %v1048, %v1051
      %vm1053 = vweird.f32 %v1023
      %vm1054 = vweird.f32 %v1048
      %vm1055 = vmor %vm1053, %vm1054
      %v1056 = vsel %vm1055, %v1048, %v1052
      %v1057 = vand.u32 2147483647, %v1023
      %vm1058 = vcmp.eq.f32.partialorder %v1057, 8.507059e+37
      %v1059 = vand.u32 %v1023, 2147483648
      %v1060 = vor.u32 1.1754944e-38, %v1059
      %v1061 = vsel %vm1058, %v1060, %v1056
      %v1062 = vmul.f32 %v1011, %v1061
      %v1063 = vrcp.pop %v1026
      %v1064 = vmul.f32 %v1026, %v1063
      %v1065 = vsub.f32 1.0, %v1064
      %v1066 = vmul.f32 %v1063, %v1065
      %v1067 = vadd.f32 %v1063, %v1066
      %vm1068 = vweird.f32 %v1026
      %vm1069 = vweird.f32 %v1063
      %vm1070 = vmor %vm1068, %vm1069
      %v1071 = vsel %vm1070, %v1063, %v1067
      %v1072 = vand.u32 2147483647, %v1026
      %vm1073 = vcmp.eq.f32.partialorder %v1072, 8.507059e+37
      %v1074 = vand.u32 %v1026, 2147483648
      %v1075 = vor.u32 1.1754944e-38, %v1074
      %v1076 = vsel %vm1073, %v1075, %v1071
      %v1077 = vmul.f32 %v1013, %v1076
      %v1078 = vrcp.pop %v1029
      %v1079 = vmul.f32 %v1029, %v1078
      %v1080 = vsub.f32 1.0, %v1079
      %v1081 = vmul.f32 %v1078, %v1080
      %v1082 = vadd.f32 %v1078, %v1081
      %vm1083 = vweird.f32 %v1029
      %vm1084 = vweird.f32 %v1078
      %vm1085 = vmor %vm1083, %vm1084
      %v1086 = vsel %vm1085, %v1078, %v1082
      %v1087 = vand.u32 2147483647, %v1029
      %vm1088 = vcmp.eq.f32.partialorder %v1087, 8.507059e+37
      %v1089 = vand.u32 %v1029, 2147483648
      %v1090 = vor.u32 1.1754944e-38, %v1089
      %v1091 = vsel %vm1088, %v1090, %v1086
      %v1092 = vmul.f32 %v1015, %v1091
      %v1093 = vrcp.pop %v1032
      %v1094 = vmul.f32 %v1032, %v1093
      %v1095 = vsub.f32 1.0, %v1094
      %v1096 = vmul.f32 %v1093, %v1095
      %v1097 = vadd.f32 %v1093, %v1096
      %vm1098 = vweird.f32 %v1032
      %vm1099 = vweird.f32 %v1093
      %vm1100 = vmor %vm1098, %vm1099
      %v1101 = vsel %vm1100, %v1093, %v1097
      %v1102 = vand.u32 2147483647, %v1032
      %vm1103 = vcmp.eq.f32.partialorder %v1102, 8.507059e+37
      %v1104 = vand.u32 %v1032, 2147483648
      %v1105 = vor.u32 1.1754944e-38, %v1104
      %v1106 = vsel %vm1103, %v1105, %v1101
      %v1107 = vmul.f32 %v1017, %v1106
      %1112 = vrot.lane.b32.xlu0 %v149, 64
      %v1113 = vpop.permute.xlu0 %1112
      %1114 = vrot.lane.b32.xlu0 %v155, 64
      %v1115 = vpop.permute.xlu0 %1114
      %1116 = vrot.lane.b32.xlu0 %v161, 64
      %v1117 = vpop.permute.xlu0 %1116
      %1118 = vrot.lane.b32.xlu0 %v167, 64
      %v1119 = vpop.permute.xlu0 %1118
      %1120 = vrot.lane.b32.xlu0 %v173, 64
      %v1121 = vpop.permute.xlu0 %1120
      %v1127 = vsel %vm247, %v1047, 0
      %v1130 = vsel %vm247, %v1062, 0
      %v1133 = vsel %vm247, %v1077, 0
      %v1136 = vsel %vm247, %v1092, 0
      %v1139 = vsel %vm247, %v1107, 0
      %v1141 = vsel %vm384, %v1121, 0
      %1143 = vmatpush.msra.mxu0 0.0
      %1144 = vmatpush.msra.mxu0 0.0
      %1145 = vmatpush.msra.mxu0 0.0
      %1146 = vmatpush.msra.mxu0 0.0
      %1147 = vmatpush.msra.mxu0 0.0
      %1148 = vmatpush.msra.mxu0 0.0
      %1149 = vmatpush.msra.mxu0 0.0
      %1150 = vmatpush.msra.mxu0 0.0
      %1151 = vmatpush.msra.mxu0 0.0
      %1152 = vmatpush.msra.mxu0 0.0
      %1153 = vmatpush.msra.mxu0 0.0
      %1154 = vmatpush.msra.mxu0 %v1141
      %1155 = vmatpush.msra.mxu0 %v1119
      %1156 = vmatpush.msra.mxu0 %v1117
      %1157 = vmatpush.msra.mxu0 %v1115
      %1158 = vmatpush.msra.mxu0 %v1113
      %1159 = vmatmul.f32.gmra.mxu0 %v1127
      %v1160 = vpop.f32.mrf.mxu0
      %v1161 = vadd.f32 0.0, %v1160
      %1162 = vmatmul.f32.gmra.mxu0 %v1130
      %v1163 = vpop.f32.mrf.mxu0
      %v1164 = vadd.f32 0.0, %v1163
      %1165 = vmatmul.f32.gmra.mxu0 %v1133
      %v1166 = vpop.f32.mrf.mxu0
      %v1167 = vadd.f32 0.0, %v1166
      %1168 = vmatmul.f32.gmra.mxu0 %v1136
      %v1169 = vpop.f32.mrf.mxu0
      %v1170 = vadd.f32 0.0, %v1169
      %1171 = vmatmul.f32.gmra.mxu0 %v1139
      %v1172 = vpop.f32.mrf.mxu0
      %v1173 = vadd.f32 0.0, %v1172
      %1174 = vdwg.mxu0
      %1180 = vrot.lane.b32.xlu0 %v665, 64
      %v1181 = vpop.permute.xlu0 %1180
      %1182 = vrot.lane.b32.xlu0 %v668, 64
      %v1183 = vpop.permute.xlu0 %1182
      %1184 = vrot.lane.b32.xlu0 %v671, 64
      %v1185 = vpop.permute.xlu0 %1184
      %1186 = vrot.lane.b32.xlu0 %v674, 64
      %v1187 = vpop.permute.xlu0 %1186
      %1188 = vrot.lane.b32.xlu0 %v677, 64
      %v1189 = vpop.permute.xlu0 %1188
      %1200 = vrot.lane.b32.xlu0 %v1161, 64
      %v1201 = vpop.permute.xlu0 %1200
      %1202 = vrot.lane.b32.xlu0 %v1164, 64
      %v1203 = vpop.permute.xlu0 %1202
      %1204 = vrot.lane.b32.xlu0 %v1167, 64
      %v1205 = vpop.permute.xlu0 %1204
      %1206 = vrot.lane.b32.xlu0 %v1170, 64
      %v1207 = vpop.permute.xlu0 %1206
      %1208 = vrot.lane.b32.xlu0 %v1173, 64
      %v1209 = vpop.permute.xlu0 %1208
      %v1215 = vsel %vm184, %v406, %v1181
      %v1216 = vsel %vm184, %v409, %v1183
      %v1217 = vsel %vm184, %v412, %v1185
      %v1218 = vsel %vm184, %v415, %v1187
      %v1219 = vsel %vm184, %v418, %v1189
      %v1220 = vsel %vm184, %v902, %v1201
      %v1221 = vsel %vm184, %v905, %v1203
      %v1222 = vsel %vm184, %v908, %v1205
      %v1223 = vsel %vm184, %v911, %v1207
      %v1224 = vsel %vm184, %v914, %v1209
      %1225 = vst [vmem:[%s143] sm:$0xff] %v1215
      %1226 = vst [vmem:[%s143 + $0x8] sm:$0xff] %v1220
      %1227 = vst [vmem:[%s143 + $0x10] sm:$0xff] %v1216
      %1228 = vst [vmem:[%s143 + $0x18] sm:$0xff] %v1221
      %1229 = vst [vmem:[%s143 + $0x20] sm:$0xff] %v1217
      %1230 = vst [vmem:[%s143 + $0x28] sm:$0xff] %v1222
      %1231 = vst [vmem:[%s143 + $0x30] sm:$0xff] %v1218
      %1232 = vst [vmem:[%s143 + $0x38] sm:$0xff] %v1223
      %1233 = vst [vmem:[%s143 + $0x40] sm:$0x1f] %v1219
      %1234 = vst [vmem:[%s143 + $0x48] sm:$0x1f] %v1224
      %p1235 = scmp.lt.s32.totalorder %s13, 1
      %s1236 = scalar_select %p1235, %s13, 1
      %s1237 = smul.addr %s1236, 10
      %s1238 = smul.addr %s1237, 8
      %s1239 = scalar_lea.vmem %s2, %s1238
      // Predicated region
      $region29: #{_lambda_.15} parent=27 // pred_check
        %p1240 = pneg %p78
      $region30: #{_lambda_.15} parent=27 // pred_check_branch
        %1242 = sbr.rel (%p1240) target = $region32
      $region31: #{_lambda_.15} parent=27 // pred_region
        _
      $region32: #{_lambda_.15} parent=27 // pred_fallthru
        _
    $region28: #{_lambda_.15} parent=5 // pred_fallthru
      _
    %p1243 = scmp.le.s32.totalorder 2, %s8
    // Predicated region
    $region33: #{_lambda_.15} parent=5 // pred_check
      %p1244 = pneg %p1243
    $region34: #{_lambda_.15} parent=5 // pred_check_branch
      %1246 = sbr.rel (%p1244) target = $region36
    $region35: #{_lambda_.15} parent=5 // pred_region
      %s1247 = ssub.s32 %s8, 2
      // Predicated region
      $region37: #{_lambda_.15} parent=35 // pred_check
        %p1248 = pneg %p84
      $region38: #{_lambda_.15} parent=35 // pred_check_branch
        %1250 = sbr.rel (%p1248) target = $region40
      $region39: #{_lambda_.15} parent=35 // pred_region
        %p1251 = scmp.lt.s32.totalorder %s14, 1
        %s1252 = scalar_select %p1251, %s14, 1
        %s1253 = smul.addr %s1252, 10
        %s1254 = smul.addr %s1253, 8
        %s1255 = scalar_lea.vmem %s2, %s1254
      $region40: #{_lambda_.15} parent=35 // pred_fallthru
        _
    $region36: #{_lambda_.15} parent=5 // pred_fallthru
      _
  $region6: #{_lambda_.15} parent=0 // loop_footer
    %s12 = sadd.s32 1, %s8
  $region7: #{_lambda_.15} parent=0 // loop_footer_branch
    %7 = sbr.rel target = $region3
  $region8: #{_lambda_.15} parent=0 // loop_exit
    _

// kernel: _lambda_.16
$region0: #{_lambda_.16}
  #allocation0 [shape = 'u32[]', space=smem, size = 0x4, offset = 0x4, fixed_abs, tag = 'smem constant byte address 0x4 - core index']
  #allocation1 [shape = 'u32[72,128]{1,0:T(1,128)}', space=vmem, size = 0x9000, scoped, tag = 'internal scratch']
  %s0 = inlined_call_operand.vmem [shape: f32[80,256], index: 0, kind: input, shape index: {}]
  %s1 = inlined_call_operand.vmem [shape: f32[256,256], index: 1, kind: input, shape index: {}]
  %s2 = inlined_call_operand.vmem [shape: f32[1,256], index: 2, kind: input, shape index: {}]
  %s3 = inlined_call_operand.vmem [shape: f32[80,256], index: 3, kind: input, shape index: {}]
  %s4 = inlined_call_operand.vmem [shape: f32[80,256], index: 4, kind: output, shape index: {}]
  %s5 = sld [smem:[#allocation0]]
  $region26: #{_lambda_.16} parent=0
    _
  %s7 = ssub.s32 1, %s5
  %s8 = scalar_select 0, %s7, %s5
  // Predicated region
  $region2: #{_lambda_.16} parent=0 // pred_check
    _
  $region3: #{_lambda_.16} parent=0 // pred_check_branch
    %10 = sbr.rel (0) target = $region5
  $region4: #{_lambda_.16} parent=0 // pred_region
    _
  $region5: #{_lambda_.16} parent=0 // pred_fallthru
    _
  // Predicated region
  $region6: #{_lambda_.16} parent=0 // pred_check
    _
  $region7: #{_lambda_.16} parent=0 // pred_check_branch
    %12 = sbr.rel (0) target = $region9
  $region8: #{_lambda_.16} parent=0 // pred_region
    _
  $region9: #{_lambda_.16} parent=0 // pred_fallthru
    _
  // Predicated region
  $region10: #{_lambda_.16} parent=0 // pred_check
    _
  $region11: #{_lambda_.16} parent=0 // pred_check_branch
    %14 = sbr.rel (0) target = $region13
  $region12: #{_lambda_.16} parent=0 // pred_region
    _
  $region13: #{_lambda_.16} parent=0 // pred_fallthru
    _
  // Predicated region
  $region14: #{_lambda_.16} parent=0 // pred_check
    _
  $region15: #{_lambda_.16} parent=0 // pred_check_branch
    %16 = sbr.rel (0) target = $region17
  $region16: #{_lambda_.16} parent=0 // pred_region
    _
  $region17: #{_lambda_.16} parent=0 // pred_fallthru
    _
  %v17 = vld [vmem:[%s0] sm:$0xff]
  %v18 = vld [vmem:[%s0 + $0x8] sm:$0xff]
  %v19 = vld [vmem:[%s0 + $0x10] sm:$0xff]
  %v20 = vld [vmem:[%s0 + $0x18] sm:$0xff]
  %v21 = vld [vmem:[%s0 + $0x20] sm:$0xff]
  %v22 = vld [vmem:[%s0 + $0x28] sm:$0xff]
  %v23 = vld [vmem:[%s0 + $0x30] sm:$0xff]
  %v24 = vld [vmem:[%s0 + $0x38] sm:$0xff]
  %v25 = vld [vmem:[%s0 + $0x40] sm:$0xff]
  %v26 = vld [vmem:[%s0 + $0x48] sm:$0xff]
  %v27 = vld [vmem:[%s0 + $0x50] sm:$0xff]
  %v28 = vld [vmem:[%s0 + $0x58] sm:$0xff]
  %v29 = vld [vmem:[%s0 + $0x60] sm:$0xff]
  %v30 = vld [vmem:[%s0 + $0x68] sm:$0xff]
  %v31 = vld [vmem:[%s0 + $0x70] sm:$0xff]
  %v32 = vld [vmem:[%s0 + $0x78] sm:$0xff]
  %v33 = vld [vmem:[%s0 + $0x80] sm:$0xff]
  %v34 = vld [vmem:[%s0 + $0x88] sm:$0xff]
  %v35 = vld [vmem:[%s0 + $0x90] sm:$0xff]
  %v36 = vld [vmem:[%s0 + $0x98] sm:$0xff]
  %v37 = vld [vmem:[%s1] sm:$0xff]
  %v38 = vld [vmem:[%s1 + $0x8] sm:$0xff]
  %v39 = vld [vmem:[%s1 + $0x10] sm:$0xff]
  %v40 = vld [vmem:[%s1 + $0x18] sm:$0xff]
  %v41 = vld [vmem:[%s1 + $0x20] sm:$0xff]
  %v42 = vld [vmem:[%s1 + $0x28] sm:$0xff]
  %v43 = vld [vmem:[%s1 + $0x30] sm:$0xff]
  %v44 = vld [vmem:[%s1 + $0x38] sm:$0xff]
  %v45 = vld [vmem:[%s1 + $0x40] sm:$0xff]
  %v46 = vld [vmem:[%s1 + $0x48] sm:$0xff]
  %v47 = vld [vmem:[%s1 + $0x50] sm:$0xff]
  %v48 = vld [vmem:[%s1 + $0x58] sm:$0xff]
  %v49 = vld [vmem:[%s1 + $0x60] sm:$0xff]
  %v50 = vld [vmem:[%s1 + $0x68] sm:$0xff]
  %v51 = vld [vmem:[%s1 + $0x70] sm:$0xff]
  %v52 = vld [vmem:[%s1 + $0x78] sm:$0xff]
  %v53 = vld [vmem:[%s1 + $0x80] sm:$0xff]
  %v54 = vld [vmem:[%s1 + $0x88] sm:$0xff]
  %v55 = vld [vmem:[%s1 + $0x90] sm:$0xff]
  %v56 = vld [vmem:[%s1 + $0x98] sm:$0xff]
  %v57 = vld [vmem:[%s1 + $0xa0] sm:$0xff]
  %v58 = vld [vmem:[%s1 + $0xa8] sm:$0xff]
  %v59 = vld [vmem:[%s1 + $0xb0] sm:$0xff]
  %v60 = vld [vmem:[%s1 + $0xb8] sm:$0xff]
  %v61 = vld [vmem:[%s1 + $0xc0] sm:$0xff]
  %v62 = vld [vmem:[%s1 + $0xc8] sm:$0xff]
  %v63 = vld [vmem:[%s1 + $0xd0] sm:$0xff]
  %v64 = vld [vmem:[%s1 + $0xd8] sm:$0xff]
  %v65 = vld [vmem:[%s1 + $0xe0] sm:$0xff]
  %v66 = vld [vmem:[%s1 + $0xe8] sm:$0xff]
  %v67 = vld [vmem:[%s1 + $0xf0] sm:$0xff]
  %v68 = vld [vmem:[%s1 + $0xf8] sm:$0xff]
  %v69 = vld [vmem:[%s1 + $0x100] sm:$0xff]
  %v70 = vld [vmem:[%s1 + $0x108] sm:$0xff]
  %v71 = vld [vmem:[%s1 + $0x110] sm:$0xff]
  %v72 = vld [vmem:[%s1 + $0x118] sm:$0xff]
  %v73 = vld [vmem:[%s1 + $0x120] sm:$0xff]
  %v74 = vld [vmem:[%s1 + $0x128] sm:$0xff]
  %v75 = vld [vmem:[%s1 + $0x130] sm:$0xff]
  %v76 = vld [vmem:[%s1 + $0x138] sm:$0xff]
  %v77 = vld [vmem:[%s1 + $0x140] sm:$0xff]
  %v78 = vld [vmem:[%s1 + $0x148] sm:$0xff]
  %v79 = vld [vmem:[%s1 + $0x150] sm:$0xff]
  %v80 = vld [vmem:[%s1 + $0x158] sm:$0xff]
  %v81 = vld [vmem:[%s1 + $0x160] sm:$0xff]
  %v82 = vld [vmem:[%s1 + $0x168] sm:$0xff]
  %v83 = vld [vmem:[%s1 + $0x170] sm:$0xff]
  %v84 = vld [vmem:[%s1 + $0x178] sm:$0xff]
  %v85 = vld [vmem:[%s1 + $0x180] sm:$0xff]
  %v86 = vld [vmem:[%s1 + $0x188] sm:$0xff]
  %v87 = vld [vmem:[%s1 + $0x190] sm:$0xff]
  %v88 = vld [vmem:[%s1 + $0x198] sm:$0xff]
  %v89 = vld [vmem:[%s1 + $0x1a0] sm:$0xff]
  %v90 = vld [vmem:[%s1 + $0x1a8] sm:$0xff]
  %v91 = vld [vmem:[%s1 + $0x1b0] sm:$0xff]
  %v92 = vld [vmem:[%s1 + $0x1b8] sm:$0xff]
  %v93 = vld [vmem:[%s1 + $0x1c0] sm:$0xff]
  %v94 = vld [vmem:[%s1 + $0x1c8] sm:$0xff]
  %v95 = vld [vmem:[%s1 + $0x1d0] sm:$0xff]
  %v96 = vld [vmem:[%s1 + $0x1d8] sm:$0xff]
  %v97 = vld [vmem:[%s1 + $0x1e0] sm:$0xff]
  %v98 = vld [vmem:[%s1 + $0x1e8] sm:$0xff]
  %v99 = vld [vmem:[%s1 + $0x1f0] sm:$0xff]
  %v100 = vld [vmem:[%s1 + $0x1f8] sm:$0xff]
  %v101 = vld [vmem:[%s2] sm:$0x3]
  %v103 = vperm.slane %v101, 0
  %v104 = vperm.slane %v101, 1
  %107 = vmatpush.msra.mxu0 %v67
  %108 = vmatpush.msra.mxu0 %v65
  %109 = vmatpush.msra.mxu0 %v63
  %110 = vmatpush.msra.mxu0 %v61
  %111 = vmatpush.msra.mxu0 %v59
  %112 = vmatpush.msra.mxu0 %v57
  %113 = vmatpush.msra.mxu0 %v55
  %114 = vmatpush.msra.mxu0 %v53
  %115 = vmatpush.msra.mxu0 %v51
  %116 = vmatpush.msra.mxu0 %v49
  %117 = vmatpush.msra.mxu0 %v47
  %118 = vmatpush.msra.mxu0 %v45
  %119 = vmatpush.msra.mxu0 %v43
  %120 = vmatpush.msra.mxu0 %v41
  %121 = vmatpush.msra.mxu0 %v39
  %122 = vmatpush.msra.mxu0 %v37
  %123 = vmatmul.f32.gmra.mxu0 %v17
  %v124 = vpop.f32.mrf.mxu0
  %v125 = vadd.f32 %v103, %v124
  %126 = vmatmul.f32.gmra.mxu0 %v19
  %v127 = vpop.f32.mrf.mxu0
  %v128 = vadd.f32 %v103, %v127
  %129 = vmatmul.f32.gmra.mxu0 %v21
  %v130 = vpop.f32.mrf.mxu0
  %v131 = vadd.f32 %v103, %v130
  %132 = vmatmul.f32.gmra.mxu0 %v23
  %v133 = vpop.f32.mrf.mxu0
  %v134 = vadd.f32 %v103, %v133
  %135 = vmatmul.f32.gmra.mxu0 %v25
  %v136 = vpop.f32.mrf.mxu0
  %v137 = vadd.f32 %v103, %v136
  %138 = vmatmul.f32.gmra.mxu0 %v27
  %v139 = vpop.f32.mrf.mxu0
  %v140 = vadd.f32 %v103, %v139
  %141 = vmatmul.f32.gmra.mxu0 %v29
  %v142 = vpop.f32.mrf.mxu0
  %v143 = vadd.f32 %v103, %v142
  %144 = vmatmul.f32.gmra.mxu0 %v31
  %v145 = vpop.f32.mrf.mxu0
  %v146 = vadd.f32 %v103, %v145
  %147 = vmatmul.f32.gmra.mxu0 %v33
  %v148 = vpop.f32.mrf.mxu0
  %v149 = vadd.f32 %v103, %v148
  %150 = vmatmul.f32.gmra.mxu0 %v35
  %v151 = vpop.f32.mrf.mxu0
  %v152 = vadd.f32 %v103, %v151
  %153 = vdwg.mxu0
  %154 = vmatpush.msra.mxu0 %v99
  %155 = vmatpush.msra.mxu0 %v97
  %156 = vmatpush.msra.mxu0 %v95
  %157 = vmatpush.msra.mxu0 %v93
  %158 = vmatpush.msra.mxu0 %v91
  %159 = vmatpush.msra.mxu0 %v89
  %160 = vmatpush.msra.mxu0 %v87
  %161 = vmatpush.msra.mxu0 %v85
  %162 = vmatpush.msra.mxu0 %v83
  %163 = vmatpush.msra.mxu0 %v81
  %164 = vmatpush.msra.mxu0 %v79
  %165 = vmatpush.msra.mxu0 %v77
  %166 = vmatpush.msra.mxu0 %v75
  %167 = vmatpush.msra.mxu0 %v73
  %168 = vmatpush.msra.mxu0 %v71
  %169 = vmatpush.msra.mxu0 %v69
  %170 = vmatmul.f32.gmra.mxu0 %v18
  %v171 = vpop.f32.mrf.mxu0
  %v172 = vadd.f32 %v125, %v171
  %173 = vmatmul.f32.gmra.mxu0 %v20
  %v174 = vpop.f32.mrf.mxu0
  %v175 = vadd.f32 %v128, %v174
  %176 = vmatmul.f32.gmra.mxu0 %v22
  %v177 = vpop.f32.mrf.mxu0
  %v178 = vadd.f32 %v131, %v177
  %179 = vmatmul.f32.gmra.mxu0 %v24
  %v180 = vpop.f32.mrf.mxu0
  %v181 = vadd.f32 %v134, %v180
  %182 = vmatmul.f32.gmra.mxu0 %v26
  %v183 = vpop.f32.mrf.mxu0
  %v184 = vadd.f32 %v137, %v183
  %185 = vmatmul.f32.gmra.mxu0 %v28
  %v186 = vpop.f32.mrf.mxu0
  %v187 = vadd.f32 %v140, %v186
  %188 = vmatmul.f32.gmra.mxu0 %v30
  %v189 = vpop.f32.mrf.mxu0
  %v190 = vadd.f32 %v143, %v189
  %191 = vmatmul.f32.gmra.mxu0 %v32
  %v192 = vpop.f32.mrf.mxu0
  %v193 = vadd.f32 %v146, %v192
  %194 = vmatmul.f32.gmra.mxu0 %v34
  %v195 = vpop.f32.mrf.mxu0
  %v196 = vadd.f32 %v149, %v195
  %197 = vmatmul.f32.gmra.mxu0 %v36
  %v198 = vpop.f32.mrf.mxu0
  %v199 = vadd.f32 %v152, %v198
  %200 = vdwg.mxu0
  %201 = vmatpush.msra.mxu0 %v68
  %202 = vmatpush.msra.mxu0 %v66
  %203 = vmatpush.msra.mxu0 %v64
  %204 = vmatpush.msra.mxu0 %v62
  %205 = vmatpush.msra.mxu0 %v60
  %206 = vmatpush.msra.mxu0 %v58
  %207 = vmatpush.msra.mxu0 %v56
  %208 = vmatpush.msra.mxu0 %v54
  %209 = vmatpush.msra.mxu0 %v52
  %210 = vmatpush.msra.mxu0 %v50
  %211 = vmatpush.msra.mxu0 %v48
  %212 = vmatpush.msra.mxu0 %v46
  %213 = vmatpush.msra.mxu0 %v44
  %214 = vmatpush.msra.mxu0 %v42
  %215 = vmatpush.msra.mxu0 %v40
  %216 = vmatpush.msra.mxu0 %v38
  %217 = vmatmul.f32.gmra.mxu0 %v17
  %v218 = vpop.f32.mrf.mxu0
  %v219 = vadd.f32 %v104, %v218
  %220 = vmatmul.f32.gmra.mxu0 %v19
  %v221 = vpop.f32.mrf.mxu0
  %v222 = vadd.f32 %v104, %v221
  %223 = vmatmul.f32.gmra.mxu0 %v21
  %v224 = vpop.f32.mrf.mxu0
  %v225 = vadd.f32 %v104, %v224
  %226 = vmatmul.f32.gmra.mxu0 %v23
  %v227 = vpop.f32.mrf.mxu0
  %v228 = vadd.f32 %v104, %v227
  %229 = vmatmul.f32.gmra.mxu0 %v25
  %v230 = vpop.f32.mrf.mxu0
  %v231 = vadd.f32 %v104, %v230
  %232 = vmatmul.f32.gmra.mxu0 %v27
  %v233 = vpop.f32.mrf.mxu0
  %v234 = vadd.f32 %v104, %v233
  %235 = vmatmul.f32.gmra.mxu0 %v29
  %v236 = vpop.f32.mrf.mxu0
  %v237 = vadd.f32 %v104, %v236
  %238 = vmatmul.f32.gmra.mxu0 %v31
  %v239 = vpop.f32.mrf.mxu0
  %v240 = vadd.f32 %v104, %v239
  %241 = vmatmul.f32.gmra.mxu0 %v33
  %v242 = vpop.f32.mrf.mxu0
  %v243 = vadd.f32 %v104, %v242
  %244 = vmatmul.f32.gmra.mxu0 %v35
  %v245 = vpop.f32.mrf.mxu0
  %v246 = vadd.f32 %v104, %v245
  %247 = vdwg.mxu0
  %248 = vmatpush.msra.mxu0 %v100
  %249 = vmatpush.msra.mxu0 %v98
  %250 = vmatpush.msra.mxu0 %v96
  %251 = vmatpush.msra.mxu0 %v94
  %252 = vmatpush.msra.mxu0 %v92
  %253 = vmatpush.msra.mxu0 %v90
  %254 = vmatpush.msra.mxu0 %v88
  %255 = vmatpush.msra.mxu0 %v86
  %256 = vmatpush.msra.mxu0 %v84
  %257 = vmatpush.msra.mxu0 %v82
  %258 = vmatpush.msra.mxu0 %v80
  %259 = vmatpush.msra.mxu0 %v78
  %260 = vmatpush.msra.mxu0 %v76
  %261 = vmatpush.msra.mxu0 %v74
  %262 = vmatpush.msra.mxu0 %v72
  %263 = vmatpush.msra.mxu0 %v70
  %264 = vmatmul.f32.gmra.mxu0 %v18
  %v265 = vpop.f32.mrf.mxu0
  %v266 = vadd.f32 %v219, %v265
  %267 = vmatmul.f32.gmra.mxu0 %v20
  %v268 = vpop.f32.mrf.mxu0
  %v269 = vadd.f32 %v222, %v268
  %270 = vmatmul.f32.gmra.mxu0 %v22
  %v271 = vpop.f32.mrf.mxu0
  %v272 = vadd.f32 %v225, %v271
  %273 = vmatmul.f32.gmra.mxu0 %v24
  %v274 = vpop.f32.mrf.mxu0
  %v275 = vadd.f32 %v228, %v274
  %276 = vmatmul.f32.gmra.mxu0 %v26
  %v277 = vpop.f32.mrf.mxu0
  %v278 = vadd.f32 %v231, %v277
  %279 = vmatmul.f32.gmra.mxu0 %v28
  %v280 = vpop.f32.mrf.mxu0
  %v281 = vadd.f32 %v234, %v280
  %282 = vmatmul.f32.gmra.mxu0 %v30
  %v283 = vpop.f32.mrf.mxu0
  %v284 = vadd.f32 %v237, %v283
  %285 = vmatmul.f32.gmra.mxu0 %v32
  %v286 = vpop.f32.mrf.mxu0
  %v287 = vadd.f32 %v240, %v286
  %288 = vmatmul.f32.gmra.mxu0 %v34
  %v289 = vpop.f32.mrf.mxu0
  %v290 = vadd.f32 %v243, %v289
  %291 = vmatmul.f32.gmra.mxu0 %v36
  %v292 = vpop.f32.mrf.mxu0
  %v293 = vadd.f32 %v246, %v292
  %294 = vdwg.mxu0
  %v295 = vld [vmem:[%s3] sm:$0xff]
  %v296 = vld [vmem:[%s3 + $0x8] sm:$0xff]
  %v297 = vld [vmem:[%s3 + $0x10] sm:$0xff]
  %v298 = vld [vmem:[%s3 + $0x18] sm:$0xff]
  %v299 = vld [vmem:[%s3 + $0x20] sm:$0xff]
  %v300 = vld [vmem:[%s3 + $0x28] sm:$0xff]
  %v301 = vld [vmem:[%s3 + $0x30] sm:$0xff]
  %v302 = vld [vmem:[%s3 + $0x38] sm:$0xff]
  %v303 = vld [vmem:[%s3 + $0x40] sm:$0xff]
  %v304 = vld [vmem:[%s3 + $0x48] sm:$0xff]
  %v305 = vld [vmem:[%s3 + $0x50] sm:$0xff]
  %v306 = vld [vmem:[%s3 + $0x58] sm:$0xff]
  %v307 = vld [vmem:[%s3 + $0x60] sm:$0xff]
  %v308 = vld [vmem:[%s3 + $0x68] sm:$0xff]
  %v309 = vld [vmem:[%s3 + $0x70] sm:$0xff]
  %v310 = vld [vmem:[%s3 + $0x78] sm:$0xff]
  %v311 = vld [vmem:[%s3 + $0x80] sm:$0xff]
  %v312 = vld [vmem:[%s3 + $0x88] sm:$0xff]
  %v313 = vld [vmem:[%s3 + $0x90] sm:$0xff]
  %v314 = vld [vmem:[%s3 + $0x98] sm:$0xff]
  %v315 = vadd.f32 %v172, %v295
  %v316 = vadd.f32 %v266, %v296
  %v317 = vadd.f32 %v175, %v297
  %v318 = vadd.f32 %v269, %v298
  %v319 = vadd.f32 %v178, %v299
  %v320 = vadd.f32 %v272, %v300
  %v321 = vadd.f32 %v181, %v301
  %v322 = vadd.f32 %v275, %v302
  %v323 = vadd.f32 %v184, %v303
  %v324 = vadd.f32 %v278, %v304
  %v325 = vadd.f32 %v187, %v305
  %v326 = vadd.f32 %v281, %v306
  %v327 = vadd.f32 %v190, %v307
  %v328 = vadd.f32 %v284, %v308
  %v329 = vadd.f32 %v193, %v309
  %v330 = vadd.f32 %v287, %v310
  %v331 = vadd.f32 %v196, %v311
  %v332 = vadd.f32 %v290, %v312
  %v333 = vadd.f32 %v199, %v313
  %v334 = vadd.f32 %v293, %v314
  %335 = vst [vmem:[%s4] sm:$0xff] %v315
  %336 = vst [vmem:[%s4 + $0x8] sm:$0xff] %v316
  %337 = vst [vmem:[%s4 + $0x10] sm:$0xff] %v317
  %338 = vst [vmem:[%s4 + $0x18] sm:$0xff] %v318
  %339 = vst [vmem:[%s4 + $0x20] sm:$0xff] %v319
  %340 = vst [vmem:[%s4 + $0x28] sm:$0xff] %v320
  %341 = vst [vmem:[%s4 + $0x30] sm:$0xff] %v321
  %342 = vst [vmem:[%s4 + $0x38] sm:$0xff] %v322
  %343 = vst [vmem:[%s4 + $0x40] sm:$0xff] %v323
  %344 = vst [vmem:[%s4 + $0x48] sm:$0xff] %v324
  %345 = vst [vmem:[%s4 + $0x50] sm:$0xff] %v325
  %346 = vst [vmem:[%s4 + $0x58] sm:$0xff] %v326
  %347 = vst [vmem:[%s4 + $0x60] sm:$0xff] %v327
  %348 = vst [vmem:[%s4 + $0x68] sm:$0xff] %v328
  %349 = vst [vmem:[%s4 + $0x70] sm:$0xff] %v329
  %350 = vst [vmem:[%s4 + $0x78] sm:$0xff] %v330
  %351 = vst [vmem:[%s4 + $0x80] sm:$0xff] %v331
  %352 = vst [vmem:[%s4 + $0x88] sm:$0xff] %v332
  %353 = vst [vmem:[%s4 + $0x90] sm:$0xff] %v333
  %354 = vst [vmem:[%s4 + $0x98] sm:$0xff] %v334
  // Predicated region
  $region18: #{_lambda_.16} parent=0 // pred_check
    _
  $region19: #{_lambda_.16} parent=0 // pred_check_branch
    %356 = sbr.rel (0) target = $region21
  $region20: #{_lambda_.16} parent=0 // pred_region
    _
  $region21: #{_lambda_.16} parent=0 // pred_fallthru
    _
  // Predicated region
  $region22: #{_lambda_.16} parent=0 // pred_check
    _
  $region23: #{_lambda_.16} parent=0 // pred_check_branch
    %358 = sbr.rel (0) target = $region25
  $region24: #{_lambda_.16} parent=0 // pred_region
    _
  $region25: #{_lambda_.16} parent=0 // pred_fallthru
    _

// kernel: _lambda_.14
$region0: #{_lambda_.14}
  #allocation0 [shape = 'u32[]', space=smem, size = 0x4, offset = 0x4, fixed_abs, tag = 'smem constant byte address 0x4 - core index']
  #allocation1 [shape = 'u32[72,128]{1,0:T(1,128)}', space=vmem, size = 0x9000, scoped, tag = 'internal scratch']
  %s0 = inlined_call_operand.vmem [shape: f32[80,256], index: 0, kind: input, shape index: {}]
  %s1 = inlined_call_operand.vmem [shape: f32[1,256], index: 1, kind: input, shape index: {}]
  %s2 = inlined_call_operand.vmem [shape: f32[1,256], index: 2, kind: input, shape index: {}]
  %s3 = inlined_call_operand.vmem [shape: f32[256,768], index: 3, kind: input, shape index: {}]
  %s4 = inlined_call_operand.vmem [shape: f32[1,768], index: 4, kind: input, shape index: {}]
  %s5 = inlined_call_operand.vmem [shape: f32[80,768], index: 5, kind: output, shape index: {}]
  %s6 = sld [smem:[#allocation0]]
  $region30: #{_lambda_.14} parent=0
    _
  %s8 = ssub.s32 1, %s6
  %s9 = scalar_select 0, %s8, %s6
  // Predicated region
  $region2: #{_lambda_.14} parent=0 // pred_check
    _
  $region3: #{_lambda_.14} parent=0 // pred_check_branch
    %11 = sbr.rel (0) target = $region5
  $region4: #{_lambda_.14} parent=0 // pred_region
    _
  $region5: #{_lambda_.14} parent=0 // pred_fallthru
    _
  // Predicated region
  $region6: #{_lambda_.14} parent=0 // pred_check
    _
  $region7: #{_lambda_.14} parent=0 // pred_check_branch
    %13 = sbr.rel (0) target = $region9
  $region8: #{_lambda_.14} parent=0 // pred_region
    _
  $region9: #{_lambda_.14} parent=0 // pred_fallthru
    _
  // Predicated region
  $region10: #{_lambda_.14} parent=0 // pred_check
    _
  $region11: #{_lambda_.14} parent=0 // pred_check_branch
    %15 = sbr.rel (0) target = $region13
  $region12: #{_lambda_.14} parent=0 // pred_region
    _
  $region13: #{_lambda_.14} parent=0 // pred_fallthru
    _
  // Predicated region
  $region14: #{_lambda_.14} parent=0 // pred_check
    _
  $region15: #{_lambda_.14} parent=0 // pred_check_branch
    %17 = sbr.rel (0) target = $region17
  $region16: #{_lambda_.14} parent=0 // pred_region
    _
  $region17: #{_lambda_.14} parent=0 // pred_fallthru
    _
  // Predicated region
  $region18: #{_lambda_.14} parent=0 // pred_check
    _
  $region19: #{_lambda_.14} parent=0 // pred_check_branch
    %19 = sbr.rel (0) target = $region21
  $region20: #{_lambda_.14} parent=0 // pred_region
    _
  $region21: #{_lambda_.14} parent=0 // pred_fallthru
    _
  %v20 = vld [vmem:[%s0] sm:$0xff]
  %v21 = vld [vmem:[%s0 + $0x8] sm:$0xff]
  %v22 = vld [vmem:[%s0 + $0x10] sm:$0xff]
  %v23 = vld [vmem:[%s0 + $0x18] sm:$0xff]
  %v24 = vld [vmem:[%s0 + $0x20] sm:$0xff]
  %v25 = vld [vmem:[%s0 + $0x28] sm:$0xff]
  %v26 = vld [vmem:[%s0 + $0x30] sm:$0xff]
  %v27 = vld [vmem:[%s0 + $0x38] sm:$0xff]
  %v28 = vld [vmem:[%s0 + $0x40] sm:$0xff]
  %v29 = vld [vmem:[%s0 + $0x48] sm:$0xff]
  %v30 = vld [vmem:[%s0 + $0x50] sm:$0xff]
  %v31 = vld [vmem:[%s0 + $0x58] sm:$0xff]
  %v32 = vld [vmem:[%s0 + $0x60] sm:$0xff]
  %v33 = vld [vmem:[%s0 + $0x68] sm:$0xff]
  %v34 = vld [vmem:[%s0 + $0x70] sm:$0xff]
  %v35 = vld [vmem:[%s0 + $0x78] sm:$0xff]
  %v36 = vld [vmem:[%s0 + $0x80] sm:$0xff]
  %v37 = vld [vmem:[%s0 + $0x88] sm:$0xff]
  %v38 = vld [vmem:[%s0 + $0x90] sm:$0xff]
  %v39 = vld [vmem:[%s0 + $0x98] sm:$0xff]
  %v40 = vadd.f32 %v20, %v21
  %41 = vadd.xlane.f32.xlu0 %v40
  %v42 = vpop.xlane.xlu0 %41
  %v43 = vadd.f32 %v22, %v23
  %44 = vadd.xlane.f32.xlu0 %v43
  %v45 = vpop.xlane.xlu0 %44
  %v46 = vadd.f32 %v24, %v25
  %47 = vadd.xlane.f32.xlu0 %v46
  %v48 = vpop.xlane.xlu0 %47
  %v49 = vadd.f32 %v26, %v27
  %50 = vadd.xlane.f32.xlu0 %v49
  %v51 = vpop.xlane.xlu0 %50
  %v52 = vadd.f32 %v28, %v29
  %53 = vadd.xlane.f32.xlu0 %v52
  %v54 = vpop.xlane.xlu0 %53
  %v55 = vadd.f32 %v30, %v31
  %56 = vadd.xlane.f32.xlu0 %v55
  %v57 = vpop.xlane.xlu0 %56
  %v58 = vadd.f32 %v32, %v33
  %59 = vadd.xlane.f32.xlu0 %v58
  %v60 = vpop.xlane.xlu0 %59
  %v61 = vadd.f32 %v34, %v35
  %62 = vadd.xlane.f32.xlu0 %v61
  %v63 = vpop.xlane.xlu0 %62
  %v64 = vadd.f32 %v36, %v37
  %65 = vadd.xlane.f32.xlu0 %v64
  %v66 = vpop.xlane.xlu0 %65
  %v67 = vadd.f32 %v38, %v39
  %68 = vadd.xlane.f32.xlu0 %v67
  %v69 = vpop.xlane.xlu0 %68
  %v70 = vrcp.pop 256.0
  %v71 = vmul.f32 256.0, %v70
  %v72 = vsub.f32 1.0, %v71
  %v73 = vmul.f32 %v70, %v72
  %v74 = vadd.f32 %v70, %v73
  %vm75 = vweird.f32 %v70
  %v76 = vsel %vm75, %v70, %v74
  %v77 = vmul.f32 %v42, %v76
  %v78 = vmul.f32 %v45, %v76
  %v79 = vmul.f32 %v48, %v76
  %v80 = vmul.f32 %v51, %v76
  %v81 = vmul.f32 %v54, %v76
  %v82 = vmul.f32 %v57, %v76
  %v83 = vmul.f32 %v60, %v76
  %v84 = vmul.f32 %v63, %v76
  %v85 = vmul.f32 %v66, %v76
  %v86 = vmul.f32 %v69, %v76
  %v87 = vsub.f32 %v20, %v77
  %v88 = vsub.f32 %v21, %v77
  %v89 = vsub.f32 %v22, %v78
  %v90 = vsub.f32 %v23, %v78
  %v91 = vsub.f32 %v24, %v79
  %v92 = vsub.f32 %v25, %v79
  %v93 = vsub.f32 %v26, %v80
  %v94 = vsub.f32 %v27, %v80
  %v95 = vsub.f32 %v28, %v81
  %v96 = vsub.f32 %v29, %v81
  %v97 = vsub.f32 %v30, %v82
  %v98 = vsub.f32 %v31, %v82
  %v99 = vsub.f32 %v32, %v83
  %v100 = vsub.f32 %v33, %v83
  %v101 = vsub.f32 %v34, %v84
  %v102 = vsub.f32 %v35, %v84
  %v103 = vsub.f32 %v36, %v85
  %v104 = vsub.f32 %v37, %v85
  %v105 = vsub.f32 %v38, %v86
  %v106 = vsub.f32 %v39, %v86
  %v107 = vmul.f32 %v87, %v87
  %v108 = vmul.f32 %v88, %v88
  %v109 = vmul.f32 %v89, %v89
  %v110 = vmul.f32 %v90, %v90
  %v111 = vmul.f32 %v91, %v91
  %v112 = vmul.f32 %v92, %v92
  %v113 = vmul.f32 %v93, %v93
  %v114 = vmul.f32 %v94, %v94
  %v115 = vmul.f32 %v95, %v95
  %v116 = vmul.f32 %v96, %v96
  %v117 = vmul.f32 %v97, %v97
  %v118 = vmul.f32 %v98, %v98
  %v119 = vmul.f32 %v99, %v99
  %v120 = vmul.f32 %v100, %v100
  %v121 = vmul.f32 %v101, %v101
  %v122 = vmul.f32 %v102, %v102
  %v123 = vmul.f32 %v103, %v103
  %v124 = vmul.f32 %v104, %v104
  %v125 = vmul.f32 %v105, %v105
  %v126 = vmul.f32 %v106, %v106
  %v127 = vadd.f32 %v107, %v108
  %128 = vadd.xlane.f32.xlu0 %v127
  %v129 = vpop.xlane.xlu0 %128
  %v130 = vadd.f32 %v109, %v110
  %131 = vadd.xlane.f32.xlu0 %v130
  %v132 = vpop.xlane.xlu0 %131
  %v133 = vadd.f32 %v111, %v112
  %134 = vadd.xlane.f32.xlu0 %v133
  %v135 = vpop.xlane.xlu0 %134
  %v136 = vadd.f32 %v113, %v114
  %137 = vadd.xlane.f32.xlu0 %v136
  %v138 = vpop.xlane.xlu0 %137
  %v139 = vadd.f32 %v115, %v116
  %140 = vadd.xlane.f32.xlu0 %v139
  %v141 = vpop.xlane.xlu0 %140
  %v142 = vadd.f32 %v117, %v118
  %143 = vadd.xlane.f32.xlu0 %v142
  %v144 = vpop.xlane.xlu0 %143
  %v145 = vadd.f32 %v119, %v120
  %146 = vadd.xlane.f32.xlu0 %v145
  %v147 = vpop.xlane.xlu0 %146
  %v148 = vadd.f32 %v121, %v122
  %149 = vadd.xlane.f32.xlu0 %v148
  %v150 = vpop.xlane.xlu0 %149
  %v151 = vadd.f32 %v123, %v124
  %152 = vadd.xlane.f32.xlu0 %v151
  %v153 = vpop.xlane.xlu0 %152
  %v154 = vadd.f32 %v125, %v126
  %155 = vadd.xlane.f32.xlu0 %v154
  %v156 = vpop.xlane.xlu0 %155
  %v157 = vmul.f32 %v129, %v76
  %v158 = vmul.f32 %v132, %v76
  %v159 = vmul.f32 %v135, %v76
  %v160 = vmul.f32 %v138, %v76
  %v161 = vmul.f32 %v141, %v76
  %v162 = vmul.f32 %v144, %v76
  %v163 = vmul.f32 %v147, %v76
  %v164 = vmul.f32 %v150, %v76
  %v165 = vmul.f32 %v153, %v76
  %v166 = vmul.f32 %v156, %v76
  %v167 = vadd.f32 %v157, 1e-05
  %v168 = vadd.f32 %v158, 1e-05
  %v169 = vadd.f32 %v159, 1e-05
  %v170 = vadd.f32 %v160, 1e-05
  %v171 = vadd.f32 %v161, 1e-05
  %v172 = vadd.f32 %v162, 1e-05
  %v173 = vadd.f32 %v163, 1e-05
  %v174 = vadd.f32 %v164, 1e-05
  %v175 = vadd.f32 %v165, 1e-05
  %v176 = vadd.f32 %v166, 1e-05
  %v177 = vrsqrt.pop %v167
  %v178 = vmul.f32 %v177, %v167
  %v179 = vmul.f32 %v178, %v177
  %v180 = vmul.f32 0.5, %v179
  %v181 = vsub.f32 1.5, %v180
  %v182 = vmul.f32 %v177, %v181
  %vm183 = vweird.f32 %v167
  %vm184 = vweird.f32 %v177
  %vm185 = vmor %vm183, %vm184
  %v186 = vsel %vm185, %v177, %v182
  %v187 = vrsqrt.pop %v168
  %v188 = vmul.f32 %v187, %v168
  %v189 = vmul.f32 %v188, %v187
  %v190 = vmul.f32 0.5, %v189
  %v191 = vsub.f32 1.5, %v190
  %v192 = vmul.f32 %v187, %v191
  %vm193 = vweird.f32 %v168
  %vm194 = vweird.f32 %v187
  %vm195 = vmor %vm193, %vm194
  %v196 = vsel %vm195, %v187, %v192
  %v197 = vrsqrt.pop %v169
  %v198 = vmul.f32 %v197, %v169
  %v199 = vmul.f32 %v198, %v197
  %v200 = vmul.f32 0.5, %v199
  %v201 = vsub.f32 1.5, %v200
  %v202 = vmul.f32 %v197, %v201
  %vm203 = vweird.f32 %v169
  %vm204 = vweird.f32 %v197
  %vm205 = vmor %vm203, %vm204
  %v206 = vsel %vm205, %v197, %v202
  %v207 = vrsqrt.pop %v170
  %v208 = vmul.f32 %v207, %v170
  %v209 = vmul.f32 %v208, %v207
  %v210 = vmul.f32 0.5, %v209
  %v211 = vsub.f32 1.5, %v210
  %v212 = vmul.f32 %v207, %v211
  %vm213 = vweird.f32 %v170
  %vm214 = vweird.f32 %v207
  %vm215 = vmor %vm213, %vm214
  %v216 = vsel %vm215, %v207, %v212
  %v217 = vrsqrt.pop %v171
  %v218 = vmul.f32 %v217, %v171
  %v219 = vmul.f32 %v218, %v217
  %v220 = vmul.f32 0.5, %v219
  %v221 = vsub.f32 1.5, %v220
  %v222 = vmul.f32 %v217, %v221
  %vm223 = vweird.f32 %v171
  %vm224 = vweird.f32 %v217
  %vm225 = vmor %vm223, %vm224
  %v226 = vsel %vm225, %v217, %v222
  %v227 = vrsqrt.pop %v172
  %v228 = vmul.f32 %v227, %v172
  %v229 = vmul.f32 %v228, %v227
  %v230 = vmul.f32 0.5, %v229
  %v231 = vsub.f32 1.5, %v230
  %v232 = vmul.f32 %v227, %v231
  %vm233 = vweird.f32 %v172
  %vm234 = vweird.f32 %v227
  %vm235 = vmor %vm233, %vm234
  %v236 = vsel %vm235, %v227, %v232
  %v237 = vrsqrt.pop %v173
  %v238 = vmul.f32 %v237, %v173
  %v239 = vmul.f32 %v238, %v237
  %v240 = vmul.f32 0.5, %v239
  %v241 = vsub.f32 1.5, %v240
  %v242 = vmul.f32 %v237, %v241
  %vm243 = vweird.f32 %v173
  %vm244 = vweird.f32 %v237
  %vm245 = vmor %vm243, %vm244
  %v246 = vsel %vm245, %v237, %v242
  %v247 = vrsqrt.pop %v174
  %v248 = vmul.f32 %v247, %v174
  %v249 = vmul.f32 %v248, %v247
  %v250 = vmul.f32 0.5, %v249
  %v251 = vsub.f32 1.5, %v250
  %v252 = vmul.f32 %v247, %v251
  %vm253 = vweird.f32 %v174
  %vm254 = vweird.f32 %v247
  %vm255 = vmor %vm253, %vm254
  %v256 = vsel %vm255, %v247, %v252
  %v257 = vrsqrt.pop %v175
  %v258 = vmul.f32 %v257, %v175
  %v259 = vmul.f32 %v258, %v257
  %v260 = vmul.f32 0.5, %v259
  %v261 = vsub.f32 1.5, %v260
  %v262 = vmul.f32 %v257, %v261
  %vm263 = vweird.f32 %v175
  %vm264 = vweird.f32 %v257
  %vm265 = vmor %vm263, %vm264
  %v266 = vsel %vm265, %v257, %v262
  %v267 = vrsqrt.pop %v176
  %v268 = vmul.f32 %v267, %v176
  %v269 = vmul.f32 %v268, %v267
  %v270 = vmul.f32 0.5, %v269
  %v271 = vsub.f32 1.5, %v270
  %v272 = vmul.f32 %v267, %v271
  %vm273 = vweird.f32 %v176
  %vm274 = vweird.f32 %v267
  %vm275 = vmor %vm273, %vm274
  %v276 = vsel %vm275, %v267, %v272
  %v277 = vmul.f32 %v87, %v186
  %v278 = vmul.f32 %v88, %v186
  %v279 = vmul.f32 %v89, %v196
  %v280 = vmul.f32 %v90, %v196
  %v281 = vmul.f32 %v91, %v206
  %v282 = vmul.f32 %v92, %v206
  %v283 = vmul.f32 %v93, %v216
  %v284 = vmul.f32 %v94, %v216
  %v285 = vmul.f32 %v95, %v226
  %v286 = vmul.f32 %v96, %v226
  %v287 = vmul.f32 %v97, %v236
  %v288 = vmul.f32 %v98, %v236
  %v289 = vmul.f32 %v99, %v246
  %v290 = vmul.f32 %v100, %v246
  %v291 = vmul.f32 %v101, %v256
  %v292 = vmul.f32 %v102, %v256
  %v293 = vmul.f32 %v103, %v266
  %v294 = vmul.f32 %v104, %v266
  %v295 = vmul.f32 %v105, %v276
  %v296 = vmul.f32 %v106, %v276
  %v297 = vld [vmem:[%s1] sm:$0x3]
  %v299 = vperm.slane %v297, 0
  %v300 = vperm.slane %v297, 1
  %v303 = vmul.f32 %v277, %v299
  %v304 = vmul.f32 %v278, %v300
  %v305 = vmul.f32 %v279, %v299
  %v306 = vmul.f32 %v280, %v300
  %v307 = vmul.f32 %v281, %v299
  %v308 = vmul.f32 %v282, %v300
  %v309 = vmul.f32 %v283, %v299
  %v310 = vmul.f32 %v284, %v300
  %v311 = vmul.f32 %v285, %v299
  %v312 = vmul.f32 %v286, %v300
  %v313 = vmul.f32 %v287, %v299
  %v314 = vmul.f32 %v288, %v300
  %v315 = vmul.f32 %v289, %v299
  %v316 = vmul.f32 %v290, %v300
  %v317 = vmul.f32 %v291, %v299
  %v318 = vmul.f32 %v292, %v300
  %v319 = vmul.f32 %v293, %v299
  %v320 = vmul.f32 %v294, %v300
  %v321 = vmul.f32 %v295, %v299
  %v322 = vmul.f32 %v296, %v300
  %v323 = vld [vmem:[%s2] sm:$0x3]
  %v325 = vperm.slane %v323, 0
  %v326 = vperm.slane %v323, 1
  %v329 = vadd.f32 %v303, %v325
  %v330 = vadd.f32 %v304, %v326
  %v331 = vadd.f32 %v305, %v325
  %v332 = vadd.f32 %v306, %v326
  %v333 = vadd.f32 %v307, %v325
  %v334 = vadd.f32 %v308, %v326
  %v335 = vadd.f32 %v309, %v325
  %v336 = vadd.f32 %v310, %v326
  %v337 = vadd.f32 %v311, %v325
  %v338 = vadd.f32 %v312, %v326
  %v339 = vadd.f32 %v313, %v325
  %v340 = vadd.f32 %v314, %v326
  %v341 = vadd.f32 %v315, %v325
  %v342 = vadd.f32 %v316, %v326
  %v343 = vadd.f32 %v317, %v325
  %v344 = vadd.f32 %v318, %v326
  %v345 = vadd.f32 %v319, %v325
  %v346 = vadd.f32 %v320, %v326
  %v347 = vadd.f32 %v321, %v325
  %v348 = vadd.f32 %v322, %v326
  %v349 = vld [vmem:[%s3] sm:$0xff]
  %v350 = vld [vmem:[%s3 + $0x8] sm:$0xff]
  %v351 = vld [vmem:[%s3 + $0x10] sm:$0xff]
  %v352 = vld [vmem:[%s3 + $0x18] sm:$0xff]
  %v353 = vld [vmem:[%s3 + $0x20] sm:$0xff]
  %v354 = vld [vmem:[%s3 + $0x28] sm:$0xff]
  %v355 = vld [vmem:[%s3 + $0x30] sm:$0xff]
  %v356 = vld [vmem:[%s3 + $0x38] sm:$0xff]
  %v357 = vld [vmem:[%s3 + $0x40] sm:$0xff]
  %v358 = vld [vmem:[%s3 + $0x48] sm:$0xff]
  %v359 = vld [vmem:[%s3 + $0x50] sm:$0xff]
  %v360 = vld [vmem:[%s3 + $0x58] sm:$0xff]
  %v361 = vld [vmem:[%s3 + $0x60] sm:$0xff]
  %v362 = vld [vmem:[%s3 + $0x68] sm:$0xff]
  %v363 = vld [vmem:[%s3 + $0x70] sm:$0xff]
  %v364 = vld [vmem:[%s3 + $0x78] sm:$0xff]
  %v365 = vld [vmem:[%s3 + $0x80] sm:$0xff]
  %v366 = vld [vmem:[%s3 + $0x88] sm:$0xff]
  %v367 = vld [vmem:[%s3 + $0x90] sm:$0xff]
  %v368 = vld [vmem:[%s3 + $0x98] sm:$0xff]
  %v369 = vld [vmem:[%s3 + $0xa0] sm:$0xff]
  %v370 = vld [vmem:[%s3 + $0xa8] sm:$0xff]
  %v371 = vld [vmem:[%s3 + $0xb0] sm:$0xff]
  %v372 = vld [vmem:[%s3 + $0xb8] sm:$0xff]
  %v373 = vld [vmem:[%s3 + $0xc0] sm:$0xff]
  %v374 = vld [vmem:[%s3 + $0xc8] sm:$0xff]
  %v375 = vld [vmem:[%s3 + $0xd0] sm:$0xff]
  %v376 = vld [vmem:[%s3 + $0xd8] sm:$0xff]
  %v377 = vld [vmem:[%s3 + $0xe0] sm:$0xff]
  %v378 = vld [vmem:[%s3 + $0xe8] sm:$0xff]
  %v379 = vld [vmem:[%s3 + $0xf0] sm:$0xff]
  %v380 = vld [vmem:[%s3 + $0xf8] sm:$0xff]
  %v381 = vld [vmem:[%s3 + $0x100] sm:$0xff]
  %v382 = vld [vmem:[%s3 + $0x108] sm:$0xff]
  %v383 = vld [vmem:[%s3 + $0x110] sm:$0xff]
  %v384 = vld [vmem:[%s3 + $0x118] sm:$0xff]
  %v385 = vld [vmem:[%s3 + $0x120] sm:$0xff]
  %v386 = vld [vmem:[%s3 + $0x128] sm:$0xff]
  %v387 = vld [vmem:[%s3 + $0x130] sm:$0xff]
  %v388 = vld [vmem:[%s3 + $0x138] sm:$0xff]
  %v389 = vld [vmem:[%s3 + $0x140] sm:$0xff]
  %v390 = vld [vmem:[%s3 + $0x148] sm:$0xff]
  %v391 = vld [vmem:[%s3 + $0x150] sm:$0xff]
  %v392 = vld [vmem:[%s3 + $0x158] sm:$0xff]
  %v393 = vld [vmem:[%s3 + $0x160] sm:$0xff]
  %v394 = vld [vmem:[%s3 + $0x168] sm:$0xff]
  %v395 = vld [vmem:[%s3 + $0x170] sm:$0xff]
  %v396 = vld [vmem:[%s3 + $0x178] sm:$0xff]
  %v397 = vld [vmem:[%s3 + $0x180] sm:$0xff]
  %v398 = vld [vmem:[%s3 + $0x188] sm:$0xff]
  %v399 = vld [vmem:[%s3 + $0x190] sm:$0xff]
  %v400 = vld [vmem:[%s3 + $0x198] sm:$0xff]
  %v401 = vld [vmem:[%s3 + $0x1a0] sm:$0xff]
  %v402 = vld [vmem:[%s3 + $0x1a8] sm:$0xff]
  %v403 = vld [vmem:[%s3 + $0x1b0] sm:$0xff]
  %v404 = vld [vmem:[%s3 + $0x1b8] sm:$0xff]
  %v405 = vld [vmem:[%s3 + $0x1c0] sm:$0xff]
  %v406 = vld [vmem:[%s3 + $0x1c8] sm:$0xff]
  %v407 = vld [vmem:[%s3 + $0x1d0] sm:$0xff]
  %v408 = vld [vmem:[%s3 + $0x1d8] sm:$0xff]
  %v409 = vld [vmem:[%s3 + $0x1e0] sm:$0xff]
  %v410 = vld [vmem:[%s3 + $0x1e8] sm:$0xff]
  %v411 = vld [vmem:[%s3 + $0x1f0] sm:$0xff]
  %v412 = vld [vmem:[%s3 + $0x1f8] sm:$0xff]
  %v413 = vld [vmem:[%s3 + $0x200] sm:$0xff]
  %v414 = vld [vmem:[%s3 + $0x208] sm:$0xff]
  %v415 = vld [vmem:[%s3 + $0x210] sm:$0xff]
  %v416 = vld [vmem:[%s3 + $0x218] sm:$0xff]
  %v417 = vld [vmem:[%s3 + $0x220] sm:$0xff]
  %v418 = vld [vmem:[%s3 + $0x228] sm:$0xff]
  %v419 = vld [vmem:[%s3 + $0x230] sm:$0xff]
  %v420 = vld [vmem:[%s3 + $0x238] sm:$0xff]
  %v421 = vld [vmem:[%s3 + $0x240] sm:$0xff]
  %v422 = vld [vmem:[%s3 + $0x248] sm:$0xff]
  %v423 = vld [vmem:[%s3 + $0x250] sm:$0xff]
  %v424 = vld [vmem:[%s3 + $0x258] sm:$0xff]
  %v425 = vld [vmem:[%s3 + $0x260] sm:$0xff]
  %v426 = vld [vmem:[%s3 + $0x268] sm:$0xff]
  %v427 = vld [vmem:[%s3 + $0x270] sm:$0xff]
  %v428 = vld [vmem:[%s3 + $0x278] sm:$0xff]
  %v429 = vld [vmem:[%s3 + $0x280] sm:$0xff]
  %v430 = vld [vmem:[%s3 + $0x288] sm:$0xff]
  %v431 = vld [vmem:[%s3 + $0x290] sm:$0xff]
  %v432 = vld [vmem:[%s3 + $0x298] sm:$0xff]
  %v433 = vld [vmem:[%s3 + $0x2a0] sm:$0xff]
  %v434 = vld [vmem:[%s3 + $0x2a8] sm:$0xff]
  %v435 = vld [vmem:[%s3 + $0x2b0] sm:$0xff]
  %v436 = vld [vmem:[%s3 + $0x2b8] sm:$0xff]
  %v437 = vld [vmem:[%s3 + $0x2c0] sm:$0xff]
  %v438 = vld [vmem:[%s3 + $0x2c8] sm:$0xff]
  %v439 = vld [vmem:[%s3 + $0x2d0] sm:$0xff]
  %v440 = vld [vmem:[%s3 + $0x2d8] sm:$0xff]
  %v441 = vld [vmem:[%s3 + $0x2e0] sm:$0xff]
  %v442 = vld [vmem:[%s3 + $0x2e8] sm:$0xff]
  %v443 = vld [vmem:[%s3 + $0x2f0] sm:$0xff]
  %v444 = vld [vmem:[%s3 + $0x2f8] sm:$0xff]
  %v445 = vld [vmem:[%s3 + $0x300] sm:$0xff]
  %v446 = vld [vmem:[%s3 + $0x308] sm:$0xff]
  %v447 = vld [vmem:[%s3 + $0x310] sm:$0xff]
  %v448 = vld [vmem:[%s3 + $0x318] sm:$0xff]
  %v449 = vld [vmem:[%s3 + $0x320] sm:$0xff]
  %v450 = vld [vmem:[%s3 + $0x328] sm:$0xff]
  %v451 = vld [vmem:[%s3 + $0x330] sm:$0xff]
  %v452 = vld [vmem:[%s3 + $0x338] sm:$0xff]
  %v453 = vld [vmem:[%s3 + $0x340] sm:$0xff]
  %v454 = vld [vmem:[%s3 + $0x348] sm:$0xff]
  %v455 = vld [vmem:[%s3 + $0x350] sm:$0xff]
  %v456 = vld [vmem:[%s3 + $0x358] sm:$0xff]
  %v457 = vld [vmem:[%s3 + $0x360] sm:$0xff]
  %v458 = vld [vmem:[%s3 + $0x368] sm:$0xff]
  %v459 = vld [vmem:[%s3 + $0x370] sm:$0xff]
  %v460 = vld [vmem:[%s3 + $0x378] sm:$0xff]
  %v461 = vld [vmem:[%s3 + $0x380] sm:$0xff]
  %v462 = vld [vmem:[%s3 + $0x388] sm:$0xff]
  %v463 = vld [vmem:[%s3 + $0x390] sm:$0xff]
  %v464 = vld [vmem:[%s3 + $0x398] sm:$0xff]
  %v465 = vld [vmem:[%s3 + $0x3a0] sm:$0xff]
  %v466 = vld [vmem:[%s3 + $0x3a8] sm:$0xff]
  %v467 = vld [vmem:[%s3 + $0x3b0] sm:$0xff]
  %v468 = vld [vmem:[%s3 + $0x3b8] sm:$0xff]
  %v469 = vld [vmem:[%s3 + $0x3c0] sm:$0xff]
  %v470 = vld [vmem:[%s3 + $0x3c8] sm:$0xff]
  %v471 = vld [vmem:[%s3 + $0x3d0] sm:$0xff]
  %v472 = vld [vmem:[%s3 + $0x3d8] sm:$0xff]
  %v473 = vld [vmem:[%s3 + $0x3e0] sm:$0xff]
  %v474 = vld [vmem:[%s3 + $0x3e8] sm:$0xff]
  %v475 = vld [vmem:[%s3 + $0x3f0] sm:$0xff]
  %v476 = vld [vmem:[%s3 + $0x3f8] sm:$0xff]
  %v477 = vld [vmem:[%s3 + $0x400] sm:$0xff]
  %v478 = vld [vmem:[%s3 + $0x408] sm:$0xff]
  %v479 = vld [vmem:[%s3 + $0x410] sm:$0xff]
  %v480 = vld [vmem:[%s3 + $0x418] sm:$0xff]
  %v481 = vld [vmem:[%s3 + $0x420] sm:$0xff]
  %v482 = vld [vmem:[%s3 + $0x428] sm:$0xff]
  %v483 = vld [vmem:[%s3 + $0x430] sm:$0xff]
  %v484 = vld [vmem:[%s3 + $0x438] sm:$0xff]
  %v485 = vld [vmem:[%s3 + $0x440] sm:$0xff]
  %v486 = vld [vmem:[%s3 + $0x448] sm:$0xff]
  %v487 = vld [vmem:[%s3 + $0x450] sm:$0xff]
  %v488 = vld [vmem:[%s3 + $0x458] sm:$0xff]
  %v489 = vld [vmem:[%s3 + $0x460] sm:$0xff]
  %v490 = vld [vmem:[%s3 + $0x468] sm:$0xff]
  %v491 = vld [vmem:[%s3 + $0x470] sm:$0xff]
  %v492 = vld [vmem:[%s3 + $0x478] sm:$0xff]
  %v493 = vld [vmem:[%s3 + $0x480] sm:$0xff]
  %v494 = vld [vmem:[%s3 + $0x488] sm:$0xff]
  %v495 = vld [vmem:[%s3 + $0x490] sm:$0xff]
  %v496 = vld [vmem:[%s3 + $0x498] sm:$0xff]
  %v497 = vld [vmem:[%s3 + $0x4a0] sm:$0xff]
  %v498 = vld [vmem:[%s3 + $0x4a8] sm:$0xff]
  %v499 = vld [vmem:[%s3 + $0x4b0] sm:$0xff]
  %v500 = vld [vmem:[%s3 + $0x4b8] sm:$0xff]
  %v501 = vld [vmem:[%s3 + $0x4c0] sm:$0xff]
  %v502 = vld [vmem:[%s3 + $0x4c8] sm:$0xff]
  %v503 = vld [vmem:[%s3 + $0x4d0] sm:$0xff]
  %v504 = vld [vmem:[%s3 + $0x4d8] sm:$0xff]
  %v505 = vld [vmem:[%s3 + $0x4e0] sm:$0xff]
  %v506 = vld [vmem:[%s3 + $0x4e8] sm:$0xff]
  %v507 = vld [vmem:[%s3 + $0x4f0] sm:$0xff]
  %v508 = vld [vmem:[%s3 + $0x4f8] sm:$0xff]
  %v509 = vld [vmem:[%s3 + $0x500] sm:$0xff]
  %v510 = vld [vmem:[%s3 + $0x508] sm:$0xff]
  %v511 = vld [vmem:[%s3 + $0x510] sm:$0xff]
  %v512 = vld [vmem:[%s3 + $0x518] sm:$0xff]
  %v513 = vld [vmem:[%s3 + $0x520] sm:$0xff]
  %v514 = vld [vmem:[%s3 + $0x528] sm:$0xff]
  %v515 = vld [vmem:[%s3 + $0x530] sm:$0xff]
  %v516 = vld [vmem:[%s3 + $0x538] sm:$0xff]
  %v517 = vld [vmem:[%s3 + $0x540] sm:$0xff]
  %v518 = vld [vmem:[%s3 + $0x548] sm:$0xff]
  %v519 = vld [vmem:[%s3 + $0x550] sm:$0xff]
  %v520 = vld [vmem:[%s3 + $0x558] sm:$0xff]
  %v521 = vld [vmem:[%s3 + $0x560] sm:$0xff]
  %v522 = vld [vmem:[%s3 + $0x568] sm:$0xff]
  %v523 = vld [vmem:[%s3 + $0x570] sm:$0xff]
  %v524 = vld [vmem:[%s3 + $0x578] sm:$0xff]
  %v525 = vld [vmem:[%s3 + $0x580] sm:$0xff]
  %v526 = vld [vmem:[%s3 + $0x588] sm:$0xff]
  %v527 = vld [vmem:[%s3 + $0x590] sm:$0xff]
  %v528 = vld [vmem:[%s3 + $0x598] sm:$0xff]
  %v529 = vld [vmem:[%s3 + $0x5a0] sm:$0xff]
  %v530 = vld [vmem:[%s3 + $0x5a8] sm:$0xff]
  %v531 = vld [vmem:[%s3 + $0x5b0] sm:$0xff]
  %v532 = vld [vmem:[%s3 + $0x5b8] sm:$0xff]
  %v533 = vld [vmem:[%s3 + $0x5c0] sm:$0xff]
  %v534 = vld [vmem:[%s3 + $0x5c8] sm:$0xff]
  %v535 = vld [vmem:[%s3 + $0x5d0] sm:$0xff]
  %v536 = vld [vmem:[%s3 + $0x5d8] sm:$0xff]
  %v537 = vld [vmem:[%s3 + $0x5e0] sm:$0xff]
  %v538 = vld [vmem:[%s3 + $0x5e8] sm:$0xff]
  %v539 = vld [vmem:[%s3 + $0x5f0] sm:$0xff]
  %v540 = vld [vmem:[%s3 + $0x5f8] sm:$0xff]
  %v541 = vld [vmem:[%s4] sm:$0x3f]
  %v543 = vperm.slane %v541, 0
  %v544 = vperm.slane %v541, 1
  %v545 = vperm.slane %v541, 2
  %v546 = vperm.slane %v541, 3
  %v547 = vperm.slane %v541, 4
  %v548 = vperm.slane %v541, 5
  %555 = vmatpush.msra.mxu0 %v439
  %556 = vmatpush.msra.mxu0 %v433
  %557 = vmatpush.msra.mxu0 %v427
  %558 = vmatpush.msra.mxu0 %v421
  %559 = vmatpush.msra.mxu0 %v415
  %560 = vmatpush.msra.mxu0 %v409
  %561 = vmatpush.msra.mxu0 %v403
  %562 = vmatpush.msra.mxu0 %v397
  %563 = vmatpush.msra.mxu0 %v391
  %564 = vmatpush.msra.mxu0 %v385
  %565 = vmatpush.msra.mxu0 %v379
  %566 = vmatpush.msra.mxu0 %v373
  %567 = vmatpush.msra.mxu0 %v367
  %568 = vmatpush.msra.mxu0 %v361
  %569 = vmatpush.msra.mxu0 %v355
  %570 = vmatpush.msra.mxu0 %v349
  %571 = vmatmul.f32.gmra.mxu0 %v329
  %v572 = vpop.f32.mrf.mxu0
  %v573 = vadd.f32 %v543, %v572
  %574 = vmatmul.f32.gmra.mxu0 %v331
  %v575 = vpop.f32.mrf.mxu0
  %v576 = vadd.f32 %v543, %v575
  %577 = vmatmul.f32.gmra.mxu0 %v333
  %v578 = vpop.f32.mrf.mxu0
  %v579 = vadd.f32 %v543, %v578
  %580 = vmatmul.f32.gmra.mxu0 %v335
  %v581 = vpop.f32.mrf.mxu0
  %v582 = vadd.f32 %v543, %v581
  %583 = vmatmul.f32.gmra.mxu0 %v337
  %v584 = vpop.f32.mrf.mxu0
  %v585 = vadd.f32 %v543, %v584
  %586 = vmatmul.f32.gmra.mxu0 %v339
  %v587 = vpop.f32.mrf.mxu0
  %v588 = vadd.f32 %v543, %v587
  %589 = vmatmul.f32.gmra.mxu0 %v341
  %v590 = vpop.f32.mrf.mxu0
  %v591 = vadd.f32 %v543, %v590
  %592 = vmatmul.f32.gmra.mxu0 %v343
  %v593 = vpop.f32.mrf.mxu0
  %v594 = vadd.f32 %v543, %v593
  %595 = vmatmul.f32.gmra.mxu0 %v345
  %v596 = vpop.f32.mrf.mxu0
  %v597 = vadd.f32 %v543, %v596
  %598 = vmatmul.f32.gmra.mxu0 %v347
  %v599 = vpop.f32.mrf.mxu0
  %v600 = vadd.f32 %v543, %v599
  %601 = vdwg.mxu0
  %602 = vmatpush.msra.mxu0 %v535
  %603 = vmatpush.msra.mxu0 %v529
  %604 = vmatpush.msra.mxu0 %v523
  %605 = vmatpush.msra.mxu0 %v517
  %606 = vmatpush.msra.mxu0 %v511
  %607 = vmatpush.msra.mxu0 %v505
  %608 = vmatpush.msra.mxu0 %v499
  %609 = vmatpush.msra.mxu0 %v493
  %610 = vmatpush.msra.mxu0 %v487
  %611 = vmatpush.msra.mxu0 %v481
  %612 = vmatpush.msra.mxu0 %v475
  %613 = vmatpush.msra.mxu0 %v469
  %614 = vmatpush.msra.mxu0 %v463
  %615 = vmatpush.msra.mxu0 %v457
  %616 = vmatpush.msra.mxu0 %v451
  %617 = vmatpush.msra.mxu0 %v445
  %618 = vmatmul.f32.gmra.mxu0 %v330
  %v619 = vpop.f32.mrf.mxu0
  %v620 = vadd.f32 %v573, %v619
  %621 = vmatmul.f32.gmra.mxu0 %v332
  %v622 = vpop.f32.mrf.mxu0
  %v623 = vadd.f32 %v576, %v622
  %624 = vmatmul.f32.gmra.mxu0 %v334
  %v625 = vpop.f32.mrf.mxu0
  %v626 = vadd.f32 %v579, %v625
  %627 = vmatmul.f32.gmra.mxu0 %v336
  %v628 = vpop.f32.mrf.mxu0
  %v629 = vadd.f32 %v582, %v628
  %630 = vmatmul.f32.gmra.mxu0 %v338
  %v631 = vpop.f32.mrf.mxu0
  %v632 = vadd.f32 %v585, %v631
  %633 = vmatmul.f32.gmra.mxu0 %v340
  %v634 = vpop.f32.mrf.mxu0
  %v635 = vadd.f32 %v588, %v634
  %636 = vmatmul.f32.gmra.mxu0 %v342
  %v637 = vpop.f32.mrf.mxu0
  %v638 = vadd.f32 %v591, %v637
  %639 = vmatmul.f32.gmra.mxu0 %v344
  %v640 = vpop.f32.mrf.mxu0
  %v641 = vadd.f32 %v594, %v640
  %642 = vmatmul.f32.gmra.mxu0 %v346
  %v643 = vpop.f32.mrf.mxu0
  %v644 = vadd.f32 %v597, %v643
  %645 = vmatmul.f32.gmra.mxu0 %v348
  %v646 = vpop.f32.mrf.mxu0
  %v647 = vadd.f32 %v600, %v646
  %648 = vdwg.mxu0
  %649 = vmatpush.msra.mxu0 %v440
  %650 = vmatpush.msra.mxu0 %v434
  %651 = vmatpush.msra.mxu0 %v428
  %652 = vmatpush.msra.mxu0 %v422
  %653 = vmatpush.msra.mxu0 %v416
  %654 = vmatpush.msra.mxu0 %v410
  %655 = vmatpush.msra.mxu0 %v404
  %656 = vmatpush.msra.mxu0 %v398
  %657 = vmatpush.msra.mxu0 %v392
  %658 = vmatpush.msra.mxu0 %v386
  %659 = vmatpush.msra.mxu0 %v380
  %660 = vmatpush.msra.mxu0 %v374
  %661 = vmatpush.msra.mxu0 %v368
  %662 = vmatpush.msra.mxu0 %v362
  %663 = vmatpush.msra.mxu0 %v356
  %664 = vmatpush.msra.mxu0 %v350
  %665 = vmatmul.f32.gmra.mxu0 %v329
  %v666 = vpop.f32.mrf.mxu0
  %v667 = vadd.f32 %v544, %v666
  %668 = vmatmul.f32.gmra.mxu0 %v331
  %v669 = vpop.f32.mrf.mxu0
  %v670 = vadd.f32 %v544, %v669
  %671 = vmatmul.f32.gmra.mxu0 %v333
  %v672 = vpop.f32.mrf.mxu0
  %v673 = vadd.f32 %v544, %v672
  %674 = vmatmul.f32.gmra.mxu0 %v335
  %v675 = vpop.f32.mrf.mxu0
  %v676 = vadd.f32 %v544, %v675
  %677 = vmatmul.f32.gmra.mxu0 %v337
  %v678 = vpop.f32.mrf.mxu0
  %v679 = vadd.f32 %v544, %v678
  %680 = vmatmul.f32.gmra.mxu0 %v339
  %v681 = vpop.f32.mrf.mxu0
  %v682 = vadd.f32 %v544, %v681
  %683 = vmatmul.f32.gmra.mxu0 %v341
  %v684 = vpop.f32.mrf.mxu0
  %v685 = vadd.f32 %v544, %v684
  %686 = vmatmul.f32.gmra.mxu0 %v343
  %v687 = vpop.f32.mrf.mxu0
  %v688 = vadd.f32 %v544, %v687
  %689 = vmatmul.f32.gmra.mxu0 %v345
  %v690 = vpop.f32.mrf.mxu0
  %v691 = vadd.f32 %v544, %v690
  %692 = vmatmul.f32.gmra.mxu0 %v347
  %v693 = vpop.f32.mrf.mxu0
  %v694 = vadd.f32 %v544, %v693
  %695 = vdwg.mxu0
  %696 = vmatpush.msra.mxu0 %v536
  %697 = vmatpush.msra.mxu0 %v530
  %698 = vmatpush.msra.mxu0 %v524
  %699 = vmatpush.msra.mxu0 %v518
  %700 = vmatpush.msra.mxu0 %v512
  %701 = vmatpush.msra.mxu0 %v506
  %702 = vmatpush.msra.mxu0 %v500
  %703 = vmatpush.msra.mxu0 %v494
  %704 = vmatpush.msra.mxu0 %v488
  %705 = vmatpush.msra.mxu0 %v482
  %706 = vmatpush.msra.mxu0 %v476
  %707 = vmatpush.msra.mxu0 %v470
  %708 = vmatpush.msra.mxu0 %v464
  %709 = vmatpush.msra.mxu0 %v458
  %710 = vmatpush.msra.mxu0 %v452
  %711 = vmatpush.msra.mxu0 %v446
  %712 = vmatmul.f32.gmra.mxu0 %v330
  %v713 = vpop.f32.mrf.mxu0
  %v714 = vadd.f32 %v667, %v713
  %715 = vmatmul.f32.gmra.mxu0 %v332
  %v716 = vpop.f32.mrf.mxu0
  %v717 = vadd.f32 %v670, %v716
  %718 = vmatmul.f32.gmra.mxu0 %v334
  %v719 = vpop.f32.mrf.mxu0
  %v720 = vadd.f32 %v673, %v719
  %721 = vmatmul.f32.gmra.mxu0 %v336
  %v722 = vpop.f32.mrf.mxu0
  %v723 = vadd.f32 %v676, %v722
  %724 = vmatmul.f32.gmra.mxu0 %v338
  %v725 = vpop.f32.mrf.mxu0
  %v726 = vadd.f32 %v679, %v725
  %727 = vmatmul.f32.gmra.mxu0 %v340
  %v728 = vpop.f32.mrf.mxu0
  %v729 = vadd.f32 %v682, %v728
  %730 = vmatmul.f32.gmra.mxu0 %v342
  %v731 = vpop.f32.mrf.mxu0
  %v732 = vadd.f32 %v685, %v731
  %733 = vmatmul.f32.gmra.mxu0 %v344
  %v734 = vpop.f32.mrf.mxu0
  %v735 = vadd.f32 %v688, %v734
  %736 = vmatmul.f32.gmra.mxu0 %v346
  %v737 = vpop.f32.mrf.mxu0
  %v738 = vadd.f32 %v691, %v737
  %739 = vmatmul.f32.gmra.mxu0 %v348
  %v740 = vpop.f32.mrf.mxu0
  %v741 = vadd.f32 %v694, %v740
  %742 = vdwg.mxu0
  %743 = vmatpush.msra.mxu0 %v441
  %744 = vmatpush.msra.mxu0 %v435
  %745 = vmatpush.msra.mxu0 %v429
  %746 = vmatpush.msra.mxu0 %v423
  %747 = vmatpush.msra.mxu0 %v417
  %748 = vmatpush.msra.mxu0 %v411
  %749 = vmatpush.msra.mxu0 %v405
  %750 = vmatpush.msra.mxu0 %v399
  %751 = vmatpush.msra.mxu0 %v393
  %752 = vmatpush.msra.mxu0 %v387
  %753 = vmatpush.msra.mxu0 %v381
  %754 = vmatpush.msra.mxu0 %v375
  %755 = vmatpush.msra.mxu0 %v369
  %756 = vmatpush.msra.mxu0 %v363
  %757 = vmatpush.msra.mxu0 %v357
  %758 = vmatpush.msra.mxu0 %v351
  %759 = vmatmul.f32.gmra.mxu0 %v329
  %v760 = vpop.f32.mrf.mxu0
  %v761 = vadd.f32 %v545, %v760
  %762 = vmatmul.f32.gmra.mxu0 %v331
  %v763 = vpop.f32.mrf.mxu0
  %v764 = vadd.f32 %v545, %v763
  %765 = vmatmul.f32.gmra.mxu0 %v333
  %v766 = vpop.f32.mrf.mxu0
  %v767 = vadd.f32 %v545, %v766
  %768 = vmatmul.f32.gmra.mxu0 %v335
  %v769 = vpop.f32.mrf.mxu0
  %v770 = vadd.f32 %v545, %v769
  %771 = vmatmul.f32.gmra.mxu0 %v337
  %v772 = vpop.f32.mrf.mxu0
  %v773 = vadd.f32 %v545, %v772
  %774 = vmatmul.f32.gmra.mxu0 %v339
  %v775 = vpop.f32.mrf.mxu0
  %v776 = vadd.f32 %v545, %v775
  %777 = vmatmul.f32.gmra.mxu0 %v341
  %v778 = vpop.f32.mrf.mxu0
  %v779 = vadd.f32 %v545, %v778
  %780 = vmatmul.f32.gmra.mxu0 %v343
  %v781 = vpop.f32.mrf.mxu0
  %v782 = vadd.f32 %v545, %v781
  %783 = vmatmul.f32.gmra.mxu0 %v345
  %v784 = vpop.f32.mrf.mxu0
  %v785 = vadd.f32 %v545, %v784
  %786 = vmatmul.f32.gmra.mxu0 %v347
  %v787 = vpop.f32.mrf.mxu0
  %v788 = vadd.f32 %v545, %v787
  %789 = vdwg.mxu0
  %790 = vmatpush.msra.mxu0 %v537
  %791 = vmatpush.msra.mxu0 %v531
  %792 = vmatpush.msra.mxu0 %v525
  %793 = vmatpush.msra.mxu0 %v519
  %794 = vmatpush.msra.mxu0 %v513
  %795 = vmatpush.msra.mxu0 %v507
  %796 = vmatpush.msra.mxu0 %v501
  %797 = vmatpush.msra.mxu0 %v495
  %798 = vmatpush.msra.mxu0 %v489
  %799 = vmatpush.msra.mxu0 %v483
  %800 = vmatpush.msra.mxu0 %v477
  %801 = vmatpush.msra.mxu0 %v471
  %802 = vmatpush.msra.mxu0 %v465
  %803 = vmatpush.msra.mxu0 %v459
  %804 = vmatpush.msra.mxu0 %v453
  %805 = vmatpush.msra.mxu0 %v447
  %806 = vmatmul.f32.gmra.mxu0 %v330
  %v807 = vpop.f32.mrf.mxu0
  %v808 = vadd.f32 %v761, %v807
  %809 = vmatmul.f32.gmra.mxu0 %v332
  %v810 = vpop.f32.mrf.mxu0
  %v811 = vadd.f32 %v764, %v810
  %812 = vmatmul.f32.gmra.mxu0 %v334
  %v813 = vpop.f32.mrf.mxu0
  %v814 = vadd.f32 %v767, %v813
  %815 = vmatmul.f32.gmra.mxu0 %v336
  %v816 = vpop.f32.mrf.mxu0
  %v817 = vadd.f32 %v770, %v816
  %818 = vmatmul.f32.gmra.mxu0 %v338
  %v819 = vpop.f32.mrf.mxu0
  %v820 = vadd.f32 %v773, %v819
  %821 = vmatmul.f32.gmra.mxu0 %v340
  %v822 = vpop.f32.mrf.mxu0
  %v823 = vadd.f32 %v776, %v822
  %824 = vmatmul.f32.gmra.mxu0 %v342
  %v825 = vpop.f32.mrf.mxu0
  %v826 = vadd.f32 %v779, %v825
  %827 = vmatmul.f32.gmra.mxu0 %v344
  %v828 = vpop.f32.mrf.mxu0
  %v829 = vadd.f32 %v782, %v828
  %830 = vmatmul.f32.gmra.mxu0 %v346
  %v831 = vpop.f32.mrf.mxu0
  %v832 = vadd.f32 %v785, %v831
  %833 = vmatmul.f32.gmra.mxu0 %v348
  %v834 = vpop.f32.mrf.mxu0
  %v835 = vadd.f32 %v788, %v834
  %836 = vdwg.mxu0
  %837 = vmatpush.msra.mxu0 %v442
  %838 = vmatpush.msra.mxu0 %v436
  %839 = vmatpush.msra.mxu0 %v430
  %840 = vmatpush.msra.mxu0 %v424
  %841 = vmatpush.msra.mxu0 %v418
  %842 = vmatpush.msra.mxu0 %v412
  %843 = vmatpush.msra.mxu0 %v406
  %844 = vmatpush.msra.mxu0 %v400
  %845 = vmatpush.msra.mxu0 %v394
  %846 = vmatpush.msra.mxu0 %v388
  %847 = vmatpush.msra.mxu0 %v382
  %848 = vmatpush.msra.mxu0 %v376
  %849 = vmatpush.msra.mxu0 %v370
  %850 = vmatpush.msra.mxu0 %v364
  %851 = vmatpush.msra.mxu0 %v358
  %852 = vmatpush.msra.mxu0 %v352
  %853 = vmatmul.f32.gmra.mxu0 %v329
  %v854 = vpop.f32.mrf.mxu0
  %v855 = vadd.f32 %v546, %v854
  %856 = vmatmul.f32.gmra.mxu0 %v331
  %v857 = vpop.f32.mrf.mxu0
  %v858 = vadd.f32 %v546, %v857
  %859 = vmatmul.f32.gmra.mxu0 %v333
  %v860 = vpop.f32.mrf.mxu0
  %v861 = vadd.f32 %v546, %v860
  %862 = vmatmul.f32.gmra.mxu0 %v335
  %v863 = vpop.f32.mrf.mxu0
  %v864 = vadd.f32 %v546, %v863
  %865 = vmatmul.f32.gmra.mxu0 %v337
  %v866 = vpop.f32.mrf.mxu0
  %v867 = vadd.f32 %v546, %v866
  %868 = vmatmul.f32.gmra.mxu0 %v339
  %v869 = vpop.f32.mrf.mxu0
  %v870 = vadd.f32 %v546, %v869
  %871 = vmatmul.f32.gmra.mxu0 %v341
  %v872 = vpop.f32.mrf.mxu0
  %v873 = vadd.f32 %v546, %v872
  %874 = vmatmul.f32.gmra.mxu0 %v343
  %v875 = vpop.f32.mrf.mxu0
  %v876 = vadd.f32 %v546, %v875
  %877 = vmatmul.f32.gmra.mxu0 %v345
  %v878 = vpop.f32.mrf.mxu0
  %v879 = vadd.f32 %v546, %v878
  %880 = vmatmul.f32.gmra.mxu0 %v347
  %v881 = vpop.f32.mrf.mxu0
  %v882 = vadd.f32 %v546, %v881
  %883 = vdwg.mxu0
  %884 = vmatpush.msra.mxu0 %v538
  %885 = vmatpush.msra.mxu0 %v532
  %886 = vmatpush.msra.mxu0 %v526
  %887 = vmatpush.msra.mxu0 %v520
  %888 = vmatpush.msra.mxu0 %v514
  %889 = vmatpush.msra.mxu0 %v508
  %890 = vmatpush.msra.mxu0 %v502
  %891 = vmatpush.msra.mxu0 %v496
  %892 = vmatpush.msra.mxu0 %v490
  %893 = vmatpush.msra.mxu0 %v484
  %894 = vmatpush.msra.mxu0 %v478
  %895 = vmatpush.msra.mxu0 %v472
  %896 = vmatpush.msra.mxu0 %v466
  %897 = vmatpush.msra.mxu0 %v460
  %898 = vmatpush.msra.mxu0 %v454
  %899 = vmatpush.msra.mxu0 %v448
  %900 = vmatmul.f32.gmra.mxu0 %v330
  %v901 = vpop.f32.mrf.mxu0
  %v902 = vadd.f32 %v855, %v901
  %903 = vmatmul.f32.gmra.mxu0 %v332
  %v904 = vpop.f32.mrf.mxu0
  %v905 = vadd.f32 %v858, %v904
  %906 = vmatmul.f32.gmra.mxu0 %v334
  %v907 = vpop.f32.mrf.mxu0
  %v908 = vadd.f32 %v861, %v907
  %909 = vmatmul.f32.gmra.mxu0 %v336
  %v910 = vpop.f32.mrf.mxu0
  %v911 = vadd.f32 %v864, %v910
  %912 = vmatmul.f32.gmra.mxu0 %v338
  %v913 = vpop.f32.mrf.mxu0
  %v914 = vadd.f32 %v867, %v913
  %915 = vmatmul.f32.gmra.mxu0 %v340
  %v916 = vpop.f32.mrf.mxu0
  %v917 = vadd.f32 %v870, %v916
  %918 = vmatmul.f32.gmra.mxu0 %v342
  %v919 = vpop.f32.mrf.mxu0
  %v920 = vadd.f32 %v873, %v919
  %921 = vmatmul.f32.gmra.mxu0 %v344
  %v922 = vpop.f32.mrf.mxu0
  %v923 = vadd.f32 %v876, %v922
  %924 = vmatmul.f32.gmra.mxu0 %v346
  %v925 = vpop.f32.mrf.mxu0
  %v926 = vadd.f32 %v879, %v925
  %927 = vmatmul.f32.gmra.mxu0 %v348
  %v928 = vpop.f32.mrf.mxu0
  %v929 = vadd.f32 %v882, %v928
  %930 = vdwg.mxu0
  %931 = vmatpush.msra.mxu0 %v443
  %932 = vmatpush.msra.mxu0 %v437
  %933 = vmatpush.msra.mxu0 %v431
  %934 = vmatpush.msra.mxu0 %v425
  %935 = vmatpush.msra.mxu0 %v419
  %936 = vmatpush.msra.mxu0 %v413
  %937 = vmatpush.msra.mxu0 %v407
  %938 = vmatpush.msra.mxu0 %v401
  %939 = vmatpush.msra.mxu0 %v395
  %940 = vmatpush.msra.mxu0 %v389
  %941 = vmatpush.msra.mxu0 %v383
  %942 = vmatpush.msra.mxu0 %v377
  %943 = vmatpush.msra.mxu0 %v371
  %944 = vmatpush.msra.mxu0 %v365
  %945 = vmatpush.msra.mxu0 %v359
  %946 = vmatpush.msra.mxu0 %v353
  %947 = vmatmul.f32.gmra.mxu0 %v329
  %v948 = vpop.f32.mrf.mxu0
  %v949 = vadd.f32 %v547, %v948
  %950 = vmatmul.f32.gmra.mxu0 %v331
  %v951 = vpop.f32.mrf.mxu0
  %v952 = vadd.f32 %v547, %v951
  %953 = vmatmul.f32.gmra.mxu0 %v333
  %v954 = vpop.f32.mrf.mxu0
  %v955 = vadd.f32 %v547, %v954
  %956 = vmatmul.f32.gmra.mxu0 %v335
  %v957 = vpop.f32.mrf.mxu0
  %v958 = vadd.f32 %v547, %v957
  %959 = vmatmul.f32.gmra.mxu0 %v337
  %v960 = vpop.f32.mrf.mxu0
  %v961 = vadd.f32 %v547, %v960
  %962 = vmatmul.f32.gmra.mxu0 %v339
  %v963 = vpop.f32.mrf.mxu0
  %v964 = vadd.f32 %v547, %v963
  %965 = vmatmul.f32.gmra.mxu0 %v341
  %v966 = vpop.f32.mrf.mxu0
  %v967 = vadd.f32 %v547, %v966
  %968 = vmatmul.f32.gmra.mxu0 %v343
  %v969 = vpop.f32.mrf.mxu0
  %v970 = vadd.f32 %v547, %v969
  %971 = vmatmul.f32.gmra.mxu0 %v345
  %v972 = vpop.f32.mrf.mxu0
  %v973 = vadd.f32 %v547, %v972
  %974 = vmatmul.f32.gmra.mxu0 %v347
  %v975 = vpop.f32.mrf.mxu0
  %v976 = vadd.f32 %v547, %v975
  %977 = vdwg.mxu0
  %978 = vmatpush.msra.mxu0 %v539
  %979 = vmatpush.msra.mxu0 %v533
  %980 = vmatpush.msra.mxu0 %v527
  %981 = vmatpush.msra.mxu0 %v521
  %982 = vmatpush.msra.mxu0 %v515
  %983 = vmatpush.msra.mxu0 %v509
  %984 = vmatpush.msra.mxu0 %v503
  %985 = vmatpush.msra.mxu0 %v497
  %986 = vmatpush.msra.mxu0 %v491
  %987 = vmatpush.msra.mxu0 %v485
  %988 = vmatpush.msra.mxu0 %v479
  %989 = vmatpush.msra.mxu0 %v473
  %990 = vmatpush.msra.mxu0 %v467
  %991 = vmatpush.msra.mxu0 %v461
  %992 = vmatpush.msra.mxu0 %v455
  %993 = vmatpush.msra.mxu0 %v449
  %994 = vmatmul.f32.gmra.mxu0 %v330
  %v995 = vpop.f32.mrf.mxu0
  %v996 = vadd.f32 %v949, %v995
  %997 = vmatmul.f32.gmra.mxu0 %v332
  %v998 = vpop.f32.mrf.mxu0
  %v999 = vadd.f32 %v952, %v998
  %1000 = vmatmul.f32.gmra.mxu0 %v334
  %v1001 = vpop.f32.mrf.mxu0
  %v1002 = vadd.f32 %v955, %v1001
  %1003 = vmatmul.f32.gmra.mxu0 %v336
  %v1004 = vpop.f32.mrf.mxu0
  %v1005 = vadd.f32 %v958, %v1004
  %1006 = vmatmul.f32.gmra.mxu0 %v338
  %v1007 = vpop.f32.mrf.mxu0
  %v1008 = vadd.f32 %v961, %v1007
  %1009 = vmatmul.f32.gmra.mxu0 %v340
  %v1010 = vpop.f32.mrf.mxu0
  %v1011 = vadd.f32 %v964, %v1010
  %1012 = vmatmul.f32.gmra.mxu0 %v342
  %v1013 = vpop.f32.mrf.mxu0
  %v1014 = vadd.f32 %v967, %v1013
  %1015 = vmatmul.f32.gmra.mxu0 %v344
  %v1016 = vpop.f32.mrf.mxu0
  %v1017 = vadd.f32 %v970, %v1016
  %1018 = vmatmul.f32.gmra.mxu0 %v346
  %v1019 = vpop.f32.mrf.mxu0
  %v1020 = vadd.f32 %v973, %v1019
  %1021 = vmatmul.f32.gmra.mxu0 %v348
  %v1022 = vpop.f32.mrf.mxu0
  %v1023 = vadd.f32 %v976, %v1022
  %1024 = vdwg.mxu0
  %1025 = vmatpush.msra.mxu0 %v444
  %1026 = vmatpush.msra.mxu0 %v438
  %1027 = vmatpush.msra.mxu0 %v432
  %1028 = vmatpush.msra.mxu0 %v426
  %1029 = vmatpush.msra.mxu0 %v420
  %1030 = vmatpush.msra.mxu0 %v414
  %1031 = vmatpush.msra.mxu0 %v408
  %1032 = vmatpush.msra.mxu0 %v402
  %1033 = vmatpush.msra.mxu0 %v396
  %1034 = vmatpush.msra.mxu0 %v390
  %1035 = vmatpush.msra.mxu0 %v384
  %1036 = vmatpush.msra.mxu0 %v378
  %1037 = vmatpush.msra.mxu0 %v372
  %1038 = vmatpush.msra.mxu0 %v366
  %1039 = vmatpush.msra.mxu0 %v360
  %1040 = vmatpush.msra.mxu0 %v354
  %1041 = vmatmul.f32.gmra.mxu0 %v329
  %v1042 = vpop.f32.mrf.mxu0
  %v1043 = vadd.f32 %v548, %v1042
  %1044 = vmatmul.f32.gmra.mxu0 %v331
  %v1045 = vpop.f32.mrf.mxu0
  %v1046 = vadd.f32 %v548, %v1045
  %1047 = vmatmul.f32.gmra.mxu0 %v333
  %v1048 = vpop.f32.mrf.mxu0
  %v1049 = vadd.f32 %v548, %v1048
  %1050 = vmatmul.f32.gmra.mxu0 %v335
  %v1051 = vpop.f32.mrf.mxu0
  %v1052 = vadd.f32 %v548, %v1051
  %1053 = vmatmul.f32.gmra.mxu0 %v337
  %v1054 = vpop.f32.mrf.mxu0
  %v1055 = vadd.f32 %v548, %v1054
  %1056 = vmatmul.f32.gmra.mxu0 %v339
  %v1057 = vpop.f32.mrf.mxu0
  %v1058 = vadd.f32 %v548, %v1057
  %1059 = vmatmul.f32.gmra.mxu0 %v341
  %v1060 = vpop.f32.mrf.mxu0
  %v1061 = vadd.f32 %v548, %v1060
  %1062 = vmatmul.f32.gmra.mxu0 %v343
  %v1063 = vpop.f32.mrf.mxu0
  %v1064 = vadd.f32 %v548, %v1063
  %1065 = vmatmul.f32.gmra.mxu0 %v345
  %v1066 = vpop.f32.mrf.mxu0
  %v1067 = vadd.f32 %v548, %v1066
  %1068 = vmatmul.f32.gmra.mxu0 %v347
  %v1069 = vpop.f32.mrf.mxu0
  %v1070 = vadd.f32 %v548, %v1069
  %1071 = vdwg.mxu0
  %1072 = vmatpush.msra.mxu0 %v540
  %1073 = vmatpush.msra.mxu0 %v534
  %1074 = vmatpush.msra.mxu0 %v528
  %1075 = vmatpush.msra.mxu0 %v522
  %1076 = vmatpush.msra.mxu0 %v516
  %1077 = vmatpush.msra.mxu0 %v510
  %1078 = vmatpush.msra.mxu0 %v504
  %1079 = vmatpush.msra.mxu0 %v498
  %1080 = vmatpush.msra.mxu0 %v492
  %1081 = vmatpush.msra.mxu0 %v486
  %1082 = vmatpush.msra.mxu0 %v480
  %1083 = vmatpush.msra.mxu0 %v474
  %1084 = vmatpush.msra.mxu0 %v468
  %1085 = vmatpush.msra.mxu0 %v462
  %1086 = vmatpush.msra.mxu0 %v456
  %1087 = vmatpush.msra.mxu0 %v450
  %1088 = vmatmul.f32.gmra.mxu0 %v330
  %v1089 = vpop.f32.mrf.mxu0
  %v1090 = vadd.f32 %v1043, %v1089
  %1091 = vmatmul.f32.gmra.mxu0 %v332
  %v1092 = vpop.f32.mrf.mxu0
  %v1093 = vadd.f32 %v1046, %v1092
  %1094 = vmatmul.f32.gmra.mxu0 %v334
  %v1095 = vpop.f32.mrf.mxu0
  %v1096 = vadd.f32 %v1049, %v1095
  %1097 = vmatmul.f32.gmra.mxu0 %v336
  %v1098 = vpop.f32.mrf.mxu0
  %v1099 = vadd.f32 %v1052, %v1098
  %1100 = vmatmul.f32.gmra.mxu0 %v338
  %v1101 = vpop.f32.mrf.mxu0
  %v1102 = vadd.f32 %v1055, %v1101
  %1103 = vmatmul.f32.gmra.mxu0 %v340
  %v1104 = vpop.f32.mrf.mxu0
  %v1105 = vadd.f32 %v1058, %v1104
  %1106 = vmatmul.f32.gmra.mxu0 %v342
  %v1107 = vpop.f32.mrf.mxu0
  %v1108 = vadd.f32 %v1061, %v1107
  %1109 = vmatmul.f32.gmra.mxu0 %v344
  %v1110 = vpop.f32.mrf.mxu0
  %v1111 = vadd.f32 %v1064, %v1110
  %1112 = vmatmul.f32.gmra.mxu0 %v346
  %v1113 = vpop.f32.mrf.mxu0
  %v1114 = vadd.f32 %v1067, %v1113
  %1115 = vmatmul.f32.gmra.mxu0 %v348
  %v1116 = vpop.f32.mrf.mxu0
  %v1117 = vadd.f32 %v1070, %v1116
  %1118 = vdwg.mxu0
  %1119 = vst [vmem:[%s5] sm:$0xff] %v620
  %1120 = vst [vmem:[%s5 + $0x8] sm:$0xff] %v714
  %1121 = vst [vmem:[%s5 + $0x10] sm:$0xff] %v808
  %1122 = vst [vmem:[%s5 + $0x18] sm:$0xff] %v902
  %1123 = vst [vmem:[%s5 + $0x20] sm:$0xff] %v996
  %1124 = vst [vmem:[%s5 + $0x28] sm:$0xff] %v1090
  %1125 = vst [vmem:[%s5 + $0x30] sm:$0xff] %v623
  %1126 = vst [vmem:[%s5 + $0x38] sm:$0xff] %v717
  %1127 = vst [vmem:[%s5 + $0x40] sm:$0xff] %v811
  %1128 = vst [vmem:[%s5 + $0x48] sm:$0xff] %v905
  %1129 = vst [vmem:[%s5 + $0x50] sm:$0xff] %v999
  %1130 = vst [vmem:[%s5 + $0x58] sm:$0xff] %v1093
  %1131 = vst [vmem:[%s5 + $0x60] sm:$0xff] %v626
  %1132 = vst [vmem:[%s5 + $0x68] sm:$0xff] %v720
  %1133 = vst [vmem:[%s5 + $0x70] sm:$0xff] %v814
  %1134 = vst [vmem:[%s5 + $0x78] sm:$0xff] %v908
  %1135 = vst [vmem:[%s5 + $0x80] sm:$0xff] %v1002
  %1136 = vst [vmem:[%s5 + $0x88] sm:$0xff] %v1096
  %1137 = vst [vmem:[%s5 + $0x90] sm:$0xff] %v629
  %1138 = vst [vmem:[%s5 + $0x98] sm:$0xff] %v723
  %1139 = vst [vmem:[%s5 + $0xa0] sm:$0xff] %v817
  %1140 = vst [vmem:[%s5 + $0xa8] sm:$0xff] %v911
  %1141 = vst [vmem:[%s5 + $0xb0] sm:$0xff] %v1005
  %1142 = vst [vmem:[%s5 + $0xb8] sm:$0xff] %v1099
  %1143 = vst [vmem:[%s5 + $0xc0] sm:$0xff] %v632
  %1144 = vst [vmem:[%s5 + $0xc8] sm:$0xff] %v726
  %1145 = vst [vmem:[%s5 + $0xd0] sm:$0xff] %v820
  %1146 = vst [vmem:[%s5 + $0xd8] sm:$0xff] %v914
  %1147 = vst [vmem:[%s5 + $0xe0] sm:$0xff] %v1008
  %1148 = vst [vmem:[%s5 + $0xe8] sm:$0xff] %v1102
  %1149 = vst [vmem:[%s5 + $0xf0] sm:$0xff] %v635
  %1150 = vst [vmem:[%s5 + $0xf8] sm:$0xff] %v729
  %1151 = vst [vmem:[%s5 + $0x100] sm:$0xff] %v823
  %1152 = vst [vmem:[%s5 + $0x108] sm:$0xff] %v917
  %1153 = vst [vmem:[%s5 + $0x110] sm:$0xff] %v1011
  %1154 = vst [vmem:[%s5 + $0x118] sm:$0xff] %v1105
  %1155 = vst [vmem:[%s5 + $0x120] sm:$0xff] %v638
  %1156 = vst [vmem:[%s5 + $0x128] sm:$0xff] %v732
  %1157 = vst [vmem:[%s5 + $0x130] sm:$0xff] %v826
  %1158 = vst [vmem:[%s5 + $0x138] sm:$0xff] %v920
  %1159 = vst [vmem:[%s5 + $0x140] sm:$0xff] %v1014
  %1160 = vst [vmem:[%s5 + $0x148] sm:$0xff] %v1108
  %1161 = vst [vmem:[%s5 + $0x150] sm:$0xff] %v641
  %1162 = vst [vmem:[%s5 + $0x158] sm:$0xff] %v735
  %1163 = vst [vmem:[%s5 + $0x160] sm:$0xff] %v829
  %1164 = vst [vmem:[%s5 + $0x168] sm:$0xff] %v923
  %1165 = vst [vmem:[%s5 + $0x170] sm:$0xff] %v1017
  %1166 = vst [vmem:[%s5 + $0x178] sm:$0xff] %v1111
  %1167 = vst [vmem:[%s5 + $0x180] sm:$0xff] %v644
  %1168 = vst [vmem:[%s5 + $0x188] sm:$0xff] %v738
  %1169 = vst [vmem:[%s5 + $0x190] sm:$0xff] %v832
  %1170 = vst [vmem:[%s5 + $0x198] sm:$0xff] %v926
  %1171 = vst [vmem:[%s5 + $0x1a0] sm:$0xff] %v1020
  %1172 = vst [vmem:[%s5 + $0x1a8] sm:$0xff] %v1114
  %1173 = vst [vmem:[%s5 + $0x1b0] sm:$0xff] %v647
  %1174 = vst [vmem:[%s5 + $0x1b8] sm:$0xff] %v741
  %1175 = vst [vmem:[%s5 + $0x1c0] sm:$0xff] %v835
  %1176 = vst [vmem:[%s5 + $0x1c8] sm:$0xff] %v929
  %1177 = vst [vmem:[%s5 + $0x1d0] sm:$0xff] %v1023
  %1178 = vst [vmem:[%s5 + $0x1d8] sm:$0xff] %v1117
  // Predicated region
  $region22: #{_lambda_.14} parent=0 // pred_check
    _
  $region23: #{_lambda_.14} parent=0 // pred_check_branch
    %1180 = sbr.rel (0) target = $region25
  $region24: #{_lambda_.14} parent=0 // pred_region
    _
  $region25: #{_lambda_.14} parent=0 // pred_fallthru
    _
  // Predicated region
  $region26: #{_lambda_.14} parent=0 // pred_check
    _
  $region27: #{_lambda_.14} parent=0 // pred_check_branch
    %1182 = sbr.rel (0) target = $region29
  $region28: #{_lambda_.14} parent=0 // pred_region
    _
  $region29: #{_lambda_.14} parent=0 // pred_fallthru
    _

// kernel: _lambda_.22
$region0: #{_lambda_.22}
  #allocation0 [shape = 'u32[]', space=smem, size = 0x4, offset = 0x4, fixed_abs, tag = 'smem constant byte address 0x4 - core index']
  #allocation1 [shape = 'u32[72,128]{1,0:T(1,128)}', space=vmem, size = 0x9000, scoped, tag = 'internal scratch']
  %s0 = inlined_call_operand.vmem [shape: f32[64,256], index: 0, kind: input, shape index: {}]
  %s1 = inlined_call_operand.vmem [shape: f32[1,256], index: 1, kind: input, shape index: {}]
  %s2 = inlined_call_operand.vmem [shape: f32[1,256], index: 2, kind: input, shape index: {}]
  %s3 = inlined_call_operand.vmem [shape: f32[64,256], index: 3, kind: output, shape index: {}]
  %s4 = sld [smem:[#allocation0]]
  $region22: #{_lambda_.22} parent=0
    _
  %s6 = ssub.s32 1, %s4
  %s7 = scalar_select 0, %s6, %s4
  // Predicated region
  $region2: #{_lambda_.22} parent=0 // pred_check
    _
  $region3: #{_lambda_.22} parent=0 // pred_check_branch
    %9 = sbr.rel (0) target = $region5
  $region4: #{_lambda_.22} parent=0 // pred_region
    _
  $region5: #{_lambda_.22} parent=0 // pred_fallthru
    _
  // Predicated region
  $region6: #{_lambda_.22} parent=0 // pred_check
    _
  $region7: #{_lambda_.22} parent=0 // pred_check_branch
    %11 = sbr.rel (0) target = $region9
  $region8: #{_lambda_.22} parent=0 // pred_region
    _
  $region9: #{_lambda_.22} parent=0 // pred_fallthru
    _
  // Predicated region
  $region10: #{_lambda_.22} parent=0 // pred_check
    _
  $region11: #{_lambda_.22} parent=0 // pred_check_branch
    %13 = sbr.rel (0) target = $region13
  $region12: #{_lambda_.22} parent=0 // pred_region
    _
  $region13: #{_lambda_.22} parent=0 // pred_fallthru
    _
  %v14 = vld [vmem:[%s0] sm:$0xff]
  %v15 = vld [vmem:[%s0 + $0x8] sm:$0xff]
  %v16 = vld [vmem:[%s0 + $0x10] sm:$0xff]
  %v17 = vld [vmem:[%s0 + $0x18] sm:$0xff]
  %v18 = vld [vmem:[%s0 + $0x20] sm:$0xff]
  %v19 = vld [vmem:[%s0 + $0x28] sm:$0xff]
  %v20 = vld [vmem:[%s0 + $0x30] sm:$0xff]
  %v21 = vld [vmem:[%s0 + $0x38] sm:$0xff]
  %v22 = vld [vmem:[%s0 + $0x40] sm:$0xff]
  %v23 = vld [vmem:[%s0 + $0x48] sm:$0xff]
  %v24 = vld [vmem:[%s0 + $0x50] sm:$0xff]
  %v25 = vld [vmem:[%s0 + $0x58] sm:$0xff]
  %v26 = vld [vmem:[%s0 + $0x60] sm:$0xff]
  %v27 = vld [vmem:[%s0 + $0x68] sm:$0xff]
  %v28 = vld [vmem:[%s0 + $0x70] sm:$0xff]
  %v29 = vld [vmem:[%s0 + $0x78] sm:$0xff]
  %v30 = vadd.f32 %v14, %v15
  %31 = vadd.xlane.f32.xlu0 %v30
  %v32 = vpop.xlane.xlu0 %31
  %v33 = vadd.f32 %v16, %v17
  %34 = vadd.xlane.f32.xlu0 %v33
  %v35 = vpop.xlane.xlu0 %34
  %v36 = vadd.f32 %v18, %v19
  %37 = vadd.xlane.f32.xlu0 %v36
  %v38 = vpop.xlane.xlu0 %37
  %v39 = vadd.f32 %v20, %v21
  %40 = vadd.xlane.f32.xlu0 %v39
  %v41 = vpop.xlane.xlu0 %40
  %v42 = vadd.f32 %v22, %v23
  %43 = vadd.xlane.f32.xlu0 %v42
  %v44 = vpop.xlane.xlu0 %43
  %v45 = vadd.f32 %v24, %v25
  %46 = vadd.xlane.f32.xlu0 %v45
  %v47 = vpop.xlane.xlu0 %46
  %v48 = vadd.f32 %v26, %v27
  %49 = vadd.xlane.f32.xlu0 %v48
  %v50 = vpop.xlane.xlu0 %49
  %v51 = vadd.f32 %v28, %v29
  %52 = vadd.xlane.f32.xlu0 %v51
  %v53 = vpop.xlane.xlu0 %52
  %v54 = vrcp.pop 256.0
  %v55 = vmul.f32 256.0, %v54
  %v56 = vsub.f32 1.0, %v55
  %v57 = vmul.f32 %v54, %v56
  %v58 = vadd.f32 %v54, %v57
  %vm59 = vweird.f32 %v54
  %v60 = vsel %vm59, %v54, %v58
  %v61 = vmul.f32 %v32, %v60
  %v62 = vmul.f32 %v35, %v60
  %v63 = vmul.f32 %v38, %v60
  %v64 = vmul.f32 %v41, %v60
  %v65 = vmul.f32 %v44, %v60
  %v66 = vmul.f32 %v47, %v60
  %v67 = vmul.f32 %v50, %v60
  %v68 = vmul.f32 %v53, %v60
  %v69 = vsub.f32 %v14, %v61
  %v70 = vsub.f32 %v15, %v61
  %v71 = vsub.f32 %v16, %v62
  %v72 = vsub.f32 %v17, %v62
  %v73 = vsub.f32 %v18, %v63
  %v74 = vsub.f32 %v19, %v63
  %v75 = vsub.f32 %v20, %v64
  %v76 = vsub.f32 %v21, %v64
  %v77 = vsub.f32 %v22, %v65
  %v78 = vsub.f32 %v23, %v65
  %v79 = vsub.f32 %v24, %v66
  %v80 = vsub.f32 %v25, %v66
  %v81 = vsub.f32 %v26, %v67
  %v82 = vsub.f32 %v27, %v67
  %v83 = vsub.f32 %v28, %v68
  %v84 = vsub.f32 %v29, %v68
  %v85 = vmul.f32 %v69, %v69
  %v86 = vmul.f32 %v70, %v70
  %v87 = vmul.f32 %v71, %v71
  %v88 = vmul.f32 %v72, %v72
  %v89 = vmul.f32 %v73, %v73
  %v90 = vmul.f32 %v74, %v74
  %v91 = vmul.f32 %v75, %v75
  %v92 = vmul.f32 %v76, %v76
  %v93 = vmul.f32 %v77, %v77
  %v94 = vmul.f32 %v78, %v78
  %v95 = vmul.f32 %v79, %v79
  %v96 = vmul.f32 %v80, %v80
  %v97 = vmul.f32 %v81, %v81
  %v98 = vmul.f32 %v82, %v82
  %v99 = vmul.f32 %v83, %v83
  %v100 = vmul.f32 %v84, %v84
  %v101 = vadd.f32 %v85, %v86
  %102 = vadd.xlane.f32.xlu0 %v101
  %v103 = vpop.xlane.xlu0 %102
  %v104 = vadd.f32 %v87, %v88
  %105 = vadd.xlane.f32.xlu0 %v104
  %v106 = vpop.xlane.xlu0 %105
  %v107 = vadd.f32 %v89, %v90
  %108 = vadd.xlane.f32.xlu0 %v107
  %v109 = vpop.xlane.xlu0 %108
  %v110 = vadd.f32 %v91, %v92
  %111 = vadd.xlane.f32.xlu0 %v110
  %v112 = vpop.xlane.xlu0 %111
  %v113 = vadd.f32 %v93, %v94
  %114 = vadd.xlane.f32.xlu0 %v113
  %v115 = vpop.xlane.xlu0 %114
  %v116 = vadd.f32 %v95, %v96
  %117 = vadd.xlane.f32.xlu0 %v116
  %v118 = vpop.xlane.xlu0 %117
  %v119 = vadd.f32 %v97, %v98
  %120 = vadd.xlane.f32.xlu0 %v119
  %v121 = vpop.xlane.xlu0 %120
  %v122 = vadd.f32 %v99, %v100
  %123 = vadd.xlane.f32.xlu0 %v122
  %v124 = vpop.xlane.xlu0 %123
  %v125 = vmul.f32 %v103, %v60
  %v126 = vmul.f32 %v106, %v60
  %v127 = vmul.f32 %v109, %v60
  %v128 = vmul.f32 %v112, %v60
  %v129 = vmul.f32 %v115, %v60
  %v130 = vmul.f32 %v118, %v60
  %v131 = vmul.f32 %v121, %v60
  %v132 = vmul.f32 %v124, %v60
  %v133 = vadd.f32 %v125, 1e-05
  %v134 = vadd.f32 %v126, 1e-05
  %v135 = vadd.f32 %v127, 1e-05
  %v136 = vadd.f32 %v128, 1e-05
  %v137 = vadd.f32 %v129, 1e-05
  %v138 = vadd.f32 %v130, 1e-05
  %v139 = vadd.f32 %v131, 1e-05
  %v140 = vadd.f32 %v132, 1e-05
  %v141 = vrsqrt.pop %v133
  %v142 = vmul.f32 %v141, %v133
  %v143 = vmul.f32 %v142, %v141
  %v144 = vmul.f32 0.5, %v143
  %v145 = vsub.f32 1.5, %v144
  %v146 = vmul.f32 %v141, %v145
  %vm147 = vweird.f32 %v133
  %vm148 = vweird.f32 %v141
  %vm149 = vmor %vm147, %vm148
  %v150 = vsel %vm149, %v141, %v146
  %v151 = vrsqrt.pop %v134
  %v152 = vmul.f32 %v151, %v134
  %v153 = vmul.f32 %v152, %v151
  %v154 = vmul.f32 0.5, %v153
  %v155 = vsub.f32 1.5, %v154
  %v156 = vmul.f32 %v151, %v155
  %vm157 = vweird.f32 %v134
  %vm158 = vweird.f32 %v151
  %vm159 = vmor %vm157, %vm158
  %v160 = vsel %vm159, %v151, %v156
  %v161 = vrsqrt.pop %v135
  %v162 = vmul.f32 %v161, %v135
  %v163 = vmul.f32 %v162, %v161
  %v164 = vmul.f32 0.5, %v163
  %v165 = vsub.f32 1.5, %v164
  %v166 = vmul.f32 %v161, %v165
  %vm167 = vweird.f32 %v135
  %vm168 = vweird.f32 %v161
  %vm169 = vmor %vm167, %vm168
  %v170 = vsel %vm169, %v161, %v166
  %v171 = vrsqrt.pop %v136
  %v172 = vmul.f32 %v171, %v136
  %v173 = vmul.f32 %v172, %v171
  %v174 = vmul.f32 0.5, %v173
  %v175 = vsub.f32 1.5, %v174
  %v176 = vmul.f32 %v171, %v175
  %vm177 = vweird.f32 %v136
  %vm178 = vweird.f32 %v171
  %vm179 = vmor %vm177, %vm178
  %v180 = vsel %vm179, %v171, %v176
  %v181 = vrsqrt.pop %v137
  %v182 = vmul.f32 %v181, %v137
  %v183 = vmul.f32 %v182, %v181
  %v184 = vmul.f32 0.5, %v183
  %v185 = vsub.f32 1.5, %v184
  %v186 = vmul.f32 %v181, %v185
  %vm187 = vweird.f32 %v137
  %vm188 = vweird.f32 %v181
  %vm189 = vmor %vm187, %vm188
  %v190 = vsel %vm189, %v181, %v186
  %v191 = vrsqrt.pop %v138
  %v192 = vmul.f32 %v191, %v138
  %v193 = vmul.f32 %v192, %v191
  %v194 = vmul.f32 0.5, %v193
  %v195 = vsub.f32 1.5, %v194
  %v196 = vmul.f32 %v191, %v195
  %vm197 = vweird.f32 %v138
  %vm198 = vweird.f32 %v191
  %vm199 = vmor %vm197, %vm198
  %v200 = vsel %vm199, %v191, %v196
  %v201 = vrsqrt.pop %v139
  %v202 = vmul.f32 %v201, %v139
  %v203 = vmul.f32 %v202, %v201
  %v204 = vmul.f32 0.5, %v203
  %v205 = vsub.f32 1.5, %v204
  %v206 = vmul.f32 %v201, %v205
  %vm207 = vweird.f32 %v139
  %vm208 = vweird.f32 %v201
  %vm209 = vmor %vm207, %vm208
  %v210 = vsel %vm209, %v201, %v206
  %v211 = vrsqrt.pop %v140
  %v212 = vmul.f32 %v211, %v140
  %v213 = vmul.f32 %v212, %v211
  %v214 = vmul.f32 0.5, %v213
  %v215 = vsub.f32 1.5, %v214
  %v216 = vmul.f32 %v211, %v215
  %vm217 = vweird.f32 %v140
  %vm218 = vweird.f32 %v211
  %vm219 = vmor %vm217, %vm218
  %v220 = vsel %vm219, %v211, %v216
  %v221 = vmul.f32 %v69, %v150
  %v222 = vmul.f32 %v70, %v150
  %v223 = vmul.f32 %v71, %v160
  %v224 = vmul.f32 %v72, %v160
  %v225 = vmul.f32 %v73, %v170
  %v226 = vmul.f32 %v74, %v170
  %v227 = vmul.f32 %v75, %v180
  %v228 = vmul.f32 %v76, %v180
  %v229 = vmul.f32 %v77, %v190
  %v230 = vmul.f32 %v78, %v190
  %v231 = vmul.f32 %v79, %v200
  %v232 = vmul.f32 %v80, %v200
  %v233 = vmul.f32 %v81, %v210
  %v234 = vmul.f32 %v82, %v210
  %v235 = vmul.f32 %v83, %v220
  %v236 = vmul.f32 %v84, %v220
  %v237 = vld [vmem:[%s1] sm:$0x3]
  %v239 = vperm.slane %v237, 0
  %v240 = vperm.slane %v237, 1
  %v243 = vmul.f32 %v221, %v239
  %v244 = vmul.f32 %v222, %v240
  %v245 = vmul.f32 %v223, %v239
  %v246 = vmul.f32 %v224, %v240
  %v247 = vmul.f32 %v225, %v239
  %v248 = vmul.f32 %v226, %v240
  %v249 = vmul.f32 %v227, %v239
  %v250 = vmul.f32 %v228, %v240
  %v251 = vmul.f32 %v229, %v239
  %v252 = vmul.f32 %v230, %v240
  %v253 = vmul.f32 %v231, %v239
  %v254 = vmul.f32 %v232, %v240
  %v255 = vmul.f32 %v233, %v239
  %v256 = vmul.f32 %v234, %v240
  %v257 = vmul.f32 %v235, %v239
  %v258 = vmul.f32 %v236, %v240
  %v259 = vld [vmem:[%s2] sm:$0x3]
  %v261 = vperm.slane %v259, 0
  %v262 = vperm.slane %v259, 1
  %v265 = vadd.f32 %v243, %v261
  %v266 = vadd.f32 %v244, %v262
  %v267 = vadd.f32 %v245, %v261
  %v268 = vadd.f32 %v246, %v262
  %v269 = vadd.f32 %v247, %v261
  %v270 = vadd.f32 %v248, %v262
  %v271 = vadd.f32 %v249, %v261
  %v272 = vadd.f32 %v250, %v262
  %v273 = vadd.f32 %v251, %v261
  %v274 = vadd.f32 %v252, %v262
  %v275 = vadd.f32 %v253, %v261
  %v276 = vadd.f32 %v254, %v262
  %v277 = vadd.f32 %v255, %v261
  %v278 = vadd.f32 %v256, %v262
  %v279 = vadd.f32 %v257, %v261
  %v280 = vadd.f32 %v258, %v262
  %281 = vst [vmem:[%s3] sm:$0xff] %v265
  %282 = vst [vmem:[%s3 + $0x8] sm:$0xff] %v266
  %283 = vst [vmem:[%s3 + $0x10] sm:$0xff] %v267
  %284 = vst [vmem:[%s3 + $0x18] sm:$0xff] %v268
  %285 = vst [vmem:[%s3 + $0x20] sm:$0xff] %v269
  %286 = vst [vmem:[%s3 + $0x28] sm:$0xff] %v270
  %287 = vst [vmem:[%s3 + $0x30] sm:$0xff] %v271
  %288 = vst [vmem:[%s3 + $0x38] sm:$0xff] %v272
  %289 = vst [vmem:[%s3 + $0x40] sm:$0xff] %v273
  %290 = vst [vmem:[%s3 + $0x48] sm:$0xff] %v274
  %291 = vst [vmem:[%s3 + $0x50] sm:$0xff] %v275
  %292 = vst [vmem:[%s3 + $0x58] sm:$0xff] %v276
  %293 = vst [vmem:[%s3 + $0x60] sm:$0xff] %v277
  %294 = vst [vmem:[%s3 + $0x68] sm:$0xff] %v278
  %295 = vst [vmem:[%s3 + $0x70] sm:$0xff] %v279
  %296 = vst [vmem:[%s3 + $0x78] sm:$0xff] %v280
  // Predicated region
  $region14: #{_lambda_.22} parent=0 // pred_check
    _
  $region15: #{_lambda_.22} parent=0 // pred_check_branch
    %298 = sbr.rel (0) target = $region17
  $region16: #{_lambda_.22} parent=0 // pred_region
    _
  $region17: #{_lambda_.22} parent=0 // pred_fallthru
    _
  // Predicated region
  $region18: #{_lambda_.22} parent=0 // pred_check
    _
  $region19: #{_lambda_.22} parent=0 // pred_check_branch
    %300 = sbr.rel (0) target = $region21
  $region20: #{_lambda_.22} parent=0 // pred_region
    _
  $region21: #{_lambda_.22} parent=0 // pred_fallthru
    _

// kernel: _lambda_.23
$region0: #{_lambda_.23}
  #allocation0 [shape = 'u32[]', space=smem, size = 0x4, offset = 0x4, fixed_abs, tag = 'smem constant byte address 0x4 - core index']
  #allocation1 [shape = 'u32[72,128]{1,0:T(1,128)}', space=vmem, size = 0x9000, scoped, tag = 'internal scratch']
  %s0 = inlined_call_operand.vmem [shape: f32[64,256], index: 0, kind: input, shape index: {}]
  %s1 = inlined_call_operand.vmem [shape: f32[256,16], index: 1, kind: input, shape index: {}]
  %s2 = inlined_call_operand.vmem [shape: f32[1,16], index: 2, kind: input, shape index: {}]
  %s3 = inlined_call_operand.vmem [shape: f32[64,16], index: 3, kind: output, shape index: {}]
  %s4 = sld [smem:[#allocation0]]
  $region22: #{_lambda_.23} parent=0
    _
  %s6 = ssub.s32 1, %s4
  %s7 = scalar_select 0, %s6, %s4
  // Predicated region
  $region2: #{_lambda_.23} parent=0 // pred_check
    _
  $region3: #{_lambda_.23} parent=0 // pred_check_branch
    %9 = sbr.rel (0) target = $region5
  $region4: #{_lambda_.23} parent=0 // pred_region
    _
  $region5: #{_lambda_.23} parent=0 // pred_fallthru
    _
  // Predicated region
  $region6: #{_lambda_.23} parent=0 // pred_check
    _
  $region7: #{_lambda_.23} parent=0 // pred_check_branch
    %11 = sbr.rel (0) target = $region9
  $region8: #{_lambda_.23} parent=0 // pred_region
    _
  $region9: #{_lambda_.23} parent=0 // pred_fallthru
    _
  // Predicated region
  $region10: #{_lambda_.23} parent=0 // pred_check
    _
  $region11: #{_lambda_.23} parent=0 // pred_check_branch
    %13 = sbr.rel (0) target = $region13
  $region12: #{_lambda_.23} parent=0 // pred_region
    _
  $region13: #{_lambda_.23} parent=0 // pred_fallthru
    _
  %v14 = vld [vmem:[%s0] sm:$0xff]
  %v15 = vld [vmem:[%s0 + $0x8] sm:$0xff]
  %v16 = vld [vmem:[%s0 + $0x10] sm:$0xff]
  %v17 = vld [vmem:[%s0 + $0x18] sm:$0xff]
  %v18 = vld [vmem:[%s0 + $0x20] sm:$0xff]
  %v19 = vld [vmem:[%s0 + $0x28] sm:$0xff]
  %v20 = vld [vmem:[%s0 + $0x30] sm:$0xff]
  %v21 = vld [vmem:[%s0 + $0x38] sm:$0xff]
  %v22 = vld [vmem:[%s0 + $0x40] sm:$0xff]
  %v23 = vld [vmem:[%s0 + $0x48] sm:$0xff]
  %v24 = vld [vmem:[%s0 + $0x50] sm:$0xff]
  %v25 = vld [vmem:[%s0 + $0x58] sm:$0xff]
  %v26 = vld [vmem:[%s0 + $0x60] sm:$0xff]
  %v27 = vld [vmem:[%s0 + $0x68] sm:$0xff]
  %v28 = vld [vmem:[%s0 + $0x70] sm:$0xff]
  %v29 = vld [vmem:[%s0 + $0x78] sm:$0xff]
  %v30 = vld [vmem:[%s1] sm:$0xff]
  %v31 = vld [vmem:[%s1 + $0x8] sm:$0xff]
  %v32 = vld [vmem:[%s1 + $0x10] sm:$0xff]
  %v33 = vld [vmem:[%s1 + $0x18] sm:$0xff]
  %v34 = vld [vmem:[%s1 + $0x20] sm:$0xff]
  %v35 = vld [vmem:[%s1 + $0x28] sm:$0xff]
  %v36 = vld [vmem:[%s1 + $0x30] sm:$0xff]
  %v37 = vld [vmem:[%s1 + $0x38] sm:$0xff]
  %v38 = vld [vmem:[%s1 + $0x40] sm:$0xff]
  %v39 = vld [vmem:[%s1 + $0x48] sm:$0xff]
  %v40 = vld [vmem:[%s1 + $0x50] sm:$0xff]
  %v41 = vld [vmem:[%s1 + $0x58] sm:$0xff]
  %v42 = vld [vmem:[%s1 + $0x60] sm:$0xff]
  %v43 = vld [vmem:[%s1 + $0x68] sm:$0xff]
  %v44 = vld [vmem:[%s1 + $0x70] sm:$0xff]
  %v45 = vld [vmem:[%s1 + $0x78] sm:$0xff]
  %v46 = vld [vmem:[%s1 + $0x80] sm:$0xff]
  %v47 = vld [vmem:[%s1 + $0x88] sm:$0xff]
  %v48 = vld [vmem:[%s1 + $0x90] sm:$0xff]
  %v49 = vld [vmem:[%s1 + $0x98] sm:$0xff]
  %v50 = vld [vmem:[%s1 + $0xa0] sm:$0xff]
  %v51 = vld [vmem:[%s1 + $0xa8] sm:$0xff]
  %v52 = vld [vmem:[%s1 + $0xb0] sm:$0xff]
  %v53 = vld [vmem:[%s1 + $0xb8] sm:$0xff]
  %v54 = vld [vmem:[%s1 + $0xc0] sm:$0xff]
  %v55 = vld [vmem:[%s1 + $0xc8] sm:$0xff]
  %v56 = vld [vmem:[%s1 + $0xd0] sm:$0xff]
  %v57 = vld [vmem:[%s1 + $0xd8] sm:$0xff]
  %v58 = vld [vmem:[%s1 + $0xe0] sm:$0xff]
  %v59 = vld [vmem:[%s1 + $0xe8] sm:$0xff]
  %v60 = vld [vmem:[%s1 + $0xf0] sm:$0xff]
  %v61 = vld [vmem:[%s1 + $0xf8] sm:$0xff]
  %v62 = vld [vmem:[%s2] sm:$0x1]
  %v64 = vperm.slane %v62, 0
  %66 = vmatpush.msra.mxu0 %v45
  %67 = vmatpush.msra.mxu0 %v44
  %68 = vmatpush.msra.mxu0 %v43
  %69 = vmatpush.msra.mxu0 %v42
  %70 = vmatpush.msra.mxu0 %v41
  %71 = vmatpush.msra.mxu0 %v40
  %72 = vmatpush.msra.mxu0 %v39
  %73 = vmatpush.msra.mxu0 %v38
  %74 = vmatpush.msra.mxu0 %v37
  %75 = vmatpush.msra.mxu0 %v36
  %76 = vmatpush.msra.mxu0 %v35
  %77 = vmatpush.msra.mxu0 %v34
  %78 = vmatpush.msra.mxu0 %v33
  %79 = vmatpush.msra.mxu0 %v32
  %80 = vmatpush.msra.mxu0 %v31
  %81 = vmatpush.msra.mxu0 %v30
  %82 = vmatmul.f32.gmra.mxu0 %v14
  %v83 = vpop.f32.mrf.mxu0
  %v84 = vadd.f32 %v64, %v83
  %85 = vmatmul.f32.gmra.mxu0 %v16
  %v86 = vpop.f32.mrf.mxu0
  %v87 = vadd.f32 %v64, %v86
  %88 = vmatmul.f32.gmra.mxu0 %v18
  %v89 = vpop.f32.mrf.mxu0
  %v90 = vadd.f32 %v64, %v89
  %91 = vmatmul.f32.gmra.mxu0 %v20
  %v92 = vpop.f32.mrf.mxu0
  %v93 = vadd.f32 %v64, %v92
  %94 = vmatmul.f32.gmra.mxu0 %v22
  %v95 = vpop.f32.mrf.mxu0
  %v96 = vadd.f32 %v64, %v95
  %97 = vmatmul.f32.gmra.mxu0 %v24
  %v98 = vpop.f32.mrf.mxu0
  %v99 = vadd.f32 %v64, %v98
  %100 = vmatmul.f32.gmra.mxu0 %v26
  %v101 = vpop.f32.mrf.mxu0
  %v102 = vadd.f32 %v64, %v101
  %103 = vmatmul.f32.gmra.mxu0 %v28
  %v104 = vpop.f32.mrf.mxu0
  %v105 = vadd.f32 %v64, %v104
  %106 = vdwg.mxu0
  %107 = vmatpush.msra.mxu0 %v61
  %108 = vmatpush.msra.mxu0 %v60
  %109 = vmatpush.msra.mxu0 %v59
  %110 = vmatpush.msra.mxu0 %v58
  %111 = vmatpush.msra.mxu0 %v57
  %112 = vmatpush.msra.mxu0 %v56
  %113 = vmatpush.msra.mxu0 %v55
  %114 = vmatpush.msra.mxu0 %v54
  %115 = vmatpush.msra.mxu0 %v53
  %116 = vmatpush.msra.mxu0 %v52
  %117 = vmatpush.msra.mxu0 %v51
  %118 = vmatpush.msra.mxu0 %v50
  %119 = vmatpush.msra.mxu0 %v49
  %120 = vmatpush.msra.mxu0 %v48
  %121 = vmatpush.msra.mxu0 %v47
  %122 = vmatpush.msra.mxu0 %v46
  %123 = vmatmul.f32.gmra.mxu0 %v15
  %v124 = vpop.f32.mrf.mxu0
  %v125 = vadd.f32 %v84, %v124
  %126 = vmatmul.f32.gmra.mxu0 %v17
  %v127 = vpop.f32.mrf.mxu0
  %v128 = vadd.f32 %v87, %v127
  %129 = vmatmul.f32.gmra.mxu0 %v19
  %v130 = vpop.f32.mrf.mxu0
  %v131 = vadd.f32 %v90, %v130
  %132 = vmatmul.f32.gmra.mxu0 %v21
  %v133 = vpop.f32.mrf.mxu0
  %v134 = vadd.f32 %v93, %v133
  %135 = vmatmul.f32.gmra.mxu0 %v23
  %v136 = vpop.f32.mrf.mxu0
  %v137 = vadd.f32 %v96, %v136
  %138 = vmatmul.f32.gmra.mxu0 %v25
  %v139 = vpop.f32.mrf.mxu0
  %v140 = vadd.f32 %v99, %v139
  %141 = vmatmul.f32.gmra.mxu0 %v27
  %v142 = vpop.f32.mrf.mxu0
  %v143 = vadd.f32 %v102, %v142
  %144 = vmatmul.f32.gmra.mxu0 %v29
  %v145 = vpop.f32.mrf.mxu0
  %v146 = vadd.f32 %v105, %v145
  %147 = vdwg.mxu0
  %vm148 = vcmask 130048
  %149 = vst.msk [vmem:[%s3] sm:$0xff] %vm148, %v125
  %150 = vst.msk [vmem:[%s3 + $0x8] sm:$0xff] %vm148, %v128
  %151 = vst.msk [vmem:[%s3 + $0x10] sm:$0xff] %vm148, %v131
  %152 = vst.msk [vmem:[%s3 + $0x18] sm:$0xff] %vm148, %v134
  %153 = vst.msk [vmem:[%s3 + $0x20] sm:$0xff] %vm148, %v137
  %154 = vst.msk [vmem:[%s3 + $0x28] sm:$0xff] %vm148, %v140
  %155 = vst.msk [vmem:[%s3 + $0x30] sm:$0xff] %vm148, %v143
  %156 = vst.msk [vmem:[%s3 + $0x38] sm:$0xff] %vm148, %v146
  // Predicated region
  $region14: #{_lambda_.23} parent=0 // pred_check
    _
  $region15: #{_lambda_.23} parent=0 // pred_check_branch
    %158 = sbr.rel (0) target = $region17
  $region16: #{_lambda_.23} parent=0 // pred_region
    _
  $region17: #{_lambda_.23} parent=0 // pred_fallthru
    _
  // Predicated region
  $region18: #{_lambda_.23} parent=0 // pred_check
    _
  $region19: #{_lambda_.23} parent=0 // pred_check_branch
    %160 = sbr.rel (0) target = $region21
  $region20: #{_lambda_.23} parent=0 // pred_region
    _
  $region21: #{_lambda_.23} parent=0 // pred_fallthru
    _

// kernel: _lambda_.17
$region0: #{_lambda_.17}
  #allocation0 [shape = 'u32[]', space=smem, size = 0x4, offset = 0x4, fixed_abs, tag = 'smem constant byte address 0x4 - core index']
  #allocation1 [shape = 'u32[72,128]{1,0:T(1,128)}', space=vmem, size = 0x9000, scoped, tag = 'internal scratch']
  %s0 = inlined_call_operand.vmem [shape: f32[80,256], index: 0, kind: input, shape index: {}]
  %s1 = inlined_call_operand.vmem [shape: f32[1,256], index: 1, kind: input, shape index: {}]
  %s2 = inlined_call_operand.vmem [shape: f32[1,256], index: 2, kind: input, shape index: {}]
  %s3 = inlined_call_operand.vmem [shape: f32[256,1024], index: 3, kind: input, shape index: {}]
  %s4 = inlined_call_operand.vmem [shape: f32[1,1024], index: 4, kind: input, shape index: {}]
  %s5 = inlined_call_operand.vmem [shape: f32[1024,256], index: 5, kind: input, shape index: {}]
  %s6 = inlined_call_operand.vmem [shape: f32[1,256], index: 6, kind: input, shape index: {}]
  %s7 = inlined_call_operand.vmem [shape: f32[80,256], index: 7, kind: output, shape index: {}]
  %s8 = sld [smem:[#allocation0]]
  $region38: #{_lambda_.17} parent=0
    _
  %s10 = ssub.s32 1, %s8
  %s11 = scalar_select 0, %s10, %s8
  // Predicated region
  $region2: #{_lambda_.17} parent=0 // pred_check
    _
  $region3: #{_lambda_.17} parent=0 // pred_check_branch
    %13 = sbr.rel (0) target = $region5
  $region4: #{_lambda_.17} parent=0 // pred_region
    _
  $region5: #{_lambda_.17} parent=0 // pred_fallthru
    _
  // Predicated region
  $region6: #{_lambda_.17} parent=0 // pred_check
    _
  $region7: #{_lambda_.17} parent=0 // pred_check_branch
    %15 = sbr.rel (0) target = $region9
  $region8: #{_lambda_.17} parent=0 // pred_region
    _
  $region9: #{_lambda_.17} parent=0 // pred_fallthru
    _
  // Predicated region
  $region10: #{_lambda_.17} parent=0 // pred_check
    _
  $region11: #{_lambda_.17} parent=0 // pred_check_branch
    %17 = sbr.rel (0) target = $region13
  $region12: #{_lambda_.17} parent=0 // pred_region
    _
  $region13: #{_lambda_.17} parent=0 // pred_fallthru
    _
  // Predicated region
  $region14: #{_lambda_.17} parent=0 // pred_check
    _
  $region15: #{_lambda_.17} parent=0 // pred_check_branch
    %19 = sbr.rel (0) target = $region17
  $region16: #{_lambda_.17} parent=0 // pred_region
    _
  $region17: #{_lambda_.17} parent=0 // pred_fallthru
    _
  // Predicated region
  $region18: #{_lambda_.17} parent=0 // pred_check
    _
  $region19: #{_lambda_.17} parent=0 // pred_check_branch
    %21 = sbr.rel (0) target = $region21
  $region20: #{_lambda_.17} parent=0 // pred_region
    _
  $region21: #{_lambda_.17} parent=0 // pred_fallthru
    _
  // Predicated region
  $region22: #{_lambda_.17} parent=0 // pred_check
    _
  $region23: #{_lambda_.17} parent=0 // pred_check_branch
    %23 = sbr.rel (0) target = $region25
  $region24: #{_lambda_.17} parent=0 // pred_region
    _
  $region25: #{_lambda_.17} parent=0 // pred_fallthru
    _
  // Predicated region
  $region26: #{_lambda_.17} parent=0 // pred_check
    _
  $region27: #{_lambda_.17} parent=0 // pred_check_branch
    %25 = sbr.rel (0) target = $region29
  $region28: #{_lambda_.17} parent=0 // pred_region
    _
  $region29: #{_lambda_.17} parent=0 // pred_fallthru
    _
  %v26 = vld [vmem:[%s0] sm:$0xff]
  %v27 = vld [vmem:[%s0 + $0x8] sm:$0xff]
  %v28 = vld [vmem:[%s0 + $0x10] sm:$0xff]
  %v29 = vld [vmem:[%s0 + $0x18] sm:$0xff]
  %v30 = vld [vmem:[%s0 + $0x20] sm:$0xff]
  %v31 = vld [vmem:[%s0 + $0x28] sm:$0xff]
  %v32 = vld [vmem:[%s0 + $0x30] sm:$0xff]
  %v33 = vld [vmem:[%s0 + $0x38] sm:$0xff]
  %v34 = vld [vmem:[%s0 + $0x40] sm:$0xff]
  %v35 = vld [vmem:[%s0 + $0x48] sm:$0xff]
  %v36 = vld [vmem:[%s0 + $0x50] sm:$0xff]
  %v37 = vld [vmem:[%s0 + $0x58] sm:$0xff]
  %v38 = vld [vmem:[%s0 + $0x60] sm:$0xff]
  %v39 = vld [vmem:[%s0 + $0x68] sm:$0xff]
  %v40 = vld [vmem:[%s0 + $0x70] sm:$0xff]
  %v41 = vld [vmem:[%s0 + $0x78] sm:$0xff]
  %v42 = vld [vmem:[%s0 + $0x80] sm:$0xff]
  %v43 = vld [vmem:[%s0 + $0x88] sm:$0xff]
  %v44 = vld [vmem:[%s0 + $0x90] sm:$0xff]
  %v45 = vld [vmem:[%s0 + $0x98] sm:$0xff]
  %v46 = vadd.f32 %v26, %v27
  %47 = vadd.xlane.f32.xlu0 %v46
  %v48 = vpop.xlane.xlu0 %47
  %v49 = vadd.f32 %v28, %v29
  %50 = vadd.xlane.f32.xlu0 %v49
  %v51 = vpop.xlane.xlu0 %50
  %v52 = vadd.f32 %v30, %v31
  %53 = vadd.xlane.f32.xlu0 %v52
  %v54 = vpop.xlane.xlu0 %53
  %v55 = vadd.f32 %v32, %v33
  %56 = vadd.xlane.f32.xlu0 %v55
  %v57 = vpop.xlane.xlu0 %56
  %v58 = vadd.f32 %v34, %v35
  %59 = vadd.xlane.f32.xlu0 %v58
  %v60 = vpop.xlane.xlu0 %59
  %v61 = vadd.f32 %v36, %v37
  %62 = vadd.xlane.f32.xlu0 %v61
  %v63 = vpop.xlane.xlu0 %62
  %v64 = vadd.f32 %v38, %v39
  %65 = vadd.xlane.f32.xlu0 %v64
  %v66 = vpop.xlane.xlu0 %65
  %v67 = vadd.f32 %v40, %v41
  %68 = vadd.xlane.f32.xlu0 %v67
  %v69 = vpop.xlane.xlu0 %68
  %v70 = vadd.f32 %v42, %v43
  %71 = vadd.xlane.f32.xlu0 %v70
  %v72 = vpop.xlane.xlu0 %71
  %v73 = vadd.f32 %v44, %v45
  %74 = vadd.xlane.f32.xlu0 %v73
  %v75 = vpop.xlane.xlu0 %74
  %v76 = vrcp.pop 256.0
  %v77 = vmul.f32 256.0, %v76
  %v78 = vsub.f32 1.0, %v77
  %v79 = vmul.f32 %v76, %v78
  %v80 = vadd.f32 %v76, %v79
  %vm81 = vweird.f32 %v76
  %v82 = vsel %vm81, %v76, %v80
  %v83 = vmul.f32 %v48, %v82
  %v84 = vmul.f32 %v51, %v82
  %v85 = vmul.f32 %v54, %v82
  %v86 = vmul.f32 %v57, %v82
  %v87 = vmul.f32 %v60, %v82
  %v88 = vmul.f32 %v63, %v82
  %v89 = vmul.f32 %v66, %v82
  %v90 = vmul.f32 %v69, %v82
  %v91 = vmul.f32 %v72, %v82
  %v92 = vmul.f32 %v75, %v82
  %v93 = vsub.f32 %v26, %v83
  %v94 = vsub.f32 %v27, %v83
  %v95 = vsub.f32 %v28, %v84
  %v96 = vsub.f32 %v29, %v84
  %v97 = vsub.f32 %v30, %v85
  %v98 = vsub.f32 %v31, %v85
  %v99 = vsub.f32 %v32, %v86
  %v100 = vsub.f32 %v33, %v86
  %v101 = vsub.f32 %v34, %v87
  %v102 = vsub.f32 %v35, %v87
  %v103 = vsub.f32 %v36, %v88
  %v104 = vsub.f32 %v37, %v88
  %v105 = vsub.f32 %v38, %v89
  %v106 = vsub.f32 %v39, %v89
  %v107 = vsub.f32 %v40, %v90
  %v108 = vsub.f32 %v41, %v90
  %v109 = vsub.f32 %v42, %v91
  %v110 = vsub.f32 %v43, %v91
  %v111 = vsub.f32 %v44, %v92
  %v112 = vsub.f32 %v45, %v92
  %v113 = vmul.f32 %v93, %v93
  %v114 = vmul.f32 %v94, %v94
  %v115 = vmul.f32 %v95, %v95
  %v116 = vmul.f32 %v96, %v96
  %v117 = vmul.f32 %v97, %v97
  %v118 = vmul.f32 %v98, %v98
  %v119 = vmul.f32 %v99, %v99
  %v120 = vmul.f32 %v100, %v100
  %v121 = vmul.f32 %v101, %v101
  %v122 = vmul.f32 %v102, %v102
  %v123 = vmul.f32 %v103, %v103
  %v124 = vmul.f32 %v104, %v104
  %v125 = vmul.f32 %v105, %v105
  %v126 = vmul.f32 %v106, %v106
  %v127 = vmul.f32 %v107, %v107
  %v128 = vmul.f32 %v108, %v108
  %v129 = vmul.f32 %v109, %v109
  %v130 = vmul.f32 %v110, %v110
  %v131 = vmul.f32 %v111, %v111
  %v132 = vmul.f32 %v112, %v112
  %v133 = vadd.f32 %v113, %v114
  %134 = vadd.xlane.f32.xlu0 %v133
  %v135 = vpop.xlane.xlu0 %134
  %v136 = vadd.f32 %v115, %v116
  %137 = vadd.xlane.f32.xlu0 %v136
  %v138 = vpop.xlane.xlu0 %137
  %v139 = vadd.f32 %v117, %v118
  %140 = vadd.xlane.f32.xlu0 %v139
  %v141 = vpop.xlane.xlu0 %140
  %v142 = vadd.f32 %v119, %v120
  %143 = vadd.xlane.f32.xlu0 %v142
  %v144 = vpop.xlane.xlu0 %143
  %v145 = vadd.f32 %v121, %v122
  %146 = vadd.xlane.f32.xlu0 %v145
  %v147 = vpop.xlane.xlu0 %146
  %v148 = vadd.f32 %v123, %v124
  %149 = vadd.xlane.f32.xlu0 %v148
  %v150 = vpop.xlane.xlu0 %149
  %v151 = vadd.f32 %v125, %v126
  %152 = vadd.xlane.f32.xlu0 %v151
  %v153 = vpop.xlane.xlu0 %152
  %v154 = vadd.f32 %v127, %v128
  %155 = vadd.xlane.f32.xlu0 %v154
  %v156 = vpop.xlane.xlu0 %155
  %v157 = vadd.f32 %v129, %v130
  %158 = vadd.xlane.f32.xlu0 %v157
  %v159 = vpop.xlane.xlu0 %158
  %v160 = vadd.f32 %v131, %v132
  %161 = vadd.xlane.f32.xlu0 %v160
  %v162 = vpop.xlane.xlu0 %161
  %v163 = vmul.f32 %v135, %v82
  %v164 = vmul.f32 %v138, %v82
  %v165 = vmul.f32 %v141, %v82
  %v166 = vmul.f32 %v144, %v82
  %v167 = vmul.f32 %v147, %v82
  %v168 = vmul.f32 %v150, %v82
  %v169 = vmul.f32 %v153, %v82
  %v170 = vmul.f32 %v156, %v82
  %v171 = vmul.f32 %v159, %v82
  %v172 = vmul.f32 %v162, %v82
  %v173 = vadd.f32 %v163, 1e-05
  %v174 = vadd.f32 %v164, 1e-05
  %v175 = vadd.f32 %v165, 1e-05
  %v176 = vadd.f32 %v166, 1e-05
  %v177 = vadd.f32 %v167, 1e-05
  %v178 = vadd.f32 %v168, 1e-05
  %v179 = vadd.f32 %v169, 1e-05
  %v180 = vadd.f32 %v170, 1e-05
  %v181 = vadd.f32 %v171, 1e-05
  %v182 = vadd.f32 %v172, 1e-05
  %v183 = vrsqrt.pop %v173
  %v184 = vmul.f32 %v183, %v173
  %v185 = vmul.f32 %v184, %v183
  %v186 = vmul.f32 0.5, %v185
  %v187 = vsub.f32 1.5, %v186
  %v188 = vmul.f32 %v183, %v187
  %vm189 = vweird.f32 %v173
  %vm190 = vweird.f32 %v183
  %vm191 = vmor %vm189, %vm190
  %v192 = vsel %vm191, %v183, %v188
  %v193 = vrsqrt.pop %v174
  %v194 = vmul.f32 %v193, %v174
  %v195 = vmul.f32 %v194, %v193
  %v196 = vmul.f32 0.5, %v195
  %v197 = vsub.f32 1.5, %v196
  %v198 = vmul.f32 %v193, %v197
  %vm199 = vweird.f32 %v174
  %vm200 = vweird.f32 %v193
  %vm201 = vmor %vm199, %vm200
  %v202 = vsel %vm201, %v193, %v198
  %v203 = vrsqrt.pop %v175
  %v204 = vmul.f32 %v203, %v175
  %v205 = vmul.f32 %v204, %v203
  %v206 = vmul.f32 0.5, %v205
  %v207 = vsub.f32 1.5, %v206
  %v208 = vmul.f32 %v203, %v207
  %vm209 = vweird.f32 %v175
  %vm210 = vweird.f32 %v203
  %vm211 = vmor %vm209, %vm210
  %v212 = vsel %vm211, %v203, %v208
  %v213 = vrsqrt.pop %v176
  %v214 = vmul.f32 %v213, %v176
  %v215 = vmul.f32 %v214, %v213
  %v216 = vmul.f32 0.5, %v215
  %v217 = vsub.f32 1.5, %v216
  %v218 = vmul.f32 %v213, %v217
  %vm219 = vweird.f32 %v176
  %vm220 = vweird.f32 %v213
  %vm221 = vmor %vm219, %vm220
  %v222 = vsel %vm221, %v213, %v218
  %v223 = vrsqrt.pop %v177
  %v224 = vmul.f32 %v223, %v177
  %v225 = vmul.f32 %v224, %v223
  %v226 = vmul.f32 0.5, %v225
  %v227 = vsub.f32 1.5, %v226
  %v228 = vmul.f32 %v223, %v227
  %vm229 = vweird.f32 %v177
  %vm230 = vweird.f32 %v223
  %vm231 = vmor %vm229, %vm230
  %v232 = vsel %vm231, %v223, %v228
  %v233 = vrsqrt.pop %v178
  %v234 = vmul.f32 %v233, %v178
  %v235 = vmul.f32 %v234, %v233
  %v236 = vmul.f32 0.5, %v235
  %v237 = vsub.f32 1.5, %v236
  %v238 = vmul.f32 %v233, %v237
  %vm239 = vweird.f32 %v178
  %vm240 = vweird.f32 %v233
  %vm241 = vmor %vm239, %vm240
  %v242 = vsel %vm241, %v233, %v238
  %v243 = vrsqrt.pop %v179
  %v244 = vmul.f32 %v243, %v179
  %v245 = vmul.f32 %v244, %v243
  %v246 = vmul.f32 0.5, %v245
  %v247 = vsub.f32 1.5, %v246
  %v248 = vmul.f32 %v243, %v247
  %vm249 = vweird.f32 %v179
  %vm250 = vweird.f32 %v243
  %vm251 = vmor %vm249, %vm250
  %v252 = vsel %vm251, %v243, %v248
  %v253 = vrsqrt.pop %v180
  %v254 = vmul.f32 %v253, %v180
  %v255 = vmul.f32 %v254, %v253
  %v256 = vmul.f32 0.5, %v255
  %v257 = vsub.f32 1.5, %v256
  %v258 = vmul.f32 %v253, %v257
  %vm259 = vweird.f32 %v180
  %vm260 = vweird.f32 %v253
  %vm261 = vmor %vm259, %vm260
  %v262 = vsel %vm261, %v253, %v258
  %v263 = vrsqrt.pop %v181
  %v264 = vmul.f32 %v263, %v181
  %v265 = vmul.f32 %v264, %v263
  %v266 = vmul.f32 0.5, %v265
  %v267 = vsub.f32 1.5, %v266
  %v268 = vmul.f32 %v263, %v267
  %vm269 = vweird.f32 %v181
  %vm270 = vweird.f32 %v263
  %vm271 = vmor %vm269, %vm270
  %v272 = vsel %vm271, %v263, %v268
  %v273 = vrsqrt.pop %v182
  %v274 = vmul.f32 %v273, %v182
  %v275 = vmul.f32 %v274, %v273
  %v276 = vmul.f32 0.5, %v275
  %v277 = vsub.f32 1.5, %v276
  %v278 = vmul.f32 %v273, %v277
  %vm279 = vweird.f32 %v182
  %vm280 = vweird.f32 %v273
  %vm281 = vmor %vm279, %vm280
  %v282 = vsel %vm281, %v273, %v278
  %v283 = vmul.f32 %v93, %v192
  %v284 = vmul.f32 %v94, %v192
  %v285 = vmul.f32 %v95, %v202
  %v286 = vmul.f32 %v96, %v202
  %v287 = vmul.f32 %v97, %v212
  %v288 = vmul.f32 %v98, %v212
  %v289 = vmul.f32 %v99, %v222
  %v290 = vmul.f32 %v100, %v222
  %v291 = vmul.f32 %v101, %v232
  %v292 = vmul.f32 %v102, %v232
  %v293 = vmul.f32 %v103, %v242
  %v294 = vmul.f32 %v104, %v242
  %v295 = vmul.f32 %v105, %v252
  %v296 = vmul.f32 %v106, %v252
  %v297 = vmul.f32 %v107, %v262
  %v298 = vmul.f32 %v108, %v262
  %v299 = vmul.f32 %v109, %v272
  %v300 = vmul.f32 %v110, %v272
  %v301 = vmul.f32 %v111, %v282
  %v302 = vmul.f32 %v112, %v282
  %v303 = vld [vmem:[%s1] sm:$0x3]
  %v305 = vperm.slane %v303, 0
  %v306 = vperm.slane %v303, 1
  %v309 = vmul.f32 %v283, %v305
  %v310 = vmul.f32 %v284, %v306
  %v311 = vmul.f32 %v285, %v305
  %v312 = vmul.f32 %v286, %v306
  %v313 = vmul.f32 %v287, %v305
  %v314 = vmul.f32 %v288, %v306
  %v315 = vmul.f32 %v289, %v305
  %v316 = vmul.f32 %v290, %v306
  %v317 = vmul.f32 %v291, %v305
  %v318 = vmul.f32 %v292, %v306
  %v319 = vmul.f32 %v293, %v305
  %v320 = vmul.f32 %v294, %v306
  %v321 = vmul.f32 %v295, %v305
  %v322 = vmul.f32 %v296, %v306
  %v323 = vmul.f32 %v297, %v305
  %v324 = vmul.f32 %v298, %v306
  %v325 = vmul.f32 %v299, %v305
  %v326 = vmul.f32 %v300, %v306
  %v327 = vmul.f32 %v301, %v305
  %v328 = vmul.f32 %v302, %v306
  %v329 = vld [vmem:[%s2] sm:$0x3]
  %v331 = vperm.slane %v329, 0
  %v332 = vperm.slane %v329, 1
  %v335 = vadd.f32 %v309, %v331
  %v336 = vadd.f32 %v310, %v332
  %v337 = vadd.f32 %v311, %v331
  %v338 = vadd.f32 %v312, %v332
  %v339 = vadd.f32 %v313, %v331
  %v340 = vadd.f32 %v314, %v332
  %v341 = vadd.f32 %v315, %v331
  %v342 = vadd.f32 %v316, %v332
  %v343 = vadd.f32 %v317, %v331
  %v344 = vadd.f32 %v318, %v332
  %v345 = vadd.f32 %v319, %v331
  %v346 = vadd.f32 %v320, %v332
  %v347 = vadd.f32 %v321, %v331
  %v348 = vadd.f32 %v322, %v332
  %v349 = vadd.f32 %v323, %v331
  %v350 = vadd.f32 %v324, %v332
  %v351 = vadd.f32 %v325, %v331
  %v352 = vadd.f32 %v326, %v332
  %v353 = vadd.f32 %v327, %v331
  %v354 = vadd.f32 %v328, %v332
  %v355 = vld [vmem:[%s3] sm:$0xff]
  %v356 = vld [vmem:[%s3 + $0x8] sm:$0xff]
  %v357 = vld [vmem:[%s3 + $0x10] sm:$0xff]
  %v358 = vld [vmem:[%s3 + $0x18] sm:$0xff]
  %v359 = vld [vmem:[%s3 + $0x20] sm:$0xff]
  %v360 = vld [vmem:[%s3 + $0x28] sm:$0xff]
  %v361 = vld [vmem:[%s3 + $0x30] sm:$0xff]
  %v362 = vld [vmem:[%s3 + $0x38] sm:$0xff]
  %v363 = vld [vmem:[%s3 + $0x40] sm:$0xff]
  %v364 = vld [vmem:[%s3 + $0x48] sm:$0xff]
  %v365 = vld [vmem:[%s3 + $0x50] sm:$0xff]
  %v366 = vld [vmem:[%s3 + $0x58] sm:$0xff]
  %v367 = vld [vmem:[%s3 + $0x60] sm:$0xff]
  %v368 = vld [vmem:[%s3 + $0x68] sm:$0xff]
  %v369 = vld [vmem:[%s3 + $0x70] sm:$0xff]
  %v370 = vld [vmem:[%s3 + $0x78] sm:$0xff]
  %v371 = vld [vmem:[%s3 + $0x80] sm:$0xff]
  %v372 = vld [vmem:[%s3 + $0x88] sm:$0xff]
  %v373 = vld [vmem:[%s3 + $0x90] sm:$0xff]
  %v374 = vld [vmem:[%s3 + $0x98] sm:$0xff]
  %v375 = vld [vmem:[%s3 + $0xa0] sm:$0xff]
  %v376 = vld [vmem:[%s3 + $0xa8] sm:$0xff]
  %v377 = vld [vmem:[%s3 + $0xb0] sm:$0xff]
  %v378 = vld [vmem:[%s3 + $0xb8] sm:$0xff]
  %v379 = vld [vmem:[%s3 + $0xc0] sm:$0xff]
  %v380 = vld [vmem:[%s3 + $0xc8] sm:$0xff]
  %v381 = vld [vmem:[%s3 + $0xd0] sm:$0xff]
  %v382 = vld [vmem:[%s3 + $0xd8] sm:$0xff]
  %v383 = vld [vmem:[%s3 + $0xe0] sm:$0xff]
  %v384 = vld [vmem:[%s3 + $0xe8] sm:$0xff]
  %v385 = vld [vmem:[%s3 + $0xf0] sm:$0xff]
  %v386 = vld [vmem:[%s3 + $0xf8] sm:$0xff]
  %v387 = vld [vmem:[%s3 + $0x100] sm:$0xff]
  %v388 = vld [vmem:[%s3 + $0x108] sm:$0xff]
  %v389 = vld [vmem:[%s3 + $0x110] sm:$0xff]
  %v390 = vld [vmem:[%s3 + $0x118] sm:$0xff]
  %v391 = vld [vmem:[%s3 + $0x120] sm:$0xff]
  %v392 = vld [vmem:[%s3 + $0x128] sm:$0xff]
  %v393 = vld [vmem:[%s3 + $0x130] sm:$0xff]
  %v394 = vld [vmem:[%s3 + $0x138] sm:$0xff]
  %v395 = vld [vmem:[%s3 + $0x140] sm:$0xff]
  %v396 = vld [vmem:[%s3 + $0x148] sm:$0xff]
  %v397 = vld [vmem:[%s3 + $0x150] sm:$0xff]
  %v398 = vld [vmem:[%s3 + $0x158] sm:$0xff]
  %v399 = vld [vmem:[%s3 + $0x160] sm:$0xff]
  %v400 = vld [vmem:[%s3 + $0x168] sm:$0xff]
  %v401 = vld [vmem:[%s3 + $0x170] sm:$0xff]
  %v402 = vld [vmem:[%s3 + $0x178] sm:$0xff]
  %v403 = vld [vmem:[%s3 + $0x180] sm:$0xff]
  %v404 = vld [vmem:[%s3 + $0x188] sm:$0xff]
  %v405 = vld [vmem:[%s3 + $0x190] sm:$0xff]
  %v406 = vld [vmem:[%s3 + $0x198] sm:$0xff]
  %v407 = vld [vmem:[%s3 + $0x1a0] sm:$0xff]
  %v408 = vld [vmem:[%s3 + $0x1a8] sm:$0xff]
  %v409 = vld [vmem:[%s3 + $0x1b0] sm:$0xff]
  %v410 = vld [vmem:[%s3 + $0x1b8] sm:$0xff]
  %v411 = vld [vmem:[%s3 + $0x1c0] sm:$0xff]
  %v412 = vld [vmem:[%s3 + $0x1c8] sm:$0xff]
  %v413 = vld [vmem:[%s3 + $0x1d0] sm:$0xff]
  %v414 = vld [vmem:[%s3 + $0x1d8] sm:$0xff]
  %v415 = vld [vmem:[%s3 + $0x1e0] sm:$0xff]
  %v416 = vld [vmem:[%s3 + $0x1e8] sm:$0xff]
  %v417 = vld [vmem:[%s3 + $0x1f0] sm:$0xff]
  %v418 = vld [vmem:[%s3 + $0x1f8] sm:$0xff]
  %v419 = vld [vmem:[%s3 + $0x200] sm:$0xff]
  %v420 = vld [vmem:[%s3 + $0x208] sm:$0xff]
  %v421 = vld [vmem:[%s3 + $0x210] sm:$0xff]
  %v422 = vld [vmem:[%s3 + $0x218] sm:$0xff]
  %v423 = vld [vmem:[%s3 + $0x220] sm:$0xff]
  %v424 = vld [vmem:[%s3 + $0x228] sm:$0xff]
  %v425 = vld [vmem:[%s3 + $0x230] sm:$0xff]
  %v426 = vld [vmem:[%s3 + $0x238] sm:$0xff]
  %v427 = vld [vmem:[%s3 + $0x240] sm:$0xff]
  %v428 = vld [vmem:[%s3 + $0x248] sm:$0xff]
  %v429 = vld [vmem:[%s3 + $0x250] sm:$0xff]
  %v430 = vld [vmem:[%s3 + $0x258] sm:$0xff]
  %v431 = vld [vmem:[%s3 + $0x260] sm:$0xff]
  %v432 = vld [vmem:[%s3 + $0x268] sm:$0xff]
  %v433 = vld [vmem:[%s3 + $0x270] sm:$0xff]
  %v434 = vld [vmem:[%s3 + $0x278] sm:$0xff]
  %v435 = vld [vmem:[%s3 + $0x280] sm:$0xff]
  %v436 = vld [vmem:[%s3 + $0x288] sm:$0xff]
  %v437 = vld [vmem:[%s3 + $0x290] sm:$0xff]
  %v438 = vld [vmem:[%s3 + $0x298] sm:$0xff]
  %v439 = vld [vmem:[%s3 + $0x2a0] sm:$0xff]
  %v440 = vld [vmem:[%s3 + $0x2a8] sm:$0xff]
  %v441 = vld [vmem:[%s3 + $0x2b0] sm:$0xff]
  %v442 = vld [vmem:[%s3 + $0x2b8] sm:$0xff]
  %v443 = vld [vmem:[%s3 + $0x2c0] sm:$0xff]
  %v444 = vld [vmem:[%s3 + $0x2c8] sm:$0xff]
  %v445 = vld [vmem:[%s3 + $0x2d0] sm:$0xff]
  %v446 = vld [vmem:[%s3 + $0x2d8] sm:$0xff]
  %v447 = vld [vmem:[%s3 + $0x2e0] sm:$0xff]
  %v448 = vld [vmem:[%s3 + $0x2e8] sm:$0xff]
  %v449 = vld [vmem:[%s3 + $0x2f0] sm:$0xff]
  %v450 = vld [vmem:[%s3 + $0x2f8] sm:$0xff]
  %v451 = vld [vmem:[%s3 + $0x300] sm:$0xff]
  %v452 = vld [vmem:[%s3 + $0x308] sm:$0xff]
  %v453 = vld [vmem:[%s3 + $0x310] sm:$0xff]
  %v454 = vld [vmem:[%s3 + $0x318] sm:$0xff]
  %v455 = vld [vmem:[%s3 + $0x320] sm:$0xff]
  %v456 = vld [vmem:[%s3 + $0x328] sm:$0xff]
  %v457 = vld [vmem:[%s3 + $0x330] sm:$0xff]
  %v458 = vld [vmem:[%s3 + $0x338] sm:$0xff]
  %v459 = vld [vmem:[%s3 + $0x340] sm:$0xff]
  %v460 = vld [vmem:[%s3 + $0x348] sm:$0xff]
  %v461 = vld [vmem:[%s3 + $0x350] sm:$0xff]
  %v462 = vld [vmem:[%s3 + $0x358] sm:$0xff]
  %v463 = vld [vmem:[%s3 + $0x360] sm:$0xff]
  %v464 = vld [vmem:[%s3 + $0x368] sm:$0xff]
  %v465 = vld [vmem:[%s3 + $0x370] sm:$0xff]
  %v466 = vld [vmem:[%s3 + $0x378] sm:$0xff]
  %v467 = vld [vmem:[%s3 + $0x380] sm:$0xff]
  %v468 = vld [vmem:[%s3 + $0x388] sm:$0xff]
  %v469 = vld [vmem:[%s3 + $0x390] sm:$0xff]
  %v470 = vld [vmem:[%s3 + $0x398] sm:$0xff]
  %v471 = vld [vmem:[%s3 + $0x3a0] sm:$0xff]
  %v472 = vld [vmem:[%s3 + $0x3a8] sm:$0xff]
  %v473 = vld [vmem:[%s3 + $0x3b0] sm:$0xff]
  %v474 = vld [vmem:[%s3 + $0x3b8] sm:$0xff]
  %v475 = vld [vmem:[%s3 + $0x3c0] sm:$0xff]
  %v476 = vld [vmem:[%s3 + $0x3c8] sm:$0xff]
  %v477 = vld [vmem:[%s3 + $0x3d0] sm:$0xff]
  %v478 = vld [vmem:[%s3 + $0x3d8] sm:$0xff]
  %v479 = vld [vmem:[%s3 + $0x3e0] sm:$0xff]
  %v480 = vld [vmem:[%s3 + $0x3e8] sm:$0xff]
  %v481 = vld [vmem:[%s3 + $0x3f0] sm:$0xff]
  %v482 = vld [vmem:[%s3 + $0x3f8] sm:$0xff]
  %v483 = vld [vmem:[%s3 + $0x400] sm:$0xff]
  %v484 = vld [vmem:[%s3 + $0x408] sm:$0xff]
  %v485 = vld [vmem:[%s3 + $0x410] sm:$0xff]
  %v486 = vld [vmem:[%s3 + $0x418] sm:$0xff]
  %v487 = vld [vmem:[%s3 + $0x420] sm:$0xff]
  %v488 = vld [vmem:[%s3 + $0x428] sm:$0xff]
  %v489 = vld [vmem:[%s3 + $0x430] sm:$0xff]
  %v490 = vld [vmem:[%s3 + $0x438] sm:$0xff]
  %v491 = vld [vmem:[%s3 + $0x440] sm:$0xff]
  %v492 = vld [vmem:[%s3 + $0x448] sm:$0xff]
  %v493 = vld [vmem:[%s3 + $0x450] sm:$0xff]
  %v494 = vld [vmem:[%s3 + $0x458] sm:$0xff]
  %v495 = vld [vmem:[%s3 + $0x460] sm:$0xff]
  %v496 = vld [vmem:[%s3 + $0x468] sm:$0xff]
  %v497 = vld [vmem:[%s3 + $0x470] sm:$0xff]
  %v498 = vld [vmem:[%s3 + $0x478] sm:$0xff]
  %v499 = vld [vmem:[%s3 + $0x480] sm:$0xff]
  %v500 = vld [vmem:[%s3 + $0x488] sm:$0xff]
  %v501 = vld [vmem:[%s3 + $0x490] sm:$0xff]
  %v502 = vld [vmem:[%s3 + $0x498] sm:$0xff]
  %v503 = vld [vmem:[%s3 + $0x4a0] sm:$0xff]
  %v504 = vld [vmem:[%s3 + $0x4a8] sm:$0xff]
  %v505 = vld [vmem:[%s3 + $0x4b0] sm:$0xff]
  %v506 = vld [vmem:[%s3 + $0x4b8] sm:$0xff]
  %v507 = vld [vmem:[%s3 + $0x4c0] sm:$0xff]
  %v508 = vld [vmem:[%s3 + $0x4c8] sm:$0xff]
  %v509 = vld [vmem:[%s3 + $0x4d0] sm:$0xff]
  %v510 = vld [vmem:[%s3 + $0x4d8] sm:$0xff]
  %v511 = vld [vmem:[%s3 + $0x4e0] sm:$0xff]
  %v512 = vld [vmem:[%s3 + $0x4e8] sm:$0xff]
  %v513 = vld [vmem:[%s3 + $0x4f0] sm:$0xff]
  %v514 = vld [vmem:[%s3 + $0x4f8] sm:$0xff]
  %v515 = vld [vmem:[%s3 + $0x500] sm:$0xff]
  %v516 = vld [vmem:[%s3 + $0x508] sm:$0xff]
  %v517 = vld [vmem:[%s3 + $0x510] sm:$0xff]
  %v518 = vld [vmem:[%s3 + $0x518] sm:$0xff]
  %v519 = vld [vmem:[%s3 + $0x520] sm:$0xff]
  %v520 = vld [vmem:[%s3 + $0x528] sm:$0xff]
  %v521 = vld [vmem:[%s3 + $0x530] sm:$0xff]
  %v522 = vld [vmem:[%s3 + $0x538] sm:$0xff]
  %v523 = vld [vmem:[%s3 + $0x540] sm:$0xff]
  %v524 = vld [vmem:[%s3 + $0x548] sm:$0xff]
  %v525 = vld [vmem:[%s3 + $0x550] sm:$0xff]
  %v526 = vld [vmem:[%s3 + $0x558] sm:$0xff]
  %v527 = vld [vmem:[%s3 + $0x560] sm:$0xff]
  %v528 = vld [vmem:[%s3 + $0x568] sm:$0xff]
  %v529 = vld [vmem:[%s3 + $0x570] sm:$0xff]
  %v530 = vld [vmem:[%s3 + $0x578] sm:$0xff]
  %v531 = vld [vmem:[%s3 + $0x580] sm:$0xff]
  %v532 = vld [vmem:[%s3 + $0x588] sm:$0xff]
  %v533 = vld [vmem:[%s3 + $0x590] sm:$0xff]
  %v534 = vld [vmem:[%s3 + $0x598] sm:$0xff]
  %v535 = vld [vmem:[%s3 + $0x5a0] sm:$0xff]
  %v536 = vld [vmem:[%s3 + $0x5a8] sm:$0xff]
  %v537 = vld [vmem:[%s3 + $0x5b0] sm:$0xff]
  %v538 = vld [vmem:[%s3 + $0x5b8] sm:$0xff]
  %v539 = vld [vmem:[%s3 + $0x5c0] sm:$0xff]
  %v540 = vld [vmem:[%s3 + $0x5c8] sm:$0xff]
  %v541 = vld [vmem:[%s3 + $0x5d0] sm:$0xff]
  %v542 = vld [vmem:[%s3 + $0x5d8] sm:$0xff]
  %v543 = vld [vmem:[%s3 + $0x5e0] sm:$0xff]
  %v544 = vld [vmem:[%s3 + $0x5e8] sm:$0xff]
  %v545 = vld [vmem:[%s3 + $0x5f0] sm:$0xff]
  %v546 = vld [vmem:[%s3 + $0x5f8] sm:$0xff]
  %v547 = vld [vmem:[%s3 + $0x600] sm:$0xff]
  %v548 = vld [vmem:[%s3 + $0x608] sm:$0xff]
  %v549 = vld [vmem:[%s3 + $0x610] sm:$0xff]
  %v550 = vld [vmem:[%s3 + $0x618] sm:$0xff]
  %v551 = vld [vmem:[%s3 + $0x620] sm:$0xff]
  %v552 = vld [vmem:[%s3 + $0x628] sm:$0xff]
  %v553 = vld [vmem:[%s3 + $0x630] sm:$0xff]
  %v554 = vld [vmem:[%s3 + $0x638] sm:$0xff]
  %v555 = vld [vmem:[%s3 + $0x640] sm:$0xff]
  %v556 = vld [vmem:[%s3 + $0x648] sm:$0xff]
  %v557 = vld [vmem:[%s3 + $0x650] sm:$0xff]
  %v558 = vld [vmem:[%s3 + $0x658] sm:$0xff]
  %v559 = vld [vmem:[%s3 + $0x660] sm:$0xff]
  %v560 = vld [vmem:[%s3 + $0x668] sm:$0xff]
  %v561 = vld [vmem:[%s3 + $0x670] sm:$0xff]
  %v562 = vld [vmem:[%s3 + $0x678] sm:$0xff]
  %v563 = vld [vmem:[%s3 + $0x680] sm:$0xff]
  %v564 = vld [vmem:[%s3 + $0x688] sm:$0xff]
  %v565 = vld [vmem:[%s3 + $0x690] sm:$0xff]
  %v566 = vld [vmem:[%s3 + $0x698] sm:$0xff]
  %v567 = vld [vmem:[%s3 + $0x6a0] sm:$0xff]
  %v568 = vld [vmem:[%s3 + $0x6a8] sm:$0xff]
  %v569 = vld [vmem:[%s3 + $0x6b0] sm:$0xff]
  %v570 = vld [vmem:[%s3 + $0x6b8] sm:$0xff]
  %v571 = vld [vmem:[%s3 + $0x6c0] sm:$0xff]
  %v572 = vld [vmem:[%s3 + $0x6c8] sm:$0xff]
  %v573 = vld [vmem:[%s3 + $0x6d0] sm:$0xff]
  %v574 = vld [vmem:[%s3 + $0x6d8] sm:$0xff]
  %v575 = vld [vmem:[%s3 + $0x6e0] sm:$0xff]
  %v576 = vld [vmem:[%s3 + $0x6e8] sm:$0xff]
  %v577 = vld [vmem:[%s3 + $0x6f0] sm:$0xff]
  %v578 = vld [vmem:[%s3 + $0x6f8] sm:$0xff]
  %v579 = vld [vmem:[%s3 + $0x700] sm:$0xff]
  %v580 = vld [vmem:[%s3 + $0x708] sm:$0xff]
  %v581 = vld [vmem:[%s3 + $0x710] sm:$0xff]
  %v582 = vld [vmem:[%s3 + $0x718] sm:$0xff]
  %v583 = vld [vmem:[%s3 + $0x720] sm:$0xff]
  %v584 = vld [vmem:[%s3 + $0x728] sm:$0xff]
  %v585 = vld [vmem:[%s3 + $0x730] sm:$0xff]
  %v586 = vld [vmem:[%s3 + $0x738] sm:$0xff]
  %v587 = vld [vmem:[%s3 + $0x740] sm:$0xff]
  %v588 = vld [vmem:[%s3 + $0x748] sm:$0xff]
  %v589 = vld [vmem:[%s3 + $0x750] sm:$0xff]
  %v590 = vld [vmem:[%s3 + $0x758] sm:$0xff]
  %v591 = vld [vmem:[%s3 + $0x760] sm:$0xff]
  %v592 = vld [vmem:[%s3 + $0x768] sm:$0xff]
  %v593 = vld [vmem:[%s3 + $0x770] sm:$0xff]
  %v594 = vld [vmem:[%s3 + $0x778] sm:$0xff]
  %v595 = vld [vmem:[%s3 + $0x780] sm:$0xff]
  %v596 = vld [vmem:[%s3 + $0x788] sm:$0xff]
  %v597 = vld [vmem:[%s3 + $0x790] sm:$0xff]
  %v598 = vld [vmem:[%s3 + $0x798] sm:$0xff]
  %v599 = vld [vmem:[%s3 + $0x7a0] sm:$0xff]
  %v600 = vld [vmem:[%s3 + $0x7a8] sm:$0xff]
  %v601 = vld [vmem:[%s3 + $0x7b0] sm:$0xff]
  %v602 = vld [vmem:[%s3 + $0x7b8] sm:$0xff]
  %v603 = vld [vmem:[%s3 + $0x7c0] sm:$0xff]
  %v604 = vld [vmem:[%s3 + $0x7c8] sm:$0xff]
  %v605 = vld [vmem:[%s3 + $0x7d0] sm:$0xff]
  %v606 = vld [vmem:[%s3 + $0x7d8] sm:$0xff]
  %v607 = vld [vmem:[%s3 + $0x7e0] sm:$0xff]
  %v608 = vld [vmem:[%s3 + $0x7e8] sm:$0xff]
  %v609 = vld [vmem:[%s3 + $0x7f0] sm:$0xff]
  %v610 = vld [vmem:[%s3 + $0x7f8] sm:$0xff]
  %v611 = vld [vmem:[%s4] sm:$0xff]
  %v613 = vperm.slane %v611, 0
  %v614 = vperm.slane %v611, 1
  %v615 = vperm.slane %v611, 2
  %v616 = vperm.slane %v611, 3
  %v617 = vperm.slane %v611, 4
  %v618 = vperm.slane %v611, 5
  %v619 = vperm.slane %v611, 6
  %v620 = vperm.slane %v611, 7
  %629 = vmatpush.msra.mxu0 %v475
  %630 = vmatpush.msra.mxu0 %v467
  %631 = vmatpush.msra.mxu0 %v459
  %632 = vmatpush.msra.mxu0 %v451
  %633 = vmatpush.msra.mxu0 %v443
  %634 = vmatpush.msra.mxu0 %v435
  %635 = vmatpush.msra.mxu0 %v427
  %636 = vmatpush.msra.mxu0 %v419
  %637 = vmatpush.msra.mxu0 %v411
  %638 = vmatpush.msra.mxu0 %v403
  %639 = vmatpush.msra.mxu0 %v395
  %640 = vmatpush.msra.mxu0 %v387
  %641 = vmatpush.msra.mxu0 %v379
  %642 = vmatpush.msra.mxu0 %v371
  %643 = vmatpush.msra.mxu0 %v363
  %644 = vmatpush.msra.mxu0 %v355
  %645 = vmatmul.f32.gmra.mxu0 %v335
  %v646 = vpop.f32.mrf.mxu0
  %v647 = vadd.f32 %v613, %v646
  %648 = vmatmul.f32.gmra.mxu0 %v337
  %v649 = vpop.f32.mrf.mxu0
  %v650 = vadd.f32 %v613, %v649
  %651 = vmatmul.f32.gmra.mxu0 %v339
  %v652 = vpop.f32.mrf.mxu0
  %v653 = vadd.f32 %v613, %v652
  %654 = vmatmul.f32.gmra.mxu0 %v341
  %v655 = vpop.f32.mrf.mxu0
  %v656 = vadd.f32 %v613, %v655
  %657 = vmatmul.f32.gmra.mxu0 %v343
  %v658 = vpop.f32.mrf.mxu0
  %v659 = vadd.f32 %v613, %v658
  %660 = vmatmul.f32.gmra.mxu0 %v345
  %v661 = vpop.f32.mrf.mxu0
  %v662 = vadd.f32 %v613, %v661
  %663 = vmatmul.f32.gmra.mxu0 %v347
  %v664 = vpop.f32.mrf.mxu0
  %v665 = vadd.f32 %v613, %v664
  %666 = vmatmul.f32.gmra.mxu0 %v349
  %v667 = vpop.f32.mrf.mxu0
  %v668 = vadd.f32 %v613, %v667
  %669 = vmatmul.f32.gmra.mxu0 %v351
  %v670 = vpop.f32.mrf.mxu0
  %v671 = vadd.f32 %v613, %v670
  %672 = vmatmul.f32.gmra.mxu0 %v353
  %v673 = vpop.f32.mrf.mxu0
  %v674 = vadd.f32 %v613, %v673
  %675 = vdwg.mxu0
  %676 = vmatpush.msra.mxu0 %v603
  %677 = vmatpush.msra.mxu0 %v595
  %678 = vmatpush.msra.mxu0 %v587
  %679 = vmatpush.msra.mxu0 %v579
  %680 = vmatpush.msra.mxu0 %v571
  %681 = vmatpush.msra.mxu0 %v563
  %682 = vmatpush.msra.mxu0 %v555
  %683 = vmatpush.msra.mxu0 %v547
  %684 = vmatpush.msra.mxu0 %v539
  %685 = vmatpush.msra.mxu0 %v531
  %686 = vmatpush.msra.mxu0 %v523
  %687 = vmatpush.msra.mxu0 %v515
  %688 = vmatpush.msra.mxu0 %v507
  %689 = vmatpush.msra.mxu0 %v499
  %690 = vmatpush.msra.mxu0 %v491
  %691 = vmatpush.msra.mxu0 %v483
  %692 = vmatmul.f32.gmra.mxu0 %v336
  %v693 = vpop.f32.mrf.mxu0
  %v694 = vadd.f32 %v647, %v693
  %695 = vmatmul.f32.gmra.mxu0 %v338
  %v696 = vpop.f32.mrf.mxu0
  %v697 = vadd.f32 %v650, %v696
  %698 = vmatmul.f32.gmra.mxu0 %v340
  %v699 = vpop.f32.mrf.mxu0
  %v700 = vadd.f32 %v653, %v699
  %701 = vmatmul.f32.gmra.mxu0 %v342
  %v702 = vpop.f32.mrf.mxu0
  %v703 = vadd.f32 %v656, %v702
  %704 = vmatmul.f32.gmra.mxu0 %v344
  %v705 = vpop.f32.mrf.mxu0
  %v706 = vadd.f32 %v659, %v705
  %707 = vmatmul.f32.gmra.mxu0 %v346
  %v708 = vpop.f32.mrf.mxu0
  %v709 = vadd.f32 %v662, %v708
  %710 = vmatmul.f32.gmra.mxu0 %v348
  %v711 = vpop.f32.mrf.mxu0
  %v712 = vadd.f32 %v665, %v711
  %713 = vmatmul.f32.gmra.mxu0 %v350
  %v714 = vpop.f32.mrf.mxu0
  %v715 = vadd.f32 %v668, %v714
  %716 = vmatmul.f32.gmra.mxu0 %v352
  %v717 = vpop.f32.mrf.mxu0
  %v718 = vadd.f32 %v671, %v717
  %719 = vmatmul.f32.gmra.mxu0 %v354
  %v720 = vpop.f32.mrf.mxu0
  %v721 = vadd.f32 %v674, %v720
  %722 = vdwg.mxu0
  %723 = vmatpush.msra.mxu0 %v476
  %724 = vmatpush.msra.mxu0 %v468
  %725 = vmatpush.msra.mxu0 %v460
  %726 = vmatpush.msra.mxu0 %v452
  %727 = vmatpush.msra.mxu0 %v444
  %728 = vmatpush.msra.mxu0 %v436
  %729 = vmatpush.msra.mxu0 %v428
  %730 = vmatpush.msra.mxu0 %v420
  %731 = vmatpush.msra.mxu0 %v412
  %732 = vmatpush.msra.mxu0 %v404
  %733 = vmatpush.msra.mxu0 %v396
  %734 = vmatpush.msra.mxu0 %v388
  %735 = vmatpush.msra.mxu0 %v380
  %736 = vmatpush.msra.mxu0 %v372
  %737 = vmatpush.msra.mxu0 %v364
  %738 = vmatpush.msra.mxu0 %v356
  %739 = vmatmul.f32.gmra.mxu0 %v335
  %v740 = vpop.f32.mrf.mxu0
  %v741 = vadd.f32 %v614, %v740
  %742 = vmatmul.f32.gmra.mxu0 %v337
  %v743 = vpop.f32.mrf.mxu0
  %v744 = vadd.f32 %v614, %v743
  %745 = vmatmul.f32.gmra.mxu0 %v339
  %v746 = vpop.f32.mrf.mxu0
  %v747 = vadd.f32 %v614, %v746
  %748 = vmatmul.f32.gmra.mxu0 %v341
  %v749 = vpop.f32.mrf.mxu0
  %v750 = vadd.f32 %v614, %v749
  %751 = vmatmul.f32.gmra.mxu0 %v343
  %v752 = vpop.f32.mrf.mxu0
  %v753 = vadd.f32 %v614, %v752
  %754 = vmatmul.f32.gmra.mxu0 %v345
  %v755 = vpop.f32.mrf.mxu0
  %v756 = vadd.f32 %v614, %v755
  %757 = vmatmul.f32.gmra.mxu0 %v347
  %v758 = vpop.f32.mrf.mxu0
  %v759 = vadd.f32 %v614, %v758
  %760 = vmatmul.f32.gmra.mxu0 %v349
  %v761 = vpop.f32.mrf.mxu0
  %v762 = vadd.f32 %v614, %v761
  %763 = vmatmul.f32.gmra.mxu0 %v351
  %v764 = vpop.f32.mrf.mxu0
  %v765 = vadd.f32 %v614, %v764
  %766 = vmatmul.f32.gmra.mxu0 %v353
  %v767 = vpop.f32.mrf.mxu0
  %v768 = vadd.f32 %v614, %v767
  %769 = vdwg.mxu0
  %770 = vmatpush.msra.mxu0 %v604
  %771 = vmatpush.msra.mxu0 %v596
  %772 = vmatpush.msra.mxu0 %v588
  %773 = vmatpush.msra.mxu0 %v580
  %774 = vmatpush.msra.mxu0 %v572
  %775 = vmatpush.msra.mxu0 %v564
  %776 = vmatpush.msra.mxu0 %v556
  %777 = vmatpush.msra.mxu0 %v548
  %778 = vmatpush.msra.mxu0 %v540
  %779 = vmatpush.msra.mxu0 %v532
  %780 = vmatpush.msra.mxu0 %v524
  %781 = vmatpush.msra.mxu0 %v516
  %782 = vmatpush.msra.mxu0 %v508
  %783 = vmatpush.msra.mxu0 %v500
  %784 = vmatpush.msra.mxu0 %v492
  %785 = vmatpush.msra.mxu0 %v484
  %786 = vmatmul.f32.gmra.mxu0 %v336
  %v787 = vpop.f32.mrf.mxu0
  %v788 = vadd.f32 %v741, %v787
  %789 = vmatmul.f32.gmra.mxu0 %v338
  %v790 = vpop.f32.mrf.mxu0
  %v791 = vadd.f32 %v744, %v790
  %792 = vmatmul.f32.gmra.mxu0 %v340
  %v793 = vpop.f32.mrf.mxu0
  %v794 = vadd.f32 %v747, %v793
  %795 = vmatmul.f32.gmra.mxu0 %v342
  %v796 = vpop.f32.mrf.mxu0
  %v797 = vadd.f32 %v750, %v796
  %798 = vmatmul.f32.gmra.mxu0 %v344
  %v799 = vpop.f32.mrf.mxu0
  %v800 = vadd.f32 %v753, %v799
  %801 = vmatmul.f32.gmra.mxu0 %v346
  %v802 = vpop.f32.mrf.mxu0
  %v803 = vadd.f32 %v756, %v802
  %804 = vmatmul.f32.gmra.mxu0 %v348
  %v805 = vpop.f32.mrf.mxu0
  %v806 = vadd.f32 %v759, %v805
  %807 = vmatmul.f32.gmra.mxu0 %v350
  %v808 = vpop.f32.mrf.mxu0
  %v809 = vadd.f32 %v762, %v808
  %810 = vmatmul.f32.gmra.mxu0 %v352
  %v811 = vpop.f32.mrf.mxu0
  %v812 = vadd.f32 %v765, %v811
  %813 = vmatmul.f32.gmra.mxu0 %v354
  %v814 = vpop.f32.mrf.mxu0
  %v815 = vadd.f32 %v768, %v814
  %816 = vdwg.mxu0
  %817 = vmatpush.msra.mxu0 %v477
  %818 = vmatpush.msra.mxu0 %v469
  %819 = vmatpush.msra.mxu0 %v461
  %820 = vmatpush.msra.mxu0 %v453
  %821 = vmatpush.msra.mxu0 %v445
  %822 = vmatpush.msra.mxu0 %v437
  %823 = vmatpush.msra.mxu0 %v429
  %824 = vmatpush.msra.mxu0 %v421
  %825 = vmatpush.msra.mxu0 %v413
  %826 = vmatpush.msra.mxu0 %v405
  %827 = vmatpush.msra.mxu0 %v397
  %828 = vmatpush.msra.mxu0 %v389
  %829 = vmatpush.msra.mxu0 %v381
  %830 = vmatpush.msra.mxu0 %v373
  %831 = vmatpush.msra.mxu0 %v365
  %832 = vmatpush.msra.mxu0 %v357
  %833 = vmatmul.f32.gmra.mxu0 %v335
  %v834 = vpop.f32.mrf.mxu0
  %v835 = vadd.f32 %v615, %v834
  %836 = vmatmul.f32.gmra.mxu0 %v337
  %v837 = vpop.f32.mrf.mxu0
  %v838 = vadd.f32 %v615, %v837
  %839 = vmatmul.f32.gmra.mxu0 %v339
  %v840 = vpop.f32.mrf.mxu0
  %v841 = vadd.f32 %v615, %v840
  %842 = vmatmul.f32.gmra.mxu0 %v341
  %v843 = vpop.f32.mrf.mxu0
  %v844 = vadd.f32 %v615, %v843
  %845 = vmatmul.f32.gmra.mxu0 %v343
  %v846 = vpop.f32.mrf.mxu0
  %v847 = vadd.f32 %v615, %v846
  %848 = vmatmul.f32.gmra.mxu0 %v345
  %v849 = vpop.f32.mrf.mxu0
  %v850 = vadd.f32 %v615, %v849
  %851 = vmatmul.f32.gmra.mxu0 %v347
  %v852 = vpop.f32.mrf.mxu0
  %v853 = vadd.f32 %v615, %v852
  %854 = vmatmul.f32.gmra.mxu0 %v349
  %v855 = vpop.f32.mrf.mxu0
  %v856 = vadd.f32 %v615, %v855
  %857 = vmatmul.f32.gmra.mxu0 %v351
  %v858 = vpop.f32.mrf.mxu0
  %v859 = vadd.f32 %v615, %v858
  %860 = vmatmul.f32.gmra.mxu0 %v353
  %v861 = vpop.f32.mrf.mxu0
  %v862 = vadd.f32 %v615, %v861
  %863 = vdwg.mxu0
  %864 = vmatpush.msra.mxu0 %v605
  %865 = vmatpush.msra.mxu0 %v597
  %866 = vmatpush.msra.mxu0 %v589
  %867 = vmatpush.msra.mxu0 %v581
  %868 = vmatpush.msra.mxu0 %v573
  %869 = vmatpush.msra.mxu0 %v565
  %870 = vmatpush.msra.mxu0 %v557
  %871 = vmatpush.msra.mxu0 %v549
  %872 = vmatpush.msra.mxu0 %v541
  %873 = vmatpush.msra.mxu0 %v533
  %874 = vmatpush.msra.mxu0 %v525
  %875 = vmatpush.msra.mxu0 %v517
  %876 = vmatpush.msra.mxu0 %v509
  %877 = vmatpush.msra.mxu0 %v501
  %878 = vmatpush.msra.mxu0 %v493
  %879 = vmatpush.msra.mxu0 %v485
  %880 = vmatmul.f32.gmra.mxu0 %v336
  %v881 = vpop.f32.mrf.mxu0
  %v882 = vadd.f32 %v835, %v881
  %883 = vmatmul.f32.gmra.mxu0 %v338
  %v884 = vpop.f32.mrf.mxu0
  %v885 = vadd.f32 %v838, %v884
  %886 = vmatmul.f32.gmra.mxu0 %v340
  %v887 = vpop.f32.mrf.mxu0
  %v888 = vadd.f32 %v841, %v887
  %889 = vmatmul.f32.gmra.mxu0 %v342
  %v890 = vpop.f32.mrf.mxu0
  %v891 = vadd.f32 %v844, %v890
  %892 = vmatmul.f32.gmra.mxu0 %v344
  %v893 = vpop.f32.mrf.mxu0
  %v894 = vadd.f32 %v847, %v893
  %895 = vmatmul.f32.gmra.mxu0 %v346
  %v896 = vpop.f32.mrf.mxu0
  %v897 = vadd.f32 %v850, %v896
  %898 = vmatmul.f32.gmra.mxu0 %v348
  %v899 = vpop.f32.mrf.mxu0
  %v900 = vadd.f32 %v853, %v899
  %901 = vmatmul.f32.gmra.mxu0 %v350
  %v902 = vpop.f32.mrf.mxu0
  %v903 = vadd.f32 %v856, %v902
  %904 = vmatmul.f32.gmra.mxu0 %v352
  %v905 = vpop.f32.mrf.mxu0
  %v906 = vadd.f32 %v859, %v905
  %907 = vmatmul.f32.gmra.mxu0 %v354
  %v908 = vpop.f32.mrf.mxu0
  %v909 = vadd.f32 %v862, %v908
  %910 = vdwg.mxu0
  %911 = vmatpush.msra.mxu0 %v478
  %912 = vmatpush.msra.mxu0 %v470
  %913 = vmatpush.msra.mxu0 %v462
  %914 = vmatpush.msra.mxu0 %v454
  %915 = vmatpush.msra.mxu0 %v446
  %916 = vmatpush.msra.mxu0 %v438
  %917 = vmatpush.msra.mxu0 %v430
  %918 = vmatpush.msra.mxu0 %v422
  %919 = vmatpush.msra.mxu0 %v414
  %920 = vmatpush.msra.mxu0 %v406
  %921 = vmatpush.msra.mxu0 %v398
  %922 = vmatpush.msra.mxu0 %v390
  %923 = vmatpush.msra.mxu0 %v382
  %924 = vmatpush.msra.mxu0 %v374
  %925 = vmatpush.msra.mxu0 %v366
  %926 = vmatpush.msra.mxu0 %v358
  %927 = vmatmul.f32.gmra.mxu0 %v335
  %v928 = vpop.f32.mrf.mxu0
  %v929 = vadd.f32 %v616, %v928
  %930 = vmatmul.f32.gmra.mxu0 %v337
  %v931 = vpop.f32.mrf.mxu0
  %v932 = vadd.f32 %v616, %v931
  %933 = vmatmul.f32.gmra.mxu0 %v339
  %v934 = vpop.f32.mrf.mxu0
  %v935 = vadd.f32 %v616, %v934
  %936 = vmatmul.f32.gmra.mxu0 %v341
  %v937 = vpop.f32.mrf.mxu0
  %v938 = vadd.f32 %v616, %v937
  %939 = vmatmul.f32.gmra.mxu0 %v343
  %v940 = vpop.f32.mrf.mxu0
  %v941 = vadd.f32 %v616, %v940
  %942 = vmatmul.f32.gmra.mxu0 %v345
  %v943 = vpop.f32.mrf.mxu0
  %v944 = vadd.f32 %v616, %v943
  %945 = vmatmul.f32.gmra.mxu0 %v347
  %v946 = vpop.f32.mrf.mxu0
  %v947 = vadd.f32 %v616, %v946
  %948 = vmatmul.f32.gmra.mxu0 %v349
  %v949 = vpop.f32.mrf.mxu0
  %v950 = vadd.f32 %v616, %v949
  %951 = vmatmul.f32.gmra.mxu0 %v351
  %v952 = vpop.f32.mrf.mxu0
  %v953 = vadd.f32 %v616, %v952
  %954 = vmatmul.f32.gmra.mxu0 %v353
  %v955 = vpop.f32.mrf.mxu0
  %v956 = vadd.f32 %v616, %v955
  %957 = vdwg.mxu0
  %958 = vmatpush.msra.mxu0 %v606
  %959 = vmatpush.msra.mxu0 %v598
  %960 = vmatpush.msra.mxu0 %v590
  %961 = vmatpush.msra.mxu0 %v582
  %962 = vmatpush.msra.mxu0 %v574
  %963 = vmatpush.msra.mxu0 %v566
  %964 = vmatpush.msra.mxu0 %v558
  %965 = vmatpush.msra.mxu0 %v550
  %966 = vmatpush.msra.mxu0 %v542
  %967 = vmatpush.msra.mxu0 %v534
  %968 = vmatpush.msra.mxu0 %v526
  %969 = vmatpush.msra.mxu0 %v518
  %970 = vmatpush.msra.mxu0 %v510
  %971 = vmatpush.msra.mxu0 %v502
  %972 = vmatpush.msra.mxu0 %v494
  %973 = vmatpush.msra.mxu0 %v486
  %974 = vmatmul.f32.gmra.mxu0 %v336
  %v975 = vpop.f32.mrf.mxu0
  %v976 = vadd.f32 %v929, %v975
  %977 = vmatmul.f32.gmra.mxu0 %v338
  %v978 = vpop.f32.mrf.mxu0
  %v979 = vadd.f32 %v932, %v978
  %980 = vmatmul.f32.gmra.mxu0 %v340
  %v981 = vpop.f32.mrf.mxu0
  %v982 = vadd.f32 %v935, %v981
  %983 = vmatmul.f32.gmra.mxu0 %v342
  %v984 = vpop.f32.mrf.mxu0
  %v985 = vadd.f32 %v938, %v984
  %986 = vmatmul.f32.gmra.mxu0 %v344
  %v987 = vpop.f32.mrf.mxu0
  %v988 = vadd.f32 %v941, %v987
  %989 = vmatmul.f32.gmra.mxu0 %v346
  %v990 = vpop.f32.mrf.mxu0
  %v991 = vadd.f32 %v944, %v990
  %992 = vmatmul.f32.gmra.mxu0 %v348
  %v993 = vpop.f32.mrf.mxu0
  %v994 = vadd.f32 %v947, %v993
  %995 = vmatmul.f32.gmra.mxu0 %v350
  %v996 = vpop.f32.mrf.mxu0
  %v997 = vadd.f32 %v950, %v996
  %998 = vmatmul.f32.gmra.mxu0 %v352
  %v999 = vpop.f32.mrf.mxu0
  %v1000 = vadd.f32 %v953, %v999
  %1001 = vmatmul.f32.gmra.mxu0 %v354
  %v1002 = vpop.f32.mrf.mxu0
  %v1003 = vadd.f32 %v956, %v1002
  %1004 = vdwg.mxu0
  %1005 = vmatpush.msra.mxu0 %v479
  %1006 = vmatpush.msra.mxu0 %v471
  %1007 = vmatpush.msra.mxu0 %v463
  %1008 = vmatpush.msra.mxu0 %v455
  %1009 = vmatpush.msra.mxu0 %v447
  %1010 = vmatpush.msra.mxu0 %v439
  %1011 = vmatpush.msra.mxu0 %v431
  %1012 = vmatpush.msra.mxu0 %v423
  %1013 = vmatpush.msra.mxu0 %v415
  %1014 = vmatpush.msra.mxu0 %v407
  %1015 = vmatpush.msra.mxu0 %v399
  %1016 = vmatpush.msra.mxu0 %v391
  %1017 = vmatpush.msra.mxu0 %v383
  %1018 = vmatpush.msra.mxu0 %v375
  %1019 = vmatpush.msra.mxu0 %v367
  %1020 = vmatpush.msra.mxu0 %v359
  %1021 = vmatmul.f32.gmra.mxu0 %v335
  %v1022 = vpop.f32.mrf.mxu0
  %v1023 = vadd.f32 %v617, %v1022
  %1024 = vmatmul.f32.gmra.mxu0 %v337
  %v1025 = vpop.f32.mrf.mxu0
  %v1026 = vadd.f32 %v617, %v1025
  %1027 = vmatmul.f32.gmra.mxu0 %v339
  %v1028 = vpop.f32.mrf.mxu0
  %v1029 = vadd.f32 %v617, %v1028
  %1030 = vmatmul.f32.gmra.mxu0 %v341
  %v1031 = vpop.f32.mrf.mxu0
  %v1032 = vadd.f32 %v617, %v1031
  %1033 = vmatmul.f32.gmra.mxu0 %v343
  %v1034 = vpop.f32.mrf.mxu0
  %v1035 = vadd.f32 %v617, %v1034
  %1036 = vmatmul.f32.gmra.mxu0 %v345
  %v1037 = vpop.f32.mrf.mxu0
  %v1038 = vadd.f32 %v617, %v1037
  %1039 = vmatmul.f32.gmra.mxu0 %v347
  %v1040 = vpop.f32.mrf.mxu0
  %v1041 = vadd.f32 %v617, %v1040
  %1042 = vmatmul.f32.gmra.mxu0 %v349
  %v1043 = vpop.f32.mrf.mxu0
  %v1044 = vadd.f32 %v617, %v1043
  %1045 = vmatmul.f32.gmra.mxu0 %v351
  %v1046 = vpop.f32.mrf.mxu0
  %v1047 = vadd.f32 %v617, %v1046
  %1048 = vmatmul.f32.gmra.mxu0 %v353
  %v1049 = vpop.f32.mrf.mxu0
  %v1050 = vadd.f32 %v617, %v1049
  %1051 = vdwg.mxu0
  %1052 = vmatpush.msra.mxu0 %v607
  %1053 = vmatpush.msra.mxu0 %v599
  %1054 = vmatpush.msra.mxu0 %v591
  %1055 = vmatpush.msra.mxu0 %v583
  %1056 = vmatpush.msra.mxu0 %v575
  %1057 = vmatpush.msra.mxu0 %v567
  %1058 = vmatpush.msra.mxu0 %v559
  %1059 = vmatpush.msra.mxu0 %v551
  %1060 = vmatpush.msra.mxu0 %v543
  %1061 = vmatpush.msra.mxu0 %v535
  %1062 = vmatpush.msra.mxu0 %v527
  %1063 = vmatpush.msra.mxu0 %v519
  %1064 = vmatpush.msra.mxu0 %v511
  %1065 = vmatpush.msra.mxu0 %v503
  %1066 = vmatpush.msra.mxu0 %v495
  %1067 = vmatpush.msra.mxu0 %v487
  %1068 = vmatmul.f32.gmra.mxu0 %v336
  %v1069 = vpop.f32.mrf.mxu0
  %v1070 = vadd.f32 %v1023, %v1069
  %1071 = vmatmul.f32.gmra.mxu0 %v338
  %v1072 = vpop.f32.mrf.mxu0
  %v1073 = vadd.f32 %v1026, %v1072
  %1074 = vmatmul.f32.gmra.mxu0 %v340
  %v1075 = vpop.f32.mrf.mxu0
  %v1076 = vadd.f32 %v1029, %v1075
  %1077 = vmatmul.f32.gmra.mxu0 %v342
  %v1078 = vpop.f32.mrf.mxu0
  %v1079 = vadd.f32 %v1032, %v1078
  %1080 = vmatmul.f32.gmra.mxu0 %v344
  %v1081 = vpop.f32.mrf.mxu0
  %v1082 = vadd.f32 %v1035, %v1081
  %1083 = vmatmul.f32.gmra.mxu0 %v346
  %v1084 = vpop.f32.mrf.mxu0
  %v1085 = vadd.f32 %v1038, %v1084
  %1086 = vmatmul.f32.gmra.mxu0 %v348
  %v1087 = vpop.f32.mrf.mxu0
  %v1088 = vadd.f32 %v1041, %v1087
  %1089 = vmatmul.f32.gmra.mxu0 %v350
  %v1090 = vpop.f32.mrf.mxu0
  %v1091 = vadd.f32 %v1044, %v1090
  %1092 = vmatmul.f32.gmra.mxu0 %v352
  %v1093 = vpop.f32.mrf.mxu0
  %v1094 = vadd.f32 %v1047, %v1093
  %1095 = vmatmul.f32.gmra.mxu0 %v354
  %v1096 = vpop.f32.mrf.mxu0
  %v1097 = vadd.f32 %v1050, %v1096
  %1098 = vdwg.mxu0
  %1099 = vmatpush.msra.mxu0 %v480
  %1100 = vmatpush.msra.mxu0 %v472
  %1101 = vmatpush.msra.mxu0 %v464
  %1102 = vmatpush.msra.mxu0 %v456
  %1103 = vmatpush.msra.mxu0 %v448
  %1104 = vmatpush.msra.mxu0 %v440
  %1105 = vmatpush.msra.mxu0 %v432
  %1106 = vmatpush.msra.mxu0 %v424
  %1107 = vmatpush.msra.mxu0 %v416
  %1108 = vmatpush.msra.mxu0 %v408
  %1109 = vmatpush.msra.mxu0 %v400
  %1110 = vmatpush.msra.mxu0 %v392
  %1111 = vmatpush.msra.mxu0 %v384
  %1112 = vmatpush.msra.mxu0 %v376
  %1113 = vmatpush.msra.mxu0 %v368
  %1114 = vmatpush.msra.mxu0 %v360
  %1115 = vmatmul.f32.gmra.mxu0 %v335
  %v1116 = vpop.f32.mrf.mxu0
  %v1117 = vadd.f32 %v618, %v1116
  %1118 = vmatmul.f32.gmra.mxu0 %v337
  %v1119 = vpop.f32.mrf.mxu0
  %v1120 = vadd.f32 %v618, %v1119
  %1121 = vmatmul.f32.gmra.mxu0 %v339
  %v1122 = vpop.f32.mrf.mxu0
  %v1123 = vadd.f32 %v618, %v1122
  %1124 = vmatmul.f32.gmra.mxu0 %v341
  %v1125 = vpop.f32.mrf.mxu0
  %v1126 = vadd.f32 %v618, %v1125
  %1127 = vmatmul.f32.gmra.mxu0 %v343
  %v1128 = vpop.f32.mrf.mxu0
  %v1129 = vadd.f32 %v618, %v1128
  %1130 = vmatmul.f32.gmra.mxu0 %v345
  %v1131 = vpop.f32.mrf.mxu0
  %v1132 = vadd.f32 %v618, %v1131
  %1133 = vmatmul.f32.gmra.mxu0 %v347
  %v1134 = vpop.f32.mrf.mxu0
  %v1135 = vadd.f32 %v618, %v1134
  %1136 = vmatmul.f32.gmra.mxu0 %v349
  %v1137 = vpop.f32.mrf.mxu0
  %v1138 = vadd.f32 %v618, %v1137
  %1139 = vmatmul.f32.gmra.mxu0 %v351
  %v1140 = vpop.f32.mrf.mxu0
  %v1141 = vadd.f32 %v618, %v1140
  %1142 = vmatmul.f32.gmra.mxu0 %v353
  %v1143 = vpop.f32.mrf.mxu0
  %v1144 = vadd.f32 %v618, %v1143
  %1145 = vdwg.mxu0
  %1146 = vmatpush.msra.mxu0 %v608
  %1147 = vmatpush.msra.mxu0 %v600
  %1148 = vmatpush.msra.mxu0 %v592
  %1149 = vmatpush.msra.mxu0 %v584
  %1150 = vmatpush.msra.mxu0 %v576
  %1151 = vmatpush.msra.mxu0 %v568
  %1152 = vmatpush.msra.mxu0 %v560
  %1153 = vmatpush.msra.mxu0 %v552
  %1154 = vmatpush.msra.mxu0 %v544
  %1155 = vmatpush.msra.mxu0 %v536
  %1156 = vmatpush.msra.mxu0 %v528
  %1157 = vmatpush.msra.mxu0 %v520
  %1158 = vmatpush.msra.mxu0 %v512
  %1159 = vmatpush.msra.mxu0 %v504
  %1160 = vmatpush.msra.mxu0 %v496
  %1161 = vmatpush.msra.mxu0 %v488
  %1162 = vmatmul.f32.gmra.mxu0 %v336
  %v1163 = vpop.f32.mrf.mxu0
  %v1164 = vadd.f32 %v1117, %v1163
  %1165 = vmatmul.f32.gmra.mxu0 %v338
  %v1166 = vpop.f32.mrf.mxu0
  %v1167 = vadd.f32 %v1120, %v1166
  %1168 = vmatmul.f32.gmra.mxu0 %v340
  %v1169 = vpop.f32.mrf.mxu0
  %v1170 = vadd.f32 %v1123, %v1169
  %1171 = vmatmul.f32.gmra.mxu0 %v342
  %v1172 = vpop.f32.mrf.mxu0
  %v1173 = vadd.f32 %v1126, %v1172
  %1174 = vmatmul.f32.gmra.mxu0 %v344
  %v1175 = vpop.f32.mrf.mxu0
  %v1176 = vadd.f32 %v1129, %v1175
  %1177 = vmatmul.f32.gmra.mxu0 %v346
  %v1178 = vpop.f32.mrf.mxu0
  %v1179 = vadd.f32 %v1132, %v1178
  %1180 = vmatmul.f32.gmra.mxu0 %v348
  %v1181 = vpop.f32.mrf.mxu0
  %v1182 = vadd.f32 %v1135, %v1181
  %1183 = vmatmul.f32.gmra.mxu0 %v350
  %v1184 = vpop.f32.mrf.mxu0
  %v1185 = vadd.f32 %v1138, %v1184
  %1186 = vmatmul.f32.gmra.mxu0 %v352
  %v1187 = vpop.f32.mrf.mxu0
  %v1188 = vadd.f32 %v1141, %v1187
  %1189 = vmatmul.f32.gmra.mxu0 %v354
  %v1190 = vpop.f32.mrf.mxu0
  %v1191 = vadd.f32 %v1144, %v1190
  %1192 = vdwg.mxu0
  %1193 = vmatpush.msra.mxu0 %v481
  %1194 = vmatpush.msra.mxu0 %v473
  %1195 = vmatpush.msra.mxu0 %v465
  %1196 = vmatpush.msra.mxu0 %v457
  %1197 = vmatpush.msra.mxu0 %v449
  %1198 = vmatpush.msra.mxu0 %v441
  %1199 = vmatpush.msra.mxu0 %v433
  %1200 = vmatpush.msra.mxu0 %v425
  %1201 = vmatpush.msra.mxu0 %v417
  %1202 = vmatpush.msra.mxu0 %v409
  %1203 = vmatpush.msra.mxu0 %v401
  %1204 = vmatpush.msra.mxu0 %v393
  %1205 = vmatpush.msra.mxu0 %v385
  %1206 = vmatpush.msra.mxu0 %v377
  %1207 = vmatpush.msra.mxu0 %v369
  %1208 = vmatpush.msra.mxu0 %v361
  %1209 = vmatmul.f32.gmra.mxu0 %v335
  %v1210 = vpop.f32.mrf.mxu0
  %v1211 = vadd.f32 %v619, %v1210
  %1212 = vmatmul.f32.gmra.mxu0 %v337
  %v1213 = vpop.f32.mrf.mxu0
  %v1214 = vadd.f32 %v619, %v1213
  %1215 = vmatmul.f32.gmra.mxu0 %v339
  %v1216 = vpop.f32.mrf.mxu0
  %v1217 = vadd.f32 %v619, %v1216
  %1218 = vmatmul.f32.gmra.mxu0 %v341
  %v1219 = vpop.f32.mrf.mxu0
  %v1220 = vadd.f32 %v619, %v1219
  %1221 = vmatmul.f32.gmra.mxu0 %v343
  %v1222 = vpop.f32.mrf.mxu0
  %v1223 = vadd.f32 %v619, %v1222
  %1224 = vmatmul.f32.gmra.mxu0 %v345
  %v1225 = vpop.f32.mrf.mxu0
  %v1226 = vadd.f32 %v619, %v1225
  %1227 = vmatmul.f32.gmra.mxu0 %v347
  %v1228 = vpop.f32.mrf.mxu0
  %v1229 = vadd.f32 %v619, %v1228
  %1230 = vmatmul.f32.gmra.mxu0 %v349
  %v1231 = vpop.f32.mrf.mxu0
  %v1232 = vadd.f32 %v619, %v1231
  %1233 = vmatmul.f32.gmra.mxu0 %v351
  %v1234 = vpop.f32.mrf.mxu0
  %v1235 = vadd.f32 %v619, %v1234
  %1236 = vmatmul.f32.gmra.mxu0 %v353
  %v1237 = vpop.f32.mrf.mxu0
  %v1238 = vadd.f32 %v619, %v1237
  %1239 = vdwg.mxu0
  %1240 = vmatpush.msra.mxu0 %v609
  %1241 = vmatpush.msra.mxu0 %v601
  %1242 = vmatpush.msra.mxu0 %v593
  %1243 = vmatpush.msra.mxu0 %v585
  %1244 = vmatpush.msra.mxu0 %v577
  %1245 = vmatpush.msra.mxu0 %v569
  %1246 = vmatpush.msra.mxu0 %v561
  %1247 = vmatpush.msra.mxu0 %v553
  %1248 = vmatpush.msra.mxu0 %v545
  %1249 = vmatpush.msra.mxu0 %v537
  %1250 = vmatpush.msra.mxu0 %v529
  %1251 = vmatpush.msra.mxu0 %v521
  %1252 = vmatpush.msra.mxu0 %v513
  %1253 = vmatpush.msra.mxu0 %v505
  %1254 = vmatpush.msra.mxu0 %v497
  %1255 = vmatpush.msra.mxu0 %v489
  %1256 = vmatmul.f32.gmra.mxu0 %v336
  %v1257 = vpop.f32.mrf.mxu0
  %v1258 = vadd.f32 %v1211, %v1257
  %1259 = vmatmul.f32.gmra.mxu0 %v338
  %v1260 = vpop.f32.mrf.mxu0
  %v1261 = vadd.f32 %v1214, %v1260
  %1262 = vmatmul.f32.gmra.mxu0 %v340
  %v1263 = vpop.f32.mrf.mxu0
  %v1264 = vadd.f32 %v1217, %v1263
  %1265 = vmatmul.f32.gmra.mxu0 %v342
  %v1266 = vpop.f32.mrf.mxu0
  %v1267 = vadd.f32 %v1220, %v1266
  %1268 = vmatmul.f32.gmra.mxu0 %v344
  %v1269 = vpop.f32.mrf.mxu0
  %v1270 = vadd.f32 %v1223, %v1269
  %1271 = vmatmul.f32.gmra.mxu0 %v346
  %v1272 = vpop.f32.mrf.mxu0
  %v1273 = vadd.f32 %v1226, %v1272
  %1274 = vmatmul.f32.gmra.mxu0 %v348
  %v1275 = vpop.f32.mrf.mxu0
  %v1276 = vadd.f32 %v1229, %v1275
  %1277 = vmatmul.f32.gmra.mxu0 %v350
  %v1278 = vpop.f32.mrf.mxu0
  %v1279 = vadd.f32 %v1232, %v1278
  %1280 = vmatmul.f32.gmra.mxu0 %v352
  %v1281 = vpop.f32.mrf.mxu0
  %v1282 = vadd.f32 %v1235, %v1281
  %1283 = vmatmul.f32.gmra.mxu0 %v354
  %v1284 = vpop.f32.mrf.mxu0
  %v1285 = vadd.f32 %v1238, %v1284
  %1286 = vdwg.mxu0
  %1287 = vmatpush.msra.mxu0 %v482
  %1288 = vmatpush.msra.mxu0 %v474
  %1289 = vmatpush.msra.mxu0 %v466
  %1290 = vmatpush.msra.mxu0 %v458
  %1291 = vmatpush.msra.mxu0 %v450
  %1292 = vmatpush.msra.mxu0 %v442
  %1293 = vmatpush.msra.mxu0 %v434
  %1294 = vmatpush.msra.mxu0 %v426
  %1295 = vmatpush.msra.mxu0 %v418
  %1296 = vmatpush.msra.mxu0 %v410
  %1297 = vmatpush.msra.mxu0 %v402
  %1298 = vmatpush.msra.mxu0 %v394
  %1299 = vmatpush.msra.mxu0 %v386
  %1300 = vmatpush.msra.mxu0 %v378
  %1301 = vmatpush.msra.mxu0 %v370
  %1302 = vmatpush.msra.mxu0 %v362
  %1303 = vmatmul.f32.gmra.mxu0 %v335
  %v1304 = vpop.f32.mrf.mxu0
  %v1305 = vadd.f32 %v620, %v1304
  %1306 = vmatmul.f32.gmra.mxu0 %v337
  %v1307 = vpop.f32.mrf.mxu0
  %v1308 = vadd.f32 %v620, %v1307
  %1309 = vmatmul.f32.gmra.mxu0 %v339
  %v1310 = vpop.f32.mrf.mxu0
  %v1311 = vadd.f32 %v620, %v1310
  %1312 = vmatmul.f32.gmra.mxu0 %v341
  %v1313 = vpop.f32.mrf.mxu0
  %v1314 = vadd.f32 %v620, %v1313
  %1315 = vmatmul.f32.gmra.mxu0 %v343
  %v1316 = vpop.f32.mrf.mxu0
  %v1317 = vadd.f32 %v620, %v1316
  %1318 = vmatmul.f32.gmra.mxu0 %v345
  %v1319 = vpop.f32.mrf.mxu0
  %v1320 = vadd.f32 %v620, %v1319
  %1321 = vmatmul.f32.gmra.mxu0 %v347
  %v1322 = vpop.f32.mrf.mxu0
  %v1323 = vadd.f32 %v620, %v1322
  %1324 = vmatmul.f32.gmra.mxu0 %v349
  %v1325 = vpop.f32.mrf.mxu0
  %v1326 = vadd.f32 %v620, %v1325
  %1327 = vmatmul.f32.gmra.mxu0 %v351
  %v1328 = vpop.f32.mrf.mxu0
  %v1329 = vadd.f32 %v620, %v1328
  %1330 = vmatmul.f32.gmra.mxu0 %v353
  %v1331 = vpop.f32.mrf.mxu0
  %v1332 = vadd.f32 %v620, %v1331
  %1333 = vdwg.mxu0
  %1334 = vmatpush.msra.mxu0 %v610
  %1335 = vmatpush.msra.mxu0 %v602
  %1336 = vmatpush.msra.mxu0 %v594
  %1337 = vmatpush.msra.mxu0 %v586
  %1338 = vmatpush.msra.mxu0 %v578
  %1339 = vmatpush.msra.mxu0 %v570
  %1340 = vmatpush.msra.mxu0 %v562
  %1341 = vmatpush.msra.mxu0 %v554
  %1342 = vmatpush.msra.mxu0 %v546
  %1343 = vmatpush.msra.mxu0 %v538
  %1344 = vmatpush.msra.mxu0 %v530
  %1345 = vmatpush.msra.mxu0 %v522
  %1346 = vmatpush.msra.mxu0 %v514
  %1347 = vmatpush.msra.mxu0 %v506
  %1348 = vmatpush.msra.mxu0 %v498
  %1349 = vmatpush.msra.mxu0 %v490
  %1350 = vmatmul.f32.gmra.mxu0 %v336
  %v1351 = vpop.f32.mrf.mxu0
  %v1352 = vadd.f32 %v1305, %v1351
  %1353 = vmatmul.f32.gmra.mxu0 %v338
  %v1354 = vpop.f32.mrf.mxu0
  %v1355 = vadd.f32 %v1308, %v1354
  %1356 = vmatmul.f32.gmra.mxu0 %v340
  %v1357 = vpop.f32.mrf.mxu0
  %v1358 = vadd.f32 %v1311, %v1357
  %1359 = vmatmul.f32.gmra.mxu0 %v342
  %v1360 = vpop.f32.mrf.mxu0
  %v1361 = vadd.f32 %v1314, %v1360
  %1362 = vmatmul.f32.gmra.mxu0 %v344
  %v1363 = vpop.f32.mrf.mxu0
  %v1364 = vadd.f32 %v1317, %v1363
  %1365 = vmatmul.f32.gmra.mxu0 %v346
  %v1366 = vpop.f32.mrf.mxu0
  %v1367 = vadd.f32 %v1320, %v1366
  %1368 = vmatmul.f32.gmra.mxu0 %v348
  %v1369 = vpop.f32.mrf.mxu0
  %v1370 = vadd.f32 %v1323, %v1369
  %1371 = vmatmul.f32.gmra.mxu0 %v350
  %v1372 = vpop.f32.mrf.mxu0
  %v1373 = vadd.f32 %v1326, %v1372
  %1374 = vmatmul.f32.gmra.mxu0 %v352
  %v1375 = vpop.f32.mrf.mxu0
  %v1376 = vadd.f32 %v1329, %v1375
  %1377 = vmatmul.f32.gmra.mxu0 %v354
  %v1378 = vpop.f32.mrf.mxu0
  %v1379 = vadd.f32 %v1332, %v1378
  %1380 = vdwg.mxu0
  %v1381 = vmul.f32 %v694, 0.5
  %v1382 = vmul.f32 %v788, 0.5
  %v1383 = vmul.f32 %v882, 0.5
  %v1384 = vmul.f32 %v976, 0.5
  %v1385 = vmul.f32 %v1070, 0.5
  %v1386 = vmul.f32 %v1164, 0.5
  %v1387 = vmul.f32 %v1258, 0.5
  %v1388 = vmul.f32 %v1352, 0.5
  %v1389 = vmul.f32 %v697, 0.5
  %v1390 = vmul.f32 %v791, 0.5
  %v1391 = vmul.f32 %v885, 0.5
  %v1392 = vmul.f32 %v979, 0.5
  %v1393 = vmul.f32 %v1073, 0.5
  %v1394 = vmul.f32 %v1167, 0.5
  %v1395 = vmul.f32 %v1261, 0.5
  %v1396 = vmul.f32 %v1355, 0.5
  %v1397 = vmul.f32 %v700, 0.5
  %v1398 = vmul.f32 %v794, 0.5
  %v1399 = vmul.f32 %v888, 0.5
  %v1400 = vmul.f32 %v982, 0.5
  %v1401 = vmul.f32 %v1076, 0.5
  %v1402 = vmul.f32 %v1170, 0.5
  %v1403 = vmul.f32 %v1264, 0.5
  %v1404 = vmul.f32 %v1358, 0.5
  %v1405 = vmul.f32 %v703, 0.5
  %v1406 = vmul.f32 %v797, 0.5
  %v1407 = vmul.f32 %v891, 0.5
  %v1408 = vmul.f32 %v985, 0.5
  %v1409 = vmul.f32 %v1079, 0.5
  %v1410 = vmul.f32 %v1173, 0.5
  %v1411 = vmul.f32 %v1267, 0.5
  %v1412 = vmul.f32 %v1361, 0.5
  %v1413 = vmul.f32 %v706, 0.5
  %v1414 = vmul.f32 %v800, 0.5
  %v1415 = vmul.f32 %v894, 0.5
  %v1416 = vmul.f32 %v988, 0.5
  %v1417 = vmul.f32 %v1082, 0.5
  %v1418 = vmul.f32 %v1176, 0.5
  %v1419 = vmul.f32 %v1270, 0.5
  %v1420 = vmul.f32 %v1364, 0.5
  %v1421 = vmul.f32 %v709, 0.5
  %v1422 = vmul.f32 %v803, 0.5
  %v1423 = vmul.f32 %v897, 0.5
  %v1424 = vmul.f32 %v991, 0.5
  %v1425 = vmul.f32 %v1085, 0.5
  %v1426 = vmul.f32 %v1179, 0.5
  %v1427 = vmul.f32 %v1273, 0.5
  %v1428 = vmul.f32 %v1367, 0.5
  %v1429 = vmul.f32 %v712, 0.5
  %v1430 = vmul.f32 %v806, 0.5
  %v1431 = vmul.f32 %v900, 0.5
  %v1432 = vmul.f32 %v994, 0.5
  %v1433 = vmul.f32 %v1088, 0.5
  %v1434 = vmul.f32 %v1182, 0.5
  %v1435 = vmul.f32 %v1276, 0.5
  %v1436 = vmul.f32 %v1370, 0.5
  %v1437 = vmul.f32 %v715, 0.5
  %v1438 = vmul.f32 %v809, 0.5
  %v1439 = vmul.f32 %v903, 0.5
  %v1440 = vmul.f32 %v997, 0.5
  %v1441 = vmul.f32 %v1091, 0.5
  %v1442 = vmul.f32 %v1185, 0.5
  %v1443 = vmul.f32 %v1279, 0.5
  %v1444 = vmul.f32 %v1373, 0.5
  %v1445 = vmul.f32 %v718, 0.5
  %v1446 = vmul.f32 %v812, 0.5
  %v1447 = vmul.f32 %v906, 0.5
  %v1448 = vmul.f32 %v1000, 0.5
  %v1449 = vmul.f32 %v1094, 0.5
  %v1450 = vmul.f32 %v1188, 0.5
  %v1451 = vmul.f32 %v1282, 0.5
  %v1452 = vmul.f32 %v1376, 0.5
  %v1453 = vmul.f32 %v721, 0.5
  %v1454 = vmul.f32 %v815, 0.5
  %v1455 = vmul.f32 %v909, 0.5
  %v1456 = vmul.f32 %v1003, 0.5
  %v1457 = vmul.f32 %v1097, 0.5
  %v1458 = vmul.f32 %v1191, 0.5
  %v1459 = vmul.f32 %v1285, 0.5
  %v1460 = vmul.f32 %v1379, 0.5
  %v1461 = vmul.f32 %v694, 0.70710677
  %v1462 = vmul.f32 %v788, 0.70710677
  %v1463 = vmul.f32 %v882, 0.70710677
  %v1464 = vmul.f32 %v976, 0.70710677
  %v1465 = vmul.f32 %v1070, 0.70710677
  %v1466 = vmul.f32 %v1164, 0.70710677
  %v1467 = vmul.f32 %v1258, 0.70710677
  %v1468 = vmul.f32 %v1352, 0.70710677
  %v1469 = vmul.f32 %v697, 0.70710677
  %v1470 = vmul.f32 %v791, 0.70710677
  %v1471 = vmul.f32 %v885, 0.70710677
  %v1472 = vmul.f32 %v979, 0.70710677
  %v1473 = vmul.f32 %v1073, 0.70710677
  %v1474 = vmul.f32 %v1167, 0.70710677
  %v1475 = vmul.f32 %v1261, 0.70710677
  %v1476 = vmul.f32 %v1355, 0.70710677
  %v1477 = vmul.f32 %v700, 0.70710677
  %v1478 = vmul.f32 %v794, 0.70710677
  %v1479 = vmul.f32 %v888, 0.70710677
  %v1480 = vmul.f32 %v982, 0.70710677
  %v1481 = vmul.f32 %v1076, 0.70710677
  %v1482 = vmul.f32 %v1170, 0.70710677
  %v1483 = vmul.f32 %v1264, 0.70710677
  %v1484 = vmul.f32 %v1358, 0.70710677
  %v1485 = vmul.f32 %v703, 0.70710677
  %v1486 = vmul.f32 %v797, 0.70710677
  %v1487 = vmul.f32 %v891, 0.70710677
  %v1488 = vmul.f32 %v985, 0.70710677
  %v1489 = vmul.f32 %v1079, 0.70710677
  %v1490 = vmul.f32 %v1173, 0.70710677
  %v1491 = vmul.f32 %v1267, 0.70710677
  %v1492 = vmul.f32 %v1361, 0.70710677
  %v1493 = vmul.f32 %v706, 0.70710677
  %v1494 = vmul.f32 %v800, 0.70710677
  %v1495 = vmul.f32 %v894, 0.70710677
  %v1496 = vmul.f32 %v988, 0.70710677
  %v1497 = vmul.f32 %v1082, 0.70710677
  %v1498 = vmul.f32 %v1176, 0.70710677
  %v1499 = vmul.f32 %v1270, 0.70710677
  %v1500 = vmul.f32 %v1364, 0.70710677
  %v1501 = vmul.f32 %v709, 0.70710677
  %v1502 = vmul.f32 %v803, 0.70710677
  %v1503 = vmul.f32 %v897, 0.70710677
  %v1504 = vmul.f32 %v991, 0.70710677
  %v1505 = vmul.f32 %v1085, 0.70710677
  %v1506 = vmul.f32 %v1179, 0.70710677
  %v1507 = vmul.f32 %v1273, 0.70710677
  %v1508 = vmul.f32 %v1367, 0.70710677
  %v1509 = vmul.f32 %v712, 0.70710677
  %v1510 = vmul.f32 %v806, 0.70710677
  %v1511 = vmul.f32 %v900, 0.70710677
  %v1512 = vmul.f32 %v994, 0.70710677
  %v1513 = vmul.f32 %v1088, 0.70710677
  %v1514 = vmul.f32 %v1182, 0.70710677
  %v1515 = vmul.f32 %v1276, 0.70710677
  %v1516 = vmul.f32 %v1370, 0.70710677
  %v1517 = vmul.f32 %v715, 0.70710677
  %v1518 = vmul.f32 %v809, 0.70710677
  %v1519 = vmul.f32 %v903, 0.70710677
  %v1520 = vmul.f32 %v997, 0.70710677
  %v1521 = vmul.f32 %v1091, 0.70710677
  %v1522 = vmul.f32 %v1185, 0.70710677
  %v1523 = vmul.f32 %v1279, 0.70710677
  %v1524 = vmul.f32 %v1373, 0.70710677
  %v1525 = vmul.f32 %v718, 0.70710677
  %v1526 = vmul.f32 %v812, 0.70710677
  %v1527 = vmul.f32 %v906, 0.70710677
  %v1528 = vmul.f32 %v1000, 0.70710677
  %v1529 = vmul.f32 %v1094, 0.70710677
  %v1530 = vmul.f32 %v1188, 0.70710677
  %v1531 = vmul.f32 %v1282, 0.70710677
  %v1532 = vmul.f32 %v1376, 0.70710677
  %v1533 = vmul.f32 %v721, 0.70710677
  %v1534 = vmul.f32 %v815, 0.70710677
  %v1535 = vmul.f32 %v909, 0.70710677
  %v1536 = vmul.f32 %v1003, 0.70710677
  %v1537 = vmul.f32 %v1097, 0.70710677
  %v1538 = vmul.f32 %v1191, 0.70710677
  %v1539 = vmul.f32 %v1285, 0.70710677
  %v1540 = vmul.f32 %v1379, 0.70710677
  %vm1541 = vcmp.ge.f32.partialorder %v1461, 0.0
  %vm1542 = vcmp.ge.f32.partialorder %v1462, 0.0
  %vm1543 = vcmp.ge.f32.partialorder %v1463, 0.0
  %vm1544 = vcmp.ge.f32.partialorder %v1464, 0.0
  %vm1545 = vcmp.ge.f32.partialorder %v1465, 0.0
  %vm1546 = vcmp.ge.f32.partialorder %v1466, 0.0
  %vm1547 = vcmp.ge.f32.partialorder %v1467, 0.0
  %vm1548 = vcmp.ge.f32.partialorder %v1468, 0.0
  %vm1549 = vcmp.ge.f32.partialorder %v1469, 0.0
  %vm1550 = vcmp.ge.f32.partialorder %v1470, 0.0
  %vm1551 = vcmp.ge.f32.partialorder %v1471, 0.0
  %vm1552 = vcmp.ge.f32.partialorder %v1472, 0.0
  %vm1553 = vcmp.ge.f32.partialorder %v1473, 0.0
  %vm1554 = vcmp.ge.f32.partialorder %v1474, 0.0
  %vm1555 = vcmp.ge.f32.partialorder %v1475, 0.0
  %vm1556 = vcmp.ge.f32.partialorder %v1476, 0.0
  %vm1557 = vcmp.ge.f32.partialorder %v1477, 0.0
  %vm1558 = vcmp.ge.f32.partialorder %v1478, 0.0
  %vm1559 = vcmp.ge.f32.partialorder %v1479, 0.0
  %vm1560 = vcmp.ge.f32.partialorder %v1480, 0.0
  %vm1561 = vcmp.ge.f32.partialorder %v1481, 0.0
  %vm1562 = vcmp.ge.f32.partialorder %v1482, 0.0
  %vm1563 = vcmp.ge.f32.partialorder %v1483, 0.0
  %vm1564 = vcmp.ge.f32.partialorder %v1484, 0.0
  %vm1565 = vcmp.ge.f32.partialorder %v1485, 0.0
  %vm1566 = vcmp.ge.f32.partialorder %v1486, 0.0
  %vm1567 = vcmp.ge.f32.partialorder %v1487, 0.0
  %vm1568 = vcmp.ge.f32.partialorder %v1488, 0.0
  %vm1569 = vcmp.ge.f32.partialorder %v1489, 0.0
  %vm1570 = vcmp.ge.f32.partialorder %v1490, 0.0
  %vm1571 = vcmp.ge.f32.partialorder %v1491, 0.0
  %vm1572 = vcmp.ge.f32.partialorder %v1492, 0.0
  %vm1573 = vcmp.ge.f32.partialorder %v1493, 0.0
  %vm1574 = vcmp.ge.f32.partialorder %v1494, 0.0
  %vm1575 = vcmp.ge.f32.partialorder %v1495, 0.0
  %vm1576 = vcmp.ge.f32.partialorder %v1496, 0.0
  %vm1577 = vcmp.ge.f32.partialorder %v1497, 0.0
  %vm1578 = vcmp.ge.f32.partialorder %v1498, 0.0
  %vm1579 = vcmp.ge.f32.partialorder %v1499, 0.0
  %vm1580 = vcmp.ge.f32.partialorder %v1500, 0.0
  %vm1581 = vcmp.ge.f32.partialorder %v1501, 0.0
  %vm1582 = vcmp.ge.f32.partialorder %v1502, 0.0
  %vm1583 = vcmp.ge.f32.partialorder %v1503, 0.0
  %vm1584 = vcmp.ge.f32.partialorder %v1504, 0.0
  %vm1585 = vcmp.ge.f32.partialorder %v1505, 0.0
  %vm1586 = vcmp.ge.f32.partialorder %v1506, 0.0
  %vm1587 = vcmp.ge.f32.partialorder %v1507, 0.0
  %vm1588 = vcmp.ge.f32.partialorder %v1508, 0.0
  %vm1589 = vcmp.ge.f32.partialorder %v1509, 0.0
  %vm1590 = vcmp.ge.f32.partialorder %v1510, 0.0
  %vm1591 = vcmp.ge.f32.partialorder %v1511, 0.0
  %vm1592 = vcmp.ge.f32.partialorder %v1512, 0.0
  %vm1593 = vcmp.ge.f32.partialorder %v1513, 0.0
  %vm1594 = vcmp.ge.f32.partialorder %v1514, 0.0
  %vm1595 = vcmp.ge.f32.partialorder %v1515, 0.0
  %vm1596 = vcmp.ge.f32.partialorder %v1516, 0.0
  %vm1597 = vcmp.ge.f32.partialorder %v1517, 0.0
  %vm1598 = vcmp.ge.f32.partialorder %v1518, 0.0
  %vm1599 = vcmp.ge.f32.partialorder %v1519, 0.0
  %vm1600 = vcmp.ge.f32.partialorder %v1520, 0.0
  %vm1601 = vcmp.ge.f32.partialorder %v1521, 0.0
  %vm1602 = vcmp.ge.f32.partialorder %v1522, 0.0
  %vm1603 = vcmp.ge.f32.partialorder %v1523, 0.0
  %vm1604 = vcmp.ge.f32.partialorder %v1524, 0.0
  %vm1605 = vcmp.ge.f32.partialorder %v1525, 0.0
  %vm1606 = vcmp.ge.f32.partialorder %v1526, 0.0
  %vm1607 = vcmp.ge.f32.partialorder %v1527, 0.0
  %vm1608 = vcmp.ge.f32.partialorder %v1528, 0.0
  %vm1609 = vcmp.ge.f32.partialorder %v1529, 0.0
  %vm1610 = vcmp.ge.f32.partialorder %v1530, 0.0
  %vm1611 = vcmp.ge.f32.partialorder %v1531, 0.0
  %vm1612 = vcmp.ge.f32.partialorder %v1532, 0.0
  %vm1613 = vcmp.ge.f32.partialorder %v1533, 0.0
  %vm1614 = vcmp.ge.f32.partialorder %v1534, 0.0
  %vm1615 = vcmp.ge.f32.partialorder %v1535, 0.0
  %vm1616 = vcmp.ge.f32.partialorder %v1536, 0.0
  %vm1617 = vcmp.ge.f32.partialorder %v1537, 0.0
  %vm1618 = vcmp.ge.f32.partialorder %v1538, 0.0
  %vm1619 = vcmp.ge.f32.partialorder %v1539, 0.0
  %vm1620 = vcmp.ge.f32.partialorder %v1540, 0.0
  %v1621 = vsel %vm1541, 1.0, -1.0
  %v1622 = vsel %vm1542, 1.0, -1.0
  %v1623 = vsel %vm1543, 1.0, -1.0
  %v1624 = vsel %vm1544, 1.0, -1.0
  %v1625 = vsel %vm1545, 1.0, -1.0
  %v1626 = vsel %vm1546, 1.0, -1.0
  %v1627 = vsel %vm1547, 1.0, -1.0
  %v1628 = vsel %vm1548, 1.0, -1.0
  %v1629 = vsel %vm1549, 1.0, -1.0
  %v1630 = vsel %vm1550, 1.0, -1.0
  %v1631 = vsel %vm1551, 1.0, -1.0
  %v1632 = vsel %vm1552, 1.0, -1.0
  %v1633 = vsel %vm1553, 1.0, -1.0
  %v1634 = vsel %vm1554, 1.0, -1.0
  %v1635 = vsel %vm1555, 1.0, -1.0
  %v1636 = vsel %vm1556, 1.0, -1.0
  %v1637 = vsel %vm1557, 1.0, -1.0
  %v1638 = vsel %vm1558, 1.0, -1.0
  %v1639 = vsel %vm1559, 1.0, -1.0
  %v1640 = vsel %vm1560, 1.0, -1.0
  %v1641 = vsel %vm1561, 1.0, -1.0
  %v1642 = vsel %vm1562, 1.0, -1.0
  %v1643 = vsel %vm1563, 1.0, -1.0
  %v1644 = vsel %vm1564, 1.0, -1.0
  %v1645 = vsel %vm1565, 1.0, -1.0
  %v1646 = vsel %vm1566, 1.0, -1.0
  %v1647 = vsel %vm1567, 1.0, -1.0
  %v1648 = vsel %vm1568, 1.0, -1.0
  %v1649 = vsel %vm1569, 1.0, -1.0
  %v1650 = vsel %vm1570, 1.0, -1.0
  %v1651 = vsel %vm1571, 1.0, -1.0
  %v1652 = vsel %vm1572, 1.0, -1.0
  %v1653 = vsel %vm1573, 1.0, -1.0
  %v1654 = vsel %vm1574, 1.0, -1.0
  %v1655 = vsel %vm1575, 1.0, -1.0
  %v1656 = vsel %vm1576, 1.0, -1.0
  %v1657 = vsel %vm1577, 1.0, -1.0
  %v1658 = vsel %vm1578, 1.0, -1.0
  %v1659 = vsel %vm1579, 1.0, -1.0
  %v1660 = vsel %vm1580, 1.0, -1.0
  %v1661 = vsel %vm1581, 1.0, -1.0
  %v1662 = vsel %vm1582, 1.0, -1.0
  %v1663 = vsel %vm1583, 1.0, -1.0
  %v1664 = vsel %vm1584, 1.0, -1.0
  %v1665 = vsel %vm1585, 1.0, -1.0
  %v1666 = vsel %vm1586, 1.0, -1.0
  %v1667 = vsel %vm1587, 1.0, -1.0
  %v1668 = vsel %vm1588, 1.0, -1.0
  %v1669 = vsel %vm1589, 1.0, -1.0
  %v1670 = vsel %vm1590, 1.0, -1.0
  %v1671 = vsel %vm1591, 1.0, -1.0
  %v1672 = vsel %vm1592, 1.0, -1.0
  %v1673 = vsel %vm1593, 1.0, -1.0
  %v1674 = vsel %vm1594, 1.0, -1.0
  %v1675 = vsel %vm1595, 1.0, -1.0
  %v1676 = vsel %vm1596, 1.0, -1.0
  %v1677 = vsel %vm1597, 1.0, -1.0
  %v1678 = vsel %vm1598, 1.0, -1.0
  %v1679 = vsel %vm1599, 1.0, -1.0
  %v1680 = vsel %vm1600, 1.0, -1.0
  %v1681 = vsel %vm1601, 1.0, -1.0
  %v1682 = vsel %vm1602, 1.0, -1.0
  %v1683 = vsel %vm1603, 1.0, -1.0
  %v1684 = vsel %vm1604, 1.0, -1.0
  %v1685 = vsel %vm1605, 1.0, -1.0
  %v1686 = vsel %vm1606, 1.0, -1.0
  %v1687 = vsel %vm1607, 1.0, -1.0
  %v1688 = vsel %vm1608, 1.0, -1.0
  %v1689 = vsel %vm1609, 1.0, -1.0
  %v1690 = vsel %vm1610, 1.0, -1.0
  %v1691 = vsel %vm1611, 1.0, -1.0
  %v1692 = vsel %vm1612, 1.0, -1.0
  %v1693 = vsel %vm1613, 1.0, -1.0
  %v1694 = vsel %vm1614, 1.0, -1.0
  %v1695 = vsel %vm1615, 1.0, -1.0
  %v1696 = vsel %vm1616, 1.0, -1.0
  %v1697 = vsel %vm1617, 1.0, -1.0
  %v1698 = vsel %vm1618, 1.0, -1.0
  %v1699 = vsel %vm1619, 1.0, -1.0
  %v1700 = vsel %vm1620, 1.0, -1.0
  %v1701 = vand.u32 2147483647, %v1461
  %v1702 = vand.u32 2147483647, %v1462
  %v1703 = vand.u32 2147483647, %v1463
  %v1704 = vand.u32 2147483647, %v1464
  %v1705 = vand.u32 2147483647, %v1465
  %v1706 = vand.u32 2147483647, %v1466
  %v1707 = vand.u32 2147483647, %v1467
  %v1708 = vand.u32 2147483647, %v1468
  %v1709 = vand.u32 2147483647, %v1469
  %v1710 = vand.u32 2147483647, %v1470
  %v1711 = vand.u32 2147483647, %v1471
  %v1712 = vand.u32 2147483647, %v1472
  %v1713 = vand.u32 2147483647, %v1473
  %v1714 = vand.u32 2147483647, %v1474
  %v1715 = vand.u32 2147483647, %v1475
  %v1716 = vand.u32 2147483647, %v1476
  %v1717 = vand.u32 2147483647, %v1477
  %v1718 = vand.u32 2147483647, %v1478
  %v1719 = vand.u32 2147483647, %v1479
  %v1720 = vand.u32 2147483647, %v1480
  %v1721 = vand.u32 2147483647, %v1481
  %v1722 = vand.u32 2147483647, %v1482
  %v1723 = vand.u32 2147483647, %v1483
  %v1724 = vand.u32 2147483647, %v1484
  %v1725 = vand.u32 2147483647, %v1485
  %v1726 = vand.u32 2147483647, %v1486
  %v1727 = vand.u32 2147483647, %v1487
  %v1728 = vand.u32 2147483647, %v1488
  %v1729 = vand.u32 2147483647, %v1489
  %v1730 = vand.u32 2147483647, %v1490
  %v1731 = vand.u32 2147483647, %v1491
  %v1732 = vand.u32 2147483647, %v1492
  %v1733 = vand.u32 2147483647, %v1493
  %v1734 = vand.u32 2147483647, %v1494
  %v1735 = vand.u32 2147483647, %v1495
  %v1736 = vand.u32 2147483647, %v1496
  %v1737 = vand.u32 2147483647, %v1497
  %v1738 = vand.u32 2147483647, %v1498
  %v1739 = vand.u32 2147483647, %v1499
  %v1740 = vand.u32 2147483647, %v1500
  %v1741 = vand.u32 2147483647, %v1501
  %v1742 = vand.u32 2147483647, %v1502
  %v1743 = vand.u32 2147483647, %v1503
  %v1744 = vand.u32 2147483647, %v1504
  %v1745 = vand.u32 2147483647, %v1505
  %v1746 = vand.u32 2147483647, %v1506
  %v1747 = vand.u32 2147483647, %v1507
  %v1748 = vand.u32 2147483647, %v1508
  %v1749 = vand.u32 2147483647, %v1509
  %v1750 = vand.u32 2147483647, %v1510
  %v1751 = vand.u32 2147483647, %v1511
  %v1752 = vand.u32 2147483647, %v1512
  %v1753 = vand.u32 2147483647, %v1513
  %v1754 = vand.u32 2147483647, %v1514
  %v1755 = vand.u32 2147483647, %v1515
  %v1756 = vand.u32 2147483647, %v1516
  %v1757 = vand.u32 2147483647, %v1517
  %v1758 = vand.u32 2147483647, %v1518
  %v1759 = vand.u32 2147483647, %v1519
  %v1760 = vand.u32 2147483647, %v1520
  %v1761 = vand.u32 2147483647, %v1521
  %v1762 = vand.u32 2147483647, %v1522
  %v1763 = vand.u32 2147483647, %v1523
  %v1764 = vand.u32 2147483647, %v1524
  %v1765 = vand.u32 2147483647, %v1525
  %v1766 = vand.u32 2147483647, %v1526
  %v1767 = vand.u32 2147483647, %v1527
  %v1768 = vand.u32 2147483647, %v1528
  %v1769 = vand.u32 2147483647, %v1529
  %v1770 = vand.u32 2147483647, %v1530
  %v1771 = vand.u32 2147483647, %v1531
  %v1772 = vand.u32 2147483647, %v1532
  %v1773 = vand.u32 2147483647, %v1533
  %v1774 = vand.u32 2147483647, %v1534
  %v1775 = vand.u32 2147483647, %v1535
  %v1776 = vand.u32 2147483647, %v1536
  %v1777 = vand.u32 2147483647, %v1537
  %v1778 = vand.u32 2147483647, %v1538
  %v1779 = vand.u32 2147483647, %v1539
  %v1780 = vand.u32 2147483647, %v1540
  %v1781 = vmul.f32 %v1701, 0.3275911
  %v1782 = vmul.f32 %v1702, 0.3275911
  %v1783 = vmul.f32 %v1703, 0.3275911
  %v1784 = vmul.f32 %v1704, 0.3275911
  %v1785 = vmul.f32 %v1705, 0.3275911
  %v1786 = vmul.f32 %v1706, 0.3275911
  %v1787 = vmul.f32 %v1707, 0.3275911
  %v1788 = vmul.f32 %v1708, 0.3275911
  %v1789 = vmul.f32 %v1709, 0.3275911
  %v1790 = vmul.f32 %v1710, 0.3275911
  %v1791 = vmul.f32 %v1711, 0.3275911
  %v1792 = vmul.f32 %v1712, 0.3275911
  %v1793 = vmul.f32 %v1713, 0.3275911
  %v1794 = vmul.f32 %v1714, 0.3275911
  %v1795 = vmul.f32 %v1715, 0.3275911
  %v1796 = vmul.f32 %v1716, 0.3275911
  %v1797 = vmul.f32 %v1717, 0.3275911
  %v1798 = vmul.f32 %v1718, 0.3275911
  %v1799 = vmul.f32 %v1719, 0.3275911
  %v1800 = vmul.f32 %v1720, 0.3275911
  %v1801 = vmul.f32 %v1721, 0.3275911
  %v1802 = vmul.f32 %v1722, 0.3275911
  %v1803 = vmul.f32 %v1723, 0.3275911
  %v1804 = vmul.f32 %v1724, 0.3275911
  %v1805 = vmul.f32 %v1725, 0.3275911
  %v1806 = vmul.f32 %v1726, 0.3275911
  %v1807 = vmul.f32 %v1727, 0.3275911
  %v1808 = vmul.f32 %v1728, 0.3275911
  %v1809 = vmul.f32 %v1729, 0.3275911
  %v1810 = vmul.f32 %v1730, 0.3275911
  %v1811 = vmul.f32 %v1731, 0.3275911
  %v1812 = vmul.f32 %v1732, 0.3275911
  %v1813 = vmul.f32 %v1733, 0.3275911
  %v1814 = vmul.f32 %v1734, 0.3275911
  %v1815 = vmul.f32 %v1735, 0.3275911
  %v1816 = vmul.f32 %v1736, 0.3275911
  %v1817 = vmul.f32 %v1737, 0.3275911
  %v1818 = vmul.f32 %v1738, 0.3275911
  %v1819 = vmul.f32 %v1739, 0.3275911
  %v1820 = vmul.f32 %v1740, 0.3275911
  %v1821 = vmul.f32 %v1741, 0.3275911
  %v1822 = vmul.f32 %v1742, 0.3275911
  %v1823 = vmul.f32 %v1743, 0.3275911
  %v1824 = vmul.f32 %v1744, 0.3275911
  %v1825 = vmul.f32 %v1745, 0.3275911
  %v1826 = vmul.f32 %v1746, 0.3275911
  %v1827 = vmul.f32 %v1747, 0.3275911
  %v1828 = vmul.f32 %v1748, 0.3275911
  %v1829 = vmul.f32 %v1749, 0.3275911
  %v1830 = vmul.f32 %v1750, 0.3275911
  %v1831 = vmul.f32 %v1751, 0.3275911
  %v1832 = vmul.f32 %v1752, 0.3275911
  %v1833 = vmul.f32 %v1753, 0.3275911
  %v1834 = vmul.f32 %v1754, 0.3275911
  %v1835 = vmul.f32 %v1755, 0.3275911
  %v1836 = vmul.f32 %v1756, 0.3275911
  %v1837 = vmul.f32 %v1757, 0.3275911
  %v1838 = vmul.f32 %v1758, 0.3275911
  %v1839 = vmul.f32 %v1759, 0.3275911
  %v1840 = vmul.f32 %v1760, 0.3275911
  %v1841 = vmul.f32 %v1761, 0.3275911
  %v1842 = vmul.f32 %v1762, 0.3275911
  %v1843 = vmul.f32 %v1763, 0.3275911
  %v1844 = vmul.f32 %v1764, 0.3275911
  %v1845 = vmul.f32 %v1765, 0.3275911
  %v1846 = vmul.f32 %v1766, 0.3275911
  %v1847 = vmul.f32 %v1767, 0.3275911
  %v1848 = vmul.f32 %v1768, 0.3275911
  %v1849 = vmul.f32 %v1769, 0.3275911
  %v1850 = vmul.f32 %v1770, 0.3275911
  %v1851 = vmul.f32 %v1771, 0.3275911
  %v1852 = vmul.f32 %v1772, 0.3275911
  %v1853 = vmul.f32 %v1773, 0.3275911
  %v1854 = vmul.f32 %v1774, 0.3275911
  %v1855 = vmul.f32 %v1775, 0.3275911
  %v1856 = vmul.f32 %v1776, 0.3275911
  %v1857 = vmul.f32 %v1777, 0.3275911
  %v1858 = vmul.f32 %v1778, 0.3275911
  %v1859 = vmul.f32 %v1779, 0.3275911
  %v1860 = vmul.f32 %v1780, 0.3275911
  %v1861 = vadd.f32 %v1781, 1.0
  %v1862 = vadd.f32 %v1782, 1.0
  %v1863 = vadd.f32 %v1783, 1.0
  %v1864 = vadd.f32 %v1784, 1.0
  %v1865 = vadd.f32 %v1785, 1.0
  %v1866 = vadd.f32 %v1786, 1.0
  %v1867 = vadd.f32 %v1787, 1.0
  %v1868 = vadd.f32 %v1788, 1.0
  %v1869 = vadd.f32 %v1789, 1.0
  %v1870 = vadd.f32 %v1790, 1.0
  %v1871 = vadd.f32 %v1791, 1.0
  %v1872 = vadd.f32 %v1792, 1.0
  %v1873 = vadd.f32 %v1793, 1.0
  %v1874 = vadd.f32 %v1794, 1.0
  %v1875 = vadd.f32 %v1795, 1.0
  %v1876 = vadd.f32 %v1796, 1.0
  %v1877 = vadd.f32 %v1797, 1.0
  %v1878 = vadd.f32 %v1798, 1.0
  %v1879 = vadd.f32 %v1799, 1.0
  %v1880 = vadd.f32 %v1800, 1.0
  %v1881 = vadd.f32 %v1801, 1.0
  %v1882 = vadd.f32 %v1802, 1.0
  %v1883 = vadd.f32 %v1803, 1.0
  %v1884 = vadd.f32 %v1804, 1.0
  %v1885 = vadd.f32 %v1805, 1.0
  %v1886 = vadd.f32 %v1806, 1.0
  %v1887 = vadd.f32 %v1807, 1.0
  %v1888 = vadd.f32 %v1808, 1.0
  %v1889 = vadd.f32 %v1809, 1.0
  %v1890 = vadd.f32 %v1810, 1.0
  %v1891 = vadd.f32 %v1811, 1.0
  %v1892 = vadd.f32 %v1812, 1.0
  %v1893 = vadd.f32 %v1813, 1.0
  %v1894 = vadd.f32 %v1814, 1.0
  %v1895 = vadd.f32 %v1815, 1.0
  %v1896 = vadd.f32 %v1816, 1.0
  %v1897 = vadd.f32 %v1817, 1.0
  %v1898 = vadd.f32 %v1818, 1.0
  %v1899 = vadd.f32 %v1819, 1.0
  %v1900 = vadd.f32 %v1820, 1.0
  %v1901 = vadd.f32 %v1821, 1.0
  %v1902 = vadd.f32 %v1822, 1.0
  %v1903 = vadd.f32 %v1823, 1.0
  %v1904 = vadd.f32 %v1824, 1.0
  %v1905 = vadd.f32 %v1825, 1.0
  %v1906 = vadd.f32 %v1826, 1.0
  %v1907 = vadd.f32 %v1827, 1.0
  %v1908 = vadd.f32 %v1828, 1.0
  %v1909 = vadd.f32 %v1829, 1.0
  %v1910 = vadd.f32 %v1830, 1.0
  %v1911 = vadd.f32 %v1831, 1.0
  %v1912 = vadd.f32 %v1832, 1.0
  %v1913 = vadd.f32 %v1833, 1.0
  %v1914 = vadd.f32 %v1834, 1.0
  %v1915 = vadd.f32 %v1835, 1.0
  %v1916 = vadd.f32 %v1836, 1.0
  %v1917 = vadd.f32 %v1837, 1.0
  %v1918 = vadd.f32 %v1838, 1.0
  %v1919 = vadd.f32 %v1839, 1.0
  %v1920 = vadd.f32 %v1840, 1.0
  %v1921 = vadd.f32 %v1841, 1.0
  %v1922 = vadd.f32 %v1842, 1.0
  %v1923 = vadd.f32 %v1843, 1.0
  %v1924 = vadd.f32 %v1844, 1.0
  %v1925 = vadd.f32 %v1845, 1.0
  %v1926 = vadd.f32 %v1846, 1.0
  %v1927 = vadd.f32 %v1847, 1.0
  %v1928 = vadd.f32 %v1848, 1.0
  %v1929 = vadd.f32 %v1849, 1.0
  %v1930 = vadd.f32 %v1850, 1.0
  %v1931 = vadd.f32 %v1851, 1.0
  %v1932 = vadd.f32 %v1852, 1.0
  %v1933 = vadd.f32 %v1853, 1.0
  %v1934 = vadd.f32 %v1854, 1.0
  %v1935 = vadd.f32 %v1855, 1.0
  %v1936 = vadd.f32 %v1856, 1.0
  %v1937 = vadd.f32 %v1857, 1.0
  %v1938 = vadd.f32 %v1858, 1.0
  %v1939 = vadd.f32 %v1859, 1.0
  %v1940 = vadd.f32 %v1860, 1.0
  %v1941 = vrcp.pop %v1861
  %v1942 = vmul.f32 %v1861, %v1941
  %v1943 = vsub.f32 1.0, %v1942
  %v1944 = vmul.f32 %v1941, %v1943
  %v1945 = vadd.f32 %v1941, %v1944
  %vm1946 = vweird.f32 %v1861
  %vm1947 = vweird.f32 %v1941
  %vm1948 = vmor %vm1946, %vm1947
  %v1949 = vsel %vm1948, %v1941, %v1945
  %v1950 = vand.u32 2147483647, %v1861
  %vm1951 = vcmp.eq.f32.partialorder %v1950, 8.507059e+37
  %v1952 = vand.u32 %v1861, 2147483648
  %v1953 = vor.u32 1.1754944e-38, %v1952
  %v1954 = vsel %vm1951, %v1953, %v1949
  %v1955 = vmul.f32 1.0, %v1954
  %v1956 = vrcp.pop %v1862
  %v1957 = vmul.f32 %v1862, %v1956
  %v1958 = vsub.f32 1.0, %v1957
  %v1959 = vmul.f32 %v1956, %v1958
  %v1960 = vadd.f32 %v1956, %v1959
  %vm1961 = vweird.f32 %v1862
  %vm1962 = vweird.f32 %v1956
  %vm1963 = vmor %vm1961, %vm1962
  %v1964 = vsel %vm1963, %v1956, %v1960
  %v1965 = vand.u32 2147483647, %v1862
  %vm1966 = vcmp.eq.f32.partialorder %v1965, 8.507059e+37
  %v1967 = vand.u32 %v1862, 2147483648
  %v1968 = vor.u32 1.1754944e-38, %v1967
  %v1969 = vsel %vm1966, %v1968, %v1964
  %v1970 = vmul.f32 1.0, %v1969
  %v1971 = vrcp.pop %v1863
  %v1972 = vmul.f32 %v1863, %v1971
  %v1973 = vsub.f32 1.0, %v1972
  %v1974 = vmul.f32 %v1971, %v1973
  %v1975 = vadd.f32 %v1971, %v1974
  %vm1976 = vweird.f32 %v1863
  %vm1977 = vweird.f32 %v1971
  %vm1978 = vmor %vm1976, %vm1977
  %v1979 = vsel %vm1978, %v1971, %v1975
  %v1980 = vand.u32 2147483647, %v1863
  %vm1981 = vcmp.eq.f32.partialorder %v1980, 8.507059e+37
  %v1982 = vand.u32 %v1863, 2147483648
  %v1983 = vor.u32 1.1754944e-38, %v1982
  %v1984 = vsel %vm1981, %v1983, %v1979
  %v1985 = vmul.f32 1.0, %v1984
  %v1986 = vrcp.pop %v1864
  %v1987 = vmul.f32 %v1864, %v1986
  %v1988 = vsub.f32 1.0, %v1987
  %v1989 = vmul.f32 %v1986, %v1988
  %v1990 = vadd.f32 %v1986, %v1989
  %vm1991 = vweird.f32 %v1864
  %vm1992 = vweird.f32 %v1986
  %vm1993 = vmor %vm1991, %vm1992
  %v1994 = vsel %vm1993, %v1986, %v1990
  %v1995 = vand.u32 2147483647, %v1864
  %vm1996 = vcmp.eq.f32.partialorder %v1995, 8.507059e+37
  %v1997 = vand.u32 %v1864, 2147483648
  %v1998 = vor.u32 1.1754944e-38, %v1997
  %v1999 = vsel %vm1996, %v1998, %v1994
  %v2000 = vmul.f32 1.0, %v1999
  %v2001 = vrcp.pop %v1865
  %v2002 = vmul.f32 %v1865, %v2001
  %v2003 = vsub.f32 1.0, %v2002
  %v2004 = vmul.f32 %v2001, %v2003
  %v2005 = vadd.f32 %v2001, %v2004
  %vm2006 = vweird.f32 %v1865
  %vm2007 = vweird.f32 %v2001
  %vm2008 = vmor %vm2006, %vm2007
  %v2009 = vsel %vm2008, %v2001, %v2005
  %v2010 = vand.u32 2147483647, %v1865
  %vm2011 = vcmp.eq.f32.partialorder %v2010, 8.507059e+37
  %v2012 = vand.u32 %v1865, 2147483648
  %v2013 = vor.u32 1.1754944e-38, %v2012
  %v2014 = vsel %vm2011, %v2013, %v2009
  %v2015 = vmul.f32 1.0, %v2014
  %v2016 = vrcp.pop %v1866
  %v2017 = vmul.f32 %v1866, %v2016
  %v2018 = vsub.f32 1.0, %v2017
  %v2019 = vmul.f32 %v2016, %v2018
  %v2020 = vadd.f32 %v2016, %v2019
  %vm2021 = vweird.f32 %v1866
  %vm2022 = vweird.f32 %v2016
  %vm2023 = vmor %vm2021, %vm2022
  %v2024 = vsel %vm2023, %v2016, %v2020
  %v2025 = vand.u32 2147483647, %v1866
  %vm2026 = vcmp.eq.f32.partialorder %v2025, 8.507059e+37
  %v2027 = vand.u32 %v1866, 2147483648
  %v2028 = vor.u32 1.1754944e-38, %v2027
  %v2029 = vsel %vm2026, %v2028, %v2024
  %v2030 = vmul.f32 1.0, %v2029
  %v2031 = vrcp.pop %v1867
  %v2032 = vmul.f32 %v1867, %v2031
  %v2033 = vsub.f32 1.0, %v2032
  %v2034 = vmul.f32 %v2031, %v2033
  %v2035 = vadd.f32 %v2031, %v2034
  %vm2036 = vweird.f32 %v1867
  %vm2037 = vweird.f32 %v2031
  %vm2038 = vmor %vm2036, %vm2037
  %v2039 = vsel %vm2038, %v2031, %v2035
  %v2040 = vand.u32 2147483647, %v1867
  %vm2041 = vcmp.eq.f32.partialorder %v2040, 8.507059e+37
  %v2042 = vand.u32 %v1867, 2147483648
  %v2043 = vor.u32 1.1754944e-38, %v2042
  %v2044 = vsel %vm2041, %v2043, %v2039
  %v2045 = vmul.f32 1.0, %v2044
  %v2046 = vrcp.pop %v1868
  %v2047 = vmul.f32 %v1868, %v2046
  %v2048 = vsub.f32 1.0, %v2047
  %v2049 = vmul.f32 %v2046, %v2048
  %v2050 = vadd.f32 %v2046, %v2049
  %vm2051 = vweird.f32 %v1868
  %vm2052 = vweird.f32 %v2046
  %vm2053 = vmor %vm2051, %vm2052
  %v2054 = vsel %vm2053, %v2046, %v2050
  %v2055 = vand.u32 2147483647, %v1868
  %vm2056 = vcmp.eq.f32.partialorder %v2055, 8.507059e+37
  %v2057 = vand.u32 %v1868, 2147483648
  %v2058 = vor.u32 1.1754944e-38, %v2057
  %v2059 = vsel %vm2056, %v2058, %v2054
  %v2060 = vmul.f32 1.0, %v2059
  %v2061 = vrcp.pop %v1869
  %v2062 = vmul.f32 %v1869, %v2061
  %v2063 = vsub.f32 1.0, %v2062
  %v2064 = vmul.f32 %v2061, %v2063
  %v2065 = vadd.f32 %v2061, %v2064
  %vm2066 = vweird.f32 %v1869
  %vm2067 = vweird.f32 %v2061
  %vm2068 = vmor %vm2066, %vm2067
  %v2069 = vsel %vm2068, %v2061, %v2065
  %v2070 = vand.u32 2147483647, %v1869
  %vm2071 = vcmp.eq.f32.partialorder %v2070, 8.507059e+37
  %v2072 = vand.u32 %v1869, 2147483648
  %v2073 = vor.u32 1.1754944e-38, %v2072
  %v2074 = vsel %vm2071, %v2073, %v2069
  %v2075 = vmul.f32 1.0, %v2074
  %v2076 = vrcp.pop %v1870
  %v2077 = vmul.f32 %v1870, %v2076
  %v2078 = vsub.f32 1.0, %v2077
  %v2079 = vmul.f32 %v2076, %v2078
  %v2080 = vadd.f32 %v2076, %v2079
  %vm2081 = vweird.f32 %v1870
  %vm2082 = vweird.f32 %v2076
  %vm2083 = vmor %vm2081, %vm2082
  %v2084 = vsel %vm2083, %v2076, %v2080
  %v2085 = vand.u32 2147483647, %v1870
  %vm2086 = vcmp.eq.f32.partialorder %v2085, 8.507059e+37
  %v2087 = vand.u32 %v1870, 2147483648
  %v2088 = vor.u32 1.1754944e-38, %v2087
  %v2089 = vsel %vm2086, %v2088, %v2084
  %v2090 = vmul.f32 1.0, %v2089
  %v2091 = vrcp.pop %v1871
  %v2092 = vmul.f32 %v1871, %v2091
  %v2093 = vsub.f32 1.0, %v2092
  %v2094 = vmul.f32 %v2091, %v2093
  %v2095 = vadd.f32 %v2091, %v2094
  %vm2096 = vweird.f32 %v1871
  %vm2097 = vweird.f32 %v2091
  %vm2098 = vmor %vm2096, %vm2097
  %v2099 = vsel %vm2098, %v2091, %v2095
  %v2100 = vand.u32 2147483647, %v1871
  %vm2101 = vcmp.eq.f32.partialorder %v2100, 8.507059e+37
  %v2102 = vand.u32 %v1871, 2147483648
  %v2103 = vor.u32 1.1754944e-38, %v2102
  %v2104 = vsel %vm2101, %v2103, %v2099
  %v2105 = vmul.f32 1.0, %v2104
  %v2106 = vrcp.pop %v1872
  %v2107 = vmul.f32 %v1872, %v2106
  %v2108 = vsub.f32 1.0, %v2107
  %v2109 = vmul.f32 %v2106, %v2108
  %v2110 = vadd.f32 %v2106, %v2109
  %vm2111 = vweird.f32 %v1872
  %vm2112 = vweird.f32 %v2106
  %vm2113 = vmor %vm2111, %vm2112
  %v2114 = vsel %vm2113, %v2106, %v2110
  %v2115 = vand.u32 2147483647, %v1872
  %vm2116 = vcmp.eq.f32.partialorder %v2115, 8.507059e+37
  %v2117 = vand.u32 %v1872, 2147483648
  %v2118 = vor.u32 1.1754944e-38, %v2117
  %v2119 = vsel %vm2116, %v2118, %v2114
  %v2120 = vmul.f32 1.0, %v2119
  %v2121 = vrcp.pop %v1873
  %v2122 = vmul.f32 %v1873, %v2121
  %v2123 = vsub.f32 1.0, %v2122
  %v2124 = vmul.f32 %v2121, %v2123
  %v2125 = vadd.f32 %v2121, %v2124
  %vm2126 = vweird.f32 %v1873
  %vm2127 = vweird.f32 %v2121
  %vm2128 = vmor %vm2126, %vm2127
  %v2129 = vsel %vm2128, %v2121, %v2125
  %v2130 = vand.u32 2147483647, %v1873
  %vm2131 = vcmp.eq.f32.partialorder %v2130, 8.507059e+37
  %v2132 = vand.u32 %v1873, 2147483648
  %v2133 = vor.u32 1.1754944e-38, %v2132
  %v2134 = vsel %vm2131, %v2133, %v2129
  %v2135 = vmul.f32 1.0, %v2134
  %v2136 = vrcp.pop %v1874
  %v2137 = vmul.f32 %v1874, %v2136
  %v2138 = vsub.f32 1.0, %v2137
  %v2139 = vmul.f32 %v2136, %v2138
  %v2140 = vadd.f32 %v2136, %v2139
  %vm2141 = vweird.f32 %v1874
  %vm2142 = vweird.f32 %v2136
  %vm2143 = vmor %vm2141, %vm2142
  %v2144 = vsel %vm2143, %v2136, %v2140
  %v2145 = vand.u32 2147483647, %v1874
  %vm2146 = vcmp.eq.f32.partialorder %v2145, 8.507059e+37
  %v2147 = vand.u32 %v1874, 2147483648
  %v2148 = vor.u32 1.1754944e-38, %v2147
  %v2149 = vsel %vm2146, %v2148, %v2144
  %v2150 = vmul.f32 1.0, %v2149
  %v2151 = vrcp.pop %v1875
  %v2152 = vmul.f32 %v1875, %v2151
  %v2153 = vsub.f32 1.0, %v2152
  %v2154 = vmul.f32 %v2151, %v2153
  %v2155 = vadd.f32 %v2151, %v2154
  %vm2156 = vweird.f32 %v1875
  %vm2157 = vweird.f32 %v2151
  %vm2158 = vmor %vm2156, %vm2157
  %v2159 = vsel %vm2158, %v2151, %v2155
  %v2160 = vand.u32 2147483647, %v1875
  %vm2161 = vcmp.eq.f32.partialorder %v2160, 8.507059e+37
  %v2162 = vand.u32 %v1875, 2147483648
  %v2163 = vor.u32 1.1754944e-38, %v2162
  %v2164 = vsel %vm2161, %v2163, %v2159
  %v2165 = vmul.f32 1.0, %v2164
  %v2166 = vrcp.pop %v1876
  %v2167 = vmul.f32 %v1876, %v2166
  %v2168 = vsub.f32 1.0, %v2167
  %v2169 = vmul.f32 %v2166, %v2168
  %v2170 = vadd.f32 %v2166, %v2169
  %vm2171 = vweird.f32 %v1876
  %vm2172 = vweird.f32 %v2166
  %vm2173 = vmor %vm2171, %vm2172
  %v2174 = vsel %vm2173, %v2166, %v2170
  %v2175 = vand.u32 2147483647, %v1876
  %vm2176 = vcmp.eq.f32.partialorder %v2175, 8.507059e+37
  %v2177 = vand.u32 %v1876, 2147483648
  %v2178 = vor.u32 1.1754944e-38, %v2177
  %v2179 = vsel %vm2176, %v2178, %v2174
  %v2180 = vmul.f32 1.0, %v2179
  %v2181 = vrcp.pop %v1877
  %v2182 = vmul.f32 %v1877, %v2181
  %v2183 = vsub.f32 1.0, %v2182
  %v2184 = vmul.f32 %v2181, %v2183
  %v2185 = vadd.f32 %v2181, %v2184
  %vm2186 = vweird.f32 %v1877
  %vm2187 = vweird.f32 %v2181
  %vm2188 = vmor %vm2186, %vm2187
  %v2189 = vsel %vm2188, %v2181, %v2185
  %v2190 = vand.u32 2147483647, %v1877
  %vm2191 = vcmp.eq.f32.partialorder %v2190, 8.507059e+37
  %v2192 = vand.u32 %v1877, 2147483648
  %v2193 = vor.u32 1.1754944e-38, %v2192
  %v2194 = vsel %vm2191, %v2193, %v2189
  %v2195 = vmul.f32 1.0, %v2194
  %v2196 = vrcp.pop %v1878
  %v2197 = vmul.f32 %v1878, %v2196
  %v2198 = vsub.f32 1.0, %v2197
  %v2199 = vmul.f32 %v2196, %v2198
  %v2200 = vadd.f32 %v2196, %v2199
  %vm2201 = vweird.f32 %v1878
  %vm2202 = vweird.f32 %v2196
  %vm2203 = vmor %vm2201, %vm2202
  %v2204 = vsel %vm2203, %v2196, %v2200
  %v2205 = vand.u32 2147483647, %v1878
  %vm2206 = vcmp.eq.f32.partialorder %v2205, 8.507059e+37
  %v2207 = vand.u32 %v1878, 2147483648
  %v2208 = vor.u32 1.1754944e-38, %v2207
  %v2209 = vsel %vm2206, %v2208, %v2204
  %v2210 = vmul.f32 1.0, %v2209
  %v2211 = vrcp.pop %v1879
  %v2212 = vmul.f32 %v1879, %v2211
  %v2213 = vsub.f32 1.0, %v2212
  %v2214 = vmul.f32 %v2211, %v2213
  %v2215 = vadd.f32 %v2211, %v2214
  %vm2216 = vweird.f32 %v1879
  %vm2217 = vweird.f32 %v2211
  %vm2218 = vmor %vm2216, %vm2217
  %v2219 = vsel %vm2218, %v2211, %v2215
  %v2220 = vand.u32 2147483647, %v1879
  %vm2221 = vcmp.eq.f32.partialorder %v2220, 8.507059e+37
  %v2222 = vand.u32 %v1879, 2147483648
  %v2223 = vor.u32 1.1754944e-38, %v2222
  %v2224 = vsel %vm2221, %v2223, %v2219
  %v2225 = vmul.f32 1.0, %v2224
  %v2226 = vrcp.pop %v1880
  %v2227 = vmul.f32 %v1880, %v2226
  %v2228 = vsub.f32 1.0, %v2227
  %v2229 = vmul.f32 %v2226, %v2228
  %v2230 = vadd.f32 %v2226, %v2229
  %vm2231 = vweird.f32 %v1880
  %vm2232 = vweird.f32 %v2226
  %vm2233 = vmor %vm2231, %vm2232
  %v2234 = vsel %vm2233, %v2226, %v2230
  %v2235 = vand.u32 2147483647, %v1880
  %vm2236 = vcmp.eq.f32.partialorder %v2235, 8.507059e+37
  %v2237 = vand.u32 %v1880, 2147483648
  %v2238 = vor.u32 1.1754944e-38, %v2237
  %v2239 = vsel %vm2236, %v2238, %v2234
  %v2240 = vmul.f32 1.0, %v2239
  %v2241 = vrcp.pop %v1881
  %v2242 = vmul.f32 %v1881, %v2241
  %v2243 = vsub.f32 1.0, %v2242
  %v2244 = vmul.f32 %v2241, %v2243
  %v2245 = vadd.f32 %v2241, %v2244
  %vm2246 = vweird.f32 %v1881
  %vm2247 = vweird.f32 %v2241
  %vm2248 = vmor %vm2246, %vm2247
  %v2249 = vsel %vm2248, %v2241, %v2245
  %v2250 = vand.u32 2147483647, %v1881
  %vm2251 = vcmp.eq.f32.partialorder %v2250, 8.507059e+37
  %v2252 = vand.u32 %v1881, 2147483648
  %v2253 = vor.u32 1.1754944e-38, %v2252
  %v2254 = vsel %vm2251, %v2253, %v2249
  %v2255 = vmul.f32 1.0, %v2254
  %v2256 = vrcp.pop %v1882
  %v2257 = vmul.f32 %v1882, %v2256
  %v2258 = vsub.f32 1.0, %v2257
  %v2259 = vmul.f32 %v2256, %v2258
  %v2260 = vadd.f32 %v2256, %v2259
  %vm2261 = vweird.f32 %v1882
  %vm2262 = vweird.f32 %v2256
  %vm2263 = vmor %vm2261, %vm2262
  %v2264 = vsel %vm2263, %v2256, %v2260
  %v2265 = vand.u32 2147483647, %v1882
  %vm2266 = vcmp.eq.f32.partialorder %v2265, 8.507059e+37
  %v2267 = vand.u32 %v1882, 2147483648
  %v2268 = vor.u32 1.1754944e-38, %v2267
  %v2269 = vsel %vm2266, %v2268, %v2264
  %v2270 = vmul.f32 1.0, %v2269
  %v2271 = vrcp.pop %v1883
  %v2272 = vmul.f32 %v1883, %v2271
  %v2273 = vsub.f32 1.0, %v2272
  %v2274 = vmul.f32 %v2271, %v2273
  %v2275 = vadd.f32 %v2271, %v2274
  %vm2276 = vweird.f32 %v1883
  %vm2277 = vweird.f32 %v2271
  %vm2278 = vmor %vm2276, %vm2277
  %v2279 = vsel %vm2278, %v2271, %v2275
  %v2280 = vand.u32 2147483647, %v1883
  %vm2281 = vcmp.eq.f32.partialorder %v2280, 8.507059e+37
  %v2282 = vand.u32 %v1883, 2147483648
  %v2283 = vor.u32 1.1754944e-38, %v2282
  %v2284 = vsel %vm2281, %v2283, %v2279
  %v2285 = vmul.f32 1.0, %v2284
  %v2286 = vrcp.pop %v1884
  %v2287 = vmul.f32 %v1884, %v2286
  %v2288 = vsub.f32 1.0, %v2287
  %v2289 = vmul.f32 %v2286, %v2288
  %v2290 = vadd.f32 %v2286, %v2289
  %vm2291 = vweird.f32 %v1884
  %vm2292 = vweird.f32 %v2286
  %vm2293 = vmor %vm2291, %vm2292
  %v2294 = vsel %vm2293, %v2286, %v2290
  %v2295 = vand.u32 2147483647, %v1884
  %vm2296 = vcmp.eq.f32.partialorder %v2295, 8.507059e+37
  %v2297 = vand.u32 %v1884, 2147483648
  %v2298 = vor.u32 1.1754944e-38, %v2297
  %v2299 = vsel %vm2296, %v2298, %v2294
  %v2300 = vmul.f32 1.0, %v2299
  %v2301 = vrcp.pop %v1885
  %v2302 = vmul.f32 %v1885, %v2301
  %v2303 = vsub.f32 1.0, %v2302
  %v2304 = vmul.f32 %v2301, %v2303
  %v2305 = vadd.f32 %v2301, %v2304
  %vm2306 = vweird.f32 %v1885
  %vm2307 = vweird.f32 %v2301
  %vm2308 = vmor %vm2306, %vm2307
  %v2309 = vsel %vm2308, %v2301, %v2305
  %v2310 = vand.u32 2147483647, %v1885
  %vm2311 = vcmp.eq.f32.partialorder %v2310, 8.507059e+37
  %v2312 = vand.u32 %v1885, 2147483648
  %v2313 = vor.u32 1.1754944e-38, %v2312
  %v2314 = vsel %vm2311, %v2313, %v2309
  %v2315 = vmul.f32 1.0, %v2314
  %v2316 = vrcp.pop %v1886
  %v2317 = vmul.f32 %v1886, %v2316
  %v2318 = vsub.f32 1.0, %v2317
  %v2319 = vmul.f32 %v2316, %v2318
  %v2320 = vadd.f32 %v2316, %v2319
  %vm2321 = vweird.f32 %v1886
  %vm2322 = vweird.f32 %v2316
  %vm2323 = vmor %vm2321, %vm2322
  %v2324 = vsel %vm2323, %v2316, %v2320
  %v2325 = vand.u32 2147483647, %v1886
  %vm2326 = vcmp.eq.f32.partialorder %v2325, 8.507059e+37
  %v2327 = vand.u32 %v1886, 2147483648
  %v2328 = vor.u32 1.1754944e-38, %v2327
  %v2329 = vsel %vm2326, %v2328, %v2324
  %v2330 = vmul.f32 1.0, %v2329
  %v2331 = vrcp.pop %v1887
  %v2332 = vmul.f32 %v1887, %v2331
  %v2333 = vsub.f32 1.0, %v2332
  %v2334 = vmul.f32 %v2331, %v2333
  %v2335 = vadd.f32 %v2331, %v2334
  %vm2336 = vweird.f32 %v1887
  %vm2337 = vweird.f32 %v2331
  %vm2338 = vmor %vm2336, %vm2337
  %v2339 = vsel %vm2338, %v2331, %v2335
  %v2340 = vand.u32 2147483647, %v1887
  %vm2341 = vcmp.eq.f32.partialorder %v2340, 8.507059e+37
  %v2342 = vand.u32 %v1887, 2147483648
  %v2343 = vor.u32 1.1754944e-38, %v2342
  %v2344 = vsel %vm2341, %v2343, %v2339
  %v2345 = vmul.f32 1.0, %v2344
  %v2346 = vrcp.pop %v1888
  %v2347 = vmul.f32 %v1888, %v2346
  %v2348 = vsub.f32 1.0, %v2347
  %v2349 = vmul.f32 %v2346, %v2348
  %v2350 = vadd.f32 %v2346, %v2349
  %vm2351 = vweird.f32 %v1888
  %vm2352 = vweird.f32 %v2346
  %vm2353 = vmor %vm2351, %vm2352
  %v2354 = vsel %vm2353, %v2346, %v2350
  %v2355 = vand.u32 2147483647, %v1888
  %vm2356 = vcmp.eq.f32.partialorder %v2355, 8.507059e+37
  %v2357 = vand.u32 %v1888, 2147483648
  %v2358 = vor.u32 1.1754944e-38, %v2357
  %v2359 = vsel %vm2356, %v2358, %v2354
  %v2360 = vmul.f32 1.0, %v2359
  %v2361 = vrcp.pop %v1889
  %v2362 = vmul.f32 %v1889, %v2361
  %v2363 = vsub.f32 1.0, %v2362
  %v2364 = vmul.f32 %v2361, %v2363
  %v2365 = vadd.f32 %v2361, %v2364
  %vm2366 = vweird.f32 %v1889
  %vm2367 = vweird.f32 %v2361
  %vm2368 = vmor %vm2366, %vm2367
  %v2369 = vsel %vm2368, %v2361, %v2365
  %v2370 = vand.u32 2147483647, %v1889
  %vm2371 = vcmp.eq.f32.partialorder %v2370, 8.507059e+37
  %v2372 = vand.u32 %v1889, 2147483648
  %v2373 = vor.u32 1.1754944e-38, %v2372
  %v2374 = vsel %vm2371, %v2373, %v2369
  %v2375 = vmul.f32 1.0, %v2374
  %v2376 = vrcp.pop %v1890
  %v2377 = vmul.f32 %v1890, %v2376
  %v2378 = vsub.f32 1.0, %v2377
  %v2379 = vmul.f32 %v2376, %v2378
  %v2380 = vadd.f32 %v2376, %v2379
  %vm2381 = vweird.f32 %v1890
  %vm2382 = vweird.f32 %v2376
  %vm2383 = vmor %vm2381, %vm2382
  %v2384 = vsel %vm2383, %v2376, %v2380
  %v2385 = vand.u32 2147483647, %v1890
  %vm2386 = vcmp.eq.f32.partialorder %v2385, 8.507059e+37
  %v2387 = vand.u32 %v1890, 2147483648
  %v2388 = vor.u32 1.1754944e-38, %v2387
  %v2389 = vsel %vm2386, %v2388, %v2384
  %v2390 = vmul.f32 1.0, %v2389
  %v2391 = vrcp.pop %v1891
  %v2392 = vmul.f32 %v1891, %v2391
  %v2393 = vsub.f32 1.0, %v2392
  %v2394 = vmul.f32 %v2391, %v2393
  %v2395 = vadd.f32 %v2391, %v2394
  %vm2396 = vweird.f32 %v1891
  %vm2397 = vweird.f32 %v2391
  %vm2398 = vmor %vm2396, %vm2397
  %v2399 = vsel %vm2398, %v2391, %v2395
  %v2400 = vand.u32 2147483647, %v1891
  %vm2401 = vcmp.eq.f32.partialorder %v2400, 8.507059e+37
  %v2402 = vand.u32 %v1891, 2147483648
  %v2403 = vor.u32 1.1754944e-38, %v2402
  %v2404 = vsel %vm2401, %v2403, %v2399
  %v2405 = vmul.f32 1.0, %v2404
  %v2406 = vrcp.pop %v1892
  %v2407 = vmul.f32 %v1892, %v2406
  %v2408 = vsub.f32 1.0, %v2407
  %v2409 = vmul.f32 %v2406, %v2408
  %v2410 = vadd.f32 %v2406, %v2409
  %vm2411 = vweird.f32 %v1892
  %vm2412 = vweird.f32 %v2406
  %vm2413 = vmor %vm2411, %vm2412
  %v2414 = vsel %vm2413, %v2406, %v2410
  %v2415 = vand.u32 2147483647, %v1892
  %vm2416 = vcmp.eq.f32.partialorder %v2415, 8.507059e+37
  %v2417 = vand.u32 %v1892, 2147483648
  %v2418 = vor.u32 1.1754944e-38, %v2417
  %v2419 = vsel %vm2416, %v2418, %v2414
  %v2420 = vmul.f32 1.0, %v2419
  %v2421 = vrcp.pop %v1893
  %v2422 = vmul.f32 %v1893, %v2421
  %v2423 = vsub.f32 1.0, %v2422
  %v2424 = vmul.f32 %v2421, %v2423
  %v2425 = vadd.f32 %v2421, %v2424
  %vm2426 = vweird.f32 %v1893
  %vm2427 = vweird.f32 %v2421
  %vm2428 = vmor %vm2426, %vm2427
  %v2429 = vsel %vm2428, %v2421, %v2425
  %v2430 = vand.u32 2147483647, %v1893
  %vm2431 = vcmp.eq.f32.partialorder %v2430, 8.507059e+37
  %v2432 = vand.u32 %v1893, 2147483648
  %v2433 = vor.u32 1.1754944e-38, %v2432
  %v2434 = vsel %vm2431, %v2433, %v2429
  %v2435 = vmul.f32 1.0, %v2434
  %v2436 = vrcp.pop %v1894
  %v2437 = vmul.f32 %v1894, %v2436
  %v2438 = vsub.f32 1.0, %v2437
  %v2439 = vmul.f32 %v2436, %v2438
  %v2440 = vadd.f32 %v2436, %v2439
  %vm2441 = vweird.f32 %v1894
  %vm2442 = vweird.f32 %v2436
  %vm2443 = vmor %vm2441, %vm2442
  %v2444 = vsel %vm2443, %v2436, %v2440
  %v2445 = vand.u32 2147483647, %v1894
  %vm2446 = vcmp.eq.f32.partialorder %v2445, 8.507059e+37
  %v2447 = vand.u32 %v1894, 2147483648
  %v2448 = vor.u32 1.1754944e-38, %v2447
  %v2449 = vsel %vm2446, %v2448, %v2444
  %v2450 = vmul.f32 1.0, %v2449
  %v2451 = vrcp.pop %v1895
  %v2452 = vmul.f32 %v1895, %v2451
  %v2453 = vsub.f32 1.0, %v2452
  %v2454 = vmul.f32 %v2451, %v2453
  %v2455 = vadd.f32 %v2451, %v2454
  %vm2456 = vweird.f32 %v1895
  %vm2457 = vweird.f32 %v2451
  %vm2458 = vmor %vm2456, %vm2457
  %v2459 = vsel %vm2458, %v2451, %v2455
  %v2460 = vand.u32 2147483647, %v1895
  %vm2461 = vcmp.eq.f32.partialorder %v2460, 8.507059e+37
  %v2462 = vand.u32 %v1895, 2147483648
  %v2463 = vor.u32 1.1754944e-38, %v2462
  %v2464 = vsel %vm2461, %v2463, %v2459
  %v2465 = vmul.f32 1.0, %v2464
  %v2466 = vrcp.pop %v1896
  %v2467 = vmul.f32 %v1896, %v2466
  %v2468 = vsub.f32 1.0, %v2467
  %v2469 = vmul.f32 %v2466, %v2468
  %v2470 = vadd.f32 %v2466, %v2469
  %vm2471 = vweird.f32 %v1896
  %vm2472 = vweird.f32 %v2466
  %vm2473 = vmor %vm2471, %vm2472
  %v2474 = vsel %vm2473, %v2466, %v2470
  %v2475 = vand.u32 2147483647, %v1896
  %vm2476 = vcmp.eq.f32.partialorder %v2475, 8.507059e+37
  %v2477 = vand.u32 %v1896, 2147483648
  %v2478 = vor.u32 1.1754944e-38, %v2477
  %v2479 = vsel %vm2476, %v2478, %v2474
  %v2480 = vmul.f32 1.0, %v2479
  %v2481 = vrcp.pop %v1897
  %v2482 = vmul.f32 %v1897, %v2481
  %v2483 = vsub.f32 1.0, %v2482
  %v2484 = vmul.f32 %v2481, %v2483
  %v2485 = vadd.f32 %v2481, %v2484
  %vm2486 = vweird.f32 %v1897
  %vm2487 = vweird.f32 %v2481
  %vm2488 = vmor %vm2486, %vm2487
  %v2489 = vsel %vm2488, %v2481, %v2485
  %v2490 = vand.u32 2147483647, %v1897
  %vm2491 = vcmp.eq.f32.partialorder %v2490, 8.507059e+37
  %v2492 = vand.u32 %v1897, 2147483648
  %v2493 = vor.u32 1.1754944e-38, %v2492
  %v2494 = vsel %vm2491, %v2493, %v2489
  %v2495 = vmul.f32 1.0, %v2494
  %v2496 = vrcp.pop %v1898
  %v2497 = vmul.f32 %v1898, %v2496
  %v2498 = vsub.f32 1.0, %v2497
  %v2499 = vmul.f32 %v2496, %v2498
  %v2500 = vadd.f32 %v2496, %v2499
  %vm2501 = vweird.f32 %v1898
  %vm2502 = vweird.f32 %v2496
  %vm2503 = vmor %vm2501, %vm2502
  %v2504 = vsel %vm2503, %v2496, %v2500
  %v2505 = vand.u32 2147483647, %v1898
  %vm2506 = vcmp.eq.f32.partialorder %v2505, 8.507059e+37
  %v2507 = vand.u32 %v1898, 2147483648
  %v2508 = vor.u32 1.1754944e-38, %v2507
  %v2509 = vsel %vm2506, %v2508, %v2504
  %v2510 = vmul.f32 1.0, %v2509
  %v2511 = vrcp.pop %v1899
  %v2512 = vmul.f32 %v1899, %v2511
  %v2513 = vsub.f32 1.0, %v2512
  %v2514 = vmul.f32 %v2511, %v2513
  %v2515 = vadd.f32 %v2511, %v2514
  %vm2516 = vweird.f32 %v1899
  %vm2517 = vweird.f32 %v2511
  %vm2518 = vmor %vm2516, %vm2517
  %v2519 = vsel %vm2518, %v2511, %v2515
  %v2520 = vand.u32 2147483647, %v1899
  %vm2521 = vcmp.eq.f32.partialorder %v2520, 8.507059e+37
  %v2522 = vand.u32 %v1899, 2147483648
  %v2523 = vor.u32 1.1754944e-38, %v2522
  %v2524 = vsel %vm2521, %v2523, %v2519
  %v2525 = vmul.f32 1.0, %v2524
  %v2526 = vrcp.pop %v1900
  %v2527 = vmul.f32 %v1900, %v2526
  %v2528 = vsub.f32 1.0, %v2527
  %v2529 = vmul.f32 %v2526, %v2528
  %v2530 = vadd.f32 %v2526, %v2529
  %vm2531 = vweird.f32 %v1900
  %vm2532 = vweird.f32 %v2526
  %vm2533 = vmor %vm2531, %vm2532
  %v2534 = vsel %vm2533, %v2526, %v2530
  %v2535 = vand.u32 2147483647, %v1900
  %vm2536 = vcmp.eq.f32.partialorder %v2535, 8.507059e+37
  %v2537 = vand.u32 %v1900, 2147483648
  %v2538 = vor.u32 1.1754944e-38, %v2537
  %v2539 = vsel %vm2536, %v2538, %v2534
  %v2540 = vmul.f32 1.0, %v2539
  %v2541 = vrcp.pop %v1901
  %v2542 = vmul.f32 %v1901, %v2541
  %v2543 = vsub.f32 1.0, %v2542
  %v2544 = vmul.f32 %v2541, %v2543
  %v2545 = vadd.f32 %v2541, %v2544
  %vm2546 = vweird.f32 %v1901
  %vm2547 = vweird.f32 %v2541
  %vm2548 = vmor %vm2546, %vm2547
  %v2549 = vsel %vm2548, %v2541, %v2545
  %v2550 = vand.u32 2147483647, %v1901
  %vm2551 = vcmp.eq.f32.partialorder %v2550, 8.507059e+37
  %v2552 = vand.u32 %v1901, 2147483648
  %v2553 = vor.u32 1.1754944e-38, %v2552
  %v2554 = vsel %vm2551, %v2553, %v2549
  %v2555 = vmul.f32 1.0, %v2554
  %v2556 = vrcp.pop %v1902
  %v2557 = vmul.f32 %v1902, %v2556
  %v2558 = vsub.f32 1.0, %v2557
  %v2559 = vmul.f32 %v2556, %v2558
  %v2560 = vadd.f32 %v2556, %v2559
  %vm2561 = vweird.f32 %v1902
  %vm2562 = vweird.f32 %v2556
  %vm2563 = vmor %vm2561, %vm2562
  %v2564 = vsel %vm2563, %v2556, %v2560
  %v2565 = vand.u32 2147483647, %v1902
  %vm2566 = vcmp.eq.f32.partialorder %v2565, 8.507059e+37
  %v2567 = vand.u32 %v1902, 2147483648
  %v2568 = vor.u32 1.1754944e-38, %v2567
  %v2569 = vsel %vm2566, %v2568, %v2564
  %v2570 = vmul.f32 1.0, %v2569
  %v2571 = vrcp.pop %v1903
  %v2572 = vmul.f32 %v1903, %v2571
  %v2573 = vsub.f32 1.0, %v2572
  %v2574 = vmul.f32 %v2571, %v2573
  %v2575 = vadd.f32 %v2571, %v2574
  %vm2576 = vweird.f32 %v1903
  %vm2577 = vweird.f32 %v2571
  %vm2578 = vmor %vm2576, %vm2577
  %v2579 = vsel %vm2578, %v2571, %v2575
  %v2580 = vand.u32 2147483647, %v1903
  %vm2581 = vcmp.eq.f32.partialorder %v2580, 8.507059e+37
  %v2582 = vand.u32 %v1903, 2147483648
  %v2583 = vor.u32 1.1754944e-38, %v2582
  %v2584 = vsel %vm2581, %v2583, %v2579
  %v2585 = vmul.f32 1.0, %v2584
  %v2586 = vrcp.pop %v1904
  %v2587 = vmul.f32 %v1904, %v2586
  %v2588 = vsub.f32 1.0, %v2587
  %v2589 = vmul.f32 %v2586, %v2588
  %v2590 = vadd.f32 %v2586, %v2589
  %vm2591 = vweird.f32 %v1904
  %vm2592 = vweird.f32 %v2586
  %vm2593 = vmor %vm2591, %vm2592
  %v2594 = vsel %vm2593, %v2586, %v2590
  %v2595 = vand.u32 2147483647, %v1904
  %vm2596 = vcmp.eq.f32.partialorder %v2595, 8.507059e+37
  %v2597 = vand.u32 %v1904, 2147483648
  %v2598 = vor.u32 1.1754944e-38, %v2597
  %v2599 = vsel %vm2596, %v2598, %v2594
  %v2600 = vmul.f32 1.0, %v2599
  %v2601 = vrcp.pop %v1905
  %v2602 = vmul.f32 %v1905, %v2601
  %v2603 = vsub.f32 1.0, %v2602
  %v2604 = vmul.f32 %v2601, %v2603
  %v2605 = vadd.f32 %v2601, %v2604
  %vm2606 = vweird.f32 %v1905
  %vm2607 = vweird.f32 %v2601
  %vm2608 = vmor %vm2606, %vm2607
  %v2609 = vsel %vm2608, %v2601, %v2605
  %v2610 = vand.u32 2147483647, %v1905
  %vm2611 = vcmp.eq.f32.partialorder %v2610, 8.507059e+37
  %v2612 = vand.u32 %v1905, 2147483648
  %v2613 = vor.u32 1.1754944e-38, %v2612
  %v2614 = vsel %vm2611, %v2613, %v2609
  %v2615 = vmul.f32 1.0, %v2614
  %v2616 = vrcp.pop %v1906
  %v2617 = vmul.f32 %v1906, %v2616
  %v2618 = vsub.f32 1.0, %v2617
  %v2619 = vmul.f32 %v2616, %v2618
  %v2620 = vadd.f32 %v2616, %v2619
  %vm2621 = vweird.f32 %v1906
  %vm2622 = vweird.f32 %v2616
  %vm2623 = vmor %vm2621, %vm2622
  %v2624 = vsel %vm2623, %v2616, %v2620
  %v2625 = vand.u32 2147483647, %v1906
  %vm2626 = vcmp.eq.f32.partialorder %v2625, 8.507059e+37
  %v2627 = vand.u32 %v1906, 2147483648
  %v2628 = vor.u32 1.1754944e-38, %v2627
  %v2629 = vsel %vm2626, %v2628, %v2624
  %v2630 = vmul.f32 1.0, %v2629
  %v2631 = vrcp.pop %v1907
  %v2632 = vmul.f32 %v1907, %v2631
  %v2633 = vsub.f32 1.0, %v2632
  %v2634 = vmul.f32 %v2631, %v2633
  %v2635 = vadd.f32 %v2631, %v2634
  %vm2636 = vweird.f32 %v1907
  %vm2637 = vweird.f32 %v2631
  %vm2638 = vmor %vm2636, %vm2637
  %v2639 = vsel %vm2638, %v2631, %v2635
  %v2640 = vand.u32 2147483647, %v1907
  %vm2641 = vcmp.eq.f32.partialorder %v2640, 8.507059e+37
  %v2642 = vand.u32 %v1907, 2147483648
  %v2643 = vor.u32 1.1754944e-38, %v2642
  %v2644 = vsel %vm2641, %v2643, %v2639
  %v2645 = vmul.f32 1.0, %v2644
  %v2646 = vrcp.pop %v1908
  %v2647 = vmul.f32 %v1908, %v2646
  %v2648 = vsub.f32 1.0, %v2647
  %v2649 = vmul.f32 %v2646, %v2648
  %v2650 = vadd.f32 %v2646, %v2649
  %vm2651 = vweird.f32 %v1908
  %vm2652 = vweird.f32 %v2646
  %vm2653 = vmor %vm2651, %vm2652
  %v2654 = vsel %vm2653, %v2646, %v2650
  %v2655 = vand.u32 2147483647, %v1908
  %vm2656 = vcmp.eq.f32.partialorder %v2655, 8.507059e+37
  %v2657 = vand.u32 %v1908, 2147483648
  %v2658 = vor.u32 1.1754944e-38, %v2657
  %v2659 = vsel %vm2656, %v2658, %v2654
  %v2660 = vmul.f32 1.0, %v2659
  %v2661 = vrcp.pop %v1909
  %v2662 = vmul.f32 %v1909, %v2661
  %v2663 = vsub.f32 1.0, %v2662
  %v2664 = vmul.f32 %v2661, %v2663
  %v2665 = vadd.f32 %v2661, %v2664
  %vm2666 = vweird.f32 %v1909
  %vm2667 = vweird.f32 %v2661
  %vm2668 = vmor %vm2666, %vm2667
  %v2669 = vsel %vm2668, %v2661, %v2665
  %v2670 = vand.u32 2147483647, %v1909
  %vm2671 = vcmp.eq.f32.partialorder %v2670, 8.507059e+37
  %v2672 = vand.u32 %v1909, 2147483648
  %v2673 = vor.u32 1.1754944e-38, %v2672
  %v2674 = vsel %vm2671, %v2673, %v2669
  %v2675 = vmul.f32 1.0, %v2674
  %v2676 = vrcp.pop %v1910
  %v2677 = vmul.f32 %v1910, %v2676
  %v2678 = vsub.f32 1.0, %v2677
  %v2679 = vmul.f32 %v2676, %v2678
  %v2680 = vadd.f32 %v2676, %v2679
  %vm2681 = vweird.f32 %v1910
  %vm2682 = vweird.f32 %v2676
  %vm2683 = vmor %vm2681, %vm2682
  %v2684 = vsel %vm2683, %v2676, %v2680
  %v2685 = vand.u32 2147483647, %v1910
  %vm2686 = vcmp.eq.f32.partialorder %v2685, 8.507059e+37
  %v2687 = vand.u32 %v1910, 2147483648
  %v2688 = vor.u32 1.1754944e-38, %v2687
  %v2689 = vsel %vm2686, %v2688, %v2684
  %v2690 = vmul.f32 1.0, %v2689
  %v2691 = vrcp.pop %v1911
  %v2692 = vmul.f32 %v1911, %v2691
  %v2693 = vsub.f32 1.0, %v2692
  %v2694 = vmul.f32 %v2691, %v2693
  %v2695 = vadd.f32 %v2691, %v2694
  %vm2696 = vweird.f32 %v1911
  %vm2697 = vweird.f32 %v2691
  %vm2698 = vmor %vm2696, %vm2697
  %v2699 = vsel %vm2698, %v2691, %v2695
  %v2700 = vand.u32 2147483647, %v1911
  %vm2701 = vcmp.eq.f32.partialorder %v2700, 8.507059e+37
  %v2702 = vand.u32 %v1911, 2147483648
  %v2703 = vor.u32 1.1754944e-38, %v2702
  %v2704 = vsel %vm2701, %v2703, %v2699
  %v2705 = vmul.f32 1.0, %v2704
  %v2706 = vrcp.pop %v1912
  %v2707 = vmul.f32 %v1912, %v2706
  %v2708 = vsub.f32 1.0, %v2707
  %v2709 = vmul.f32 %v2706, %v2708
  %v2710 = vadd.f32 %v2706, %v2709
  %vm2711 = vweird.f32 %v1912
  %vm2712 = vweird.f32 %v2706
  %vm2713 = vmor %vm2711, %vm2712
  %v2714 = vsel %vm2713, %v2706, %v2710
  %v2715 = vand.u32 2147483647, %v1912
  %vm2716 = vcmp.eq.f32.partialorder %v2715, 8.507059e+37
  %v2717 = vand.u32 %v1912, 2147483648
  %v2718 = vor.u32 1.1754944e-38, %v2717
  %v2719 = vsel %vm2716, %v2718, %v2714
  %v2720 = vmul.f32 1.0, %v2719
  %v2721 = vrcp.pop %v1913
  %v2722 = vmul.f32 %v1913, %v2721
  %v2723 = vsub.f32 1.0, %v2722
  %v2724 = vmul.f32 %v2721, %v2723
  %v2725 = vadd.f32 %v2721, %v2724
  %vm2726 = vweird.f32 %v1913
  %vm2727 = vweird.f32 %v2721
  %vm2728 = vmor %vm2726, %vm2727
  %v2729 = vsel %vm2728, %v2721, %v2725
  %v2730 = vand.u32 2147483647, %v1913
  %vm2731 = vcmp.eq.f32.partialorder %v2730, 8.507059e+37
  %v2732 = vand.u32 %v1913, 2147483648
  %v2733 = vor.u32 1.1754944e-38, %v2732
  %v2734 = vsel %vm2731, %v2733, %v2729
  %v2735 = vmul.f32 1.0, %v2734
  %v2736 = vrcp.pop %v1914
  %v2737 = vmul.f32 %v1914, %v2736
  %v2738 = vsub.f32 1.0, %v2737
  %v2739 = vmul.f32 %v2736, %v2738
  %v2740 = vadd.f32 %v2736, %v2739
  %vm2741 = vweird.f32 %v1914
  %vm2742 = vweird.f32 %v2736
  %vm2743 = vmor %vm2741, %vm2742
  %v2744 = vsel %vm2743, %v2736, %v2740
  %v2745 = vand.u32 2147483647, %v1914
  %vm2746 = vcmp.eq.f32.partialorder %v2745, 8.507059e+37
  %v2747 = vand.u32 %v1914, 2147483648
  %v2748 = vor.u32 1.1754944e-38, %v2747
  %v2749 = vsel %vm2746, %v2748, %v2744
  %v2750 = vmul.f32 1.0, %v2749
  %v2751 = vrcp.pop %v1915
  %v2752 = vmul.f32 %v1915, %v2751
  %v2753 = vsub.f32 1.0, %v2752
  %v2754 = vmul.f32 %v2751, %v2753
  %v2755 = vadd.f32 %v2751, %v2754
  %vm2756 = vweird.f32 %v1915
  %vm2757 = vweird.f32 %v2751
  %vm2758 = vmor %vm2756, %vm2757
  %v2759 = vsel %vm2758, %v2751, %v2755
  %v2760 = vand.u32 2147483647, %v1915
  %vm2761 = vcmp.eq.f32.partialorder %v2760, 8.507059e+37
  %v2762 = vand.u32 %v1915, 2147483648
  %v2763 = vor.u32 1.1754944e-38, %v2762
  %v2764 = vsel %vm2761, %v2763, %v2759
  %v2765 = vmul.f32 1.0, %v2764
  %v2766 = vrcp.pop %v1916
  %v2767 = vmul.f32 %v1916, %v2766
  %v2768 = vsub.f32 1.0, %v2767
  %v2769 = vmul.f32 %v2766, %v2768
  %v2770 = vadd.f32 %v2766, %v2769
  %vm2771 = vweird.f32 %v1916
  %vm2772 = vweird.f32 %v2766
  %vm2773 = vmor %vm2771, %vm2772
  %v2774 = vsel %vm2773, %v2766, %v2770
  %v2775 = vand.u32 2147483647, %v1916
  %vm2776 = vcmp.eq.f32.partialorder %v2775, 8.507059e+37
  %v2777 = vand.u32 %v1916, 2147483648
  %v2778 = vor.u32 1.1754944e-38, %v2777
  %v2779 = vsel %vm2776, %v2778, %v2774
  %v2780 = vmul.f32 1.0, %v2779
  %v2781 = vrcp.pop %v1917
  %v2782 = vmul.f32 %v1917, %v2781
  %v2783 = vsub.f32 1.0, %v2782
  %v2784 = vmul.f32 %v2781, %v2783
  %v2785 = vadd.f32 %v2781, %v2784
  %vm2786 = vweird.f32 %v1917
  %vm2787 = vweird.f32 %v2781
  %vm2788 = vmor %vm2786, %vm2787
  %v2789 = vsel %vm2788, %v2781, %v2785
  %v2790 = vand.u32 2147483647, %v1917
  %vm2791 = vcmp.eq.f32.partialorder %v2790, 8.507059e+37
  %v2792 = vand.u32 %v1917, 2147483648
  %v2793 = vor.u32 1.1754944e-38, %v2792
  %v2794 = vsel %vm2791, %v2793, %v2789
  %v2795 = vmul.f32 1.0, %v2794
  %v2796 = vrcp.pop %v1918
  %v2797 = vmul.f32 %v1918, %v2796
  %v2798 = vsub.f32 1.0, %v2797
  %v2799 = vmul.f32 %v2796, %v2798
  %v2800 = vadd.f32 %v2796, %v2799
  %vm2801 = vweird.f32 %v1918
  %vm2802 = vweird.f32 %v2796
  %vm2803 = vmor %vm2801, %vm2802
  %v2804 = vsel %vm2803, %v2796, %v2800
  %v2805 = vand.u32 2147483647, %v1918
  %vm2806 = vcmp.eq.f32.partialorder %v2805, 8.507059e+37
  %v2807 = vand.u32 %v1918, 2147483648
  %v2808 = vor.u32 1.1754944e-38, %v2807
  %v2809 = vsel %vm2806, %v2808, %v2804
  %v2810 = vmul.f32 1.0, %v2809
  %v2811 = vrcp.pop %v1919
  %v2812 = vmul.f32 %v1919, %v2811
  %v2813 = vsub.f32 1.0, %v2812
  %v2814 = vmul.f32 %v2811, %v2813
  %v2815 = vadd.f32 %v2811, %v2814
  %vm2816 = vweird.f32 %v1919
  %vm2817 = vweird.f32 %v2811
  %vm2818 = vmor %vm2816, %vm2817
  %v2819 = vsel %vm2818, %v2811, %v2815
  %v2820 = vand.u32 2147483647, %v1919
  %vm2821 = vcmp.eq.f32.partialorder %v2820, 8.507059e+37
  %v2822 = vand.u32 %v1919, 2147483648
  %v2823 = vor.u32 1.1754944e-38, %v2822
  %v2824 = vsel %vm2821, %v2823, %v2819
  %v2825 = vmul.f32 1.0, %v2824
  %v2826 = vrcp.pop %v1920
  %v2827 = vmul.f32 %v1920, %v2826
  %v2828 = vsub.f32 1.0, %v2827
  %v2829 = vmul.f32 %v2826, %v2828
  %v2830 = vadd.f32 %v2826, %v2829
  %vm2831 = vweird.f32 %v1920
  %vm2832 = vweird.f32 %v2826
  %vm2833 = vmor %vm2831, %vm2832
  %v2834 = vsel %vm2833, %v2826, %v2830
  %v2835 = vand.u32 2147483647, %v1920
  %vm2836 = vcmp.eq.f32.partialorder %v2835, 8.507059e+37
  %v2837 = vand.u32 %v1920, 2147483648
  %v2838 = vor.u32 1.1754944e-38, %v2837
  %v2839 = vsel %vm2836, %v2838, %v2834
  %v2840 = vmul.f32 1.0, %v2839
  %v2841 = vrcp.pop %v1921
  %v2842 = vmul.f32 %v1921, %v2841
  %v2843 = vsub.f32 1.0, %v2842
  %v2844 = vmul.f32 %v2841, %v2843
  %v2845 = vadd.f32 %v2841, %v2844
  %vm2846 = vweird.f32 %v1921
  %vm2847 = vweird.f32 %v2841
  %vm2848 = vmor %vm2846, %vm2847
  %v2849 = vsel %vm2848, %v2841, %v2845
  %v2850 = vand.u32 2147483647, %v1921
  %vm2851 = vcmp.eq.f32.partialorder %v2850, 8.507059e+37
  %v2852 = vand.u32 %v1921, 2147483648
  %v2853 = vor.u32 1.1754944e-38, %v2852
  %v2854 = vsel %vm2851, %v2853, %v2849
  %v2855 = vmul.f32 1.0, %v2854
  %v2856 = vrcp.pop %v1922
  %v2857 = vmul.f32 %v1922, %v2856
  %v2858 = vsub.f32 1.0, %v2857
  %v2859 = vmul.f32 %v2856, %v2858
  %v2860 = vadd.f32 %v2856, %v2859
  %vm2861 = vweird.f32 %v1922
  %vm2862 = vweird.f32 %v2856
  %vm2863 = vmor %vm2861, %vm2862
  %v2864 = vsel %vm2863, %v2856, %v2860
  %v2865 = vand.u32 2147483647, %v1922
  %vm2866 = vcmp.eq.f32.partialorder %v2865, 8.507059e+37
  %v2867 = vand.u32 %v1922, 2147483648
  %v2868 = vor.u32 1.1754944e-38, %v2867
  %v2869 = vsel %vm2866, %v2868, %v2864
  %v2870 = vmul.f32 1.0, %v2869
  %v2871 = vrcp.pop %v1923
  %v2872 = vmul.f32 %v1923, %v2871
  %v2873 = vsub.f32 1.0, %v2872
  %v2874 = vmul.f32 %v2871, %v2873
  %v2875 = vadd.f32 %v2871, %v2874
  %vm2876 = vweird.f32 %v1923
  %vm2877 = vweird.f32 %v2871
  %vm2878 = vmor %vm2876, %vm2877
  %v2879 = vsel %vm2878, %v2871, %v2875
  %v2880 = vand.u32 2147483647, %v1923
  %vm2881 = vcmp.eq.f32.partialorder %v2880, 8.507059e+37
  %v2882 = vand.u32 %v1923, 2147483648
  %v2883 = vor.u32 1.1754944e-38, %v2882
  %v2884 = vsel %vm2881, %v2883, %v2879
  %v2885 = vmul.f32 1.0, %v2884
  %v2886 = vrcp.pop %v1924
  %v2887 = vmul.f32 %v1924, %v2886
  %v2888 = vsub.f32 1.0, %v2887
  %v2889 = vmul.f32 %v2886, %v2888
  %v2890 = vadd.f32 %v2886, %v2889
  %vm2891 = vweird.f32 %v1924
  %vm2892 = vweird.f32 %v2886
  %vm2893 = vmor %vm2891, %vm2892
  %v2894 = vsel %vm2893, %v2886, %v2890
  %v2895 = vand.u32 2147483647, %v1924
  %vm2896 = vcmp.eq.f32.partialorder %v2895, 8.507059e+37
  %v2897 = vand.u32 %v1924, 2147483648
  %v2898 = vor.u32 1.1754944e-38, %v2897
  %v2899 = vsel %vm2896, %v2898, %v2894
  %v2900 = vmul.f32 1.0, %v2899
  %v2901 = vrcp.pop %v1925
  %v2902 = vmul.f32 %v1925, %v2901
  %v2903 = vsub.f32 1.0, %v2902
  %v2904 = vmul.f32 %v2901, %v2903
  %v2905 = vadd.f32 %v2901, %v2904
  %vm2906 = vweird.f32 %v1925
  %vm2907 = vweird.f32 %v2901
  %vm2908 = vmor %vm2906, %vm2907
  %v2909 = vsel %vm2908, %v2901, %v2905
  %v2910 = vand.u32 2147483647, %v1925
  %vm2911 = vcmp.eq.f32.partialorder %v2910, 8.507059e+37
  %v2912 = vand.u32 %v1925, 2147483648
  %v2913 = vor.u32 1.1754944e-38, %v2912
  %v2914 = vsel %vm2911, %v2913, %v2909
  %v2915 = vmul.f32 1.0, %v2914
  %v2916 = vrcp.pop %v1926
  %v2917 = vmul.f32 %v1926, %v2916
  %v2918 = vsub.f32 1.0, %v2917
  %v2919 = vmul.f32 %v2916, %v2918
  %v2920 = vadd.f32 %v2916, %v2919
  %vm2921 = vweird.f32 %v1926
  %vm2922 = vweird.f32 %v2916
  %vm2923 = vmor %vm2921, %vm2922
  %v2924 = vsel %vm2923, %v2916, %v2920
  %v2925 = vand.u32 2147483647, %v1926
  %vm2926 = vcmp.eq.f32.partialorder %v2925, 8.507059e+37
  %v2927 = vand.u32 %v1926, 2147483648
  %v2928 = vor.u32 1.1754944e-38, %v2927
  %v2929 = vsel %vm2926, %v2928, %v2924
  %v2930 = vmul.f32 1.0, %v2929
  %v2931 = vrcp.pop %v1927
  %v2932 = vmul.f32 %v1927, %v2931
  %v2933 = vsub.f32 1.0, %v2932
  %v2934 = vmul.f32 %v2931, %v2933
  %v2935 = vadd.f32 %v2931, %v2934
  %vm2936 = vweird.f32 %v1927
  %vm2937 = vweird.f32 %v2931
  %vm2938 = vmor %vm2936, %vm2937
  %v2939 = vsel %vm2938, %v2931, %v2935
  %v2940 = vand.u32 2147483647, %v1927
  %vm2941 = vcmp.eq.f32.partialorder %v2940, 8.507059e+37
  %v2942 = vand.u32 %v1927, 2147483648
  %v2943 = vor.u32 1.1754944e-38, %v2942
  %v2944 = vsel %vm2941, %v2943, %v2939
  %v2945 = vmul.f32 1.0, %v2944
  %v2946 = vrcp.pop %v1928
  %v2947 = vmul.f32 %v1928, %v2946
  %v2948 = vsub.f32 1.0, %v2947
  %v2949 = vmul.f32 %v2946, %v2948
  %v2950 = vadd.f32 %v2946, %v2949
  %vm2951 = vweird.f32 %v1928
  %vm2952 = vweird.f32 %v2946
  %vm2953 = vmor %vm2951, %vm2952
  %v2954 = vsel %vm2953, %v2946, %v2950
  %v2955 = vand.u32 2147483647, %v1928
  %vm2956 = vcmp.eq.f32.partialorder %v2955, 8.507059e+37
  %v2957 = vand.u32 %v1928, 2147483648
  %v2958 = vor.u32 1.1754944e-38, %v2957
  %v2959 = vsel %vm2956, %v2958, %v2954
  %v2960 = vmul.f32 1.0, %v2959
  %v2961 = vrcp.pop %v1929
  %v2962 = vmul.f32 %v1929, %v2961
  %v2963 = vsub.f32 1.0, %v2962
  %v2964 = vmul.f32 %v2961, %v2963
  %v2965 = vadd.f32 %v2961, %v2964
  %vm2966 = vweird.f32 %v1929
  %vm2967 = vweird.f32 %v2961
  %vm2968 = vmor %vm2966, %vm2967
  %v2969 = vsel %vm2968, %v2961, %v2965
  %v2970 = vand.u32 2147483647, %v1929
  %vm2971 = vcmp.eq.f32.partialorder %v2970, 8.507059e+37
  %v2972 = vand.u32 %v1929, 2147483648
  %v2973 = vor.u32 1.1754944e-38, %v2972
  %v2974 = vsel %vm2971, %v2973, %v2969
  %v2975 = vmul.f32 1.0, %v2974
  %v2976 = vrcp.pop %v1930
  %v2977 = vmul.f32 %v1930, %v2976
  %v2978 = vsub.f32 1.0, %v2977
  %v2979 = vmul.f32 %v2976, %v2978
  %v2980 = vadd.f32 %v2976, %v2979
  %vm2981 = vweird.f32 %v1930
  %vm2982 = vweird.f32 %v2976
  %vm2983 = vmor %vm2981, %vm2982
  %v2984 = vsel %vm2983, %v2976, %v2980
  %v2985 = vand.u32 2147483647, %v1930
  %vm2986 = vcmp.eq.f32.partialorder %v2985, 8.507059e+37
  %v2987 = vand.u32 %v1930, 2147483648
  %v2988 = vor.u32 1.1754944e-38, %v2987
  %v2989 = vsel %vm2986, %v2988, %v2984
  %v2990 = vmul.f32 1.0, %v2989
  %v2991 = vrcp.pop %v1931
  %v2992 = vmul.f32 %v1931, %v2991
  %v2993 = vsub.f32 1.0, %v2992
  %v2994 = vmul.f32 %v2991, %v2993
  %v2995 = vadd.f32 %v2991, %v2994
  %vm2996 = vweird.f32 %v1931
  %vm2997 = vweird.f32 %v2991
  %vm2998 = vmor %vm2996, %vm2997
  %v2999 = vsel %vm2998, %v2991, %v2995
  %v3000 = vand.u32 2147483647, %v1931
  %vm3001 = vcmp.eq.f32.partialorder %v3000, 8.507059e+37
  %v3002 = vand.u32 %v1931, 2147483648
  %v3003 = vor.u32 1.1754944e-38, %v3002
  %v3004 = vsel %vm3001, %v3003, %v2999
  %v3005 = vmul.f32 1.0, %v3004
  %v3006 = vrcp.pop %v1932
  %v3007 = vmul.f32 %v1932, %v3006
  %v3008 = vsub.f32 1.0, %v3007
  %v3009 = vmul.f32 %v3006, %v3008
  %v3010 = vadd.f32 %v3006, %v3009
  %vm3011 = vweird.f32 %v1932
  %vm3012 = vweird.f32 %v3006
  %vm3013 = vmor %vm3011, %vm3012
  %v3014 = vsel %vm3013, %v3006, %v3010
  %v3015 = vand.u32 2147483647, %v1932
  %vm3016 = vcmp.eq.f32.partialorder %v3015, 8.507059e+37
  %v3017 = vand.u32 %v1932, 2147483648
  %v3018 = vor.u32 1.1754944e-38, %v3017
  %v3019 = vsel %vm3016, %v3018, %v3014
  %v3020 = vmul.f32 1.0, %v3019
  %v3021 = vrcp.pop %v1933
  %v3022 = vmul.f32 %v1933, %v3021
  %v3023 = vsub.f32 1.0, %v3022
  %v3024 = vmul.f32 %v3021, %v3023
  %v3025 = vadd.f32 %v3021, %v3024
  %vm3026 = vweird.f32 %v1933
  %vm3027 = vweird.f32 %v3021
  %vm3028 = vmor %vm3026, %vm3027
  %v3029 = vsel %vm3028, %v3021, %v3025
  %v3030 = vand.u32 2147483647, %v1933
  %vm3031 = vcmp.eq.f32.partialorder %v3030, 8.507059e+37
  %v3032 = vand.u32 %v1933, 2147483648
  %v3033 = vor.u32 1.1754944e-38, %v3032
  %v3034 = vsel %vm3031, %v3033, %v3029
  %v3035 = vmul.f32 1.0, %v3034
  %v3036 = vrcp.pop %v1934
  %v3037 = vmul.f32 %v1934, %v3036
  %v3038 = vsub.f32 1.0, %v3037
  %v3039 = vmul.f32 %v3036, %v3038
  %v3040 = vadd.f32 %v3036, %v3039
  %vm3041 = vweird.f32 %v1934
  %vm3042 = vweird.f32 %v3036
  %vm3043 = vmor %vm3041, %vm3042
  %v3044 = vsel %vm3043, %v3036, %v3040
  %v3045 = vand.u32 2147483647, %v1934
  %vm3046 = vcmp.eq.f32.partialorder %v3045, 8.507059e+37
  %v3047 = vand.u32 %v1934, 2147483648
  %v3048 = vor.u32 1.1754944e-38, %v3047
  %v3049 = vsel %vm3046, %v3048, %v3044
  %v3050 = vmul.f32 1.0, %v3049
  %v3051 = vrcp.pop %v1935
  %v3052 = vmul.f32 %v1935, %v3051
  %v3053 = vsub.f32 1.0, %v3052
  %v3054 = vmul.f32 %v3051, %v3053
  %v3055 = vadd.f32 %v3051, %v3054
  %vm3056 = vweird.f32 %v1935
  %vm3057 = vweird.f32 %v3051
  %vm3058 = vmor %vm3056, %vm3057
  %v3059 = vsel %vm3058, %v3051, %v3055
  %v3060 = vand.u32 2147483647, %v1935
  %vm3061 = vcmp.eq.f32.partialorder %v3060, 8.507059e+37
  %v3062 = vand.u32 %v1935, 2147483648
  %v3063 = vor.u32 1.1754944e-38, %v3062
  %v3064 = vsel %vm3061, %v3063, %v3059
  %v3065 = vmul.f32 1.0, %v3064
  %v3066 = vrcp.pop %v1936
  %v3067 = vmul.f32 %v1936, %v3066
  %v3068 = vsub.f32 1.0, %v3067
  %v3069 = vmul.f32 %v3066, %v3068
  %v3070 = vadd.f32 %v3066, %v3069
  %vm3071 = vweird.f32 %v1936
  %vm3072 = vweird.f32 %v3066
  %vm3073 = vmor %vm3071, %vm3072
  %v3074 = vsel %vm3073, %v3066, %v3070
  %v3075 = vand.u32 2147483647, %v1936
  %vm3076 = vcmp.eq.f32.partialorder %v3075, 8.507059e+37
  %v3077 = vand.u32 %v1936, 2147483648
  %v3078 = vor.u32 1.1754944e-38, %v3077
  %v3079 = vsel %vm3076, %v3078, %v3074
  %v3080 = vmul.f32 1.0, %v3079
  %v3081 = vrcp.pop %v1937
  %v3082 = vmul.f32 %v1937, %v3081
  %v3083 = vsub.f32 1.0, %v3082
  %v3084 = vmul.f32 %v3081, %v3083
  %v3085 = vadd.f32 %v3081, %v3084
  %vm3086 = vweird.f32 %v1937
  %vm3087 = vweird.f32 %v3081
  %vm3088 = vmor %vm3086, %vm3087
  %v3089 = vsel %vm3088, %v3081, %v3085
  %v3090 = vand.u32 2147483647, %v1937
  %vm3091 = vcmp.eq.f32.partialorder %v3090, 8.507059e+37
  %v3092 = vand.u32 %v1937, 2147483648
  %v3093 = vor.u32 1.1754944e-38, %v3092
  %v3094 = vsel %vm3091, %v3093, %v3089
  %v3095 = vmul.f32 1.0, %v3094
  %v3096 = vrcp.pop %v1938
  %v3097 = vmul.f32 %v1938, %v3096
  %v3098 = vsub.f32 1.0, %v3097
  %v3099 = vmul.f32 %v3096, %v3098
  %v3100 = vadd.f32 %v3096, %v3099
  %vm3101 = vweird.f32 %v1938
  %vm3102 = vweird.f32 %v3096
  %vm3103 = vmor %vm3101, %vm3102
  %v3104 = vsel %vm3103, %v3096, %v3100
  %v3105 = vand.u32 2147483647, %v1938
  %vm3106 = vcmp.eq.f32.partialorder %v3105, 8.507059e+37
  %v3107 = vand.u32 %v1938, 2147483648
  %v3108 = vor.u32 1.1754944e-38, %v3107
  %v3109 = vsel %vm3106, %v3108, %v3104
  %v3110 = vmul.f32 1.0, %v3109
  %v3111 = vrcp.pop %v1939
  %v3112 = vmul.f32 %v1939, %v3111
  %v3113 = vsub.f32 1.0, %v3112
  %v3114 = vmul.f32 %v3111, %v3113
  %v3115 = vadd.f32 %v3111, %v3114
  %vm3116 = vweird.f32 %v1939
  %vm3117 = vweird.f32 %v3111
  %vm3118 = vmor %vm3116, %vm3117
  %v3119 = vsel %vm3118, %v3111, %v3115
  %v3120 = vand.u32 2147483647, %v1939
  %vm3121 = vcmp.eq.f32.partialorder %v3120, 8.507059e+37
  %v3122 = vand.u32 %v1939, 2147483648
  %v3123 = vor.u32 1.1754944e-38, %v3122
  %v3124 = vsel %vm3121, %v3123, %v3119
  %v3125 = vmul.f32 1.0, %v3124
  %v3126 = vrcp.pop %v1940
  %v3127 = vmul.f32 %v1940, %v3126
  %v3128 = vsub.f32 1.0, %v3127
  %v3129 = vmul.f32 %v3126, %v3128
  %v3130 = vadd.f32 %v3126, %v3129
  %vm3131 = vweird.f32 %v1940
  %vm3132 = vweird.f32 %v3126
  %vm3133 = vmor %vm3131, %vm3132
  %v3134 = vsel %vm3133, %v3126, %v3130
  %v3135 = vand.u32 2147483647, %v1940
  %vm3136 = vcmp.eq.f32.partialorder %v3135, 8.507059e+37
  %v3137 = vand.u32 %v1940, 2147483648
  %v3138 = vor.u32 1.1754944e-38, %v3137
  %v3139 = vsel %vm3136, %v3138, %v3134
  %v3140 = vmul.f32 1.0, %v3139
  %v3141 = vmul.f32 %v1955, 1.0614054
  %v3142 = vmul.f32 %v1970, 1.0614054
  %v3143 = vmul.f32 %v1985, 1.0614054
  %v3144 = vmul.f32 %v2000, 1.0614054
  %v3145 = vmul.f32 %v2015, 1.0614054
  %v3146 = vmul.f32 %v2030, 1.0614054
  %v3147 = vmul.f32 %v2045, 1.0614054
  %v3148 = vmul.f32 %v2060, 1.0614054
  %v3149 = vmul.f32 %v2075, 1.0614054
  %v3150 = vmul.f32 %v2090, 1.0614054
  %v3151 = vmul.f32 %v2105, 1.0614054
  %v3152 = vmul.f32 %v2120, 1.0614054
  %v3153 = vmul.f32 %v2135, 1.0614054
  %v3154 = vmul.f32 %v2150, 1.0614054
  %v3155 = vmul.f32 %v2165, 1.0614054
  %v3156 = vmul.f32 %v2180, 1.0614054
  %v3157 = vmul.f32 %v2195, 1.0614054
  %v3158 = vmul.f32 %v2210, 1.0614054
  %v3159 = vmul.f32 %v2225, 1.0614054
  %v3160 = vmul.f32 %v2240, 1.0614054
  %v3161 = vmul.f32 %v2255, 1.0614054
  %v3162 = vmul.f32 %v2270, 1.0614054
  %v3163 = vmul.f32 %v2285, 1.0614054
  %v3164 = vmul.f32 %v2300, 1.0614054
  %v3165 = vmul.f32 %v2315, 1.0614054
  %v3166 = vmul.f32 %v2330, 1.0614054
  %v3167 = vmul.f32 %v2345, 1.0614054
  %v3168 = vmul.f32 %v2360, 1.0614054
  %v3169 = vmul.f32 %v2375, 1.0614054
  %v3170 = vmul.f32 %v2390, 1.0614054
  %v3171 = vmul.f32 %v2405, 1.0614054
  %v3172 = vmul.f32 %v2420, 1.0614054
  %v3173 = vmul.f32 %v2435, 1.0614054
  %v3174 = vmul.f32 %v2450, 1.0614054
  %v3175 = vmul.f32 %v2465, 1.0614054
  %v3176 = vmul.f32 %v2480, 1.0614054
  %v3177 = vmul.f32 %v2495, 1.0614054
  %v3178 = vmul.f32 %v2510, 1.0614054
  %v3179 = vmul.f32 %v2525, 1.0614054
  %v3180 = vmul.f32 %v2540, 1.0614054
  %v3181 = vmul.f32 %v2555, 1.0614054
  %v3182 = vmul.f32 %v2570, 1.0614054
  %v3183 = vmul.f32 %v2585, 1.0614054
  %v3184 = vmul.f32 %v2600, 1.0614054
  %v3185 = vmul.f32 %v2615, 1.0614054
  %v3186 = vmul.f32 %v2630, 1.0614054
  %v3187 = vmul.f32 %v2645, 1.0614054
  %v3188 = vmul.f32 %v2660, 1.0614054
  %v3189 = vmul.f32 %v2675, 1.0614054
  %v3190 = vmul.f32 %v2690, 1.0614054
  %v3191 = vmul.f32 %v2705, 1.0614054
  %v3192 = vmul.f32 %v2720, 1.0614054
  %v3193 = vmul.f32 %v2735, 1.0614054
  %v3194 = vmul.f32 %v2750, 1.0614054
  %v3195 = vmul.f32 %v2765, 1.0614054
  %v3196 = vmul.f32 %v2780, 1.0614054
  %v3197 = vmul.f32 %v2795, 1.0614054
  %v3198 = vmul.f32 %v2810, 1.0614054
  %v3199 = vmul.f32 %v2825, 1.0614054
  %v3200 = vmul.f32 %v2840, 1.0614054
  %v3201 = vmul.f32 %v2855, 1.0614054
  %v3202 = vmul.f32 %v2870, 1.0614054
  %v3203 = vmul.f32 %v2885, 1.0614054
  %v3204 = vmul.f32 %v2900, 1.0614054
  %v3205 = vmul.f32 %v2915, 1.0614054
  %v3206 = vmul.f32 %v2930, 1.0614054
  %v3207 = vmul.f32 %v2945, 1.0614054
  %v3208 = vmul.f32 %v2960, 1.0614054
  %v3209 = vmul.f32 %v2975, 1.0614054
  %v3210 = vmul.f32 %v2990, 1.0614054
  %v3211 = vmul.f32 %v3005, 1.0614054
  %v3212 = vmul.f32 %v3020, 1.0614054
  %v3213 = vmul.f32 %v3035, 1.0614054
  %v3214 = vmul.f32 %v3050, 1.0614054
  %v3215 = vmul.f32 %v3065, 1.0614054
  %v3216 = vmul.f32 %v3080, 1.0614054
  %v3217 = vmul.f32 %v3095, 1.0614054
  %v3218 = vmul.f32 %v3110, 1.0614054
  %v3219 = vmul.f32 %v3125, 1.0614054
  %v3220 = vmul.f32 %v3140, 1.0614054
  %v3221 = vadd.f32 %v3141, -1.4531521
  %v3222 = vadd.f32 %v3142, -1.4531521
  %v3223 = vadd.f32 %v3143, -1.4531521
  %v3224 = vadd.f32 %v3144, -1.4531521
  %v3225 = vadd.f32 %v3145, -1.4531521
  %v3226 = vadd.f32 %v3146, -1.4531521
  %v3227 = vadd.f32 %v3147, -1.4531521
  %v3228 = vadd.f32 %v3148, -1.4531521
  %v3229 = vadd.f32 %v3149, -1.4531521
  %v3230 = vadd.f32 %v3150, -1.4531521
  %v3231 = vadd.f32 %v3151, -1.4531521
  %v3232 = vadd.f32 %v3152, -1.4531521
  %v3233 = vadd.f32 %v3153, -1.4531521
  %v3234 = vadd.f32 %v3154, -1.4531521
  %v3235 = vadd.f32 %v3155, -1.4531521
  %v3236 = vadd.f32 %v3156, -1.4531521
  %v3237 = vadd.f32 %v3157, -1.4531521
  %v3238 = vadd.f32 %v3158, -1.4531521
  %v3239 = vadd.f32 %v3159, -1.4531521
  %v3240 = vadd.f32 %v3160, -1.4531521
  %v3241 = vadd.f32 %v3161, -1.4531521
  %v3242 = vadd.f32 %v3162, -1.4531521
  %v3243 = vadd.f32 %v3163, -1.4531521
  %v3244 = vadd.f32 %v3164, -1.4531521
  %v3245 = vadd.f32 %v3165, -1.4531521
  %v3246 = vadd.f32 %v3166, -1.4531521
  %v3247 = vadd.f32 %v3167, -1.4531521
  %v3248 = vadd.f32 %v3168, -1.4531521
  %v3249 = vadd.f32 %v3169, -1.4531521
  %v3250 = vadd.f32 %v3170, -1.4531521
  %v3251 = vadd.f32 %v3171, -1.4531521
  %v3252 = vadd.f32 %v3172, -1.4531521
  %v3253 = vadd.f32 %v3173, -1.4531521
  %v3254 = vadd.f32 %v3174, -1.4531521
  %v3255 = vadd.f32 %v3175, -1.4531521
  %v3256 = vadd.f32 %v3176, -1.4531521
  %v3257 = vadd.f32 %v3177, -1.4531521
  %v3258 = vadd.f32 %v3178, -1.4531521
  %v3259 = vadd.f32 %v3179, -1.4531521
  %v3260 = vadd.f32 %v3180, -1.4531521
  %v3261 = vadd.f32 %v3181, -1.4531521
  %v3262 = vadd.f32 %v3182, -1.4531521
  %v3263 = vadd.f32 %v3183, -1.4531521
  %v3264 = vadd.f32 %v3184, -1.4531521
  %v3265 = vadd.f32 %v3185, -1.4531521
  %v3266 = vadd.f32 %v3186, -1.4531521
  %v3267 = vadd.f32 %v3187, -1.4531521
  %v3268 = vadd.f32 %v3188, -1.4531521
  %v3269 = vadd.f32 %v3189, -1.4531521
  %v3270 = vadd.f32 %v3190, -1.4531521
  %v3271 = vadd.f32 %v3191, -1.4531521
  %v3272 = vadd.f32 %v3192, -1.4531521
  %v3273 = vadd.f32 %v3193, -1.4531521
  %v3274 = vadd.f32 %v3194, -1.4531521
  %v3275 = vadd.f32 %v3195, -1.4531521
  %v3276 = vadd.f32 %v3196, -1.4531521
  %v3277 = vadd.f32 %v3197, -1.4531521
  %v3278 = vadd.f32 %v3198, -1.4531521
  %v3279 = vadd.f32 %v3199, -1.4531521
  %v3280 = vadd.f32 %v3200, -1.4531521
  %v3281 = vadd.f32 %v3201, -1.4531521
  %v3282 = vadd.f32 %v3202, -1.4531521
  %v3283 = vadd.f32 %v3203, -1.4531521
  %v3284 = vadd.f32 %v3204, -1.4531521
  %v3285 = vadd.f32 %v3205, -1.4531521
  %v3286 = vadd.f32 %v3206, -1.4531521
  %v3287 = vadd.f32 %v3207, -1.4531521
  %v3288 = vadd.f32 %v3208, -1.4531521
  %v3289 = vadd.f32 %v3209, -1.4531521
  %v3290 = vadd.f32 %v3210, -1.4531521
  %v3291 = vadd.f32 %v3211, -1.4531521
  %v3292 = vadd.f32 %v3212, -1.4531521
  %v3293 = vadd.f32 %v3213, -1.4531521
  %v3294 = vadd.f32 %v3214, -1.4531521
  %v3295 = vadd.f32 %v3215, -1.4531521
  %v3296 = vadd.f32 %v3216, -1.4531521
  %v3297 = vadd.f32 %v3217, -1.4531521
  %v3298 = vadd.f32 %v3218, -1.4531521
  %v3299 = vadd.f32 %v3219, -1.4531521
  %v3300 = vadd.f32 %v3220, -1.4531521
  %v3301 = vmul.f32 %v3221, %v1955
  %v3302 = vmul.f32 %v3222, %v1970
  %v3303 = vmul.f32 %v3223, %v1985
  %v3304 = vmul.f32 %v3224, %v2000
  %v3305 = vmul.f32 %v3225, %v2015
  %v3306 = vmul.f32 %v3226, %v2030
  %v3307 = vmul.f32 %v3227, %v2045
  %v3308 = vmul.f32 %v3228, %v2060
  %v3309 = vmul.f32 %v3229, %v2075
  %v3310 = vmul.f32 %v3230, %v2090
  %v3311 = vmul.f32 %v3231, %v2105
  %v3312 = vmul.f32 %v3232, %v2120
  %v3313 = vmul.f32 %v3233, %v2135
  %v3314 = vmul.f32 %v3234, %v2150
  %v3315 = vmul.f32 %v3235, %v2165
  %v3316 = vmul.f32 %v3236, %v2180
  %v3317 = vmul.f32 %v3237, %v2195
  %v3318 = vmul.f32 %v3238, %v2210
  %v3319 = vmul.f32 %v3239, %v2225
  %v3320 = vmul.f32 %v3240, %v2240
  %v3321 = vmul.f32 %v3241, %v2255
  %v3322 = vmul.f32 %v3242, %v2270
  %v3323 = vmul.f32 %v3243, %v2285
  %v3324 = vmul.f32 %v3244, %v2300
  %v3325 = vmul.f32 %v3245, %v2315
  %v3326 = vmul.f32 %v3246, %v2330
  %v3327 = vmul.f32 %v3247, %v2345
  %v3328 = vmul.f32 %v3248, %v2360
  %v3329 = vmul.f32 %v3249, %v2375
  %v3330 = vmul.f32 %v3250, %v2390
  %v3331 = vmul.f32 %v3251, %v2405
  %v3332 = vmul.f32 %v3252, %v2420
  %v3333 = vmul.f32 %v3253, %v2435
  %v3334 = vmul.f32 %v3254, %v2450
  %v3335 = vmul.f32 %v3255, %v2465
  %v3336 = vmul.f32 %v3256, %v2480
  %v3337 = vmul.f32 %v3257, %v2495
  %v3338 = vmul.f32 %v3258, %v2510
  %v3339 = vmul.f32 %v3259, %v2525
  %v3340 = vmul.f32 %v3260, %v2540
  %v3341 = vmul.f32 %v3261, %v2555
  %v3342 = vmul.f32 %v3262, %v2570
  %v3343 = vmul.f32 %v3263, %v2585
  %v3344 = vmul.f32 %v3264, %v2600
  %v3345 = vmul.f32 %v3265, %v2615
  %v3346 = vmul.f32 %v3266, %v2630
  %v3347 = vmul.f32 %v3267, %v2645
  %v3348 = vmul.f32 %v3268, %v2660
  %v3349 = vmul.f32 %v3269, %v2675
  %v3350 = vmul.f32 %v3270, %v2690
  %v3351 = vmul.f32 %v3271, %v2705
  %v3352 = vmul.f32 %v3272, %v2720
  %v3353 = vmul.f32 %v3273, %v2735
  %v3354 = vmul.f32 %v3274, %v2750
  %v3355 = vmul.f32 %v3275, %v2765
  %v3356 = vmul.f32 %v3276, %v2780
  %v3357 = vmul.f32 %v3277, %v2795
  %v3358 = vmul.f32 %v3278, %v2810
  %v3359 = vmul.f32 %v3279, %v2825
  %v3360 = vmul.f32 %v3280, %v2840
  %v3361 = vmul.f32 %v3281, %v2855
  %v3362 = vmul.f32 %v3282, %v2870
  %v3363 = vmul.f32 %v3283, %v2885
  %v3364 = vmul.f32 %v3284, %v2900
  %v3365 = vmul.f32 %v3285, %v2915
  %v3366 = vmul.f32 %v3286, %v2930
  %v3367 = vmul.f32 %v3287, %v2945
  %v3368 = vmul.f32 %v3288, %v2960
  %v3369 = vmul.f32 %v3289, %v2975
  %v3370 = vmul.f32 %v3290, %v2990
  %v3371 = vmul.f32 %v3291, %v3005
  %v3372 = vmul.f32 %v3292, %v3020
  %v3373 = vmul.f32 %v3293, %v3035
  %v3374 = vmul.f32 %v3294, %v3050
  %v3375 = vmul.f32 %v3295, %v3065
  %v3376 = vmul.f32 %v3296, %v3080
  %v3377 = vmul.f32 %v3297, %v3095
  %v3378 = vmul.f32 %v3298, %v3110
  %v3379 = vmul.f32 %v3299, %v3125
  %v3380 = vmul.f32 %v3300, %v3140
  %v3381 = vadd.f32 %v3301, 1.4214138
  %v3382 = vadd.f32 %v3302, 1.4214138
  %v3383 = vadd.f32 %v3303, 1.4214138
  %v3384 = vadd.f32 %v3304, 1.4214138
  %v3385 = vadd.f32 %v3305, 1.4214138
  %v3386 = vadd.f32 %v3306, 1.4214138
  %v3387 = vadd.f32 %v3307, 1.4214138
  %v3388 = vadd.f32 %v3308, 1.4214138
  %v3389 = vadd.f32 %v3309, 1.4214138
  %v3390 = vadd.f32 %v3310, 1.4214138
  %v3391 = vadd.f32 %v3311, 1.4214138
  %v3392 = vadd.f32 %v3312, 1.4214138
  %v3393 = vadd.f32 %v3313, 1.4214138
  %v3394 = vadd.f32 %v3314, 1.4214138
  %v3395 = vadd.f32 %v3315, 1.4214138
  %v3396 = vadd.f32 %v3316, 1.4214138
  %v3397 = vadd.f32 %v3317, 1.4214138
  %v3398 = vadd.f32 %v3318, 1.4214138
  %v3399 = vadd.f32 %v3319, 1.4214138
  %v3400 = vadd.f32 %v3320, 1.4214138
  %v3401 = vadd.f32 %v3321, 1.4214138
  %v3402 = vadd.f32 %v3322, 1.4214138
  %v3403 = vadd.f32 %v3323, 1.4214138
  %v3404 = vadd.f32 %v3324, 1.4214138
  %v3405 = vadd.f32 %v3325, 1.4214138
  %v3406 = vadd.f32 %v3326, 1.4214138
  %v3407 = vadd.f32 %v3327, 1.4214138
  %v3408 = vadd.f32 %v3328, 1.4214138
  %v3409 = vadd.f32 %v3329, 1.4214138
  %v3410 = vadd.f32 %v3330, 1.4214138
  %v3411 = vadd.f32 %v3331, 1.4214138
  %v3412 = vadd.f32 %v3332, 1.4214138
  %v3413 = vadd.f32 %v3333, 1.4214138
  %v3414 = vadd.f32 %v3334, 1.4214138
  %v3415 = vadd.f32 %v3335, 1.4214138
  %v3416 = vadd.f32 %v3336, 1.4214138
  %v3417 = vadd.f32 %v3337, 1.4214138
  %v3418 = vadd.f32 %v3338, 1.4214138
  %v3419 = vadd.f32 %v3339, 1.4214138
  %v3420 = vadd.f32 %v3340, 1.4214138
  %v3421 = vadd.f32 %v3341, 1.4214138
  %v3422 = vadd.f32 %v3342, 1.4214138
  %v3423 = vadd.f32 %v3343, 1.4214138
  %v3424 = vadd.f32 %v3344, 1.4214138
  %v3425 = vadd.f32 %v3345, 1.4214138
  %v3426 = vadd.f32 %v3346, 1.4214138
  %v3427 = vadd.f32 %v3347, 1.4214138
  %v3428 = vadd.f32 %v3348, 1.4214138
  %v3429 = vadd.f32 %v3349, 1.4214138
  %v3430 = vadd.f32 %v3350, 1.4214138
  %v3431 = vadd.f32 %v3351, 1.4214138
  %v3432 = vadd.f32 %v3352, 1.4214138
  %v3433 = vadd.f32 %v3353, 1.4214138
  %v3434 = vadd.f32 %v3354, 1.4214138
  %v3435 = vadd.f32 %v3355, 1.4214138
  %v3436 = vadd.f32 %v3356, 1.4214138
  %v3437 = vadd.f32 %v3357, 1.4214138
  %v3438 = vadd.f32 %v3358, 1.4214138
  %v3439 = vadd.f32 %v3359, 1.4214138
  %v3440 = vadd.f32 %v3360, 1.4214138
  %v3441 = vadd.f32 %v3361, 1.4214138
  %v3442 = vadd.f32 %v3362, 1.4214138
  %v3443 = vadd.f32 %v3363, 1.4214138
  %v3444 = vadd.f32 %v3364, 1.4214138
  %v3445 = vadd.f32 %v3365, 1.4214138
  %v3446 = vadd.f32 %v3366, 1.4214138
  %v3447 = vadd.f32 %v3367, 1.4214138
  %v3448 = vadd.f32 %v3368, 1.4214138
  %v3449 = vadd.f32 %v3369, 1.4214138
  %v3450 = vadd.f32 %v3370, 1.4214138
  %v3451 = vadd.f32 %v3371, 1.4214138
  %v3452 = vadd.f32 %v3372, 1.4214138
  %v3453 = vadd.f32 %v3373, 1.4214138
  %v3454 = vadd.f32 %v3374, 1.4214138
  %v3455 = vadd.f32 %v3375, 1.4214138
  %v3456 = vadd.f32 %v3376, 1.4214138
  %v3457 = vadd.f32 %v3377, 1.4214138
  %v3458 = vadd.f32 %v3378, 1.4214138
  %v3459 = vadd.f32 %v3379, 1.4214138
  %v3460 = vadd.f32 %v3380, 1.4214138
  %v3461 = vmul.f32 %v3381, %v1955
  %v3462 = vmul.f32 %v3382, %v1970
  %v3463 = vmul.f32 %v3383, %v1985
  %v3464 = vmul.f32 %v3384, %v2000
  %v3465 = vmul.f32 %v3385, %v2015
  %v3466 = vmul.f32 %v3386, %v2030
  %v3467 = vmul.f32 %v3387, %v2045
  %v3468 = vmul.f32 %v3388, %v2060
  %v3469 = vmul.f32 %v3389, %v2075
  %v3470 = vmul.f32 %v3390, %v2090
  %v3471 = vmul.f32 %v3391, %v2105
  %v3472 = vmul.f32 %v3392, %v2120
  %v3473 = vmul.f32 %v3393, %v2135
  %v3474 = vmul.f32 %v3394, %v2150
  %v3475 = vmul.f32 %v3395, %v2165
  %v3476 = vmul.f32 %v3396, %v2180
  %v3477 = vmul.f32 %v3397, %v2195
  %v3478 = vmul.f32 %v3398, %v2210
  %v3479 = vmul.f32 %v3399, %v2225
  %v3480 = vmul.f32 %v3400, %v2240
  %v3481 = vmul.f32 %v3401, %v2255
  %v3482 = vmul.f32 %v3402, %v2270
  %v3483 = vmul.f32 %v3403, %v2285
  %v3484 = vmul.f32 %v3404, %v2300
  %v3485 = vmul.f32 %v3405, %v2315
  %v3486 = vmul.f32 %v3406, %v2330
  %v3487 = vmul.f32 %v3407, %v2345
  %v3488 = vmul.f32 %v3408, %v2360
  %v3489 = vmul.f32 %v3409, %v2375
  %v3490 = vmul.f32 %v3410, %v2390
  %v3491 = vmul.f32 %v3411, %v2405
  %v3492 = vmul.f32 %v3412, %v2420
  %v3493 = vmul.f32 %v3413, %v2435
  %v3494 = vmul.f32 %v3414, %v2450
  %v3495 = vmul.f32 %v3415, %v2465
  %v3496 = vmul.f32 %v3416, %v2480
  %v3497 = vmul.f32 %v3417, %v2495
  %v3498 = vmul.f32 %v3418, %v2510
  %v3499 = vmul.f32 %v3419, %v2525
  %v3500 = vmul.f32 %v3420, %v2540
  %v3501 = vmul.f32 %v3421, %v2555
  %v3502 = vmul.f32 %v3422, %v2570
  %v3503 = vmul.f32 %v3423, %v2585
  %v3504 = vmul.f32 %v3424, %v2600
  %v3505 = vmul.f32 %v3425, %v2615
  %v3506 = vmul.f32 %v3426, %v2630
  %v3507 = vmul.f32 %v3427, %v2645
  %v3508 = vmul.f32 %v3428, %v2660
  %v3509 = vmul.f32 %v3429, %v2675
  %v3510 = vmul.f32 %v3430, %v2690
  %v3511 = vmul.f32 %v3431, %v2705
  %v3512 = vmul.f32 %v3432, %v2720
  %v3513 = vmul.f32 %v3433, %v2735
  %v3514 = vmul.f32 %v3434, %v2750
  %v3515 = vmul.f32 %v3435, %v2765
  %v3516 = vmul.f32 %v3436, %v2780
  %v3517 = vmul.f32 %v3437, %v2795
  %v3518 = vmul.f32 %v3438, %v2810
  %v3519 = vmul.f32 %v3439, %v2825
  %v3520 = vmul.f32 %v3440, %v2840
  %v3521 = vmul.f32 %v3441, %v2855
  %v3522 = vmul.f32 %v3442, %v2870
  %v3523 = vmul.f32 %v3443, %v2885
  %v3524 = vmul.f32 %v3444, %v2900
  %v3525 = vmul.f32 %v3445, %v2915
  %v3526 = vmul.f32 %v3446, %v2930
  %v3527 = vmul.f32 %v3447, %v2945
  %v3528 = vmul.f32 %v3448, %v2960
  %v3529 = vmul.f32 %v3449, %v2975
  %v3530 = vmul.f32 %v3450, %v2990
  %v3531 = vmul.f32 %v3451, %v3005
  %v3532 = vmul.f32 %v3452, %v3020
  %v3533 = vmul.f32 %v3453, %v3035
  %v3534 = vmul.f32 %v3454, %v3050
  %v3535 = vmul.f32 %v3455, %v3065
  %v3536 = vmul.f32 %v3456, %v3080
  %v3537 = vmul.f32 %v3457, %v3095
  %v3538 = vmul.f32 %v3458, %v3110
  %v3539 = vmul.f32 %v3459, %v3125
  %v3540 = vmul.f32 %v3460, %v3140
  %v3541 = vadd.f32 %v3461, -0.28449672
  %v3542 = vadd.f32 %v3462, -0.28449672
  %v3543 = vadd.f32 %v3463, -0.28449672
  %v3544 = vadd.f32 %v3464, -0.28449672
  %v3545 = vadd.f32 %v3465, -0.28449672
  %v3546 = vadd.f32 %v3466, -0.28449672
  %v3547 = vadd.f32 %v3467, -0.28449672
  %v3548 = vadd.f32 %v3468, -0.28449672
  %v3549 = vadd.f32 %v3469, -0.28449672
  %v3550 = vadd.f32 %v3470, -0.28449672
  %v3551 = vadd.f32 %v3471, -0.28449672
  %v3552 = vadd.f32 %v3472, -0.28449672
  %v3553 = vadd.f32 %v3473, -0.28449672
  %v3554 = vadd.f32 %v3474, -0.28449672
  %v3555 = vadd.f32 %v3475, -0.28449672
  %v3556 = vadd.f32 %v3476, -0.28449672
  %v3557 = vadd.f32 %v3477, -0.28449672
  %v3558 = vadd.f32 %v3478, -0.28449672
  %v3559 = vadd.f32 %v3479, -0.28449672
  %v3560 = vadd.f32 %v3480, -0.28449672
  %v3561 = vadd.f32 %v3481, -0.28449672
  %v3562 = vadd.f32 %v3482, -0.28449672
  %v3563 = vadd.f32 %v3483, -0.28449672
  %v3564 = vadd.f32 %v3484, -0.28449672
  %v3565 = vadd.f32 %v3485, -0.28449672
  %v3566 = vadd.f32 %v3486, -0.28449672
  %v3567 = vadd.f32 %v3487, -0.28449672
  %v3568 = vadd.f32 %v3488, -0.28449672
  %v3569 = vadd.f32 %v3489, -0.28449672
  %v3570 = vadd.f32 %v3490, -0.28449672
  %v3571 = vadd.f32 %v3491, -0.28449672
  %v3572 = vadd.f32 %v3492, -0.28449672
  %v3573 = vadd.f32 %v3493, -0.28449672
  %v3574 = vadd.f32 %v3494, -0.28449672
  %v3575 = vadd.f32 %v3495, -0.28449672
  %v3576 = vadd.f32 %v3496, -0.28449672
  %v3577 = vadd.f32 %v3497, -0.28449672
  %v3578 = vadd.f32 %v3498, -0.28449672
  %v3579 = vadd.f32 %v3499, -0.28449672
  %v3580 = vadd.f32 %v3500, -0.28449672
  %v3581 = vadd.f32 %v3501, -0.28449672
  %v3582 = vadd.f32 %v3502, -0.28449672
  %v3583 = vadd.f32 %v3503, -0.28449672
  %v3584 = vadd.f32 %v3504, -0.28449672
  %v3585 = vadd.f32 %v3505, -0.28449672
  %v3586 = vadd.f32 %v3506, -0.28449672
  %v3587 = vadd.f32 %v3507, -0.28449672
  %v3588 = vadd.f32 %v3508, -0.28449672
  %v3589 = vadd.f32 %v3509, -0.28449672
  %v3590 = vadd.f32 %v3510, -0.28449672
  %v3591 = vadd.f32 %v3511, -0.28449672
  %v3592 = vadd.f32 %v3512, -0.28449672
  %v3593 = vadd.f32 %v3513, -0.28449672
  %v3594 = vadd.f32 %v3514, -0.28449672
  %v3595 = vadd.f32 %v3515, -0.28449672
  %v3596 = vadd.f32 %v3516, -0.28449672
  %v3597 = vadd.f32 %v3517, -0.28449672
  %v3598 = vadd.f32 %v3518, -0.28449672
  %v3599 = vadd.f32 %v3519, -0.28449672
  %v3600 = vadd.f32 %v3520, -0.28449672
  %v3601 = vadd.f32 %v3521, -0.28449672
  %v3602 = vadd.f32 %v3522, -0.28449672
  %v3603 = vadd.f32 %v3523, -0.28449672
  %v3604 = vadd.f32 %v3524, -0.28449672
  %v3605 = vadd.f32 %v3525, -0.28449672
  %v3606 = vadd.f32 %v3526, -0.28449672
  %v3607 = vadd.f32 %v3527, -0.28449672
  %v3608 = vadd.f32 %v3528, -0.28449672
  %v3609 = vadd.f32 %v3529, -0.28449672
  %v3610 = vadd.f32 %v3530, -0.28449672
  %v3611 = vadd.f32 %v3531, -0.28449672
  %v3612 = vadd.f32 %v3532, -0.28449672
  %v3613 = vadd.f32 %v3533, -0.28449672
  %v3614 = vadd.f32 %v3534, -0.28449672
  %v3615 = vadd.f32 %v3535, -0.28449672
  %v3616 = vadd.f32 %v3536, -0.28449672
  %v3617 = vadd.f32 %v3537, -0.28449672
  %v3618 = vadd.f32 %v3538, -0.28449672
  %v3619 = vadd.f32 %v3539, -0.28449672
  %v3620 = vadd.f32 %v3540, -0.28449672
  %v3621 = vmul.f32 %v3541, %v1955
  %v3622 = vmul.f32 %v3542, %v1970
  %v3623 = vmul.f32 %v3543, %v1985
  %v3624 = vmul.f32 %v3544, %v2000
  %v3625 = vmul.f32 %v3545, %v2015
  %v3626 = vmul.f32 %v3546, %v2030
  %v3627 = vmul.f32 %v3547, %v2045
  %v3628 = vmul.f32 %v3548, %v2060
  %v3629 = vmul.f32 %v3549, %v2075
  %v3630 = vmul.f32 %v3550, %v2090
  %v3631 = vmul.f32 %v3551, %v2105
  %v3632 = vmul.f32 %v3552, %v2120
  %v3633 = vmul.f32 %v3553, %v2135
  %v3634 = vmul.f32 %v3554, %v2150
  %v3635 = vmul.f32 %v3555, %v2165
  %v3636 = vmul.f32 %v3556, %v2180
  %v3637 = vmul.f32 %v3557, %v2195
  %v3638 = vmul.f32 %v3558, %v2210
  %v3639 = vmul.f32 %v3559, %v2225
  %v3640 = vmul.f32 %v3560, %v2240
  %v3641 = vmul.f32 %v3561, %v2255
  %v3642 = vmul.f32 %v3562, %v2270
  %v3643 = vmul.f32 %v3563, %v2285
  %v3644 = vmul.f32 %v3564, %v2300
  %v3645 = vmul.f32 %v3565, %v2315
  %v3646 = vmul.f32 %v3566, %v2330
  %v3647 = vmul.f32 %v3567, %v2345
  %v3648 = vmul.f32 %v3568, %v2360
  %v3649 = vmul.f32 %v3569, %v2375
  %v3650 = vmul.f32 %v3570, %v2390
  %v3651 = vmul.f32 %v3571, %v2405
  %v3652 = vmul.f32 %v3572, %v2420
  %v3653 = vmul.f32 %v3573, %v2435
  %v3654 = vmul.f32 %v3574, %v2450
  %v3655 = vmul.f32 %v3575, %v2465
  %v3656 = vmul.f32 %v3576, %v2480
  %v3657 = vmul.f32 %v3577, %v2495
  %v3658 = vmul.f32 %v3578, %v2510
  %v3659 = vmul.f32 %v3579, %v2525
  %v3660 = vmul.f32 %v3580, %v2540
  %v3661 = vmul.f32 %v3581, %v2555
  %v3662 = vmul.f32 %v3582, %v2570
  %v3663 = vmul.f32 %v3583, %v2585
  %v3664 = vmul.f32 %v3584, %v2600
  %v3665 = vmul.f32 %v3585, %v2615
  %v3666 = vmul.f32 %v3586, %v2630
  %v3667 = vmul.f32 %v3587, %v2645
  %v3668 = vmul.f32 %v3588, %v2660
  %v3669 = vmul.f32 %v3589, %v2675
  %v3670 = vmul.f32 %v3590, %v2690
  %v3671 = vmul.f32 %v3591, %v2705
  %v3672 = vmul.f32 %v3592, %v2720
  %v3673 = vmul.f32 %v3593, %v2735
  %v3674 = vmul.f32 %v3594, %v2750
  %v3675 = vmul.f32 %v3595, %v2765
  %v3676 = vmul.f32 %v3596, %v2780
  %v3677 = vmul.f32 %v3597, %v2795
  %v3678 = vmul.f32 %v3598, %v2810
  %v3679 = vmul.f32 %v3599, %v2825
  %v3680 = vmul.f32 %v3600, %v2840
  %v3681 = vmul.f32 %v3601, %v2855
  %v3682 = vmul.f32 %v3602, %v2870
  %v3683 = vmul.f32 %v3603, %v2885
  %v3684 = vmul.f32 %v3604, %v2900
  %v3685 = vmul.f32 %v3605, %v2915
  %v3686 = vmul.f32 %v3606, %v2930
  %v3687 = vmul.f32 %v3607, %v2945
  %v3688 = vmul.f32 %v3608, %v2960
  %v3689 = vmul.f32 %v3609, %v2975
  %v3690 = vmul.f32 %v3610, %v2990
  %v3691 = vmul.f32 %v3611, %v3005
  %v3692 = vmul.f32 %v3612, %v3020
  %v3693 = vmul.f32 %v3613, %v3035
  %v3694 = vmul.f32 %v3614, %v3050
  %v3695 = vmul.f32 %v3615, %v3065
  %v3696 = vmul.f32 %v3616, %v3080
  %v3697 = vmul.f32 %v3617, %v3095
  %v3698 = vmul.f32 %v3618, %v3110
  %v3699 = vmul.f32 %v3619, %v3125
  %v3700 = vmul.f32 %v3620, %v3140
  %v3701 = vadd.f32 %v3621, 0.2548296
  %v3702 = vadd.f32 %v3622, 0.2548296
  %v3703 = vadd.f32 %v3623, 0.2548296
  %v3704 = vadd.f32 %v3624, 0.2548296
  %v3705 = vadd.f32 %v3625, 0.2548296
  %v3706 = vadd.f32 %v3626, 0.2548296
  %v3707 = vadd.f32 %v3627, 0.2548296
  %v3708 = vadd.f32 %v3628, 0.2548296
  %v3709 = vadd.f32 %v3629, 0.2548296
  %v3710 = vadd.f32 %v3630, 0.2548296
  %v3711 = vadd.f32 %v3631, 0.2548296
  %v3712 = vadd.f32 %v3632, 0.2548296
  %v3713 = vadd.f32 %v3633, 0.2548296
  %v3714 = vadd.f32 %v3634, 0.2548296
  %v3715 = vadd.f32 %v3635, 0.2548296
  %v3716 = vadd.f32 %v3636, 0.2548296
  %v3717 = vadd.f32 %v3637, 0.2548296
  %v3718 = vadd.f32 %v3638, 0.2548296
  %v3719 = vadd.f32 %v3639, 0.2548296
  %v3720 = vadd.f32 %v3640, 0.2548296
  %v3721 = vadd.f32 %v3641, 0.2548296
  %v3722 = vadd.f32 %v3642, 0.2548296
  %v3723 = vadd.f32 %v3643, 0.2548296
  %v3724 = vadd.f32 %v3644, 0.2548296
  %v3725 = vadd.f32 %v3645, 0.2548296
  %v3726 = vadd.f32 %v3646, 0.2548296
  %v3727 = vadd.f32 %v3647, 0.2548296
  %v3728 = vadd.f32 %v3648, 0.2548296
  %v3729 = vadd.f32 %v3649, 0.2548296
  %v3730 = vadd.f32 %v3650, 0.2548296
  %v3731 = vadd.f32 %v3651, 0.2548296
  %v3732 = vadd.f32 %v3652, 0.2548296
  %v3733 = vadd.f32 %v3653, 0.2548296
  %v3734 = vadd.f32 %v3654, 0.2548296
  %v3735 = vadd.f32 %v3655, 0.2548296
  %v3736 = vadd.f32 %v3656, 0.2548296
  %v3737 = vadd.f32 %v3657, 0.2548296
  %v3738 = vadd.f32 %v3658, 0.2548296
  %v3739 = vadd.f32 %v3659, 0.2548296
  %v3740 = vadd.f32 %v3660, 0.2548296
  %v3741 = vadd.f32 %v3661, 0.2548296
  %v3742 = vadd.f32 %v3662, 0.2548296
  %v3743 = vadd.f32 %v3663, 0.2548296
  %v3744 = vadd.f32 %v3664, 0.2548296
  %v3745 = vadd.f32 %v3665, 0.2548296
  %v3746 = vadd.f32 %v3666, 0.2548296
  %v3747 = vadd.f32 %v3667, 0.2548296
  %v3748 = vadd.f32 %v3668, 0.2548296
  %v3749 = vadd.f32 %v3669, 0.2548296
  %v3750 = vadd.f32 %v3670, 0.2548296
  %v3751 = vadd.f32 %v3671, 0.2548296
  %v3752 = vadd.f32 %v3672, 0.2548296
  %v3753 = vadd.f32 %v3673, 0.2548296
  %v3754 = vadd.f32 %v3674, 0.2548296
  %v3755 = vadd.f32 %v3675, 0.2548296
  %v3756 = vadd.f32 %v3676, 0.2548296
  %v3757 = vadd.f32 %v3677, 0.2548296
  %v3758 = vadd.f32 %v3678, 0.2548296
  %v3759 = vadd.f32 %v3679, 0.2548296
  %v3760 = vadd.f32 %v3680, 0.2548296
  %v3761 = vadd.f32 %v3681, 0.2548296
  %v3762 = vadd.f32 %v3682, 0.2548296
  %v3763 = vadd.f32 %v3683, 0.2548296
  %v3764 = vadd.f32 %v3684, 0.2548296
  %v3765 = vadd.f32 %v3685, 0.2548296
  %v3766 = vadd.f32 %v3686, 0.2548296
  %v3767 = vadd.f32 %v3687, 0.2548296
  %v3768 = vadd.f32 %v3688, 0.2548296
  %v3769 = vadd.f32 %v3689, 0.2548296
  %v3770 = vadd.f32 %v3690, 0.2548296
  %v3771 = vadd.f32 %v3691, 0.2548296
  %v3772 = vadd.f32 %v3692, 0.2548296
  %v3773 = vadd.f32 %v3693, 0.2548296
  %v3774 = vadd.f32 %v3694, 0.2548296
  %v3775 = vadd.f32 %v3695, 0.2548296
  %v3776 = vadd.f32 %v3696, 0.2548296
  %v3777 = vadd.f32 %v3697, 0.2548296
  %v3778 = vadd.f32 %v3698, 0.2548296
  %v3779 = vadd.f32 %v3699, 0.2548296
  %v3780 = vadd.f32 %v3700, 0.2548296
  %v3781 = vmul.f32 %v3701, %v1955
  %v3782 = vmul.f32 %v3702, %v1970
  %v3783 = vmul.f32 %v3703, %v1985
  %v3784 = vmul.f32 %v3704, %v2000
  %v3785 = vmul.f32 %v3705, %v2015
  %v3786 = vmul.f32 %v3706, %v2030
  %v3787 = vmul.f32 %v3707, %v2045
  %v3788 = vmul.f32 %v3708, %v2060
  %v3789 = vmul.f32 %v3709, %v2075
  %v3790 = vmul.f32 %v3710, %v2090
  %v3791 = vmul.f32 %v3711, %v2105
  %v3792 = vmul.f32 %v3712, %v2120
  %v3793 = vmul.f32 %v3713, %v2135
  %v3794 = vmul.f32 %v3714, %v2150
  %v3795 = vmul.f32 %v3715, %v2165
  %v3796 = vmul.f32 %v3716, %v2180
  %v3797 = vmul.f32 %v3717, %v2195
  %v3798 = vmul.f32 %v3718, %v2210
  %v3799 = vmul.f32 %v3719, %v2225
  %v3800 = vmul.f32 %v3720, %v2240
  %v3801 = vmul.f32 %v3721, %v2255
  %v3802 = vmul.f32 %v3722, %v2270
  %v3803 = vmul.f32 %v3723, %v2285
  %v3804 = vmul.f32 %v3724, %v2300
  %v3805 = vmul.f32 %v3725, %v2315
  %v3806 = vmul.f32 %v3726, %v2330
  %v3807 = vmul.f32 %v3727, %v2345
  %v3808 = vmul.f32 %v3728, %v2360
  %v3809 = vmul.f32 %v3729, %v2375
  %v3810 = vmul.f32 %v3730, %v2390
  %v3811 = vmul.f32 %v3731, %v2405
  %v3812 = vmul.f32 %v3732, %v2420
  %v3813 = vmul.f32 %v3733, %v2435
  %v3814 = vmul.f32 %v3734, %v2450
  %v3815 = vmul.f32 %v3735, %v2465
  %v3816 = vmul.f32 %v3736, %v2480
  %v3817 = vmul.f32 %v3737, %v2495
  %v3818 = vmul.f32 %v3738, %v2510
  %v3819 = vmul.f32 %v3739, %v2525
  %v3820 = vmul.f32 %v3740, %v2540
  %v3821 = vmul.f32 %v3741, %v2555
  %v3822 = vmul.f32 %v3742, %v2570
  %v3823 = vmul.f32 %v3743, %v2585
  %v3824 = vmul.f32 %v3744, %v2600
  %v3825 = vmul.f32 %v3745, %v2615
  %v3826 = vmul.f32 %v3746, %v2630
  %v3827 = vmul.f32 %v3747, %v2645
  %v3828 = vmul.f32 %v3748, %v2660
  %v3829 = vmul.f32 %v3749, %v2675
  %v3830 = vmul.f32 %v3750, %v2690
  %v3831 = vmul.f32 %v3751, %v2705
  %v3832 = vmul.f32 %v3752, %v2720
  %v3833 = vmul.f32 %v3753, %v2735
  %v3834 = vmul.f32 %v3754, %v2750
  %v3835 = vmul.f32 %v3755, %v2765
  %v3836 = vmul.f32 %v3756, %v2780
  %v3837 = vmul.f32 %v3757, %v2795
  %v3838 = vmul.f32 %v3758, %v2810
  %v3839 = vmul.f32 %v3759, %v2825
  %v3840 = vmul.f32 %v3760, %v2840
  %v3841 = vmul.f32 %v3761, %v2855
  %v3842 = vmul.f32 %v3762, %v2870
  %v3843 = vmul.f32 %v3763, %v2885
  %v3844 = vmul.f32 %v3764, %v2900
  %v3845 = vmul.f32 %v3765, %v2915
  %v3846 = vmul.f32 %v3766, %v2930
  %v3847 = vmul.f32 %v3767, %v2945
  %v3848 = vmul.f32 %v3768, %v2960
  %v3849 = vmul.f32 %v3769, %v2975
  %v3850 = vmul.f32 %v3770, %v2990
  %v3851 = vmul.f32 %v3771, %v3005
  %v3852 = vmul.f32 %v3772, %v3020
  %v3853 = vmul.f32 %v3773, %v3035
  %v3854 = vmul.f32 %v3774, %v3050
  %v3855 = vmul.f32 %v3775, %v3065
  %v3856 = vmul.f32 %v3776, %v3080
  %v3857 = vmul.f32 %v3777, %v3095
  %v3858 = vmul.f32 %v3778, %v3110
  %v3859 = vmul.f32 %v3779, %v3125
  %v3860 = vmul.f32 %v3780, %v3140
  %v3861 = vsub.f32 0.0, %v1701
  %v3862 = vsub.f32 0.0, %v1702
  %v3863 = vsub.f32 0.0, %v1703
  %v3864 = vsub.f32 0.0, %v1704
  %v3865 = vsub.f32 0.0, %v1705
  %v3866 = vsub.f32 0.0, %v1706
  %v3867 = vsub.f32 0.0, %v1707
  %v3868 = vsub.f32 0.0, %v1708
  %v3869 = vsub.f32 0.0, %v1709
  %v3870 = vsub.f32 0.0, %v1710
  %v3871 = vsub.f32 0.0, %v1711
  %v3872 = vsub.f32 0.0, %v1712
  %v3873 = vsub.f32 0.0, %v1713
  %v3874 = vsub.f32 0.0, %v1714
  %v3875 = vsub.f32 0.0, %v1715
  %v3876 = vsub.f32 0.0, %v1716
  %v3877 = vsub.f32 0.0, %v1717
  %v3878 = vsub.f32 0.0, %v1718
  %v3879 = vsub.f32 0.0, %v1719
  %v3880 = vsub.f32 0.0, %v1720
  %v3881 = vsub.f32 0.0, %v1721
  %v3882 = vsub.f32 0.0, %v1722
  %v3883 = vsub.f32 0.0, %v1723
  %v3884 = vsub.f32 0.0, %v1724
  %v3885 = vsub.f32 0.0, %v1725
  %v3886 = vsub.f32 0.0, %v1726
  %v3887 = vsub.f32 0.0, %v1727
  %v3888 = vsub.f32 0.0, %v1728
  %v3889 = vsub.f32 0.0, %v1729
  %v3890 = vsub.f32 0.0, %v1730
  %v3891 = vsub.f32 0.0, %v1731
  %v3892 = vsub.f32 0.0, %v1732
  %v3893 = vsub.f32 0.0, %v1733
  %v3894 = vsub.f32 0.0, %v1734
  %v3895 = vsub.f32 0.0, %v1735
  %v3896 = vsub.f32 0.0, %v1736
  %v3897 = vsub.f32 0.0, %v1737
  %v3898 = vsub.f32 0.0, %v1738
  %v3899 = vsub.f32 0.0, %v1739
  %v3900 = vsub.f32 0.0, %v1740
  %v3901 = vsub.f32 0.0, %v1741
  %v3902 = vsub.f32 0.0, %v1742
  %v3903 = vsub.f32 0.0, %v1743
  %v3904 = vsub.f32 0.0, %v1744
  %v3905 = vsub.f32 0.0, %v1745
  %v3906 = vsub.f32 0.0, %v1746
  %v3907 = vsub.f32 0.0, %v1747
  %v3908 = vsub.f32 0.0, %v1748
  %v3909 = vsub.f32 0.0, %v1749
  %v3910 = vsub.f32 0.0, %v1750
  %v3911 = vsub.f32 0.0, %v1751
  %v3912 = vsub.f32 0.0, %v1752
  %v3913 = vsub.f32 0.0, %v1753
  %v3914 = vsub.f32 0.0, %v1754
  %v3915 = vsub.f32 0.0, %v1755
  %v3916 = vsub.f32 0.0, %v1756
  %v3917 = vsub.f32 0.0, %v1757
  %v3918 = vsub.f32 0.0, %v1758
  %v3919 = vsub.f32 0.0, %v1759
  %v3920 = vsub.f32 0.0, %v1760
  %v3921 = vsub.f32 0.0, %v1761
  %v3922 = vsub.f32 0.0, %v1762
  %v3923 = vsub.f32 0.0, %v1763
  %v3924 = vsub.f32 0.0, %v1764
  %v3925 = vsub.f32 0.0, %v1765
  %v3926 = vsub.f32 0.0, %v1766
  %v3927 = vsub.f32 0.0, %v1767
  %v3928 = vsub.f32 0.0, %v1768
  %v3929 = vsub.f32 0.0, %v1769
  %v3930 = vsub.f32 0.0, %v1770
  %v3931 = vsub.f32 0.0, %v1771
  %v3932 = vsub.f32 0.0, %v1772
  %v3933 = vsub.f32 0.0, %v1773
  %v3934 = vsub.f32 0.0, %v1774
  %v3935 = vsub.f32 0.0, %v1775
  %v3936 = vsub.f32 0.0, %v1776
  %v3937 = vsub.f32 0.0, %v1777
  %v3938 = vsub.f32 0.0, %v1778
  %v3939 = vsub.f32 0.0, %v1779
  %v3940 = vsub.f32 0.0, %v1780
  %v3941 = vmul.f32 %v3861, %v1701
  %v3942 = vmul.f32 %v3862, %v1702
  %v3943 = vmul.f32 %v3863, %v1703
  %v3944 = vmul.f32 %v3864, %v1704
  %v3945 = vmul.f32 %v3865, %v1705
  %v3946 = vmul.f32 %v3866, %v1706
  %v3947 = vmul.f32 %v3867, %v1707
  %v3948 = vmul.f32 %v3868, %v1708
  %v3949 = vmul.f32 %v3869, %v1709
  %v3950 = vmul.f32 %v3870, %v1710
  %v3951 = vmul.f32 %v3871, %v1711
  %v3952 = vmul.f32 %v3872, %v1712
  %v3953 = vmul.f32 %v3873, %v1713
  %v3954 = vmul.f32 %v3874, %v1714
  %v3955 = vmul.f32 %v3875, %v1715
  %v3956 = vmul.f32 %v3876, %v1716
  %v3957 = vmul.f32 %v3877, %v1717
  %v3958 = vmul.f32 %v3878, %v1718
  %v3959 = vmul.f32 %v3879, %v1719
  %v3960 = vmul.f32 %v3880, %v1720
  %v3961 = vmul.f32 %v3881, %v1721
  %v3962 = vmul.f32 %v3882, %v1722
  %v3963 = vmul.f32 %v3883, %v1723
  %v3964 = vmul.f32 %v3884, %v1724
  %v3965 = vmul.f32 %v3885, %v1725
  %v3966 = vmul.f32 %v3886, %v1726
  %v3967 = vmul.f32 %v3887, %v1727
  %v3968 = vmul.f32 %v3888, %v1728
  %v3969 = vmul.f32 %v3889, %v1729
  %v3970 = vmul.f32 %v3890, %v1730
  %v3971 = vmul.f32 %v3891, %v1731
  %v3972 = vmul.f32 %v3892, %v1732
  %v3973 = vmul.f32 %v3893, %v1733
  %v3974 = vmul.f32 %v3894, %v1734
  %v3975 = vmul.f32 %v3895, %v1735
  %v3976 = vmul.f32 %v3896, %v1736
  %v3977 = vmul.f32 %v3897, %v1737
  %v3978 = vmul.f32 %v3898, %v1738
  %v3979 = vmul.f32 %v3899, %v1739
  %v3980 = vmul.f32 %v3900, %v1740
  %v3981 = vmul.f32 %v3901, %v1741
  %v3982 = vmul.f32 %v3902, %v1742
  %v3983 = vmul.f32 %v3903, %v1743
  %v3984 = vmul.f32 %v3904, %v1744
  %v3985 = vmul.f32 %v3905, %v1745
  %v3986 = vmul.f32 %v3906, %v1746
  %v3987 = vmul.f32 %v3907, %v1747
  %v3988 = vmul.f32 %v3908, %v1748
  %v3989 = vmul.f32 %v3909, %v1749
  %v3990 = vmul.f32 %v3910, %v1750
  %v3991 = vmul.f32 %v3911, %v1751
  %v3992 = vmul.f32 %v3912, %v1752
  %v3993 = vmul.f32 %v3913, %v1753
  %v3994 = vmul.f32 %v3914, %v1754
  %v3995 = vmul.f32 %v3915, %v1755
  %v3996 = vmul.f32 %v3916, %v1756
  %v3997 = vmul.f32 %v3917, %v1757
  %v3998 = vmul.f32 %v3918, %v1758
  %v3999 = vmul.f32 %v3919, %v1759
  %v4000 = vmul.f32 %v3920, %v1760
  %v4001 = vmul.f32 %v3921, %v1761
  %v4002 = vmul.f32 %v3922, %v1762
  %v4003 = vmul.f32 %v3923, %v1763
  %v4004 = vmul.f32 %v3924, %v1764
  %v4005 = vmul.f32 %v3925, %v1765
  %v4006 = vmul.f32 %v3926, %v1766
  %v4007 = vmul.f32 %v3927, %v1767
  %v4008 = vmul.f32 %v3928, %v1768
  %v4009 = vmul.f32 %v3929, %v1769
  %v4010 = vmul.f32 %v3930, %v1770
  %v4011 = vmul.f32 %v3931, %v1771
  %v4012 = vmul.f32 %v3932, %v1772
  %v4013 = vmul.f32 %v3933, %v1773
  %v4014 = vmul.f32 %v3934, %v1774
  %v4015 = vmul.f32 %v3935, %v1775
  %v4016 = vmul.f32 %v3936, %v1776
  %v4017 = vmul.f32 %v3937, %v1777
  %v4018 = vmul.f32 %v3938, %v1778
  %v4019 = vmul.f32 %v3939, %v1779
  %v4020 = vmul.f32 %v3940, %v1780
  %v4021 = vmul.f32 %v3941, 1.442695
  %v4022 = vpow.pop %v4021
  %v4023 = vmul.f32 %v3942, 1.442695
  %v4024 = vpow.pop %v4023
  %v4025 = vmul.f32 %v3943, 1.442695
  %v4026 = vpow.pop %v4025
  %v4027 = vmul.f32 %v3944, 1.442695
  %v4028 = vpow.pop %v4027
  %v4029 = vmul.f32 %v3945, 1.442695
  %v4030 = vpow.pop %v4029
  %v4031 = vmul.f32 %v3946, 1.442695
  %v4032 = vpow.pop %v4031
  %v4033 = vmul.f32 %v3947, 1.442695
  %v4034 = vpow.pop %v4033
  %v4035 = vmul.f32 %v3948, 1.442695
  %v4036 = vpow.pop %v4035
  %v4037 = vmul.f32 %v3949, 1.442695
  %v4038 = vpow.pop %v4037
  %v4039 = vmul.f32 %v3950, 1.442695
  %v4040 = vpow.pop %v4039
  %v4041 = vmul.f32 %v3951, 1.442695
  %v4042 = vpow.pop %v4041
  %v4043 = vmul.f32 %v3952, 1.442695
  %v4044 = vpow.pop %v4043
  %v4045 = vmul.f32 %v3953, 1.442695
  %v4046 = vpow.pop %v4045
  %v4047 = vmul.f32 %v3954, 1.442695
  %v4048 = vpow.pop %v4047
  %v4049 = vmul.f32 %v3955, 1.442695
  %v4050 = vpow.pop %v4049
  %v4051 = vmul.f32 %v3956, 1.442695
  %v4052 = vpow.pop %v4051
  %v4053 = vmul.f32 %v3957, 1.442695
  %v4054 = vpow.pop %v4053
  %v4055 = vmul.f32 %v3958, 1.442695
  %v4056 = vpow.pop %v4055
  %v4057 = vmul.f32 %v3959, 1.442695
  %v4058 = vpow.pop %v4057
  %v4059 = vmul.f32 %v3960, 1.442695
  %v4060 = vpow.pop %v4059
  %v4061 = vmul.f32 %v3961, 1.442695
  %v4062 = vpow.pop %v4061
  %v4063 = vmul.f32 %v3962, 1.442695
  %v4064 = vpow.pop %v4063
  %v4065 = vmul.f32 %v3963, 1.442695
  %v4066 = vpow.pop %v4065
  %v4067 = vmul.f32 %v3964, 1.442695
  %v4068 = vpow.pop %v4067
  %v4069 = vmul.f32 %v3965, 1.442695
  %v4070 = vpow.pop %v4069
  %v4071 = vmul.f32 %v3966, 1.442695
  %v4072 = vpow.pop %v4071
  %v4073 = vmul.f32 %v3967, 1.442695
  %v4074 = vpow.pop %v4073
  %v4075 = vmul.f32 %v3968, 1.442695
  %v4076 = vpow.pop %v4075
  %v4077 = vmul.f32 %v3969, 1.442695
  %v4078 = vpow.pop %v4077
  %v4079 = vmul.f32 %v3970, 1.442695
  %v4080 = vpow.pop %v4079
  %v4081 = vmul.f32 %v3971, 1.442695
  %v4082 = vpow.pop %v4081
  %v4083 = vmul.f32 %v3972, 1.442695
  %v4084 = vpow.pop %v4083
  %v4085 = vmul.f32 %v3973, 1.442695
  %v4086 = vpow.pop %v4085
  %v4087 = vmul.f32 %v3974, 1.442695
  %v4088 = vpow.pop %v4087
  %v4089 = vmul.f32 %v3975, 1.442695
  %v4090 = vpow.pop %v4089
  %v4091 = vmul.f32 %v3976, 1.442695
  %v4092 = vpow.pop %v4091
  %v4093 = vmul.f32 %v3977, 1.442695
  %v4094 = vpow.pop %v4093
  %v4095 = vmul.f32 %v3978, 1.442695
  %v4096 = vpow.pop %v4095
  %v4097 = vmul.f32 %v3979, 1.442695
  %v4098 = vpow.pop %v4097
  %v4099 = vmul.f32 %v3980, 1.442695
  %v4100 = vpow.pop %v4099
  %v4101 = vmul.f32 %v3981, 1.442695
  %v4102 = vpow.pop %v4101
  %v4103 = vmul.f32 %v3982, 1.442695
  %v4104 = vpow.pop %v4103
  %v4105 = vmul.f32 %v3983, 1.442695
  %v4106 = vpow.pop %v4105
  %v4107 = vmul.f32 %v3984, 1.442695
  %v4108 = vpow.pop %v4107
  %v4109 = vmul.f32 %v3985, 1.442695
  %v4110 = vpow.pop %v4109
  %v4111 = vmul.f32 %v3986, 1.442695
  %v4112 = vpow.pop %v4111
  %v4113 = vmul.f32 %v3987, 1.442695
  %v4114 = vpow.pop %v4113
  %v4115 = vmul.f32 %v3988, 1.442695
  %v4116 = vpow.pop %v4115
  %v4117 = vmul.f32 %v3989, 1.442695
  %v4118 = vpow.pop %v4117
  %v4119 = vmul.f32 %v3990, 1.442695
  %v4120 = vpow.pop %v4119
  %v4121 = vmul.f32 %v3991, 1.442695
  %v4122 = vpow.pop %v4121
  %v4123 = vmul.f32 %v3992, 1.442695
  %v4124 = vpow.pop %v4123
  %v4125 = vmul.f32 %v3993, 1.442695
  %v4126 = vpow.pop %v4125
  %v4127 = vmul.f32 %v3994, 1.442695
  %v4128 = vpow.pop %v4127
  %v4129 = vmul.f32 %v3995, 1.442695
  %v4130 = vpow.pop %v4129
  %v4131 = vmul.f32 %v3996, 1.442695
  %v4132 = vpow.pop %v4131
  %v4133 = vmul.f32 %v3997, 1.442695
  %v4134 = vpow.pop %v4133
  %v4135 = vmul.f32 %v3998, 1.442695
  %v4136 = vpow.pop %v4135
  %v4137 = vmul.f32 %v3999, 1.442695
  %v4138 = vpow.pop %v4137
  %v4139 = vmul.f32 %v4000, 1.442695
  %v4140 = vpow.pop %v4139
  %v4141 = vmul.f32 %v4001, 1.442695
  %v4142 = vpow.pop %v4141
  %v4143 = vmul.f32 %v4002, 1.442695
  %v4144 = vpow.pop %v4143
  %v4145 = vmul.f32 %v4003, 1.442695
  %v4146 = vpow.pop %v4145
  %v4147 = vmul.f32 %v4004, 1.442695
  %v4148 = vpow.pop %v4147
  %v4149 = vmul.f32 %v4005, 1.442695
  %v4150 = vpow.pop %v4149
  %v4151 = vmul.f32 %v4006, 1.442695
  %v4152 = vpow.pop %v4151
  %v4153 = vmul.f32 %v4007, 1.442695
  %v4154 = vpow.pop %v4153
  %v4155 = vmul.f32 %v4008, 1.442695
  %v4156 = vpow.pop %v4155
  %v4157 = vmul.f32 %v4009, 1.442695
  %v4158 = vpow.pop %v4157
  %v4159 = vmul.f32 %v4010, 1.442695
  %v4160 = vpow.pop %v4159
  %v4161 = vmul.f32 %v4011, 1.442695
  %v4162 = vpow.pop %v4161
  %v4163 = vmul.f32 %v4012, 1.442695
  %v4164 = vpow.pop %v4163
  %v4165 = vmul.f32 %v4013, 1.442695
  %v4166 = vpow.pop %v4165
  %v4167 = vmul.f32 %v4014, 1.442695
  %v4168 = vpow.pop %v4167
  %v4169 = vmul.f32 %v4015, 1.442695
  %v4170 = vpow.pop %v4169
  %v4171 = vmul.f32 %v4016, 1.442695
  %v4172 = vpow.pop %v4171
  %v4173 = vmul.f32 %v4017, 1.442695
  %v4174 = vpow.pop %v4173
  %v4175 = vmul.f32 %v4018, 1.442695
  %v4176 = vpow.pop %v4175
  %v4177 = vmul.f32 %v4019, 1.442695
  %v4178 = vpow.pop %v4177
  %v4179 = vmul.f32 %v4020, 1.442695
  %v4180 = vpow.pop %v4179
  %v4181 = vmul.f32 %v3781, %v4022
  %v4182 = vmul.f32 %v3782, %v4024
  %v4183 = vmul.f32 %v3783, %v4026
  %v4184 = vmul.f32 %v3784, %v4028
  %v4185 = vmul.f32 %v3785, %v4030
  %v4186 = vmul.f32 %v3786, %v4032
  %v4187 = vmul.f32 %v3787, %v4034
  %v4188 = vmul.f32 %v3788, %v4036
  %v4189 = vmul.f32 %v3789, %v4038
  %v4190 = vmul.f32 %v3790, %v4040
  %v4191 = vmul.f32 %v3791, %v4042
  %v4192 = vmul.f32 %v3792, %v4044
  %v4193 = vmul.f32 %v3793, %v4046
  %v4194 = vmul.f32 %v3794, %v4048
  %v4195 = vmul.f32 %v3795, %v4050
  %v4196 = vmul.f32 %v3796, %v4052
  %v4197 = vmul.f32 %v3797, %v4054
  %v4198 = vmul.f32 %v3798, %v4056
  %v4199 = vmul.f32 %v3799, %v4058
  %v4200 = vmul.f32 %v3800, %v4060
  %v4201 = vmul.f32 %v3801, %v4062
  %v4202 = vmul.f32 %v3802, %v4064
  %v4203 = vmul.f32 %v3803, %v4066
  %v4204 = vmul.f32 %v3804, %v4068
  %v4205 = vmul.f32 %v3805, %v4070
  %v4206 = vmul.f32 %v3806, %v4072
  %v4207 = vmul.f32 %v3807, %v4074
  %v4208 = vmul.f32 %v3808, %v4076
  %v4209 = vmul.f32 %v3809, %v4078
  %v4210 = vmul.f32 %v3810, %v4080
  %v4211 = vmul.f32 %v3811, %v4082
  %v4212 = vmul.f32 %v3812, %v4084
  %v4213 = vmul.f32 %v3813, %v4086
  %v4214 = vmul.f32 %v3814, %v4088
  %v4215 = vmul.f32 %v3815, %v4090
  %v4216 = vmul.f32 %v3816, %v4092
  %v4217 = vmul.f32 %v3817, %v4094
  %v4218 = vmul.f32 %v3818, %v4096
  %v4219 = vmul.f32 %v3819, %v4098
  %v4220 = vmul.f32 %v3820, %v4100
  %v4221 = vmul.f32 %v3821, %v4102
  %v4222 = vmul.f32 %v3822, %v4104
  %v4223 = vmul.f32 %v3823, %v4106
  %v4224 = vmul.f32 %v3824, %v4108
  %v4225 = vmul.f32 %v3825, %v4110
  %v4226 = vmul.f32 %v3826, %v4112
  %v4227 = vmul.f32 %v3827, %v4114
  %v4228 = vmul.f32 %v3828, %v4116
  %v4229 = vmul.f32 %v3829, %v4118
  %v4230 = vmul.f32 %v3830, %v4120
  %v4231 = vmul.f32 %v3831, %v4122
  %v4232 = vmul.f32 %v3832, %v4124
  %v4233 = vmul.f32 %v3833, %v4126
  %v4234 = vmul.f32 %v3834, %v4128
  %v4235 = vmul.f32 %v3835, %v4130
  %v4236 = vmul.f32 %v3836, %v4132
  %v4237 = vmul.f32 %v3837, %v4134
  %v4238 = vmul.f32 %v3838, %v4136
  %v4239 = vmul.f32 %v3839, %v4138
  %v4240 = vmul.f32 %v3840, %v4140
  %v4241 = vmul.f32 %v3841, %v4142
  %v4242 = vmul.f32 %v3842, %v4144
  %v4243 = vmul.f32 %v3843, %v4146
  %v4244 = vmul.f32 %v3844, %v4148
  %v4245 = vmul.f32 %v3845, %v4150
  %v4246 = vmul.f32 %v3846, %v4152
  %v4247 = vmul.f32 %v3847, %v4154
  %v4248 = vmul.f32 %v3848, %v4156
  %v4249 = vmul.f32 %v3849, %v4158
  %v4250 = vmul.f32 %v3850, %v4160
  %v4251 = vmul.f32 %v3851, %v4162
  %v4252 = vmul.f32 %v3852, %v4164
  %v4253 = vmul.f32 %v3853, %v4166
  %v4254 = vmul.f32 %v3854, %v4168
  %v4255 = vmul.f32 %v3855, %v4170
  %v4256 = vmul.f32 %v3856, %v4172
  %v4257 = vmul.f32 %v3857, %v4174
  %v4258 = vmul.f32 %v3858, %v4176
  %v4259 = vmul.f32 %v3859, %v4178
  %v4260 = vmul.f32 %v3860, %v4180
  %v4261 = vsub.f32 1.0, %v4181
  %v4262 = vsub.f32 1.0, %v4182
  %v4263 = vsub.f32 1.0, %v4183
  %v4264 = vsub.f32 1.0, %v4184
  %v4265 = vsub.f32 1.0, %v4185
  %v4266 = vsub.f32 1.0, %v4186
  %v4267 = vsub.f32 1.0, %v4187
  %v4268 = vsub.f32 1.0, %v4188
  %v4269 = vsub.f32 1.0, %v4189
  %v4270 = vsub.f32 1.0, %v4190
  %v4271 = vsub.f32 1.0, %v4191
  %v4272 = vsub.f32 1.0, %v4192
  %v4273 = vsub.f32 1.0, %v4193
  %v4274 = vsub.f32 1.0, %v4194
  %v4275 = vsub.f32 1.0, %v4195
  %v4276 = vsub.f32 1.0, %v4196
  %v4277 = vsub.f32 1.0, %v4197
  %v4278 = vsub.f32 1.0, %v4198
  %v4279 = vsub.f32 1.0, %v4199
  %v4280 = vsub.f32 1.0, %v4200
  %v4281 = vsub.f32 1.0, %v4201
  %v4282 = vsub.f32 1.0, %v4202
  %v4283 = vsub.f32 1.0, %v4203
  %v4284 = vsub.f32 1.0, %v4204
  %v4285 = vsub.f32 1.0, %v4205
  %v4286 = vsub.f32 1.0, %v4206
  %v4287 = vsub.f32 1.0, %v4207
  %v4288 = vsub.f32 1.0, %v4208
  %v4289 = vsub.f32 1.0, %v4209
  %v4290 = vsub.f32 1.0, %v4210
  %v4291 = vsub.f32 1.0, %v4211
  %v4292 = vsub.f32 1.0, %v4212
  %v4293 = vsub.f32 1.0, %v4213
  %v4294 = vsub.f32 1.0, %v4214
  %v4295 = vsub.f32 1.0, %v4215
  %v4296 = vsub.f32 1.0, %v4216
  %v4297 = vsub.f32 1.0, %v4217
  %v4298 = vsub.f32 1.0, %v4218
  %v4299 = vsub.f32 1.0, %v4219
  %v4300 = vsub.f32 1.0, %v4220
  %v4301 = vsub.f32 1.0, %v4221
  %v4302 = vsub.f32 1.0, %v4222
  %v4303 = vsub.f32 1.0, %v4223
  %v4304 = vsub.f32 1.0, %v4224
  %v4305 = vsub.f32 1.0, %v4225
  %v4306 = vsub.f32 1.0, %v4226
  %v4307 = vsub.f32 1.0, %v4227
  %v4308 = vsub.f32 1.0, %v4228
  %v4309 = vsub.f32 1.0, %v4229
  %v4310 = vsub.f32 1.0, %v4230
  %v4311 = vsub.f32 1.0, %v4231
  %v4312 = vsub.f32 1.0, %v4232
  %v4313 = vsub.f32 1.0, %v4233
  %v4314 = vsub.f32 1.0, %v4234
  %v4315 = vsub.f32 1.0, %v4235
  %v4316 = vsub.f32 1.0, %v4236
  %v4317 = vsub.f32 1.0, %v4237
  %v4318 = vsub.f32 1.0, %v4238
  %v4319 = vsub.f32 1.0, %v4239
  %v4320 = vsub.f32 1.0, %v4240
  %v4321 = vsub.f32 1.0, %v4241
  %v4322 = vsub.f32 1.0, %v4242
  %v4323 = vsub.f32 1.0, %v4243
  %v4324 = vsub.f32 1.0, %v4244
  %v4325 = vsub.f32 1.0, %v4245
  %v4326 = vsub.f32 1.0, %v4246
  %v4327 = vsub.f32 1.0, %v4247
  %v4328 = vsub.f32 1.0, %v4248
  %v4329 = vsub.f32 1.0, %v4249
  %v4330 = vsub.f32 1.0, %v4250
  %v4331 = vsub.f32 1.0, %v4251
  %v4332 = vsub.f32 1.0, %v4252
  %v4333 = vsub.f32 1.0, %v4253
  %v4334 = vsub.f32 1.0, %v4254
  %v4335 = vsub.f32 1.0, %v4255
  %v4336 = vsub.f32 1.0, %v4256
  %v4337 = vsub.f32 1.0, %v4257
  %v4338 = vsub.f32 1.0, %v4258
  %v4339 = vsub.f32 1.0, %v4259
  %v4340 = vsub.f32 1.0, %v4260
  %v4341 = vmul.f32 %v1621, %v4261
  %v4342 = vmul.f32 %v1622, %v4262
  %v4343 = vmul.f32 %v1623, %v4263
  %v4344 = vmul.f32 %v1624, %v4264
  %v4345 = vmul.f32 %v1625, %v4265
  %v4346 = vmul.f32 %v1626, %v4266
  %v4347 = vmul.f32 %v1627, %v4267
  %v4348 = vmul.f32 %v1628, %v4268
  %v4349 = vmul.f32 %v1629, %v4269
  %v4350 = vmul.f32 %v1630, %v4270
  %v4351 = vmul.f32 %v1631, %v4271
  %v4352 = vmul.f32 %v1632, %v4272
  %v4353 = vmul.f32 %v1633, %v4273
  %v4354 = vmul.f32 %v1634, %v4274
  %v4355 = vmul.f32 %v1635, %v4275
  %v4356 = vmul.f32 %v1636, %v4276
  %v4357 = vmul.f32 %v1637, %v4277
  %v4358 = vmul.f32 %v1638, %v4278
  %v4359 = vmul.f32 %v1639, %v4279
  %v4360 = vmul.f32 %v1640, %v4280
  %v4361 = vmul.f32 %v1641, %v4281
  %v4362 = vmul.f32 %v1642, %v4282
  %v4363 = vmul.f32 %v1643, %v4283
  %v4364 = vmul.f32 %v1644, %v4284
  %v4365 = vmul.f32 %v1645, %v4285
  %v4366 = vmul.f32 %v1646, %v4286
  %v4367 = vmul.f32 %v1647, %v4287
  %v4368 = vmul.f32 %v1648, %v4288
  %v4369 = vmul.f32 %v1649, %v4289
  %v4370 = vmul.f32 %v1650, %v4290
  %v4371 = vmul.f32 %v1651, %v4291
  %v4372 = vmul.f32 %v1652, %v4292
  %v4373 = vmul.f32 %v1653, %v4293
  %v4374 = vmul.f32 %v1654, %v4294
  %v4375 = vmul.f32 %v1655, %v4295
  %v4376 = vmul.f32 %v1656, %v4296
  %v4377 = vmul.f32 %v1657, %v4297
  %v4378 = vmul.f32 %v1658, %v4298
  %v4379 = vmul.f32 %v1659, %v4299
  %v4380 = vmul.f32 %v1660, %v4300
  %v4381 = vmul.f32 %v1661, %v4301
  %v4382 = vmul.f32 %v1662, %v4302
  %v4383 = vmul.f32 %v1663, %v4303
  %v4384 = vmul.f32 %v1664, %v4304
  %v4385 = vmul.f32 %v1665, %v4305
  %v4386 = vmul.f32 %v1666, %v4306
  %v4387 = vmul.f32 %v1667, %v4307
  %v4388 = vmul.f32 %v1668, %v4308
  %v4389 = vmul.f32 %v1669, %v4309
  %v4390 = vmul.f32 %v1670, %v4310
  %v4391 = vmul.f32 %v1671, %v4311
  %v4392 = vmul.f32 %v1672, %v4312
  %v4393 = vmul.f32 %v1673, %v4313
  %v4394 = vmul.f32 %v1674, %v4314
  %v4395 = vmul.f32 %v1675, %v4315
  %v4396 = vmul.f32 %v1676, %v4316
  %v4397 = vmul.f32 %v1677, %v4317
  %v4398 = vmul.f32 %v1678, %v4318
  %v4399 = vmul.f32 %v1679, %v4319
  %v4400 = vmul.f32 %v1680, %v4320
  %v4401 = vmul.f32 %v1681, %v4321
  %v4402 = vmul.f32 %v1682, %v4322
  %v4403 = vmul.f32 %v1683, %v4323
  %v4404 = vmul.f32 %v1684, %v4324
  %v4405 = vmul.f32 %v1685, %v4325
  %v4406 = vmul.f32 %v1686, %v4326
  %v4407 = vmul.f32 %v1687, %v4327
  %v4408 = vmul.f32 %v1688, %v4328
  %v4409 = vmul.f32 %v1689, %v4329
  %v4410 = vmul.f32 %v1690, %v4330
  %v4411 = vmul.f32 %v1691, %v4331
  %v4412 = vmul.f32 %v1692, %v4332
  %v4413 = vmul.f32 %v1693, %v4333
  %v4414 = vmul.f32 %v1694, %v4334
  %v4415 = vmul.f32 %v1695, %v4335
  %v4416 = vmul.f32 %v1696, %v4336
  %v4417 = vmul.f32 %v1697, %v4337
  %v4418 = vmul.f32 %v1698, %v4338
  %v4419 = vmul.f32 %v1699, %v4339
  %v4420 = vmul.f32 %v1700, %v4340
  %v4421 = vadd.f32 %v4341, 1.0
  %v4422 = vadd.f32 %v4342, 1.0
  %v4423 = vadd.f32 %v4343, 1.0
  %v4424 = vadd.f32 %v4344, 1.0
  %v4425 = vadd.f32 %v4345, 1.0
  %v4426 = vadd.f32 %v4346, 1.0
  %v4427 = vadd.f32 %v4347, 1.0
  %v4428 = vadd.f32 %v4348, 1.0
  %v4429 = vadd.f32 %v4349, 1.0
  %v4430 = vadd.f32 %v4350, 1.0
  %v4431 = vadd.f32 %v4351, 1.0
  %v4432 = vadd.f32 %v4352, 1.0
  %v4433 = vadd.f32 %v4353, 1.0
  %v4434 = vadd.f32 %v4354, 1.0
  %v4435 = vadd.f32 %v4355, 1.0
  %v4436 = vadd.f32 %v4356, 1.0
  %v4437 = vadd.f32 %v4357, 1.0
  %v4438 = vadd.f32 %v4358, 1.0
  %v4439 = vadd.f32 %v4359, 1.0
  %v4440 = vadd.f32 %v4360, 1.0
  %v4441 = vadd.f32 %v4361, 1.0
  %v4442 = vadd.f32 %v4362, 1.0
  %v4443 = vadd.f32 %v4363, 1.0
  %v4444 = vadd.f32 %v4364, 1.0
  %v4445 = vadd.f32 %v4365, 1.0
  %v4446 = vadd.f32 %v4366, 1.0
  %v4447 = vadd.f32 %v4367, 1.0
  %v4448 = vadd.f32 %v4368, 1.0
  %v4449 = vadd.f32 %v4369, 1.0
  %v4450 = vadd.f32 %v4370, 1.0
  %v4451 = vadd.f32 %v4371, 1.0
  %v4452 = vadd.f32 %v4372, 1.0
  %v4453 = vadd.f32 %v4373, 1.0
  %v4454 = vadd.f32 %v4374, 1.0
  %v4455 = vadd.f32 %v4375, 1.0
  %v4456 = vadd.f32 %v4376, 1.0
  %v4457 = vadd.f32 %v4377, 1.0
  %v4458 = vadd.f32 %v4378, 1.0
  %v4459 = vadd.f32 %v4379, 1.0
  %v4460 = vadd.f32 %v4380, 1.0
  %v4461 = vadd.f32 %v4381, 1.0
  %v4462 = vadd.f32 %v4382, 1.0
  %v4463 = vadd.f32 %v4383, 1.0
  %v4464 = vadd.f32 %v4384, 1.0
  %v4465 = vadd.f32 %v4385, 1.0
  %v4466 = vadd.f32 %v4386, 1.0
  %v4467 = vadd.f32 %v4387, 1.0
  %v4468 = vadd.f32 %v4388, 1.0
  %v4469 = vadd.f32 %v4389, 1.0
  %v4470 = vadd.f32 %v4390, 1.0
  %v4471 = vadd.f32 %v4391, 1.0
  %v4472 = vadd.f32 %v4392, 1.0
  %v4473 = vadd.f32 %v4393, 1.0
  %v4474 = vadd.f32 %v4394, 1.0
  %v4475 = vadd.f32 %v4395, 1.0
  %v4476 = vadd.f32 %v4396, 1.0
  %v4477 = vadd.f32 %v4397, 1.0
  %v4478 = vadd.f32 %v4398, 1.0
  %v4479 = vadd.f32 %v4399, 1.0
  %v4480 = vadd.f32 %v4400, 1.0
  %v4481 = vadd.f32 %v4401, 1.0
  %v4482 = vadd.f32 %v4402, 1.0
  %v4483 = vadd.f32 %v4403, 1.0
  %v4484 = vadd.f32 %v4404, 1.0
  %v4485 = vadd.f32 %v4405, 1.0
  %v4486 = vadd.f32 %v4406, 1.0
  %v4487 = vadd.f32 %v4407, 1.0
  %v4488 = vadd.f32 %v4408, 1.0
  %v4489 = vadd.f32 %v4409, 1.0
  %v4490 = vadd.f32 %v4410, 1.0
  %v4491 = vadd.f32 %v4411, 1.0
  %v4492 = vadd.f32 %v4412, 1.0
  %v4493 = vadd.f32 %v4413, 1.0
  %v4494 = vadd.f32 %v4414, 1.0
  %v4495 = vadd.f32 %v4415, 1.0
  %v4496 = vadd.f32 %v4416, 1.0
  %v4497 = vadd.f32 %v4417, 1.0
  %v4498 = vadd.f32 %v4418, 1.0
  %v4499 = vadd.f32 %v4419, 1.0
  %v4500 = vadd.f32 %v4420, 1.0
  %v4501 = vmul.f32 %v1381, %v4421
  %v4502 = vmul.f32 %v1382, %v4422
  %v4503 = vmul.f32 %v1383, %v4423
  %v4504 = vmul.f32 %v1384, %v4424
  %v4505 = vmul.f32 %v1385, %v4425
  %v4506 = vmul.f32 %v1386, %v4426
  %v4507 = vmul.f32 %v1387, %v4427
  %v4508 = vmul.f32 %v1388, %v4428
  %v4509 = vmul.f32 %v1389, %v4429
  %v4510 = vmul.f32 %v1390, %v4430
  %v4511 = vmul.f32 %v1391, %v4431
  %v4512 = vmul.f32 %v1392, %v4432
  %v4513 = vmul.f32 %v1393, %v4433
  %v4514 = vmul.f32 %v1394, %v4434
  %v4515 = vmul.f32 %v1395, %v4435
  %v4516 = vmul.f32 %v1396, %v4436
  %v4517 = vmul.f32 %v1397, %v4437
  %v4518 = vmul.f32 %v1398, %v4438
  %v4519 = vmul.f32 %v1399, %v4439
  %v4520 = vmul.f32 %v1400, %v4440
  %v4521 = vmul.f32 %v1401, %v4441
  %v4522 = vmul.f32 %v1402, %v4442
  %v4523 = vmul.f32 %v1403, %v4443
  %v4524 = vmul.f32 %v1404, %v4444
  %v4525 = vmul.f32 %v1405, %v4445
  %v4526 = vmul.f32 %v1406, %v4446
  %v4527 = vmul.f32 %v1407, %v4447
  %v4528 = vmul.f32 %v1408, %v4448
  %v4529 = vmul.f32 %v1409, %v4449
  %v4530 = vmul.f32 %v1410, %v4450
  %v4531 = vmul.f32 %v1411, %v4451
  %v4532 = vmul.f32 %v1412, %v4452
  %v4533 = vmul.f32 %v1413, %v4453
  %v4534 = vmul.f32 %v1414, %v4454
  %v4535 = vmul.f32 %v1415, %v4455
  %v4536 = vmul.f32 %v1416, %v4456
  %v4537 = vmul.f32 %v1417, %v4457
  %v4538 = vmul.f32 %v1418, %v4458
  %v4539 = vmul.f32 %v1419, %v4459
  %v4540 = vmul.f32 %v1420, %v4460
  %v4541 = vmul.f32 %v1421, %v4461
  %v4542 = vmul.f32 %v1422, %v4462
  %v4543 = vmul.f32 %v1423, %v4463
  %v4544 = vmul.f32 %v1424, %v4464
  %v4545 = vmul.f32 %v1425, %v4465
  %v4546 = vmul.f32 %v1426, %v4466
  %v4547 = vmul.f32 %v1427, %v4467
  %v4548 = vmul.f32 %v1428, %v4468
  %v4549 = vmul.f32 %v1429, %v4469
  %v4550 = vmul.f32 %v1430, %v4470
  %v4551 = vmul.f32 %v1431, %v4471
  %v4552 = vmul.f32 %v1432, %v4472
  %v4553 = vmul.f32 %v1433, %v4473
  %v4554 = vmul.f32 %v1434, %v4474
  %v4555 = vmul.f32 %v1435, %v4475
  %v4556 = vmul.f32 %v1436, %v4476
  %v4557 = vmul.f32 %v1437, %v4477
  %v4558 = vmul.f32 %v1438, %v4478
  %v4559 = vmul.f32 %v1439, %v4479
  %v4560 = vmul.f32 %v1440, %v4480
  %v4561 = vmul.f32 %v1441, %v4481
  %v4562 = vmul.f32 %v1442, %v4482
  %v4563 = vmul.f32 %v1443, %v4483
  %v4564 = vmul.f32 %v1444, %v4484
  %v4565 = vmul.f32 %v1445, %v4485
  %v4566 = vmul.f32 %v1446, %v4486
  %v4567 = vmul.f32 %v1447, %v4487
  %v4568 = vmul.f32 %v1448, %v4488
  %v4569 = vmul.f32 %v1449, %v4489
  %v4570 = vmul.f32 %v1450, %v4490
  %v4571 = vmul.f32 %v1451, %v4491
  %v4572 = vmul.f32 %v1452, %v4492
  %v4573 = vmul.f32 %v1453, %v4493
  %v4574 = vmul.f32 %v1454, %v4494
  %v4575 = vmul.f32 %v1455, %v4495
  %v4576 = vmul.f32 %v1456, %v4496
  %v4577 = vmul.f32 %v1457, %v4497
  %v4578 = vmul.f32 %v1458, %v4498
  %v4579 = vmul.f32 %v1459, %v4499
  %v4580 = vmul.f32 %v1460, %v4500
  %v4581 = vld [vmem:[%s5] sm:$0xff]
  %v4582 = vld [vmem:[%s5 + $0x8] sm:$0xff]
  %v4583 = vld [vmem:[%s5 + $0x10] sm:$0xff]
  %v4584 = vld [vmem:[%s5 + $0x18] sm:$0xff]
  %v4585 = vld [vmem:[%s5 + $0x20] sm:$0xff]
  %v4586 = vld [vmem:[%s5 + $0x28] sm:$0xff]
  %v4587 = vld [vmem:[%s5 + $0x30] sm:$0xff]
  %v4588 = vld [vmem:[%s5 + $0x38] sm:$0xff]
  %v4589 = vld [vmem:[%s5 + $0x40] sm:$0xff]
  %v4590 = vld [vmem:[%s5 + $0x48] sm:$0xff]
  %v4591 = vld [vmem:[%s5 + $0x50] sm:$0xff]
  %v4592 = vld [vmem:[%s5 + $0x58] sm:$0xff]
  %v4593 = vld [vmem:[%s5 + $0x60] sm:$0xff]
  %v4594 = vld [vmem:[%s5 + $0x68] sm:$0xff]
  %v4595 = vld [vmem:[%s5 + $0x70] sm:$0xff]
  %v4596 = vld [vmem:[%s5 + $0x78] sm:$0xff]
  %v4597 = vld [vmem:[%s5 + $0x80] sm:$0xff]
  %v4598 = vld [vmem:[%s5 + $0x88] sm:$0xff]
  %v4599 = vld [vmem:[%s5 + $0x90] sm:$0xff]
  %v4600 = vld [vmem:[%s5 + $0x98] sm:$0xff]
  %v4601 = vld [vmem:[%s5 + $0xa0] sm:$0xff]
  %v4602 = vld [vmem:[%s5 + $0xa8] sm:$0xff]
  %v4603 = vld [vmem:[%s5 + $0xb0] sm:$0xff]
  %v4604 = vld [vmem:[%s5 + $0xb8] sm:$0xff]
  %v4605 = vld [vmem:[%s5 + $0xc0] sm:$0xff]
  %v4606 = vld [vmem:[%s5 + $0xc8] sm:$0xff]
  %v4607 = vld [vmem:[%s5 + $0xd0] sm:$0xff]
  %v4608 = vld [vmem:[%s5 + $0xd8] sm:$0xff]
  %v4609 = vld [vmem:[%s5 + $0xe0] sm:$0xff]
  %v4610 = vld [vmem:[%s5 + $0xe8] sm:$0xff]
  %v4611 = vld [vmem:[%s5 + $0xf0] sm:$0xff]
  %v4612 = vld [vmem:[%s5 + $0xf8] sm:$0xff]
  %v4613 = vld [vmem:[%s5 + $0x100] sm:$0xff]
  %v4614 = vld [vmem:[%s5 + $0x108] sm:$0xff]
  %v4615 = vld [vmem:[%s5 + $0x110] sm:$0xff]
  %v4616 = vld [vmem:[%s5 + $0x118] sm:$0xff]
  %v4617 = vld [vmem:[%s5 + $0x120] sm:$0xff]
  %v4618 = vld [vmem:[%s5 + $0x128] sm:$0xff]
  %v4619 = vld [vmem:[%s5 + $0x130] sm:$0xff]
  %v4620 = vld [vmem:[%s5 + $0x138] sm:$0xff]
  %v4621 = vld [vmem:[%s5 + $0x140] sm:$0xff]
  %v4622 = vld [vmem:[%s5 + $0x148] sm:$0xff]
  %v4623 = vld [vmem:[%s5 + $0x150] sm:$0xff]
  %v4624 = vld [vmem:[%s5 + $0x158] sm:$0xff]
  %v4625 = vld [vmem:[%s5 + $0x160] sm:$0xff]
  %v4626 = vld [vmem:[%s5 + $0x168] sm:$0xff]
  %v4627 = vld [vmem:[%s5 + $0x170] sm:$0xff]
  %v4628 = vld [vmem:[%s5 + $0x178] sm:$0xff]
  %v4629 = vld [vmem:[%s5 + $0x180] sm:$0xff]
  %v4630 = vld [vmem:[%s5 + $0x188] sm:$0xff]
  %v4631 = vld [vmem:[%s5 + $0x190] sm:$0xff]
  %v4632 = vld [vmem:[%s5 + $0x198] sm:$0xff]
  %v4633 = vld [vmem:[%s5 + $0x1a0] sm:$0xff]
  %v4634 = vld [vmem:[%s5 + $0x1a8] sm:$0xff]
  %v4635 = vld [vmem:[%s5 + $0x1b0] sm:$0xff]
  %v4636 = vld [vmem:[%s5 + $0x1b8] sm:$0xff]
  %v4637 = vld [vmem:[%s5 + $0x1c0] sm:$0xff]
  %v4638 = vld [vmem:[%s5 + $0x1c8] sm:$0xff]
  %v4639 = vld [vmem:[%s5 + $0x1d0] sm:$0xff]
  %v4640 = vld [vmem:[%s5 + $0x1d8] sm:$0xff]
  %v4641 = vld [vmem:[%s5 + $0x1e0] sm:$0xff]
  %v4642 = vld [vmem:[%s5 + $0x1e8] sm:$0xff]
  %v4643 = vld [vmem:[%s5 + $0x1f0] sm:$0xff]
  %v4644 = vld [vmem:[%s5 + $0x1f8] sm:$0xff]
  %v4645 = vld [vmem:[%s5 + $0x200] sm:$0xff]
  %v4646 = vld [vmem:[%s5 + $0x208] sm:$0xff]
  %v4647 = vld [vmem:[%s5 + $0x210] sm:$0xff]
  %v4648 = vld [vmem:[%s5 + $0x218] sm:$0xff]
  %v4649 = vld [vmem:[%s5 + $0x220] sm:$0xff]
  %v4650 = vld [vmem:[%s5 + $0x228] sm:$0xff]
  %v4651 = vld [vmem:[%s5 + $0x230] sm:$0xff]
  %v4652 = vld [vmem:[%s5 + $0x238] sm:$0xff]
  %v4653 = vld [vmem:[%s5 + $0x240] sm:$0xff]
  %v4654 = vld [vmem:[%s5 + $0x248] sm:$0xff]
  %v4655 = vld [vmem:[%s5 + $0x250] sm:$0xff]
  %v4656 = vld [vmem:[%s5 + $0x258] sm:$0xff]
  %v4657 = vld [vmem:[%s5 + $0x260] sm:$0xff]
  %v4658 = vld [vmem:[%s5 + $0x268] sm:$0xff]
  %v4659 = vld [vmem:[%s5 + $0x270] sm:$0xff]
  %v4660 = vld [vmem:[%s5 + $0x278] sm:$0xff]
  %v4661 = vld [vmem:[%s5 + $0x280] sm:$0xff]
  %v4662 = vld [vmem:[%s5 + $0x288] sm:$0xff]
  %v4663 = vld [vmem:[%s5 + $0x290] sm:$0xff]
  %v4664 = vld [vmem:[%s5 + $0x298] sm:$0xff]
  %v4665 = vld [vmem:[%s5 + $0x2a0] sm:$0xff]
  %v4666 = vld [vmem:[%s5 + $0x2a8] sm:$0xff]
  %v4667 = vld [vmem:[%s5 + $0x2b0] sm:$0xff]
  %v4668 = vld [vmem:[%s5 + $0x2b8] sm:$0xff]
  %v4669 = vld [vmem:[%s5 + $0x2c0] sm:$0xff]
  %v4670 = vld [vmem:[%s5 + $0x2c8] sm:$0xff]
  %v4671 = vld [vmem:[%s5 + $0x2d0] sm:$0xff]
  %v4672 = vld [vmem:[%s5 + $0x2d8] sm:$0xff]
  %v4673 = vld [vmem:[%s5 + $0x2e0] sm:$0xff]
  %v4674 = vld [vmem:[%s5 + $0x2e8] sm:$0xff]
  %v4675 = vld [vmem:[%s5 + $0x2f0] sm:$0xff]
  %v4676 = vld [vmem:[%s5 + $0x2f8] sm:$0xff]
  %v4677 = vld [vmem:[%s5 + $0x300] sm:$0xff]
  %v4678 = vld [vmem:[%s5 + $0x308] sm:$0xff]
  %v4679 = vld [vmem:[%s5 + $0x310] sm:$0xff]
  %v4680 = vld [vmem:[%s5 + $0x318] sm:$0xff]
  %v4681 = vld [vmem:[%s5 + $0x320] sm:$0xff]
  %v4682 = vld [vmem:[%s5 + $0x328] sm:$0xff]
  %v4683 = vld [vmem:[%s5 + $0x330] sm:$0xff]
  %v4684 = vld [vmem:[%s5 + $0x338] sm:$0xff]
  %v4685 = vld [vmem:[%s5 + $0x340] sm:$0xff]
  %v4686 = vld [vmem:[%s5 + $0x348] sm:$0xff]
  %v4687 = vld [vmem:[%s5 + $0x350] sm:$0xff]
  %v4688 = vld [vmem:[%s5 + $0x358] sm:$0xff]
  %v4689 = vld [vmem:[%s5 + $0x360] sm:$0xff]
  %v4690 = vld [vmem:[%s5 + $0x368] sm:$0xff]
  %v4691 = vld [vmem:[%s5 + $0x370] sm:$0xff]
  %v4692 = vld [vmem:[%s5 + $0x378] sm:$0xff]
  %v4693 = vld [vmem:[%s5 + $0x380] sm:$0xff]
  %v4694 = vld [vmem:[%s5 + $0x388] sm:$0xff]
  %v4695 = vld [vmem:[%s5 + $0x390] sm:$0xff]
  %v4696 = vld [vmem:[%s5 + $0x398] sm:$0xff]
  %v4697 = vld [vmem:[%s5 + $0x3a0] sm:$0xff]
  %v4698 = vld [vmem:[%s5 + $0x3a8] sm:$0xff]
  %v4699 = vld [vmem:[%s5 + $0x3b0] sm:$0xff]
  %v4700 = vld [vmem:[%s5 + $0x3b8] sm:$0xff]
  %v4701 = vld [vmem:[%s5 + $0x3c0] sm:$0xff]
  %v4702 = vld [vmem:[%s5 + $0x3c8] sm:$0xff]
  %v4703 = vld [vmem:[%s5 + $0x3d0] sm:$0xff]
  %v4704 = vld [vmem:[%s5 + $0x3d8] sm:$0xff]
  %v4705 = vld [vmem:[%s5 + $0x3e0] sm:$0xff]
  %v4706 = vld [vmem:[%s5 + $0x3e8] sm:$0xff]
  %v4707 = vld [vmem:[%s5 + $0x3f0] sm:$0xff]
  %v4708 = vld [vmem:[%s5 + $0x3f8] sm:$0xff]
  %v4709 = vld [vmem:[%s5 + $0x400] sm:$0xff]
  %v4710 = vld [vmem:[%s5 + $0x408] sm:$0xff]
  %v4711 = vld [vmem:[%s5 + $0x410] sm:$0xff]
  %v4712 = vld [vmem:[%s5 + $0x418] sm:$0xff]
  %v4713 = vld [vmem:[%s5 + $0x420] sm:$0xff]
  %v4714 = vld [vmem:[%s5 + $0x428] sm:$0xff]
  %v4715 = vld [vmem:[%s5 + $0x430] sm:$0xff]
  %v4716 = vld [vmem:[%s5 + $0x438] sm:$0xff]
  %v4717 = vld [vmem:[%s5 + $0x440] sm:$0xff]
  %v4718 = vld [vmem:[%s5 + $0x448] sm:$0xff]
  %v4719 = vld [vmem:[%s5 + $0x450] sm:$0xff]
  %v4720 = vld [vmem:[%s5 + $0x458] sm:$0xff]
  %v4721 = vld [vmem:[%s5 + $0x460] sm:$0xff]
  %v4722 = vld [vmem:[%s5 + $0x468] sm:$0xff]
  %v4723 = vld [vmem:[%s5 + $0x470] sm:$0xff]
  %v4724 = vld [vmem:[%s5 + $0x478] sm:$0xff]
  %v4725 = vld [vmem:[%s5 + $0x480] sm:$0xff]
  %v4726 = vld [vmem:[%s5 + $0x488] sm:$0xff]
  %v4727 = vld [vmem:[%s5 + $0x490] sm:$0xff]
  %v4728 = vld [vmem:[%s5 + $0x498] sm:$0xff]
  %v4729 = vld [vmem:[%s5 + $0x4a0] sm:$0xff]
  %v4730 = vld [vmem:[%s5 + $0x4a8] sm:$0xff]
  %v4731 = vld [vmem:[%s5 + $0x4b0] sm:$0xff]
  %v4732 = vld [vmem:[%s5 + $0x4b8] sm:$0xff]
  %v4733 = vld [vmem:[%s5 + $0x4c0] sm:$0xff]
  %v4734 = vld [vmem:[%s5 + $0x4c8] sm:$0xff]
  %v4735 = vld [vmem:[%s5 + $0x4d0] sm:$0xff]
  %v4736 = vld [vmem:[%s5 + $0x4d8] sm:$0xff]
  %v4737 = vld [vmem:[%s5 + $0x4e0] sm:$0xff]
  %v4738 = vld [vmem:[%s5 + $0x4e8] sm:$0xff]
  %v4739 = vld [vmem:[%s5 + $0x4f0] sm:$0xff]
  %v4740 = vld [vmem:[%s5 + $0x4f8] sm:$0xff]
  %v4741 = vld [vmem:[%s5 + $0x500] sm:$0xff]
  %v4742 = vld [vmem:[%s5 + $0x508] sm:$0xff]
  %v4743 = vld [vmem:[%s5 + $0x510] sm:$0xff]
  %v4744 = vld [vmem:[%s5 + $0x518] sm:$0xff]
  %v4745 = vld [vmem:[%s5 + $0x520] sm:$0xff]
  %v4746 = vld [vmem:[%s5 + $0x528] sm:$0xff]
  %v4747 = vld [vmem:[%s5 + $0x530] sm:$0xff]
  %v4748 = vld [vmem:[%s5 + $0x538] sm:$0xff]
  %v4749 = vld [vmem:[%s5 + $0x540] sm:$0xff]
  %v4750 = vld [vmem:[%s5 + $0x548] sm:$0xff]
  %v4751 = vld [vmem:[%s5 + $0x550] sm:$0xff]
  %v4752 = vld [vmem:[%s5 + $0x558] sm:$0xff]
  %v4753 = vld [vmem:[%s5 + $0x560] sm:$0xff]
  %v4754 = vld [vmem:[%s5 + $0x568] sm:$0xff]
  %v4755 = vld [vmem:[%s5 + $0x570] sm:$0xff]
  %v4756 = vld [vmem:[%s5 + $0x578] sm:$0xff]
  %v4757 = vld [vmem:[%s5 + $0x580] sm:$0xff]
  %v4758 = vld [vmem:[%s5 + $0x588] sm:$0xff]
  %v4759 = vld [vmem:[%s5 + $0x590] sm:$0xff]
  %v4760 = vld [vmem:[%s5 + $0x598] sm:$0xff]
  %v4761 = vld [vmem:[%s5 + $0x5a0] sm:$0xff]
  %v4762 = vld [vmem:[%s5 + $0x5a8] sm:$0xff]
  %v4763 = vld [vmem:[%s5 + $0x5b0] sm:$0xff]
  %v4764 = vld [vmem:[%s5 + $0x5b8] sm:$0xff]
  %v4765 = vld [vmem:[%s5 + $0x5c0] sm:$0xff]
  %v4766 = vld [vmem:[%s5 + $0x5c8] sm:$0xff]
  %v4767 = vld [vmem:[%s5 + $0x5d0] sm:$0xff]
  %v4768 = vld [vmem:[%s5 + $0x5d8] sm:$0xff]
  %v4769 = vld [vmem:[%s5 + $0x5e0] sm:$0xff]
  %v4770 = vld [vmem:[%s5 + $0x5e8] sm:$0xff]
  %v4771 = vld [vmem:[%s5 + $0x5f0] sm:$0xff]
  %v4772 = vld [vmem:[%s5 + $0x5f8] sm:$0xff]
  %v4773 = vld [vmem:[%s5 + $0x600] sm:$0xff]
  %v4774 = vld [vmem:[%s5 + $0x608] sm:$0xff]
  %v4775 = vld [vmem:[%s5 + $0x610] sm:$0xff]
  %v4776 = vld [vmem:[%s5 + $0x618] sm:$0xff]
  %v4777 = vld [vmem:[%s5 + $0x620] sm:$0xff]
  %v4778 = vld [vmem:[%s5 + $0x628] sm:$0xff]
  %v4779 = vld [vmem:[%s5 + $0x630] sm:$0xff]
  %v4780 = vld [vmem:[%s5 + $0x638] sm:$0xff]
  %v4781 = vld [vmem:[%s5 + $0x640] sm:$0xff]
  %v4782 = vld [vmem:[%s5 + $0x648] sm:$0xff]
  %v4783 = vld [vmem:[%s5 + $0x650] sm:$0xff]
  %v4784 = vld [vmem:[%s5 + $0x658] sm:$0xff]
  %v4785 = vld [vmem:[%s5 + $0x660] sm:$0xff]
  %v4786 = vld [vmem:[%s5 + $0x668] sm:$0xff]
  %v4787 = vld [vmem:[%s5 + $0x670] sm:$0xff]
  %v4788 = vld [vmem:[%s5 + $0x678] sm:$0xff]
  %v4789 = vld [vmem:[%s5 + $0x680] sm:$0xff]
  %v4790 = vld [vmem:[%s5 + $0x688] sm:$0xff]
  %v4791 = vld [vmem:[%s5 + $0x690] sm:$0xff]
  %v4792 = vld [vmem:[%s5 + $0x698] sm:$0xff]
  %v4793 = vld [vmem:[%s5 + $0x6a0] sm:$0xff]
  %v4794 = vld [vmem:[%s5 + $0x6a8] sm:$0xff]
  %v4795 = vld [vmem:[%s5 + $0x6b0] sm:$0xff]
  %v4796 = vld [vmem:[%s5 + $0x6b8] sm:$0xff]
  %v4797 = vld [vmem:[%s5 + $0x6c0] sm:$0xff]
  %v4798 = vld [vmem:[%s5 + $0x6c8] sm:$0xff]
  %v4799 = vld [vmem:[%s5 + $0x6d0] sm:$0xff]
  %v4800 = vld [vmem:[%s5 + $0x6d8] sm:$0xff]
  %v4801 = vld [vmem:[%s5 + $0x6e0] sm:$0xff]
  %v4802 = vld [vmem:[%s5 + $0x6e8] sm:$0xff]
  %v4803 = vld [vmem:[%s5 + $0x6f0] sm:$0xff]
  %v4804 = vld [vmem:[%s5 + $0x6f8] sm:$0xff]
  %v4805 = vld [vmem:[%s5 + $0x700] sm:$0xff]
  %v4806 = vld [vmem:[%s5 + $0x708] sm:$0xff]
  %v4807 = vld [vmem:[%s5 + $0x710] sm:$0xff]
  %v4808 = vld [vmem:[%s5 + $0x718] sm:$0xff]
  %v4809 = vld [vmem:[%s5 + $0x720] sm:$0xff]
  %v4810 = vld [vmem:[%s5 + $0x728] sm:$0xff]
  %v4811 = vld [vmem:[%s5 + $0x730] sm:$0xff]
  %v4812 = vld [vmem:[%s5 + $0x738] sm:$0xff]
  %v4813 = vld [vmem:[%s5 + $0x740] sm:$0xff]
  %v4814 = vld [vmem:[%s5 + $0x748] sm:$0xff]
  %v4815 = vld [vmem:[%s5 + $0x750] sm:$0xff]
  %v4816 = vld [vmem:[%s5 + $0x758] sm:$0xff]
  %v4817 = vld [vmem:[%s5 + $0x760] sm:$0xff]
  %v4818 = vld [vmem:[%s5 + $0x768] sm:$0xff]
  %v4819 = vld [vmem:[%s5 + $0x770] sm:$0xff]
  %v4820 = vld [vmem:[%s5 + $0x778] sm:$0xff]
  %v4821 = vld [vmem:[%s5 + $0x780] sm:$0xff]
  %v4822 = vld [vmem:[%s5 + $0x788] sm:$0xff]
  %v4823 = vld [vmem:[%s5 + $0x790] sm:$0xff]
  %v4824 = vld [vmem:[%s5 + $0x798] sm:$0xff]
  %v4825 = vld [vmem:[%s5 + $0x7a0] sm:$0xff]
  %v4826 = vld [vmem:[%s5 + $0x7a8] sm:$0xff]
  %v4827 = vld [vmem:[%s5 + $0x7b0] sm:$0xff]
  %v4828 = vld [vmem:[%s5 + $0x7b8] sm:$0xff]
  %v4829 = vld [vmem:[%s5 + $0x7c0] sm:$0xff]
  %v4830 = vld [vmem:[%s5 + $0x7c8] sm:$0xff]
  %v4831 = vld [vmem:[%s5 + $0x7d0] sm:$0xff]
  %v4832 = vld [vmem:[%s5 + $0x7d8] sm:$0xff]
  %v4833 = vld [vmem:[%s5 + $0x7e0] sm:$0xff]
  %v4834 = vld [vmem:[%s5 + $0x7e8] sm:$0xff]
  %v4835 = vld [vmem:[%s5 + $0x7f0] sm:$0xff]
  %v4836 = vld [vmem:[%s5 + $0x7f8] sm:$0xff]
  %4837 = vmatpush.msra.mxu0 %v4611
  %4838 = vmatpush.msra.mxu0 %v4609
  %4839 = vmatpush.msra.mxu0 %v4607
  %4840 = vmatpush.msra.mxu0 %v4605
  %4841 = vmatpush.msra.mxu0 %v4603
  %4842 = vmatpush.msra.mxu0 %v4601
  %4843 = vmatpush.msra.mxu0 %v4599
  %4844 = vmatpush.msra.mxu0 %v4597
  %4845 = vmatpush.msra.mxu0 %v4595
  %4846 = vmatpush.msra.mxu0 %v4593
  %4847 = vmatpush.msra.mxu0 %v4591
  %4848 = vmatpush.msra.mxu0 %v4589
  %4849 = vmatpush.msra.mxu0 %v4587
  %4850 = vmatpush.msra.mxu0 %v4585
  %4851 = vmatpush.msra.mxu0 %v4583
  %4852 = vmatpush.msra.mxu0 %v4581
  %4853 = vmatmul.f32.gmra.mxu0 %v4501
  %v4854 = vpop.f32.mrf.mxu0
  %v4855 = vadd.f32 0.0, %v4854
  %4856 = vmatmul.f32.gmra.mxu0 %v4509
  %v4857 = vpop.f32.mrf.mxu0
  %v4858 = vadd.f32 0.0, %v4857
  %4859 = vmatmul.f32.gmra.mxu0 %v4517
  %v4860 = vpop.f32.mrf.mxu0
  %v4861 = vadd.f32 0.0, %v4860
  %4862 = vmatmul.f32.gmra.mxu0 %v4525
  %v4863 = vpop.f32.mrf.mxu0
  %v4864 = vadd.f32 0.0, %v4863
  %4865 = vmatmul.f32.gmra.mxu0 %v4533
  %v4866 = vpop.f32.mrf.mxu0
  %v4867 = vadd.f32 0.0, %v4866
  %4868 = vmatmul.f32.gmra.mxu0 %v4541
  %v4869 = vpop.f32.mrf.mxu0
  %v4870 = vadd.f32 0.0, %v4869
  %4871 = vmatmul.f32.gmra.mxu0 %v4549
  %v4872 = vpop.f32.mrf.mxu0
  %v4873 = vadd.f32 0.0, %v4872
  %4874 = vmatmul.f32.gmra.mxu0 %v4557
  %v4875 = vpop.f32.mrf.mxu0
  %v4876 = vadd.f32 0.0, %v4875
  %4877 = vmatmul.f32.gmra.mxu0 %v4565
  %v4878 = vpop.f32.mrf.mxu0
  %v4879 = vadd.f32 0.0, %v4878
  %4880 = vmatmul.f32.gmra.mxu0 %v4573
  %v4881 = vpop.f32.mrf.mxu0
  %v4882 = vadd.f32 0.0, %v4881
  %4883 = vdwg.mxu0
  %4884 = vmatpush.msra.mxu0 %v4643
  %4885 = vmatpush.msra.mxu0 %v4641
  %4886 = vmatpush.msra.mxu0 %v4639
  %4887 = vmatpush.msra.mxu0 %v4637
  %4888 = vmatpush.msra.mxu0 %v4635
  %4889 = vmatpush.msra.mxu0 %v4633
  %4890 = vmatpush.msra.mxu0 %v4631
  %4891 = vmatpush.msra.mxu0 %v4629
  %4892 = vmatpush.msra.mxu0 %v4627
  %4893 = vmatpush.msra.mxu0 %v4625
  %4894 = vmatpush.msra.mxu0 %v4623
  %4895 = vmatpush.msra.mxu0 %v4621
  %4896 = vmatpush.msra.mxu0 %v4619
  %4897 = vmatpush.msra.mxu0 %v4617
  %4898 = vmatpush.msra.mxu0 %v4615
  %4899 = vmatpush.msra.mxu0 %v4613
  %4900 = vmatmul.f32.gmra.mxu0 %v4502
  %v4901 = vpop.f32.mrf.mxu0
  %v4902 = vadd.f32 %v4855, %v4901
  %4903 = vmatmul.f32.gmra.mxu0 %v4510
  %v4904 = vpop.f32.mrf.mxu0
  %v4905 = vadd.f32 %v4858, %v4904
  %4906 = vmatmul.f32.gmra.mxu0 %v4518
  %v4907 = vpop.f32.mrf.mxu0
  %v4908 = vadd.f32 %v4861, %v4907
  %4909 = vmatmul.f32.gmra.mxu0 %v4526
  %v4910 = vpop.f32.mrf.mxu0
  %v4911 = vadd.f32 %v4864, %v4910
  %4912 = vmatmul.f32.gmra.mxu0 %v4534
  %v4913 = vpop.f32.mrf.mxu0
  %v4914 = vadd.f32 %v4867, %v4913
  %4915 = vmatmul.f32.gmra.mxu0 %v4542
  %v4916 = vpop.f32.mrf.mxu0
  %v4917 = vadd.f32 %v4870, %v4916
  %4918 = vmatmul.f32.gmra.mxu0 %v4550
  %v4919 = vpop.f32.mrf.mxu0
  %v4920 = vadd.f32 %v4873, %v4919
  %4921 = vmatmul.f32.gmra.mxu0 %v4558
  %v4922 = vpop.f32.mrf.mxu0
  %v4923 = vadd.f32 %v4876, %v4922
  %4924 = vmatmul.f32.gmra.mxu0 %v4566
  %v4925 = vpop.f32.mrf.mxu0
  %v4926 = vadd.f32 %v4879, %v4925
  %4927 = vmatmul.f32.gmra.mxu0 %v4574
  %v4928 = vpop.f32.mrf.mxu0
  %v4929 = vadd.f32 %v4882, %v4928
  %4930 = vdwg.mxu0
  %4931 = vmatpush.msra.mxu0 %v4675
  %4932 = vmatpush.msra.mxu0 %v4673
  %4933 = vmatpush.msra.mxu0 %v4671
  %4934 = vmatpush.msra.mxu0 %v4669
  %4935 = vmatpush.msra.mxu0 %v4667
  %4936 = vmatpush.msra.mxu0 %v4665
  %4937 = vmatpush.msra.mxu0 %v4663
  %4938 = vmatpush.msra.mxu0 %v4661
  %4939 = vmatpush.msra.mxu0 %v4659
  %4940 = vmatpush.msra.mxu0 %v4657
  %4941 = vmatpush.msra.mxu0 %v4655
  %4942 = vmatpush.msra.mxu0 %v4653
  %4943 = vmatpush.msra.mxu0 %v4651
  %4944 = vmatpush.msra.mxu0 %v4649
  %4945 = vmatpush.msra.mxu0 %v4647
  %4946 = vmatpush.msra.mxu0 %v4645
  %4947 = vmatmul.f32.gmra.mxu0 %v4503
  %v4948 = vpop.f32.mrf.mxu0
  %v4949 = vadd.f32 %v4902, %v4948
  %4950 = vmatmul.f32.gmra.mxu0 %v4511
  %v4951 = vpop.f32.mrf.mxu0
  %v4952 = vadd.f32 %v4905, %v4951
  %4953 = vmatmul.f32.gmra.mxu0 %v4519
  %v4954 = vpop.f32.mrf.mxu0
  %v4955 = vadd.f32 %v4908, %v4954
  %4956 = vmatmul.f32.gmra.mxu0 %v4527
  %v4957 = vpop.f32.mrf.mxu0
  %v4958 = vadd.f32 %v4911, %v4957
  %4959 = vmatmul.f32.gmra.mxu0 %v4535
  %v4960 = vpop.f32.mrf.mxu0
  %v4961 = vadd.f32 %v4914, %v4960
  %4962 = vmatmul.f32.gmra.mxu0 %v4543
  %v4963 = vpop.f32.mrf.mxu0
  %v4964 = vadd.f32 %v4917, %v4963
  %4965 = vmatmul.f32.gmra.mxu0 %v4551
  %v4966 = vpop.f32.mrf.mxu0
  %v4967 = vadd.f32 %v4920, %v4966
  %4968 = vmatmul.f32.gmra.mxu0 %v4559
  %v4969 = vpop.f32.mrf.mxu0
  %v4970 = vadd.f32 %v4923, %v4969
  %4971 = vmatmul.f32.gmra.mxu0 %v4567
  %v4972 = vpop.f32.mrf.mxu0
  %v4973 = vadd.f32 %v4926, %v4972
  %4974 = vmatmul.f32.gmra.mxu0 %v4575
  %v4975 = vpop.f32.mrf.mxu0
  %v4976 = vadd.f32 %v4929, %v4975
  %4977 = vdwg.mxu0
  %4978 = vmatpush.msra.mxu0 %v4707
  %4979 = vmatpush.msra.mxu0 %v4705
  %4980 = vmatpush.msra.mxu0 %v4703
  %4981 = vmatpush.msra.mxu0 %v4701
  %4982 = vmatpush.msra.mxu0 %v4699
  %4983 = vmatpush.msra.mxu0 %v4697
  %4984 = vmatpush.msra.mxu0 %v4695
  %4985 = vmatpush.msra.mxu0 %v4693
  %4986 = vmatpush.msra.mxu0 %v4691
  %4987 = vmatpush.msra.mxu0 %v4689
  %4988 = vmatpush.msra.mxu0 %v4687
  %4989 = vmatpush.msra.mxu0 %v4685
  %4990 = vmatpush.msra.mxu0 %v4683
  %4991 = vmatpush.msra.mxu0 %v4681
  %4992 = vmatpush.msra.mxu0 %v4679
  %4993 = vmatpush.msra.mxu0 %v4677
  %4994 = vmatmul.f32.gmra.mxu0 %v4504
  %v4995 = vpop.f32.mrf.mxu0
  %v4996 = vadd.f32 %v4949, %v4995
  %4997 = vmatmul.f32.gmra.mxu0 %v4512
  %v4998 = vpop.f32.mrf.mxu0
  %v4999 = vadd.f32 %v4952, %v4998
  %5000 = vmatmul.f32.gmra.mxu0 %v4520
  %v5001 = vpop.f32.mrf.mxu0
  %v5002 = vadd.f32 %v4955, %v5001
  %5003 = vmatmul.f32.gmra.mxu0 %v4528
  %v5004 = vpop.f32.mrf.mxu0
  %v5005 = vadd.f32 %v4958, %v5004
  %5006 = vmatmul.f32.gmra.mxu0 %v4536
  %v5007 = vpop.f32.mrf.mxu0
  %v5008 = vadd.f32 %v4961, %v5007
  %5009 = vmatmul.f32.gmra.mxu0 %v4544
  %v5010 = vpop.f32.mrf.mxu0
  %v5011 = vadd.f32 %v4964, %v5010
  %5012 = vmatmul.f32.gmra.mxu0 %v4552
  %v5013 = vpop.f32.mrf.mxu0
  %v5014 = vadd.f32 %v4967, %v5013
  %5015 = vmatmul.f32.gmra.mxu0 %v4560
  %v5016 = vpop.f32.mrf.mxu0
  %v5017 = vadd.f32 %v4970, %v5016
  %5018 = vmatmul.f32.gmra.mxu0 %v4568
  %v5019 = vpop.f32.mrf.mxu0
  %v5020 = vadd.f32 %v4973, %v5019
  %5021 = vmatmul.f32.gmra.mxu0 %v4576
  %v5022 = vpop.f32.mrf.mxu0
  %v5023 = vadd.f32 %v4976, %v5022
  %5024 = vdwg.mxu0
  %5025 = vmatpush.msra.mxu0 %v4739
  %5026 = vmatpush.msra.mxu0 %v4737
  %5027 = vmatpush.msra.mxu0 %v4735
  %5028 = vmatpush.msra.mxu0 %v4733
  %5029 = vmatpush.msra.mxu0 %v4731
  %5030 = vmatpush.msra.mxu0 %v4729
  %5031 = vmatpush.msra.mxu0 %v4727
  %5032 = vmatpush.msra.mxu0 %v4725
  %5033 = vmatpush.msra.mxu0 %v4723
  %5034 = vmatpush.msra.mxu0 %v4721
  %5035 = vmatpush.msra.mxu0 %v4719
  %5036 = vmatpush.msra.mxu0 %v4717
  %5037 = vmatpush.msra.mxu0 %v4715
  %5038 = vmatpush.msra.mxu0 %v4713
  %5039 = vmatpush.msra.mxu0 %v4711
  %5040 = vmatpush.msra.mxu0 %v4709
  %5041 = vmatmul.f32.gmra.mxu0 %v4505
  %v5042 = vpop.f32.mrf.mxu0
  %v5043 = vadd.f32 %v4996, %v5042
  %5044 = vmatmul.f32.gmra.mxu0 %v4513
  %v5045 = vpop.f32.mrf.mxu0
  %v5046 = vadd.f32 %v4999, %v5045
  %5047 = vmatmul.f32.gmra.mxu0 %v4521
  %v5048 = vpop.f32.mrf.mxu0
  %v5049 = vadd.f32 %v5002, %v5048
  %5050 = vmatmul.f32.gmra.mxu0 %v4529
  %v5051 = vpop.f32.mrf.mxu0
  %v5052 = vadd.f32 %v5005, %v5051
  %5053 = vmatmul.f32.gmra.mxu0 %v4537
  %v5054 = vpop.f32.mrf.mxu0
  %v5055 = vadd.f32 %v5008, %v5054
  %5056 = vmatmul.f32.gmra.mxu0 %v4545
  %v5057 = vpop.f32.mrf.mxu0
  %v5058 = vadd.f32 %v5011, %v5057
  %5059 = vmatmul.f32.gmra.mxu0 %v4553
  %v5060 = vpop.f32.mrf.mxu0
  %v5061 = vadd.f32 %v5014, %v5060
  %5062 = vmatmul.f32.gmra.mxu0 %v4561
  %v5063 = vpop.f32.mrf.mxu0
  %v5064 = vadd.f32 %v5017, %v5063
  %5065 = vmatmul.f32.gmra.mxu0 %v4569
  %v5066 = vpop.f32.mrf.mxu0
  %v5067 = vadd.f32 %v5020, %v5066
  %5068 = vmatmul.f32.gmra.mxu0 %v4577
  %v5069 = vpop.f32.mrf.mxu0
  %v5070 = vadd.f32 %v5023, %v5069
  %5071 = vdwg.mxu0
  %5072 = vmatpush.msra.mxu0 %v4771
  %5073 = vmatpush.msra.mxu0 %v4769
  %5074 = vmatpush.msra.mxu0 %v4767
  %5075 = vmatpush.msra.mxu0 %v4765
  %5076 = vmatpush.msra.mxu0 %v4763
  %5077 = vmatpush.msra.mxu0 %v4761
  %5078 = vmatpush.msra.mxu0 %v4759
  %5079 = vmatpush.msra.mxu0 %v4757
  %5080 = vmatpush.msra.mxu0 %v4755
  %5081 = vmatpush.msra.mxu0 %v4753
  %5082 = vmatpush.msra.mxu0 %v4751
  %5083 = vmatpush.msra.mxu0 %v4749
  %5084 = vmatpush.msra.mxu0 %v4747
  %5085 = vmatpush.msra.mxu0 %v4745
  %5086 = vmatpush.msra.mxu0 %v4743
  %5087 = vmatpush.msra.mxu0 %v4741
  %5088 = vmatmul.f32.gmra.mxu0 %v4506
  %v5089 = vpop.f32.mrf.mxu0
  %v5090 = vadd.f32 %v5043, %v5089
  %5091 = vmatmul.f32.gmra.mxu0 %v4514
  %v5092 = vpop.f32.mrf.mxu0
  %v5093 = vadd.f32 %v5046, %v5092
  %5094 = vmatmul.f32.gmra.mxu0 %v4522
  %v5095 = vpop.f32.mrf.mxu0
  %v5096 = vadd.f32 %v5049, %v5095
  %5097 = vmatmul.f32.gmra.mxu0 %v4530
  %v5098 = vpop.f32.mrf.mxu0
  %v5099 = vadd.f32 %v5052, %v5098
  %5100 = vmatmul.f32.gmra.mxu0 %v4538
  %v5101 = vpop.f32.mrf.mxu0
  %v5102 = vadd.f32 %v5055, %v5101
  %5103 = vmatmul.f32.gmra.mxu0 %v4546
  %v5104 = vpop.f32.mrf.mxu0
  %v5105 = vadd.f32 %v5058, %v5104
  %5106 = vmatmul.f32.gmra.mxu0 %v4554
  %v5107 = vpop.f32.mrf.mxu0
  %v5108 = vadd.f32 %v5061, %v5107
  %5109 = vmatmul.f32.gmra.mxu0 %v4562
  %v5110 = vpop.f32.mrf.mxu0
  %v5111 = vadd.f32 %v5064, %v5110
  %5112 = vmatmul.f32.gmra.mxu0 %v4570
  %v5113 = vpop.f32.mrf.mxu0
  %v5114 = vadd.f32 %v5067, %v5113
  %5115 = vmatmul.f32.gmra.mxu0 %v4578
  %v5116 = vpop.f32.mrf.mxu0
  %v5117 = vadd.f32 %v5070, %v5116
  %5118 = vdwg.mxu0
  %5119 = vmatpush.msra.mxu0 %v4803
  %5120 = vmatpush.msra.mxu0 %v4801
  %5121 = vmatpush.msra.mxu0 %v4799
  %5122 = vmatpush.msra.mxu0 %v4797
  %5123 = vmatpush.msra.mxu0 %v4795
  %5124 = vmatpush.msra.mxu0 %v4793
  %5125 = vmatpush.msra.mxu0 %v4791
  %5126 = vmatpush.msra.mxu0 %v4789
  %5127 = vmatpush.msra.mxu0 %v4787
  %5128 = vmatpush.msra.mxu0 %v4785
  %5129 = vmatpush.msra.mxu0 %v4783
  %5130 = vmatpush.msra.mxu0 %v4781
  %5131 = vmatpush.msra.mxu0 %v4779
  %5132 = vmatpush.msra.mxu0 %v4777
  %5133 = vmatpush.msra.mxu0 %v4775
  %5134 = vmatpush.msra.mxu0 %v4773
  %5135 = vmatmul.f32.gmra.mxu0 %v4507
  %v5136 = vpop.f32.mrf.mxu0
  %v5137 = vadd.f32 %v5090, %v5136
  %5138 = vmatmul.f32.gmra.mxu0 %v4515
  %v5139 = vpop.f32.mrf.mxu0
  %v5140 = vadd.f32 %v5093, %v5139
  %5141 = vmatmul.f32.gmra.mxu0 %v4523
  %v5142 = vpop.f32.mrf.mxu0
  %v5143 = vadd.f32 %v5096, %v5142
  %5144 = vmatmul.f32.gmra.mxu0 %v4531
  %v5145 = vpop.f32.mrf.mxu0
  %v5146 = vadd.f32 %v5099, %v5145
  %5147 = vmatmul.f32.gmra.mxu0 %v4539
  %v5148 = vpop.f32.mrf.mxu0
  %v5149 = vadd.f32 %v5102, %v5148
  %5150 = vmatmul.f32.gmra.mxu0 %v4547
  %v5151 = vpop.f32.mrf.mxu0
  %v5152 = vadd.f32 %v5105, %v5151
  %5153 = vmatmul.f32.gmra.mxu0 %v4555
  %v5154 = vpop.f32.mrf.mxu0
  %v5155 = vadd.f32 %v5108, %v5154
  %5156 = vmatmul.f32.gmra.mxu0 %v4563
  %v5157 = vpop.f32.mrf.mxu0
  %v5158 = vadd.f32 %v5111, %v5157
  %5159 = vmatmul.f32.gmra.mxu0 %v4571
  %v5160 = vpop.f32.mrf.mxu0
  %v5161 = vadd.f32 %v5114, %v5160
  %5162 = vmatmul.f32.gmra.mxu0 %v4579
  %v5163 = vpop.f32.mrf.mxu0
  %v5164 = vadd.f32 %v5117, %v5163
  %5165 = vdwg.mxu0
  %5166 = vmatpush.msra.mxu0 %v4835
  %5167 = vmatpush.msra.mxu0 %v4833
  %5168 = vmatpush.msra.mxu0 %v4831
  %5169 = vmatpush.msra.mxu0 %v4829
  %5170 = vmatpush.msra.mxu0 %v4827
  %5171 = vmatpush.msra.mxu0 %v4825
  %5172 = vmatpush.msra.mxu0 %v4823
  %5173 = vmatpush.msra.mxu0 %v4821
  %5174 = vmatpush.msra.mxu0 %v4819
  %5175 = vmatpush.msra.mxu0 %v4817
  %5176 = vmatpush.msra.mxu0 %v4815
  %5177 = vmatpush.msra.mxu0 %v4813
  %5178 = vmatpush.msra.mxu0 %v4811
  %5179 = vmatpush.msra.mxu0 %v4809
  %5180 = vmatpush.msra.mxu0 %v4807
  %5181 = vmatpush.msra.mxu0 %v4805
  %5182 = vmatmul.f32.gmra.mxu0 %v4508
  %v5183 = vpop.f32.mrf.mxu0
  %v5184 = vadd.f32 %v5137, %v5183
  %5185 = vmatmul.f32.gmra.mxu0 %v4516
  %v5186 = vpop.f32.mrf.mxu0
  %v5187 = vadd.f32 %v5140, %v5186
  %5188 = vmatmul.f32.gmra.mxu0 %v4524
  %v5189 = vpop.f32.mrf.mxu0
  %v5190 = vadd.f32 %v5143, %v5189
  %5191 = vmatmul.f32.gmra.mxu0 %v4532
  %v5192 = vpop.f32.mrf.mxu0
  %v5193 = vadd.f32 %v5146, %v5192
  %5194 = vmatmul.f32.gmra.mxu0 %v4540
  %v5195 = vpop.f32.mrf.mxu0
  %v5196 = vadd.f32 %v5149, %v5195
  %5197 = vmatmul.f32.gmra.mxu0 %v4548
  %v5198 = vpop.f32.mrf.mxu0
  %v5199 = vadd.f32 %v5152, %v5198
  %5200 = vmatmul.f32.gmra.mxu0 %v4556
  %v5201 = vpop.f32.mrf.mxu0
  %v5202 = vadd.f32 %v5155, %v5201
  %5203 = vmatmul.f32.gmra.mxu0 %v4564
  %v5204 = vpop.f32.mrf.mxu0
  %v5205 = vadd.f32 %v5158, %v5204
  %5206 = vmatmul.f32.gmra.mxu0 %v4572
  %v5207 = vpop.f32.mrf.mxu0
  %v5208 = vadd.f32 %v5161, %v5207
  %5209 = vmatmul.f32.gmra.mxu0 %v4580
  %v5210 = vpop.f32.mrf.mxu0
  %v5211 = vadd.f32 %v5164, %v5210
  %5212 = vdwg.mxu0
  %5213 = vmatpush.msra.mxu0 %v4612
  %5214 = vmatpush.msra.mxu0 %v4610
  %5215 = vmatpush.msra.mxu0 %v4608
  %5216 = vmatpush.msra.mxu0 %v4606
  %5217 = vmatpush.msra.mxu0 %v4604
  %5218 = vmatpush.msra.mxu0 %v4602
  %5219 = vmatpush.msra.mxu0 %v4600
  %5220 = vmatpush.msra.mxu0 %v4598
  %5221 = vmatpush.msra.mxu0 %v4596
  %5222 = vmatpush.msra.mxu0 %v4594
  %5223 = vmatpush.msra.mxu0 %v4592
  %5224 = vmatpush.msra.mxu0 %v4590
  %5225 = vmatpush.msra.mxu0 %v4588
  %5226 = vmatpush.msra.mxu0 %v4586
  %5227 = vmatpush.msra.mxu0 %v4584
  %5228 = vmatpush.msra.mxu0 %v4582
  %5229 = vmatmul.f32.gmra.mxu0 %v4501
  %v5230 = vpop.f32.mrf.mxu0
  %v5231 = vadd.f32 0.0, %v5230
  %5232 = vmatmul.f32.gmra.mxu0 %v4509
  %v5233 = vpop.f32.mrf.mxu0
  %v5234 = vadd.f32 0.0, %v5233
  %5235 = vmatmul.f32.gmra.mxu0 %v4517
  %v5236 = vpop.f32.mrf.mxu0
  %v5237 = vadd.f32 0.0, %v5236
  %5238 = vmatmul.f32.gmra.mxu0 %v4525
  %v5239 = vpop.f32.mrf.mxu0
  %v5240 = vadd.f32 0.0, %v5239
  %5241 = vmatmul.f32.gmra.mxu0 %v4533
  %v5242 = vpop.f32.mrf.mxu0
  %v5243 = vadd.f32 0.0, %v5242
  %5244 = vmatmul.f32.gmra.mxu0 %v4541
  %v5245 = vpop.f32.mrf.mxu0
  %v5246 = vadd.f32 0.0, %v5245
  %5247 = vmatmul.f32.gmra.mxu0 %v4549
  %v5248 = vpop.f32.mrf.mxu0
  %v5249 = vadd.f32 0.0, %v5248
  %5250 = vmatmul.f32.gmra.mxu0 %v4557
  %v5251 = vpop.f32.mrf.mxu0
  %v5252 = vadd.f32 0.0, %v5251
  %5253 = vmatmul.f32.gmra.mxu0 %v4565
  %v5254 = vpop.f32.mrf.mxu0
  %v5255 = vadd.f32 0.0, %v5254
  %5256 = vmatmul.f32.gmra.mxu0 %v4573
  %v5257 = vpop.f32.mrf.mxu0
  %v5258 = vadd.f32 0.0, %v5257
  %5259 = vdwg.mxu0
  %5260 = vmatpush.msra.mxu0 %v4644
  %5261 = vmatpush.msra.mxu0 %v4642
  %5262 = vmatpush.msra.mxu0 %v4640
  %5263 = vmatpush.msra.mxu0 %v4638
  %5264 = vmatpush.msra.mxu0 %v4636
  %5265 = vmatpush.msra.mxu0 %v4634
  %5266 = vmatpush.msra.mxu0 %v4632
  %5267 = vmatpush.msra.mxu0 %v4630
  %5268 = vmatpush.msra.mxu0 %v4628
  %5269 = vmatpush.msra.mxu0 %v4626
  %5270 = vmatpush.msra.mxu0 %v4624
  %5271 = vmatpush.msra.mxu0 %v4622
  %5272 = vmatpush.msra.mxu0 %v4620
  %5273 = vmatpush.msra.mxu0 %v4618
  %5274 = vmatpush.msra.mxu0 %v4616
  %5275 = vmatpush.msra.mxu0 %v4614
  %5276 = vmatmul.f32.gmra.mxu0 %v4502
  %v5277 = vpop.f32.mrf.mxu0
  %v5278 = vadd.f32 %v5231, %v5277
  %5279 = vmatmul.f32.gmra.mxu0 %v4510
  %v5280 = vpop.f32.mrf.mxu0
  %v5281 = vadd.f32 %v5234, %v5280
  %5282 = vmatmul.f32.gmra.mxu0 %v4518
  %v5283 = vpop.f32.mrf.mxu0
  %v5284 = vadd.f32 %v5237, %v5283
  %5285 = vmatmul.f32.gmra.mxu0 %v4526
  %v5286 = vpop.f32.mrf.mxu0
  %v5287 = vadd.f32 %v5240, %v5286
  %5288 = vmatmul.f32.gmra.mxu0 %v4534
  %v5289 = vpop.f32.mrf.mxu0
  %v5290 = vadd.f32 %v5243, %v5289
  %5291 = vmatmul.f32.gmra.mxu0 %v4542
  %v5292 = vpop.f32.mrf.mxu0
  %v5293 = vadd.f32 %v5246, %v5292
  %5294 = vmatmul.f32.gmra.mxu0 %v4550
  %v5295 = vpop.f32.mrf.mxu0
  %v5296 = vadd.f32 %v5249, %v5295
  %5297 = vmatmul.f32.gmra.mxu0 %v4558
  %v5298 = vpop.f32.mrf.mxu0
  %v5299 = vadd.f32 %v5252, %v5298
  %5300 = vmatmul.f32.gmra.mxu0 %v4566
  %v5301 = vpop.f32.mrf.mxu0
  %v5302 = vadd.f32 %v5255, %v5301
  %5303 = vmatmul.f32.gmra.mxu0 %v4574
  %v5304 = vpop.f32.mrf.mxu0
  %v5305 = vadd.f32 %v5258, %v5304
  %5306 = vdwg.mxu0
  %5307 = vmatpush.msra.mxu0 %v4676
  %5308 = vmatpush.msra.mxu0 %v4674
  %5309 = vmatpush.msra.mxu0 %v4672
  %5310 = vmatpush.msra.mxu0 %v4670
  %5311 = vmatpush.msra.mxu0 %v4668
  %5312 = vmatpush.msra.mxu0 %v4666
  %5313 = vmatpush.msra.mxu0 %v4664
  %5314 = vmatpush.msra.mxu0 %v4662
  %5315 = vmatpush.msra.mxu0 %v4660
  %5316 = vmatpush.msra.mxu0 %v4658
  %5317 = vmatpush.msra.mxu0 %v4656
  %5318 = vmatpush.msra.mxu0 %v4654
  %5319 = vmatpush.msra.mxu0 %v4652
  %5320 = vmatpush.msra.mxu0 %v4650
  %5321 = vmatpush.msra.mxu0 %v4648
  %5322 = vmatpush.msra.mxu0 %v4646
  %5323 = vmatmul.f32.gmra.mxu0 %v4503
  %v5324 = vpop.f32.mrf.mxu0
  %v5325 = vadd.f32 %v5278, %v5324
  %5326 = vmatmul.f32.gmra.mxu0 %v4511
  %v5327 = vpop.f32.mrf.mxu0
  %v5328 = vadd.f32 %v5281, %v5327
  %5329 = vmatmul.f32.gmra.mxu0 %v4519
  %v5330 = vpop.f32.mrf.mxu0
  %v5331 = vadd.f32 %v5284, %v5330
  %5332 = vmatmul.f32.gmra.mxu0 %v4527
  %v5333 = vpop.f32.mrf.mxu0
  %v5334 = vadd.f32 %v5287, %v5333
  %5335 = vmatmul.f32.gmra.mxu0 %v4535
  %v5336 = vpop.f32.mrf.mxu0
  %v5337 = vadd.f32 %v5290, %v5336
  %5338 = vmatmul.f32.gmra.mxu0 %v4543
  %v5339 = vpop.f32.mrf.mxu0
  %v5340 = vadd.f32 %v5293, %v5339
  %5341 = vmatmul.f32.gmra.mxu0 %v4551
  %v5342 = vpop.f32.mrf.mxu0
  %v5343 = vadd.f32 %v5296, %v5342
  %5344 = vmatmul.f32.gmra.mxu0 %v4559
  %v5345 = vpop.f32.mrf.mxu0
  %v5346 = vadd.f32 %v5299, %v5345
  %5347 = vmatmul.f32.gmra.mxu0 %v4567
  %v5348 = vpop.f32.mrf.mxu0
  %v5349 = vadd.f32 %v5302, %v5348
  %5350 = vmatmul.f32.gmra.mxu0 %v4575
  %v5351 = vpop.f32.mrf.mxu0
  %v5352 = vadd.f32 %v5305, %v5351
  %5353 = vdwg.mxu0
  %5354 = vmatpush.msra.mxu0 %v4708
  %5355 = vmatpush.msra.mxu0 %v4706
  %5356 = vmatpush.msra.mxu0 %v4704
  %5357 = vmatpush.msra.mxu0 %v4702
  %5358 = vmatpush.msra.mxu0 %v4700
  %5359 = vmatpush.msra.mxu0 %v4698
  %5360 = vmatpush.msra.mxu0 %v4696
  %5361 = vmatpush.msra.mxu0 %v4694
  %5362 = vmatpush.msra.mxu0 %v4692
  %5363 = vmatpush.msra.mxu0 %v4690
  %5364 = vmatpush.msra.mxu0 %v4688
  %5365 = vmatpush.msra.mxu0 %v4686
  %5366 = vmatpush.msra.mxu0 %v4684
  %5367 = vmatpush.msra.mxu0 %v4682
  %5368 = vmatpush.msra.mxu0 %v4680
  %5369 = vmatpush.msra.mxu0 %v4678
  %5370 = vmatmul.f32.gmra.mxu0 %v4504
  %v5371 = vpop.f32.mrf.mxu0
  %v5372 = vadd.f32 %v5325, %v5371
  %5373 = vmatmul.f32.gmra.mxu0 %v4512
  %v5374 = vpop.f32.mrf.mxu0
  %v5375 = vadd.f32 %v5328, %v5374
  %5376 = vmatmul.f32.gmra.mxu0 %v4520
  %v5377 = vpop.f32.mrf.mxu0
  %v5378 = vadd.f32 %v5331, %v5377
  %5379 = vmatmul.f32.gmra.mxu0 %v4528
  %v5380 = vpop.f32.mrf.mxu0
  %v5381 = vadd.f32 %v5334, %v5380
  %5382 = vmatmul.f32.gmra.mxu0 %v4536
  %v5383 = vpop.f32.mrf.mxu0
  %v5384 = vadd.f32 %v5337, %v5383
  %5385 = vmatmul.f32.gmra.mxu0 %v4544
  %v5386 = vpop.f32.mrf.mxu0
  %v5387 = vadd.f32 %v5340, %v5386
  %5388 = vmatmul.f32.gmra.mxu0 %v4552
  %v5389 = vpop.f32.mrf.mxu0
  %v5390 = vadd.f32 %v5343, %v5389
  %5391 = vmatmul.f32.gmra.mxu0 %v4560
  %v5392 = vpop.f32.mrf.mxu0
  %v5393 = vadd.f32 %v5346, %v5392
  %5394 = vmatmul.f32.gmra.mxu0 %v4568
  %v5395 = vpop.f32.mrf.mxu0
  %v5396 = vadd.f32 %v5349, %v5395
  %5397 = vmatmul.f32.gmra.mxu0 %v4576
  %v5398 = vpop.f32.mrf.mxu0
  %v5399 = vadd.f32 %v5352, %v5398
  %5400 = vdwg.mxu0
  %5401 = vmatpush.msra.mxu0 %v4740
  %5402 = vmatpush.msra.mxu0 %v4738
  %5403 = vmatpush.msra.mxu0 %v4736
  %5404 = vmatpush.msra.mxu0 %v4734
  %5405 = vmatpush.msra.mxu0 %v4732
  %5406 = vmatpush.msra.mxu0 %v4730
  %5407 = vmatpush.msra.mxu0 %v4728
  %5408 = vmatpush.msra.mxu0 %v4726
  %5409 = vmatpush.msra.mxu0 %v4724
  %5410 = vmatpush.msra.mxu0 %v4722
  %5411 = vmatpush.msra.mxu0 %v4720
  %5412 = vmatpush.msra.mxu0 %v4718
  %5413 = vmatpush.msra.mxu0 %v4716
  %5414 = vmatpush.msra.mxu0 %v4714
  %5415 = vmatpush.msra.mxu0 %v4712
  %5416 = vmatpush.msra.mxu0 %v4710
  %5417 = vmatmul.f32.gmra.mxu0 %v4505
  %v5418 = vpop.f32.mrf.mxu0
  %v5419 = vadd.f32 %v5372, %v5418
  %5420 = vmatmul.f32.gmra.mxu0 %v4513
  %v5421 = vpop.f32.mrf.mxu0
  %v5422 = vadd.f32 %v5375, %v5421
  %5423 = vmatmul.f32.gmra.mxu0 %v4521
  %v5424 = vpop.f32.mrf.mxu0
  %v5425 = vadd.f32 %v5378, %v5424
  %5426 = vmatmul.f32.gmra.mxu0 %v4529
  %v5427 = vpop.f32.mrf.mxu0
  %v5428 = vadd.f32 %v5381, %v5427
  %5429 = vmatmul.f32.gmra.mxu0 %v4537
  %v5430 = vpop.f32.mrf.mxu0
  %v5431 = vadd.f32 %v5384, %v5430
  %5432 = vmatmul.f32.gmra.mxu0 %v4545
  %v5433 = vpop.f32.mrf.mxu0
  %v5434 = vadd.f32 %v5387, %v5433
  %5435 = vmatmul.f32.gmra.mxu0 %v4553
  %v5436 = vpop.f32.mrf.mxu0
  %v5437 = vadd.f32 %v5390, %v5436
  %5438 = vmatmul.f32.gmra.mxu0 %v4561
  %v5439 = vpop.f32.mrf.mxu0
  %v5440 = vadd.f32 %v5393, %v5439
  %5441 = vmatmul.f32.gmra.mxu0 %v4569
  %v5442 = vpop.f32.mrf.mxu0
  %v5443 = vadd.f32 %v5396, %v5442
  %5444 = vmatmul.f32.gmra.mxu0 %v4577
  %v5445 = vpop.f32.mrf.mxu0
  %v5446 = vadd.f32 %v5399, %v5445
  %5447 = vdwg.mxu0
  %5448 = vmatpush.msra.mxu0 %v4772
  %5449 = vmatpush.msra.mxu0 %v4770
  %5450 = vmatpush.msra.mxu0 %v4768
  %5451 = vmatpush.msra.mxu0 %v4766
  %5452 = vmatpush.msra.mxu0 %v4764
  %5453 = vmatpush.msra.mxu0 %v4762
  %5454 = vmatpush.msra.mxu0 %v4760
  %5455 = vmatpush.msra.mxu0 %v4758
  %5456 = vmatpush.msra.mxu0 %v4756
  %5457 = vmatpush.msra.mxu0 %v4754
  %5458 = vmatpush.msra.mxu0 %v4752
  %5459 = vmatpush.msra.mxu0 %v4750
  %5460 = vmatpush.msra.mxu0 %v4748
  %5461 = vmatpush.msra.mxu0 %v4746
  %5462 = vmatpush.msra.mxu0 %v4744
  %5463 = vmatpush.msra.mxu0 %v4742
  %5464 = vmatmul.f32.gmra.mxu0 %v4506
  %v5465 = vpop.f32.mrf.mxu0
  %v5466 = vadd.f32 %v5419, %v5465
  %5467 = vmatmul.f32.gmra.mxu0 %v4514
  %v5468 = vpop.f32.mrf.mxu0
  %v5469 = vadd.f32 %v5422, %v5468
  %5470 = vmatmul.f32.gmra.mxu0 %v4522
  %v5471 = vpop.f32.mrf.mxu0
  %v5472 = vadd.f32 %v5425, %v5471
  %5473 = vmatmul.f32.gmra.mxu0 %v4530
  %v5474 = vpop.f32.mrf.mxu0
  %v5475 = vadd.f32 %v5428, %v5474
  %5476 = vmatmul.f32.gmra.mxu0 %v4538
  %v5477 = vpop.f32.mrf.mxu0
  %v5478 = vadd.f32 %v5431, %v5477
  %5479 = vmatmul.f32.gmra.mxu0 %v4546
  %v5480 = vpop.f32.mrf.mxu0
  %v5481 = vadd.f32 %v5434, %v5480
  %5482 = vmatmul.f32.gmra.mxu0 %v4554
  %v5483 = vpop.f32.mrf.mxu0
  %v5484 = vadd.f32 %v5437, %v5483
  %5485 = vmatmul.f32.gmra.mxu0 %v4562
  %v5486 = vpop.f32.mrf.mxu0
  %v5487 = vadd.f32 %v5440, %v5486
  %5488 = vmatmul.f32.gmra.mxu0 %v4570
  %v5489 = vpop.f32.mrf.mxu0
  %v5490 = vadd.f32 %v5443, %v5489
  %5491 = vmatmul.f32.gmra.mxu0 %v4578
  %v5492 = vpop.f32.mrf.mxu0
  %v5493 = vadd.f32 %v5446, %v5492
  %5494 = vdwg.mxu0
  %5495 = vmatpush.msra.mxu0 %v4804
  %5496 = vmatpush.msra.mxu0 %v4802
  %5497 = vmatpush.msra.mxu0 %v4800
  %5498 = vmatpush.msra.mxu0 %v4798
  %5499 = vmatpush.msra.mxu0 %v4796
  %5500 = vmatpush.msra.mxu0 %v4794
  %5501 = vmatpush.msra.mxu0 %v4792
  %5502 = vmatpush.msra.mxu0 %v4790
  %5503 = vmatpush.msra.mxu0 %v4788
  %5504 = vmatpush.msra.mxu0 %v4786
  %5505 = vmatpush.msra.mxu0 %v4784
  %5506 = vmatpush.msra.mxu0 %v4782
  %5507 = vmatpush.msra.mxu0 %v4780
  %5508 = vmatpush.msra.mxu0 %v4778
  %5509 = vmatpush.msra.mxu0 %v4776
  %5510 = vmatpush.msra.mxu0 %v4774
  %5511 = vmatmul.f32.gmra.mxu0 %v4507
  %v5512 = vpop.f32.mrf.mxu0
  %v5513 = vadd.f32 %v5466, %v5512
  %5514 = vmatmul.f32.gmra.mxu0 %v4515
  %v5515 = vpop.f32.mrf.mxu0
  %v5516 = vadd.f32 %v5469, %v5515
  %5517 = vmatmul.f32.gmra.mxu0 %v4523
  %v5518 = vpop.f32.mrf.mxu0
  %v5519 = vadd.f32 %v5472, %v5518
  %5520 = vmatmul.f32.gmra.mxu0 %v4531
  %v5521 = vpop.f32.mrf.mxu0
  %v5522 = vadd.f32 %v5475, %v5521
  %5523 = vmatmul.f32.gmra.mxu0 %v4539
  %v5524 = vpop.f32.mrf.mxu0
  %v5525 = vadd.f32 %v5478, %v5524
  %5526 = vmatmul.f32.gmra.mxu0 %v4547
  %v5527 = vpop.f32.mrf.mxu0
  %v5528 = vadd.f32 %v5481, %v5527
  %5529 = vmatmul.f32.gmra.mxu0 %v4555
  %v5530 = vpop.f32.mrf.mxu0
  %v5531 = vadd.f32 %v5484, %v5530
  %5532 = vmatmul.f32.gmra.mxu0 %v4563
  %v5533 = vpop.f32.mrf.mxu0
  %v5534 = vadd.f32 %v5487, %v5533
  %5535 = vmatmul.f32.gmra.mxu0 %v4571
  %v5536 = vpop.f32.mrf.mxu0
  %v5537 = vadd.f32 %v5490, %v5536
  %5538 = vmatmul.f32.gmra.mxu0 %v4579
  %v5539 = vpop.f32.mrf.mxu0
  %v5540 = vadd.f32 %v5493, %v5539
  %5541 = vdwg.mxu0
  %5542 = vmatpush.msra.mxu0 %v4836
  %5543 = vmatpush.msra.mxu0 %v4834
  %5544 = vmatpush.msra.mxu0 %v4832
  %5545 = vmatpush.msra.mxu0 %v4830
  %5546 = vmatpush.msra.mxu0 %v4828
  %5547 = vmatpush.msra.mxu0 %v4826
  %5548 = vmatpush.msra.mxu0 %v4824
  %5549 = vmatpush.msra.mxu0 %v4822
  %5550 = vmatpush.msra.mxu0 %v4820
  %5551 = vmatpush.msra.mxu0 %v4818
  %5552 = vmatpush.msra.mxu0 %v4816
  %5553 = vmatpush.msra.mxu0 %v4814
  %5554 = vmatpush.msra.mxu0 %v4812
  %5555 = vmatpush.msra.mxu0 %v4810
  %5556 = vmatpush.msra.mxu0 %v4808
  %5557 = vmatpush.msra.mxu0 %v4806
  %5558 = vmatmul.f32.gmra.mxu0 %v4508
  %v5559 = vpop.f32.mrf.mxu0
  %v5560 = vadd.f32 %v5513, %v5559
  %5561 = vmatmul.f32.gmra.mxu0 %v4516
  %v5562 = vpop.f32.mrf.mxu0
  %v5563 = vadd.f32 %v5516, %v5562
  %5564 = vmatmul.f32.gmra.mxu0 %v4524
  %v5565 = vpop.f32.mrf.mxu0
  %v5566 = vadd.f32 %v5519, %v5565
  %5567 = vmatmul.f32.gmra.mxu0 %v4532
  %v5568 = vpop.f32.mrf.mxu0
  %v5569 = vadd.f32 %v5522, %v5568
  %5570 = vmatmul.f32.gmra.mxu0 %v4540
  %v5571 = vpop.f32.mrf.mxu0
  %v5572 = vadd.f32 %v5525, %v5571
  %5573 = vmatmul.f32.gmra.mxu0 %v4548
  %v5574 = vpop.f32.mrf.mxu0
  %v5575 = vadd.f32 %v5528, %v5574
  %5576 = vmatmul.f32.gmra.mxu0 %v4556
  %v5577 = vpop.f32.mrf.mxu0
  %v5578 = vadd.f32 %v5531, %v5577
  %5579 = vmatmul.f32.gmra.mxu0 %v4564
  %v5580 = vpop.f32.mrf.mxu0
  %v5581 = vadd.f32 %v5534, %v5580
  %5582 = vmatmul.f32.gmra.mxu0 %v4572
  %v5583 = vpop.f32.mrf.mxu0
  %v5584 = vadd.f32 %v5537, %v5583
  %5585 = vmatmul.f32.gmra.mxu0 %v4580
  %v5586 = vpop.f32.mrf.mxu0
  %v5587 = vadd.f32 %v5540, %v5586
  %5588 = vdwg.mxu0
  %v5589 = vadd.f32 %v26, %v5184
  %v5590 = vadd.f32 %v27, %v5560
  %v5591 = vadd.f32 %v28, %v5187
  %v5592 = vadd.f32 %v29, %v5563
  %v5593 = vadd.f32 %v30, %v5190
  %v5594 = vadd.f32 %v31, %v5566
  %v5595 = vadd.f32 %v32, %v5193
  %v5596 = vadd.f32 %v33, %v5569
  %v5597 = vadd.f32 %v34, %v5196
  %v5598 = vadd.f32 %v35, %v5572
  %v5599 = vadd.f32 %v36, %v5199
  %v5600 = vadd.f32 %v37, %v5575
  %v5601 = vadd.f32 %v38, %v5202
  %v5602 = vadd.f32 %v39, %v5578
  %v5603 = vadd.f32 %v40, %v5205
  %v5604 = vadd.f32 %v41, %v5581
  %v5605 = vadd.f32 %v42, %v5208
  %v5606 = vadd.f32 %v43, %v5584
  %v5607 = vadd.f32 %v44, %v5211
  %v5608 = vadd.f32 %v45, %v5587
  %v5609 = vld [vmem:[%s6] sm:$0x3]
  %v5611 = vperm.slane %v5609, 0
  %v5612 = vperm.slane %v5609, 1
  %v5615 = vadd.f32 %v5589, %v5611
  %v5616 = vadd.f32 %v5590, %v5612
  %v5617 = vadd.f32 %v5591, %v5611
  %v5618 = vadd.f32 %v5592, %v5612
  %v5619 = vadd.f32 %v5593, %v5611
  %v5620 = vadd.f32 %v5594, %v5612
  %v5621 = vadd.f32 %v5595, %v5611
  %v5622 = vadd.f32 %v5596, %v5612
  %v5623 = vadd.f32 %v5597, %v5611
  %v5624 = vadd.f32 %v5598, %v5612
  %v5625 = vadd.f32 %v5599, %v5611
  %v5626 = vadd.f32 %v5600, %v5612
  %v5627 = vadd.f32 %v5601, %v5611
  %v5628 = vadd.f32 %v5602, %v5612
  %v5629 = vadd.f32 %v5603, %v5611
  %v5630 = vadd.f32 %v5604, %v5612
  %v5631 = vadd.f32 %v5605, %v5611
  %v5632 = vadd.f32 %v5606, %v5612
  %v5633 = vadd.f32 %v5607, %v5611
  %v5634 = vadd.f32 %v5608, %v5612
  %5635 = vst [vmem:[%s7] sm:$0xff] %v5615
  %5636 = vst [vmem:[%s7 + $0x8] sm:$0xff] %v5616
  %5637 = vst [vmem:[%s7 + $0x10] sm:$0xff] %v5617
  %5638 = vst [vmem:[%s7 + $0x18] sm:$0xff] %v5618
  %5639 = vst [vmem:[%s7 + $0x20] sm:$0xff] %v5619
  %5640 = vst [vmem:[%s7 + $0x28] sm:$0xff] %v5620
  %5641 = vst [vmem:[%s7 + $0x30] sm:$0xff] %v5621
  %5642 = vst [vmem:[%s7 + $0x38] sm:$0xff] %v5622
  %5643 = vst [vmem:[%s7 + $0x40] sm:$0xff] %v5623
  %5644 = vst [vmem:[%s7 + $0x48] sm:$0xff] %v5624
  %5645 = vst [vmem:[%s7 + $0x50] sm:$0xff] %v5625
  %5646 = vst [vmem:[%s7 + $0x58] sm:$0xff] %v5626
  %5647 = vst [vmem:[%s7 + $0x60] sm:$0xff] %v5627
  %5648 = vst [vmem:[%s7 + $0x68] sm:$0xff] %v5628
  %5649 = vst [vmem:[%s7 + $0x70] sm:$0xff] %v5629
  %5650 = vst [vmem:[%s7 + $0x78] sm:$0xff] %v5630
  %5651 = vst [vmem:[%s7 + $0x80] sm:$0xff] %v5631
  %5652 = vst [vmem:[%s7 + $0x88] sm:$0xff] %v5632
  %5653 = vst [vmem:[%s7 + $0x90] sm:$0xff] %v5633
  %5654 = vst [vmem:[%s7 + $0x98] sm:$0xff] %v5634
  // Predicated region
  $region30: #{_lambda_.17} parent=0 // pred_check
    _
  $region31: #{_lambda_.17} parent=0 // pred_check_branch
    %5656 = sbr.rel (0) target = $region33
  $region32: #{_lambda_.17} parent=0 // pred_region
    _
  $region33: #{_lambda_.17} parent=0 // pred_fallthru
    _
  // Predicated region
  $region34: #{_lambda_.17} parent=0 // pred_check
    _
  $region35: #{_lambda_.17} parent=0 // pred_check_branch
    %5658 = sbr.rel (0) target = $region37
  $region36: #{_lambda_.17} parent=0 // pred_region
    _
  $region37: #{_lambda_.17} parent=0 // pred_fallthru
    _

</llo_original>
